<compile_context>
chip_gen: v7x
topology: tpu7x:2x2x1
jax: 0.10.0
libtpu: 0.0.40
codegen_flags: <defaults>
</compile_context>

<pallas_src>
import functools

import jax
import jax.numpy as jnp
from jax.experimental import pallas as pl
from jax.experimental.pallas import tpu as pltpu

_VMEM = pl.BlockSpec(memory_space=pltpu.MemorySpace.VMEM)


# ----------------------------------------------------------------------------
# Pallas kernels
# ----------------------------------------------------------------------------
def _conv_pool_kernel(cols_ref, w_ref, b_ref, o_ref, *, cols_on_left):
    """Fused conv-GEMM + bias + ReLU + 2x2 max-pool.

    cols_ref stacks the im2col matrices of the 4 corners of every 2x2 pooling
    window along its leading axis.  Since ReLU is monotone and the bias is
    shared within a window, pool(relu(conv + b)) == relu(max_c(acc_c) + b).

      cols_on_left=True :  cols (4, M, K) @ w (K, Cout)    -> o (M, Cout)
      cols_on_left=False:  w (Cout, K)    @ cols (4, K, M) -> o (Cout, M)  lane-dense
    """
    w = w_ref[...]
    acc = None
    for i in range(4):
        c = cols_ref[i]
        if cols_on_left:
            p = jnp.dot(c, w, preferred_element_type=jnp.float32)
        else:
            p = jnp.dot(w, c, preferred_element_type=jnp.float32)
        acc = p if acc is None else jnp.maximum(acc, p)
    o_ref[...] = jnp.maximum(acc + b_ref[...], 0.0)


def _fc_stack_kernel(*refs, num_layers):
    """All 7 Linear layers fused; weights stay VMEM-resident, activation live."""
    x_ref, o_ref = refs[0], refs[-1]
    wb = refs[1:-1]
    a = x_ref[...]                                   # (N, 1024) f32
    for i in range(num_layers):
        w = wb[2 * i][...]                           # (din, dout) f32
        b = wb[2 * i + 1][...]                       # (1, dout)   f32
        a = jnp.dot(a, w, preferred_element_type=jnp.float32) + b
        if i < num_layers - 1:
            a = jnp.maximum(a, 0.0)
    o_ref[...] = a.astype(o_ref.dtype)


# ----------------------------------------------------------------------------
# Conv (5x5, pad=2) + ReLU + 2x2 max-pool as one pallas_call
# ----------------------------------------------------------------------------
def _im2col_pool_corners(x, H, W):
    """x: (N, H, W, Cin) -> (4, N*(H/2)*(W/2), 25*Cin).

    Leading axis = the 4 corners (di, dj) of each 2x2 pool window.  K ordering
    is (kh, kw, cin), matching w_hwio.reshape(25*Cin, Cout).
    """
    N, _, _, Cin = x.shape
    Ho, Wo = H // 2, W // 2
    xp = jnp.pad(x, ((0, 0), (2, 2), (2, 2), (0, 0)))
    taps = [xp[:, kh:kh + H, kw:kw + W, :] for kh in range(5) for kw in range(5)]
    cols = jnp.concatenate(taps, axis=-1)                    # (N, H, W, 25*Cin)
    cols = cols.reshape(N, Ho, 2, Wo, 2, 25 * Cin)
    cols = cols.transpose(2, 4, 0, 1, 3, 5)                  # (di, dj, N, Ho, Wo, K)
    return cols.reshape(4, N * Ho * Wo, 25 * Cin)


def conv5x5_relu_pool(x, w_hwio, b, *, channels_major_out):
    """x: (N, H, W, Cin) NHWC -> (N, H/2, W/2, Cout) NHWC (conv+ReLU+pool)."""
    N, H, W, Cin = x.shape
    Cout = w_hwio.shape[-1]
    Ho, Wo = H // 2, W // 2
    M = N * Ho * Wo

    cols = _im2col_pool_corners(x, H, W)                     # (4, M, 25*Cin)
    wmat = w_hwio.reshape(25 * Cin, Cout)
    K = 25 * Cin
    if K < 128:                                              # conv1: pad 75 -> 128
        cols = jnp.pad(cols, ((0, 0), (0, 0), (0, 128 - K)))
        wmat = jnp.pad(wmat, ((0, 128 - K), (0, 0)))
        K = 128
    cols = cols.astype(jnp.float32)
    wmat = wmat.astype(jnp.float32)

    if channels_major_out:
        # Transposed GEMM: (Cout, K) @ (K, M) -> lane-dense (Cout, M) stores.
        kern = functools.partial(_conv_pool_kernel, cols_on_left=False)
        out = pl.pallas_call(
            kern,
            out_shape=jax.ShapeDtypeStruct((Cout, M), jnp.float32),
            in_specs=[_VMEM] * 3,
            out_specs=_VMEM,
        )(jnp.swapaxes(cols, 1, 2), wmat.T,
          b.reshape(Cout, 1).astype(jnp.float32))
        return out.reshape(Cout, N, Ho, Wo).transpose(1, 2, 3, 0)   # -> NHWC
    else:
        kern = functools.partial(_conv_pool_kernel, cols_on_left=True)
        out = pl.pallas_call(
            kern,
            out_shape=jax.ShapeDtypeStruct((M, Cout), jnp.float32),
            in_specs=[_VMEM] * 3,
            out_specs=_VMEM,
        )(cols, wmat, b.reshape(1, Cout).astype(jnp.float32))
        return out.reshape(N, Ho, Wo, Cout)


def fc_stack(x, weights, biases):
    """relu(x@W1+b1) ... @W7+b7 in a single pallas_call."""
    args = [x.astype(jnp.float32)]
    for w, b in zip(weights, biases):
        args.append(w.astype(jnp.float32))
        args.append(b.reshape(1, -1).astype(jnp.float32))
    kern = functools.partial(_fc_stack_kernel, num_layers=len(weights))
    return pl.pallas_call(
        kern,
        out_shape=jax.ShapeDtypeStruct((x.shape[0], weights[-1].shape[1]),
                                       jnp.float32),
        in_specs=[_VMEM] * len(args),
        out_specs=_VMEM,
    )(*args)


# ----------------------------------------------------------------------------
# Parameter init (deterministic, synthetic) and forward pass
# ----------------------------------------------------------------------------
def init_params(key):
    def dense(key, shape, fan_in):
        return (jax.random.normal(key, shape, jnp.float32) /
                jnp.sqrt(jnp.float32(fan_in)))

    keys = jax.random.split(key, 20)
    p = {}
    # conv weights stored as HWIO (kh, kw, cin, cout)
    p["w1"] = dense(keys[0], (5, 5, 3, 16), 5 * 5 * 3)
    p["b1"] = 0.01 * jax.random.normal(keys[1], (16,), jnp.float32)
    p["w2"] = dense(keys[2], (5, 5, 16, 32), 5 * 5 * 16)
    p["b2"] = 0.01 * jax.random.normal(keys[3], (32,), jnp.float32)
    p["w3"] = dense(keys[4], (5, 5, 32, 64), 5 * 5 * 32)
    p["b3"] = 0.01 * jax.random.normal(keys[5], (64,), jnp.float32)
    # fc weights stored as (in, out)  (PyTorch Linear is (out, in); y = x @ W.T + b)
    fc_dims = [(64 * 4 * 4, 512), (512, 400), (400, 256), (256, 128),
               (128, 64), (64, 32), (32, 10)]
    for i, (din, dout) in enumerate(fc_dims, start=1):
        p[f"fw{i}"] = dense(keys[4 + 2 * i], (din, dout), din)
        p[f"fb{i}"] = 0.01 * jax.random.normal(keys[5 + 2 * i], (dout,), jnp.float32)
    return p


# NOTE: batch1/batch2/batch3 (BatchNorm2d) are declared in Net.__init__ but
# never used in Net.forward, so they are intentionally not implemented here.
def net_forward(params, x_nchw):
    # NCHW -> NHWC for kernel compute
    x = jnp.transpose(x_nchw, (0, 2, 3, 1)).astype(jnp.float32)

    x = conv5x5_relu_pool(x, params["w1"], params["b1"], channels_major_out=True)   # (N,16,16,16)
    x = conv5x5_relu_pool(x, params["w2"], params["b2"], channels_major_out=True)   # (N, 8, 8,32)
    x = conv5x5_relu_pool(x, params["w3"], params["b3"], channels_major_out=False)  # (N, 4, 4,64)

    # flatten in NCHW order, matching torch's x.view(-1, 64*4*4)
    n = x.shape[0]
    x = jnp.transpose(x, (0, 3, 1, 2)).reshape(n, 64 * 4 * 4)

    ws = [params[f"fw{i}"] for i in range(1, 8)]
    bs = [params[f"fb{i}"] for i in range(1, 8)]
    return fc_stack(x, ws, bs)  # (N, 10)


if __name__ == "__main__":
    key = jax.random.PRNGKey(0)
    pkey, xkey = jax.random.split(key)
    params = init_params(pkey)
    # Spatial size must be 32 so that three 2x2 pools give 4x4 before fc1.
    x = jax.random.normal(xkey, (2, 3, 32, 32), jnp.float32)  # NCHW like PyTorch

    out = jax.jit(net_forward)(params, x)
    out = jax.block_until_ready(out)
    assert out.shape == (2, 10), out.shape
    assert bool(jnp.all(jnp.isfinite(out)))
    print("KERNEL_OK")
</pallas_src>

<mosaic_0001>
module attributes {stable_mosaic.version = 11 : i64} {
  func.func @_conv_pool_kernel(%arg0: memref<4x128x512xf32, #tpu.memory_space<vmem>>, %arg1: memref<16x128xf32, #tpu.memory_space<vmem>>, %arg2: memref<16x1xf32, #tpu.memory_space<vmem>>, %arg3: memref<16x512xf32, #tpu.memory_space<vmem>>) attributes {dimension_semantics = [], scalar_prefetch = 0 : i64, scratch_operands = 0 : i64, tpu.core_type = #tpu.core_type<tc>} {
    %c0 = arith.constant 0 : index
    %c0_0 = arith.constant 0 : index
    %0 = vector.load %arg1[%c0, %c0_0] : memref<16x128xf32, #tpu.memory_space<vmem>>, vector<16x128xf32>
    %c0_1 = arith.constant 0 : index
    %c0_2 = arith.constant 0 : index
    %c0_3 = arith.constant 0 : index
    %1 = vector.load %arg0[%c0_1, %c0_2, %c0_3] : memref<4x128x512xf32, #tpu.memory_space<vmem>>, vector<1x128x512xf32>
    %2 = vector.shape_cast %1 : vector<1x128x512xf32> to vector<128x512xf32>
    %cst = arith.constant dense<0.000000e+00> : vector<16x512xf32>
    %3 = tpu.matmul %0, %2, %cst {dimension_numbers = #tpu.dot_dimension_numbers<[1], [0], [0], [1], [0, 0, 1, 1], [], []>} : vector<16x128xf32>, vector<128x512xf32>, vector<16x512xf32> -> vector<16x512xf32>
    %c1 = arith.constant 1 : index
    %c0_4 = arith.constant 0 : index
    %c0_5 = arith.constant 0 : index
    %4 = vector.load %arg0[%c1, %c0_4, %c0_5] : memref<4x128x512xf32, #tpu.memory_space<vmem>>, vector<1x128x512xf32>
    %5 = vector.shape_cast %4 : vector<1x128x512xf32> to vector<128x512xf32>
    %cst_6 = arith.constant dense<0.000000e+00> : vector<16x512xf32>
    %6 = tpu.matmul %0, %5, %cst_6 {dimension_numbers = #tpu.dot_dimension_numbers<[1], [0], [0], [1], [0, 0, 1, 1], [], []>} : vector<16x128xf32>, vector<128x512xf32>, vector<16x512xf32> -> vector<16x512xf32>
    %7 = arith.maximumf %3, %6 : vector<16x512xf32>
    %c2 = arith.constant 2 : index
    %c0_7 = arith.constant 0 : index
    %c0_8 = arith.constant 0 : index
    %8 = vector.load %arg0[%c2, %c0_7, %c0_8] : memref<4x128x512xf32, #tpu.memory_space<vmem>>, vector<1x128x512xf32>
    %9 = vector.shape_cast %8 : vector<1x128x512xf32> to vector<128x512xf32>
    %cst_9 = arith.constant dense<0.000000e+00> : vector<16x512xf32>
    %10 = tpu.matmul %0, %9, %cst_9 {dimension_numbers = #tpu.dot_dimension_numbers<[1], [0], [0], [1], [0, 0, 1, 1], [], []>} : vector<16x128xf32>, vector<128x512xf32>, vector<16x512xf32> -> vector<16x512xf32>
    %11 = arith.maximumf %7, %10 : vector<16x512xf32>
    %c3 = arith.constant 3 : index
    %c0_10 = arith.constant 0 : index
    %c0_11 = arith.constant 0 : index
    %12 = vector.load %arg0[%c3, %c0_10, %c0_11] : memref<4x128x512xf32, #tpu.memory_space<vmem>>, vector<1x128x512xf32>
    %13 = vector.shape_cast %12 : vector<1x128x512xf32> to vector<128x512xf32>
    %cst_12 = arith.constant dense<0.000000e+00> : vector<16x512xf32>
    %14 = tpu.matmul %0, %13, %cst_12 {dimension_numbers = #tpu.dot_dimension_numbers<[1], [0], [0], [1], [0, 0, 1, 1], [], []>} : vector<16x128xf32>, vector<128x512xf32>, vector<16x512xf32> -> vector<16x512xf32>
    %15 = arith.maximumf %11, %14 : vector<16x512xf32>
    %c0_13 = arith.constant 0 : index
    %c0_14 = arith.constant 0 : index
    %16 = vector.load %arg2[%c0_13, %c0_14] : memref<16x1xf32, #tpu.memory_space<vmem>>, vector<16x1xf32>
    %17 = vector.broadcast %16 : vector<16x1xf32> to vector<16x512xf32>
    %18 = arith.addf %15, %17 : vector<16x512xf32>
    %cst_15 = arith.constant 0.000000e+00 : f32
    %19 = vector.broadcast %cst_15 : f32 to vector<16x512xf32>
    %20 = arith.maximumf %18, %19 : vector<16x512xf32>
    %c0_16 = arith.constant 0 : index
    %c0_17 = arith.constant 0 : index
    %21 = vector.load %arg3[%c0_16, %c0_17] : memref<16x512xf32, #tpu.memory_space<vmem>>, vector<16x512xf32>
    tpu.vector_store %arg3[%c0_16, %c0_17], %20 {strides = array<i32>} : memref<16x512xf32, #tpu.memory_space<vmem>>, vector<16x512xf32>,
    return
  }
}

module attributes {stable_mosaic.version = 11 : i64} {
  func.func @_conv_pool_kernel(%arg0: memref<4x400x128xf32, #tpu.memory_space<vmem>>, %arg1: memref<32x400xf32, #tpu.memory_space<vmem>>, %arg2: memref<32x1xf32, #tpu.memory_space<vmem>>, %arg3: memref<32x128xf32, #tpu.memory_space<vmem>>) attributes {dimension_semantics = [], scalar_prefetch = 0 : i64, scratch_operands = 0 : i64, tpu.core_type = #tpu.core_type<tc>} {
    %c0 = arith.constant 0 : index
    %c0_0 = arith.constant 0 : index
    %0 = vector.load %arg1[%c0, %c0_0] : memref<32x400xf32, #tpu.memory_space<vmem>>, vector<32x400xf32>
    %c0_1 = arith.constant 0 : index
    %c0_2 = arith.constant 0 : index
    %c0_3 = arith.constant 0 : index
    %1 = vector.load %arg0[%c0_1, %c0_2, %c0_3] : memref<4x400x128xf32, #tpu.memory_space<vmem>>, vector<1x400x128xf32>
    %2 = vector.shape_cast %1 : vector<1x400x128xf32> to vector<400x128xf32>
    %cst = arith.constant dense<0.000000e+00> : vector<32x128xf32>
    %3 = tpu.matmul %0, %2, %cst {dimension_numbers = #tpu.dot_dimension_numbers<[1], [0], [0], [1], [0, 0, 1, 1], [], []>} : vector<32x400xf32>, vector<400x128xf32>, vector<32x128xf32> -> vector<32x128xf32>
    %c1 = arith.constant 1 : index
    %c0_4 = arith.constant 0 : index
    %c0_5 = arith.constant 0 : index
    %4 = vector.load %arg0[%c1, %c0_4, %c0_5] : memref<4x400x128xf32, #tpu.memory_space<vmem>>, vector<1x400x128xf32>
    %5 = vector.shape_cast %4 : vector<1x400x128xf32> to vector<400x128xf32>
    %cst_6 = arith.constant dense<0.000000e+00> : vector<32x128xf32>
    %6 = tpu.matmul %0, %5, %cst_6 {dimension_numbers = #tpu.dot_dimension_numbers<[1], [0], [0], [1], [0, 0, 1, 1], [], []>} : vector<32x400xf32>, vector<400x128xf32>, vector<32x128xf32> -> vector<32x128xf32>
    %7 = arith.maximumf %3, %6 : vector<32x128xf32>
    %c2 = arith.constant 2 : index
    %c0_7 = arith.constant 0 : index
    %c0_8 = arith.constant 0 : index
    %8 = vector.load %arg0[%c2, %c0_7, %c0_8] : memref<4x400x128xf32, #tpu.memory_space<vmem>>, vector<1x400x128xf32>
    %9 = vector.shape_cast %8 : vector<1x400x128xf32> to vector<400x128xf32>
    %cst_9 = arith.constant dense<0.000000e+00> : vector<32x128xf32>
    %10 = tpu.matmul %0, %9, %cst_9 {dimension_numbers = #tpu.dot_dimension_numbers<[1], [0], [0], [1], [0, 0, 1, 1], [], []>} : vector<32x400xf32>, vector<400x128xf32>, vector<32x128xf32> -> vector<32x128xf32>
    %11 = arith.maximumf %7, %10 : vector<32x128xf32>
    %c3 = arith.constant 3 : index
    %c0_10 = arith.constant 0 : index
    %c0_11 = arith.constant 0 : index
    %12 = vector.load %arg0[%c3, %c0_10, %c0_11] : memref<4x400x128xf32, #tpu.memory_space<vmem>>, vector<1x400x128xf32>
    %13 = vector.shape_cast %12 : vector<1x400x128xf32> to vector<400x128xf32>
    %cst_12 = arith.constant dense<0.000000e+00> : vector<32x128xf32>
    %14 = tpu.matmul %0, %13, %cst_12 {dimension_numbers = #tpu.dot_dimension_numbers<[1], [0], [0], [1], [0, 0, 1, 1], [], []>} : vector<32x400xf32>, vector<400x128xf32>, vector<32x128xf32> -> vector<32x128xf32>
    %15 = arith.maximumf %11, %14 : vector<32x128xf32>
    %c0_13 = arith.constant 0 : index
    %c0_14 = arith.constant 0 : index
    %16 = vector.load %arg2[%c0_13, %c0_14] : memref<32x1xf32, #tpu.memory_space<vmem>>, vector<32x1xf32>
    %17 = vector.broadcast %16 : vector<32x1xf32> to vector<32x128xf32>
    %18 = arith.addf %15, %17 : vector<32x128xf32>
    %cst_15 = arith.constant 0.000000e+00 : f32
    %19 = vector.broadcast %cst_15 : f32 to vector<32x128xf32>
    %20 = arith.maximumf %18, %19 : vector<32x128xf32>
    %c0_16 = arith.constant 0 : index
    %c0_17 = arith.constant 0 : index
    %21 = vector.load %arg3[%c0_16, %c0_17] : memref<32x128xf32, #tpu.memory_space<vmem>>, vector<32x128xf32>
    tpu.vector_store %arg3[%c0_16, %c0_17], %20 {strides = array<i32>} : memref<32x128xf32, #tpu.memory_space<vmem>>, vector<32x128xf32>,
    return
  }
}

module attributes {stable_mosaic.version = 11 : i64} {
  func.func @_conv_pool_kernel(%arg0: memref<4x32x800xf32, #tpu.memory_space<vmem>>, %arg1: memref<800x64xf32, #tpu.memory_space<vmem>>, %arg2: memref<1x64xf32, #tpu.memory_space<vmem>>, %arg3: memref<32x64xf32, #tpu.memory_space<vmem>>) attributes {dimension_semantics = [], scalar_prefetch = 0 : i64, scratch_operands = 0 : i64, tpu.core_type = #tpu.core_type<tc>} {
    %c0 = arith.constant 0 : index
    %c0_0 = arith.constant 0 : index
    %0 = vector.load %arg1[%c0, %c0_0] : memref<800x64xf32, #tpu.memory_space<vmem>>, vector<800x64xf32>
    %c0_1 = arith.constant 0 : index
    %c0_2 = arith.constant 0 : index
    %c0_3 = arith.constant 0 : index
    %1 = vector.load %arg0[%c0_1, %c0_2, %c0_3] : memref<4x32x800xf32, #tpu.memory_space<vmem>>, vector<1x32x800xf32>
    %2 = vector.shape_cast %1 : vector<1x32x800xf32> to vector<32x800xf32>
    %cst = arith.constant dense<0.000000e+00> : vector<32x64xf32>
    %3 = tpu.matmul %2, %0, %cst {dimension_numbers = #tpu.dot_dimension_numbers<[1], [0], [0], [1], [0, 0, 1, 1], [], []>} : vector<32x800xf32>, vector<800x64xf32>, vector<32x64xf32> -> vector<32x64xf32>
    %c1 = arith.constant 1 : index
    %c0_4 = arith.constant 0 : index
    %c0_5 = arith.constant 0 : index
    %4 = vector.load %arg0[%c1, %c0_4, %c0_5] : memref<4x32x800xf32, #tpu.memory_space<vmem>>, vector<1x32x800xf32>
    %5 = vector.shape_cast %4 : vector<1x32x800xf32> to vector<32x800xf32>
    %cst_6 = arith.constant dense<0.000000e+00> : vector<32x64xf32>
    %6 = tpu.matmul %5, %0, %cst_6 {dimension_numbers = #tpu.dot_dimension_numbers<[1], [0], [0], [1], [0, 0, 1, 1], [], []>} : vector<32x800xf32>, vector<800x64xf32>, vector<32x64xf32> -> vector<32x64xf32>
    %7 = arith.maximumf %3, %6 : vector<32x64xf32>
    %c2 = arith.constant 2 : index
    %c0_7 = arith.constant 0 : index
    %c0_8 = arith.constant 0 : index
    %8 = vector.load %arg0[%c2, %c0_7, %c0_8] : memref<4x32x800xf32, #tpu.memory_space<vmem>>, vector<1x32x800xf32>
    %9 = vector.shape_cast %8 : vector<1x32x800xf32> to vector<32x800xf32>
    %cst_9 = arith.constant dense<0.000000e+00> : vector<32x64xf32>
    %10 = tpu.matmul %9, %0, %cst_9 {dimension_numbers = #tpu.dot_dimension_numbers<[1], [0], [0], [1], [0, 0, 1, 1], [], []>} : vector<32x800xf32>, vector<800x64xf32>, vector<32x64xf32> -> vector<32x64xf32>
    %11 = arith.maximumf %7, %10 : vector<32x64xf32>
    %c3 = arith.constant 3 : index
    %c0_10 = arith.constant 0 : index
    %c0_11 = arith.constant 0 : index
    %12 = vector.load %arg0[%c3, %c0_10, %c0_11] : memref<4x32x800xf32, #tpu.memory_space<vmem>>, vector<1x32x800xf32>
    %13 = vector.shape_cast %12 : vector<1x32x800xf32> to vector<32x800xf32>
    %cst_12 = arith.constant dense<0.000000e+00> : vector<32x64xf32>
    %14 = tpu.matmul %13, %0, %cst_12 {dimension_numbers = #tpu.dot_dimension_numbers<[1], [0], [0], [1], [0, 0, 1, 1], [], []>} : vector<32x800xf32>, vector<800x64xf32>, vector<32x64xf32> -> vector<32x64xf32>
    %15 = arith.maximumf %11, %14 : vector<32x64xf32>
    %c0_13 = arith.constant 0 : index
    %c0_14 = arith.constant 0 : index
    %16 = vector.load %arg2[%c0_13, %c0_14] : memref<1x64xf32, #tpu.memory_space<vmem>>, vector<1x64xf32>
    %17 = vector.broadcast %16 : vector<1x64xf32> to vector<32x64xf32>
    %18 = arith.addf %15, %17 : vector<32x64xf32>
    %cst_15 = arith.constant 0.000000e+00 : f32
    %19 = vector.broadcast %cst_15 : f32 to vector<32x64xf32>
    %20 = arith.maximumf %18, %19 : vector<32x64xf32>
    %c0_16 = arith.constant 0 : index
    %c0_17 = arith.constant 0 : index
    %21 = vector.load %arg3[%c0_16, %c0_17] : memref<32x64xf32, #tpu.memory_space<vmem>>, vector<32x64xf32>
    tpu.vector_store %arg3[%c0_16, %c0_17], %20 {strides = array<i32>} : memref<32x64xf32, #tpu.memory_space<vmem>>, vector<32x64xf32>,
    return
  }
}

module attributes {stable_mosaic.version = 11 : i64} {
  func.func @_fc_stack_kernel(%arg0: memref<2x1024xf32, #tpu.memory_space<vmem>>, %arg1: memref<1024x512xf32, #tpu.memory_space<vmem>>, %arg2: memref<1x512xf32, #tpu.memory_space<vmem>>, %arg3: memref<512x400xf32, #tpu.memory_space<vmem>>, %arg4: memref<1x400xf32, #tpu.memory_space<vmem>>, %arg5: memref<400x256xf32, #tpu.memory_space<vmem>>, %arg6: memref<1x256xf32, #tpu.memory_space<vmem>>, %arg7: memref<256x128xf32, #tpu.memory_space<vmem>>, %arg8: memref<1x128xf32, #tpu.memory_space<vmem>>, %arg9: memref<128x64xf32, #tpu.memory_space<vmem>>, %arg10: memref<1x64xf32, #tpu.memory_space<vmem>>, %arg11: memref<64x32xf32, #tpu.memory_space<vmem>>, %arg12: memref<1x32xf32, #tpu.memory_space<vmem>>, %arg13: memref<32x10xf32, #tpu.memory_space<vmem>>, %arg14: memref<1x10xf32, #tpu.memory_space<vmem>>, %arg15: memref<2x10xf32, #tpu.memory_space<vmem>>) attributes {dimension_semantics = [], scalar_prefetch = 0 : i64, scratch_operands = 0 : i64, tpu.core_type = #tpu.core_type<tc>} {
    %c0 = arith.constant 0 : index
    %c0_0 = arith.constant 0 : index
    %0 = vector.load %arg0[%c0, %c0_0] : memref<2x1024xf32, #tpu.memory_space<vmem>>, vector<2x1024xf32>
    %c0_1 = arith.constant 0 : index
    %c0_2 = arith.constant 0 : index
    %1 = vector.load %arg1[%c0_1, %c0_2] : memref<1024x512xf32, #tpu.memory_space<vmem>>, vector<1024x512xf32>
    %c0_3 = arith.constant 0 : index
    %c0_4 = arith.constant 0 : index
    %2 = vector.load %arg2[%c0_3, %c0_4] : memref<1x512xf32, #tpu.memory_space<vmem>>, vector<1x512xf32>
    %cst = arith.constant dense<0.000000e+00> : vector<2x512xf32>
    %3 = tpu.matmul %0, %1, %cst {dimension_numbers = #tpu.dot_dimension_numbers<[1], [0], [0], [1], [0, 0, 1, 1], [], []>} : vector<2x1024xf32>, vector<1024x512xf32>, vector<2x512xf32> -> vector<2x512xf32>
    %4 = vector.broadcast %2 : vector<1x512xf32> to vector<2x512xf32>
    %5 = arith.addf %3, %4 : vector<2x512xf32>
    %cst_5 = arith.constant 0.000000e+00 : f32
    %6 = vector.broadcast %cst_5 : f32 to vector<2x512xf32>
    %7 = arith.maximumf %5, %6 : vector<2x512xf32>
    %c0_6 = arith.constant 0 : index
    %c0_7 = arith.constant 0 : index
    %8 = vector.load %arg3[%c0_6, %c0_7] : memref<512x400xf32, #tpu.memory_space<vmem>>, vector<512x400xf32>
    %c0_8 = arith.constant 0 : index
    %c0_9 = arith.constant 0 : index
    %9 = vector.load %arg4[%c0_8, %c0_9] : memref<1x400xf32, #tpu.memory_space<vmem>>, vector<1x400xf32>
    %cst_10 = arith.constant dense<0.000000e+00> : vector<2x400xf32>
    %10 = tpu.matmul %7, %8, %cst_10 {dimension_numbers = #tpu.dot_dimension_numbers<[1], [0], [0], [1], [0, 0, 1, 1], [], []>} : vector<2x512xf32>, vector<512x400xf32>, vector<2x400xf32> -> vector<2x400xf32>
    %11 = vector.broadcast %9 : vector<1x400xf32> to vector<2x400xf32>
    %12 = arith.addf %10, %11 : vector<2x400xf32>
    %cst_11 = arith.constant 0.000000e+00 : f32
    %13 = vector.broadcast %cst_11 : f32 to vector<2x400xf32>
    %14 = arith.maximumf %12, %13 : vector<2x400xf32>
    %c0_12 = arith.constant 0 : index
    %c0_13 = arith.constant 0 : index
    %15 = vector.load %arg5[%c0_12, %c0_13] : memref<400x256xf32, #tpu.memory_space<vmem>>, vector<400x256xf32>
    %c0_14 = arith.constant 0 : index
    %c0_15 = arith.constant 0 : index
    %16 = vector.load %arg6[%c0_14, %c0_15] : memref<1x256xf32, #tpu.memory_space<vmem>>, vector<1x256xf32>
    %cst_16 = arith.constant dense<0.000000e+00> : vector<2x256xf32>
    %17 = tpu.matmul %14, %15, %cst_16 {dimension_numbers = #tpu.dot_dimension_numbers<[1], [0], [0], [1], [0, 0, 1, 1], [], []>} : vector<2x400xf32>, vector<400x256xf32>, vector<2x256xf32> -> vector<2x256xf32>
    %18 = vector.broadcast %16 : vector<1x256xf32> to vector<2x256xf32>
    %19 = arith.addf %17, %18 : vector<2x256xf32>
    %cst_17 = arith.constant 0.000000e+00 : f32
    %20 = vector.broadcast %cst_17 : f32 to vector<2x256xf32>
    %21 = arith.maximumf %19, %20 : vector<2x256xf32>
    %c0_18 = arith.constant 0 : index
    %c0_19 = arith.constant 0 : index
    %22 = vector.load %arg7[%c0_18, %c0_19] : memref<256x128xf32, #tpu.memory_space<vmem>>, vector<256x128xf32>
    %c0_20 = arith.constant 0 : index
    %c0_21 = arith.constant 0 : index
    %23 = vector.load %arg8[%c0_20, %c0_21] : memref<1x128xf32, #tpu.memory_space<vmem>>, vector<1x128xf32>
    %cst_22 = arith.constant dense<0.000000e+00> : vector<2x128xf32>
    %24 = tpu.matmul %21, %22, %cst_22 {dimension_numbers = #tpu.dot_dimension_numbers<[1], [0], [0], [1], [0, 0, 1, 1], [], []>} : vector<2x256xf32>, vector<256x128xf32>, vector<2x128xf32> -> vector<2x128xf32>
    %25 = vector.broadcast %23 : vector<1x128xf32> to vector<2x128xf32>
    %26 = arith.addf %24, %25 : vector<2x128xf32>
    %cst_23 = arith.constant 0.000000e+00 : f32
    %27 = vector.broadcast %cst_23 : f32 to vector<2x128xf32>
    %28 = arith.maximumf %26, %27 : vector<2x128xf32>
    %c0_24 = arith.constant 0 : index
    %c0_25 = arith.constant 0 : index
    %29 = vector.load %arg9[%c0_24, %c0_25] : memref<128x64xf32, #tpu.memory_space<vmem>>, vector<128x64xf32>
    %c0_26 = arith.constant 0 : index
    %c0_27 = arith.constant 0 : index
    %30 = vector.load %arg10[%c0_26, %c0_27] : memref<1x64xf32, #tpu.memory_space<vmem>>, vector<1x64xf32>
    %cst_28 = arith.constant dense<0.000000e+00> : vector<2x64xf32>
    %31 = tpu.matmul %28, %29, %cst_28 {dimension_numbers = #tpu.dot_dimension_numbers<[1], [0], [0], [1], [0, 0, 1, 1], [], []>} : vector<2x128xf32>, vector<128x64xf32>, vector<2x64xf32> -> vector<2x64xf32>
    %32 = vector.broadcast %30 : vector<1x64xf32> to vector<2x64xf32>
    %33 = arith.addf %31, %32 : vector<2x64xf32>
    %cst_29 = arith.constant 0.000000e+00 : f32
    %34 = vector.broadcast %cst_29 : f32 to vector<2x64xf32>
    %35 = arith.maximumf %33, %34 : vector<2x64xf32>
    %c0_30 = arith.constant 0 : index
    %c0_31 = arith.constant 0 : index
    %36 = vector.load %arg11[%c0_30, %c0_31] : memref<64x32xf32, #tpu.memory_space<vmem>>, vector<64x32xf32>
    %c0_32 = arith.constant 0 : index
    %c0_33 = arith.constant 0 : index
    %37 = vector.load %arg12[%c0_32, %c0_33] : memref<1x32xf32, #tpu.memory_space<vmem>>, vector<1x32xf32>
    %cst_34 = arith.constant dense<0.000000e+00> : vector<2x32xf32>
    %38 = tpu.matmul %35, %36, %cst_34 {dimension_numbers = #tpu.dot_dimension_numbers<[1], [0], [0], [1], [0, 0, 1, 1], [], []>} : vector<2x64xf32>, vector<64x32xf32>, vector<2x32xf32> -> vector<2x32xf32>
    %39 = vector.broadcast %37 : vector<1x32xf32> to vector<2x32xf32>
    %40 = arith.addf %38, %39 : vector<2x32xf32>
    %cst_35 = arith.constant 0.000000e+00 : f32
    %41 = vector.broadcast %cst_35 : f32 to vector<2x32xf32>
    %42 = arith.maximumf %40, %41 : vector<2x32xf32>
    %c0_36 = arith.constant 0 : index
    %c0_37 = arith.constant 0 : index
    %43 = vector.load %arg13[%c0_36, %c0_37] : memref<32x10xf32, #tpu.memory_space<vmem>>, vector<32x10xf32>
    %c0_38 = arith.constant 0 : index
    %c0_39 = arith.constant 0 : index
    %44 = vector.load %arg14[%c0_38, %c0_39] : memref<1x10xf32, #tpu.memory_space<vmem>>, vector<1x10xf32>
    %cst_40 = arith.constant dense<0.000000e+00> : vector<2x10xf32>
    %45 = tpu.matmul %42, %43, %cst_40 {dimension_numbers = #tpu.dot_dimension_numbers<[1], [0], [0], [1], [0, 0, 1, 1], [], []>} : vector<2x32xf32>, vector<32x10xf32>, vector<2x10xf32> -> vector<2x10xf32>
    %46 = vector.broadcast %44 : vector<1x10xf32> to vector<2x10xf32>
    %47 = arith.addf %45, %46 : vector<2x10xf32>
    %c0_41 = arith.constant 0 : index
    %c0_42 = arith.constant 0 : index
    %48 = vector.load %arg15[%c0_41, %c0_42] : memref<2x10xf32, #tpu.memory_space<vmem>>, vector<2x10xf32>
    tpu.vector_store %arg15[%c0_41, %c0_42], %47 {strides = array<i32>} : memref<2x10xf32, #tpu.memory_space<vmem>>, vector<2x10xf32>,
    return
  }
}

</mosaic_0001>

<llo_original>
// kernel: net_forward.4
$region0: #{net_forward.4}
  #allocation0 [shape = 'u32[]', space=smem, size = 0x4, offset = 0x4, fixed_abs, tag = 'smem constant byte address 0x4 - core index']
  #allocation1 [shape = 'u32[144,128]{1,0:T(1,128)}', space=vmem, size = 0x12000, scoped, tag = 'internal scratch']
  %s0 = inlined_call_operand.vmem [shape: f32[4,128,512], index: 0, kind: input, shape index: {}]
  %s1 = inlined_call_operand.vmem [shape: f32[16,128], index: 1, kind: input, shape index: {}]
  %s2 = inlined_call_operand.vmem [shape: f32[16,1], index: 2, kind: input, shape index: {}]
  %s3 = inlined_call_operand.vmem [shape: f32[16,512], index: 3, kind: output, shape index: {}]
  %s4 = sld [smem:[#allocation0]]
  $region22: #{net_forward.4} parent=0
    _
  %s6 = ssub.s32 1, %s4
  %s7 = scalar_select 0, %s6, %s4
  // Predicated region
  $region2: #{net_forward.4} parent=0 // pred_check
    _
  $region3: #{net_forward.4} parent=0 // pred_check_branch
    %9 = sbr.rel (0) target = $region5
  $region4: #{net_forward.4} parent=0 // pred_region
    _
  $region5: #{net_forward.4} parent=0 // pred_fallthru
    _
  // Predicated region
  $region6: #{net_forward.4} parent=0 // pred_check
    _
  $region7: #{net_forward.4} parent=0 // pred_check_branch
    %11 = sbr.rel (0) target = $region9
  $region8: #{net_forward.4} parent=0 // pred_region
    _
  $region9: #{net_forward.4} parent=0 // pred_fallthru
    _
  // Predicated region
  $region10: #{net_forward.4} parent=0 // pred_check
    _
  $region11: #{net_forward.4} parent=0 // pred_check_branch
    %13 = sbr.rel (0) target = $region13
  $region12: #{net_forward.4} parent=0 // pred_region
    _
  $region13: #{net_forward.4} parent=0 // pred_fallthru
    _
  %v14 = vld [vmem:[%s1] sm:$0xff]
  %v15 = vld [vmem:[%s1 + $0x8] sm:$0xff]
  %v16 = vld [vmem:[%s0] sm:$0xff]
  %v17 = vld [vmem:[%s0 + $0x8] sm:$0xff]
  %v18 = vld [vmem:[%s0 + $0x10] sm:$0xff]
  %v19 = vld [vmem:[%s0 + $0x18] sm:$0xff]
  %v20 = vld [vmem:[%s0 + $0x20] sm:$0xff]
  %v21 = vld [vmem:[%s0 + $0x28] sm:$0xff]
  %v22 = vld [vmem:[%s0 + $0x30] sm:$0xff]
  %v23 = vld [vmem:[%s0 + $0x38] sm:$0xff]
  %v24 = vld [vmem:[%s0 + $0x40] sm:$0xff]
  %v25 = vld [vmem:[%s0 + $0x48] sm:$0xff]
  %v26 = vld [vmem:[%s0 + $0x50] sm:$0xff]
  %v27 = vld [vmem:[%s0 + $0x58] sm:$0xff]
  %v28 = vld [vmem:[%s0 + $0x60] sm:$0xff]
  %v29 = vld [vmem:[%s0 + $0x68] sm:$0xff]
  %v30 = vld [vmem:[%s0 + $0x70] sm:$0xff]
  %v31 = vld [vmem:[%s0 + $0x78] sm:$0xff]
  %v32 = vld [vmem:[%s0 + $0x80] sm:$0xff]
  %v33 = vld [vmem:[%s0 + $0x88] sm:$0xff]
  %v34 = vld [vmem:[%s0 + $0x90] sm:$0xff]
  %v35 = vld [vmem:[%s0 + $0x98] sm:$0xff]
  %v36 = vld [vmem:[%s0 + $0xa0] sm:$0xff]
  %v37 = vld [vmem:[%s0 + $0xa8] sm:$0xff]
  %v38 = vld [vmem:[%s0 + $0xb0] sm:$0xff]
  %v39 = vld [vmem:[%s0 + $0xb8] sm:$0xff]
  %v40 = vld [vmem:[%s0 + $0xc0] sm:$0xff]
  %v41 = vld [vmem:[%s0 + $0xc8] sm:$0xff]
  %v42 = vld [vmem:[%s0 + $0xd0] sm:$0xff]
  %v43 = vld [vmem:[%s0 + $0xd8] sm:$0xff]
  %v44 = vld [vmem:[%s0 + $0xe0] sm:$0xff]
  %v45 = vld [vmem:[%s0 + $0xe8] sm:$0xff]
  %v46 = vld [vmem:[%s0 + $0xf0] sm:$0xff]
  %v47 = vld [vmem:[%s0 + $0xf8] sm:$0xff]
  %v48 = vld [vmem:[%s0 + $0x100] sm:$0xff]
  %v49 = vld [vmem:[%s0 + $0x108] sm:$0xff]
  %v50 = vld [vmem:[%s0 + $0x110] sm:$0xff]
  %v51 = vld [vmem:[%s0 + $0x118] sm:$0xff]
  %v52 = vld [vmem:[%s0 + $0x120] sm:$0xff]
  %v53 = vld [vmem:[%s0 + $0x128] sm:$0xff]
  %v54 = vld [vmem:[%s0 + $0x130] sm:$0xff]
  %v55 = vld [vmem:[%s0 + $0x138] sm:$0xff]
  %v56 = vld [vmem:[%s0 + $0x140] sm:$0xff]
  %v57 = vld [vmem:[%s0 + $0x148] sm:$0xff]
  %v58 = vld [vmem:[%s0 + $0x150] sm:$0xff]
  %v59 = vld [vmem:[%s0 + $0x158] sm:$0xff]
  %v60 = vld [vmem:[%s0 + $0x160] sm:$0xff]
  %v61 = vld [vmem:[%s0 + $0x168] sm:$0xff]
  %v62 = vld [vmem:[%s0 + $0x170] sm:$0xff]
  %v63 = vld [vmem:[%s0 + $0x178] sm:$0xff]
  %v64 = vld [vmem:[%s0 + $0x180] sm:$0xff]
  %v65 = vld [vmem:[%s0 + $0x188] sm:$0xff]
  %v66 = vld [vmem:[%s0 + $0x190] sm:$0xff]
  %v67 = vld [vmem:[%s0 + $0x198] sm:$0xff]
  %v68 = vld [vmem:[%s0 + $0x1a0] sm:$0xff]
  %v69 = vld [vmem:[%s0 + $0x1a8] sm:$0xff]
  %v70 = vld [vmem:[%s0 + $0x1b0] sm:$0xff]
  %v71 = vld [vmem:[%s0 + $0x1b8] sm:$0xff]
  %v72 = vld [vmem:[%s0 + $0x1c0] sm:$0xff]
  %v73 = vld [vmem:[%s0 + $0x1c8] sm:$0xff]
  %v74 = vld [vmem:[%s0 + $0x1d0] sm:$0xff]
  %v75 = vld [vmem:[%s0 + $0x1d8] sm:$0xff]
  %v76 = vld [vmem:[%s0 + $0x1e0] sm:$0xff]
  %v77 = vld [vmem:[%s0 + $0x1e8] sm:$0xff]
  %v78 = vld [vmem:[%s0 + $0x1f0] sm:$0xff]
  %v79 = vld [vmem:[%s0 + $0x1f8] sm:$0xff]
  %80 = vmatprep.subr.mxu0 %v17
  %81 = vmatpush1.msra.mxu0 %v16
  %82 = vmatprep.subr.mxu0 %v21
  %83 = vmatpush1.msra.mxu0 %v20
  %84 = vmatprep.subr.mxu0 %v25
  %85 = vmatpush1.msra.mxu0 %v24
  %86 = vmatprep.subr.mxu0 %v29
  %87 = vmatpush1.msra.mxu0 %v28
  %88 = vmatprep.subr.mxu0 %v33
  %89 = vmatpush1.msra.mxu0 %v32
  %90 = vmatprep.subr.mxu0 %v37
  %91 = vmatpush1.msra.mxu0 %v36
  %92 = vmatprep.subr.mxu0 %v41
  %93 = vmatpush1.msra.mxu0 %v40
  %94 = vmatprep.subr.mxu0 %v45
  %95 = vmatpush1.msra.mxu0 %v44
  %96 = vmatprep.subr.mxu0 %v49
  %97 = vmatpush1.msra.mxu0 %v48
  %98 = vmatprep.subr.mxu0 %v53
  %99 = vmatpush1.msra.mxu0 %v52
  %100 = vmatprep.subr.mxu0 %v57
  %101 = vmatpush1.msra.mxu0 %v56
  %102 = vmatprep.subr.mxu0 %v61
  %103 = vmatpush1.msra.mxu0 %v60
  %104 = vmatprep.subr.mxu0 %v65
  %105 = vmatpush1.msra.mxu0 %v64
  %106 = vmatprep.subr.mxu0 %v69
  %107 = vmatpush1.msra.mxu0 %v68
  %108 = vmatprep.subr.mxu0 %v73
  %109 = vmatpush1.msra.mxu0 %v72
  %110 = vmatprep.subr.mxu0 %v77
  %111 = vmatpush1.msra.mxu0 %v76
  %112 = vmatprep.subr.mxu0 0.0
  %113 = vmatpush1.msra.mxu0 0.0
  %114 = vmatprep.subr.mxu0 0.0
  %115 = vmatpush1.msra.mxu0 0.0
  %116 = vmatprep.subr.mxu0 0.0
  %117 = vmatpush1.msra.mxu0 0.0
  %118 = vmatprep.subr.mxu0 0.0
  %119 = vmatpush1.msra.mxu0 0.0
  %120 = vmatprep.subr.mxu0 0.0
  %121 = vmatpush1.msra.mxu0 0.0
  %122 = vmatprep.subr.mxu0 0.0
  %123 = vmatpush1.msra.mxu0 0.0
  %124 = vmatprep.subr.mxu0 0.0
  %125 = vmatpush1.msra.mxu0 0.0
  %126 = vmatprep.subr.mxu0 0.0
  %127 = vmatpush1.msra.mxu0 0.0
  %128 = vmatprep.subr.mxu0 0.0
  %129 = vmatpush1.msra.mxu0 0.0
  %130 = vmatprep.subr.mxu0 0.0
  %131 = vmatpush1.msra.mxu0 0.0
  %132 = vmatprep.subr.mxu0 0.0
  %133 = vmatpush1.msra.mxu0 0.0
  %134 = vmatprep.subr.mxu0 0.0
  %135 = vmatpush1.msra.mxu0 0.0
  %136 = vmatprep.subr.mxu0 0.0
  %137 = vmatpush1.msra.mxu0 0.0
  %138 = vmatprep.subr.mxu0 0.0
  %139 = vmatpush1.msra.mxu0 0.0
  %140 = vmatprep.subr.mxu0 0.0
  %141 = vmatpush1.msra.mxu0 0.0
  %142 = vmatprep.subr.mxu0 0.0
  %143 = vmatpush1.msra.mxu0 0.0
  %144 = vmatprep.mubr.f32.mxu0 0.0
  %145 = vmatmul.mubr.f32.gmra.mrb[0].mxu0 %v14
  %v146 = vpop.f32.mrb[0].mxu0
  %v147 = vadd.f32 0.0, %v146
  %v148 = vpop.f32.mrb[0].mxu0
  %v149 = vadd.f32 0.0, %v148
  %150 = vmatprep.mubr.f32.mxu0 0.0
  %151 = vmatmul.mubr.f32.gmra.mrb[0].mxu0 %v15
  %v152 = vpop.f32.mrb[0].mxu0
  %v153 = vadd.f32 0.0, %v152
  %v154 = vpop.f32.mrb[0].mxu0
  %v155 = vadd.f32 0.0, %v154
  %156 = vdwg.mxu0
  %157 = vmatprep.subr.mxu0 %v19
  %158 = vmatpush1.msra.mxu0 %v18
  %159 = vmatprep.subr.mxu0 %v23
  %160 = vmatpush1.msra.mxu0 %v22
  %161 = vmatprep.subr.mxu0 %v27
  %162 = vmatpush1.msra.mxu0 %v26
  %163 = vmatprep.subr.mxu0 %v31
  %164 = vmatpush1.msra.mxu0 %v30
  %165 = vmatprep.subr.mxu0 %v35
  %166 = vmatpush1.msra.mxu0 %v34
  %167 = vmatprep.subr.mxu0 %v39
  %168 = vmatpush1.msra.mxu0 %v38
  %169 = vmatprep.subr.mxu0 %v43
  %170 = vmatpush1.msra.mxu0 %v42
  %171 = vmatprep.subr.mxu0 %v47
  %172 = vmatpush1.msra.mxu0 %v46
  %173 = vmatprep.subr.mxu0 %v51
  %174 = vmatpush1.msra.mxu0 %v50
  %175 = vmatprep.subr.mxu0 %v55
  %176 = vmatpush1.msra.mxu0 %v54
  %177 = vmatprep.subr.mxu0 %v59
  %178 = vmatpush1.msra.mxu0 %v58
  %179 = vmatprep.subr.mxu0 %v63
  %180 = vmatpush1.msra.mxu0 %v62
  %181 = vmatprep.subr.mxu0 %v67
  %182 = vmatpush1.msra.mxu0 %v66
  %183 = vmatprep.subr.mxu0 %v71
  %184 = vmatpush1.msra.mxu0 %v70
  %185 = vmatprep.subr.mxu0 %v75
  %186 = vmatpush1.msra.mxu0 %v74
  %187 = vmatprep.subr.mxu0 %v79
  %188 = vmatpush1.msra.mxu0 %v78
  %189 = vmatprep.subr.mxu0 0.0
  %190 = vmatpush1.msra.mxu0 0.0
  %191 = vmatprep.subr.mxu0 0.0
  %192 = vmatpush1.msra.mxu0 0.0
  %193 = vmatprep.subr.mxu0 0.0
  %194 = vmatpush1.msra.mxu0 0.0
  %195 = vmatprep.subr.mxu0 0.0
  %196 = vmatpush1.msra.mxu0 0.0
  %197 = vmatprep.subr.mxu0 0.0
  %198 = vmatpush1.msra.mxu0 0.0
  %199 = vmatprep.subr.mxu0 0.0
  %200 = vmatpush1.msra.mxu0 0.0
  %201 = vmatprep.subr.mxu0 0.0
  %202 = vmatpush1.msra.mxu0 0.0
  %203 = vmatprep.subr.mxu0 0.0
  %204 = vmatpush1.msra.mxu0 0.0
  %205 = vmatprep.subr.mxu0 0.0
  %206 = vmatpush1.msra.mxu0 0.0
  %207 = vmatprep.subr.mxu0 0.0
  %208 = vmatpush1.msra.mxu0 0.0
  %209 = vmatprep.subr.mxu0 0.0
  %210 = vmatpush1.msra.mxu0 0.0
  %211 = vmatprep.subr.mxu0 0.0
  %212 = vmatpush1.msra.mxu0 0.0
  %213 = vmatprep.subr.mxu0 0.0
  %214 = vmatpush1.msra.mxu0 0.0
  %215 = vmatprep.subr.mxu0 0.0
  %216 = vmatpush1.msra.mxu0 0.0
  %217 = vmatprep.subr.mxu0 0.0
  %218 = vmatpush1.msra.mxu0 0.0
  %219 = vmatprep.subr.mxu0 0.0
  %220 = vmatpush1.msra.mxu0 0.0
  %221 = vmatprep.mubr.f32.mxu0 0.0
  %222 = vmatmul.mubr.f32.gmra.mrb[0].mxu0 %v14
  %v223 = vpop.f32.mrb[0].mxu0
  %v224 = vadd.f32 0.0, %v223
  %v225 = vpop.f32.mrb[0].mxu0
  %v226 = vadd.f32 0.0, %v225
  %227 = vmatprep.mubr.f32.mxu0 0.0
  %228 = vmatmul.mubr.f32.gmra.mrb[0].mxu0 %v15
  %v229 = vpop.f32.mrb[0].mxu0
  %v230 = vadd.f32 0.0, %v229
  %v231 = vpop.f32.mrb[0].mxu0
  %v232 = vadd.f32 0.0, %v231
  %233 = vdwg.mxu0
  %s234 = scalar_lea.vmem %s0, 512
  %v235 = vld [vmem:[%s234] sm:$0xff]
  %v236 = vld [vmem:[%s234 + $0x8] sm:$0xff]
  %v237 = vld [vmem:[%s234 + $0x10] sm:$0xff]
  %v238 = vld [vmem:[%s234 + $0x18] sm:$0xff]
  %v239 = vld [vmem:[%s234 + $0x20] sm:$0xff]
  %v240 = vld [vmem:[%s234 + $0x28] sm:$0xff]
  %v241 = vld [vmem:[%s234 + $0x30] sm:$0xff]
  %v242 = vld [vmem:[%s234 + $0x38] sm:$0xff]
  %v243 = vld [vmem:[%s234 + $0x40] sm:$0xff]
  %v244 = vld [vmem:[%s234 + $0x48] sm:$0xff]
  %v245 = vld [vmem:[%s234 + $0x50] sm:$0xff]
  %v246 = vld [vmem:[%s234 + $0x58] sm:$0xff]
  %v247 = vld [vmem:[%s234 + $0x60] sm:$0xff]
  %v248 = vld [vmem:[%s234 + $0x68] sm:$0xff]
  %v249 = vld [vmem:[%s234 + $0x70] sm:$0xff]
  %v250 = vld [vmem:[%s234 + $0x78] sm:$0xff]
  %v251 = vld [vmem:[%s234 + $0x80] sm:$0xff]
  %v252 = vld [vmem:[%s234 + $0x88] sm:$0xff]
  %v253 = vld [vmem:[%s234 + $0x90] sm:$0xff]
  %v254 = vld [vmem:[%s234 + $0x98] sm:$0xff]
  %v255 = vld [vmem:[%s234 + $0xa0] sm:$0xff]
  %v256 = vld [vmem:[%s234 + $0xa8] sm:$0xff]
  %v257 = vld [vmem:[%s234 + $0xb0] sm:$0xff]
  %v258 = vld [vmem:[%s234 + $0xb8] sm:$0xff]
  %v259 = vld [vmem:[%s234 + $0xc0] sm:$0xff]
  %v260 = vld [vmem:[%s234 + $0xc8] sm:$0xff]
  %v261 = vld [vmem:[%s234 + $0xd0] sm:$0xff]
  %v262 = vld [vmem:[%s234 + $0xd8] sm:$0xff]
  %v263 = vld [vmem:[%s234 + $0xe0] sm:$0xff]
  %v264 = vld [vmem:[%s234 + $0xe8] sm:$0xff]
  %v265 = vld [vmem:[%s234 + $0xf0] sm:$0xff]
  %v266 = vld [vmem:[%s234 + $0xf8] sm:$0xff]
  %v267 = vld [vmem:[%s234 + $0x100] sm:$0xff]
  %v268 = vld [vmem:[%s234 + $0x108] sm:$0xff]
  %v269 = vld [vmem:[%s234 + $0x110] sm:$0xff]
  %v270 = vld [vmem:[%s234 + $0x118] sm:$0xff]
  %v271 = vld [vmem:[%s234 + $0x120] sm:$0xff]
  %v272 = vld [vmem:[%s234 + $0x128] sm:$0xff]
  %v273 = vld [vmem:[%s234 + $0x130] sm:$0xff]
  %v274 = vld [vmem:[%s234 + $0x138] sm:$0xff]
  %v275 = vld [vmem:[%s234 + $0x140] sm:$0xff]
  %v276 = vld [vmem:[%s234 + $0x148] sm:$0xff]
  %v277 = vld [vmem:[%s234 + $0x150] sm:$0xff]
  %v278 = vld [vmem:[%s234 + $0x158] sm:$0xff]
  %v279 = vld [vmem:[%s234 + $0x160] sm:$0xff]
  %v280 = vld [vmem:[%s234 + $0x168] sm:$0xff]
  %v281 = vld [vmem:[%s234 + $0x170] sm:$0xff]
  %v282 = vld [vmem:[%s234 + $0x178] sm:$0xff]
  %v283 = vld [vmem:[%s234 + $0x180] sm:$0xff]
  %v284 = vld [vmem:[%s234 + $0x188] sm:$0xff]
  %v285 = vld [vmem:[%s234 + $0x190] sm:$0xff]
  %v286 = vld [vmem:[%s234 + $0x198] sm:$0xff]
  %v287 = vld [vmem:[%s234 + $0x1a0] sm:$0xff]
  %v288 = vld [vmem:[%s234 + $0x1a8] sm:$0xff]
  %v289 = vld [vmem:[%s234 + $0x1b0] sm:$0xff]
  %v290 = vld [vmem:[%s234 + $0x1b8] sm:$0xff]
  %v291 = vld [vmem:[%s234 + $0x1c0] sm:$0xff]
  %v292 = vld [vmem:[%s234 + $0x1c8] sm:$0xff]
  %v293 = vld [vmem:[%s234 + $0x1d0] sm:$0xff]
  %v294 = vld [vmem:[%s234 + $0x1d8] sm:$0xff]
  %v295 = vld [vmem:[%s234 + $0x1e0] sm:$0xff]
  %v296 = vld [vmem:[%s234 + $0x1e8] sm:$0xff]
  %v297 = vld [vmem:[%s234 + $0x1f0] sm:$0xff]
  %v298 = vld [vmem:[%s234 + $0x1f8] sm:$0xff]
  %299 = vmatprep.subr.mxu0 %v236
  %300 = vmatpush1.msra.mxu0 %v235
  %301 = vmatprep.subr.mxu0 %v240
  %302 = vmatpush1.msra.mxu0 %v239
  %303 = vmatprep.subr.mxu0 %v244
  %304 = vmatpush1.msra.mxu0 %v243
  %305 = vmatprep.subr.mxu0 %v248
  %306 = vmatpush1.msra.mxu0 %v247
  %307 = vmatprep.subr.mxu0 %v252
  %308 = vmatpush1.msra.mxu0 %v251
  %309 = vmatprep.subr.mxu0 %v256
  %310 = vmatpush1.msra.mxu0 %v255
  %311 = vmatprep.subr.mxu0 %v260
  %312 = vmatpush1.msra.mxu0 %v259
  %313 = vmatprep.subr.mxu0 %v264
  %314 = vmatpush1.msra.mxu0 %v263
  %315 = vmatprep.subr.mxu0 %v268
  %316 = vmatpush1.msra.mxu0 %v267
  %317 = vmatprep.subr.mxu0 %v272
  %318 = vmatpush1.msra.mxu0 %v271
  %319 = vmatprep.subr.mxu0 %v276
  %320 = vmatpush1.msra.mxu0 %v275
  %321 = vmatprep.subr.mxu0 %v280
  %322 = vmatpush1.msra.mxu0 %v279
  %323 = vmatprep.subr.mxu0 %v284
  %324 = vmatpush1.msra.mxu0 %v283
  %325 = vmatprep.subr.mxu0 %v288
  %326 = vmatpush1.msra.mxu0 %v287
  %327 = vmatprep.subr.mxu0 %v292
  %328 = vmatpush1.msra.mxu0 %v291
  %329 = vmatprep.subr.mxu0 %v296
  %330 = vmatpush1.msra.mxu0 %v295
  %331 = vmatprep.subr.mxu0 0.0
  %332 = vmatpush1.msra.mxu0 0.0
  %333 = vmatprep.subr.mxu0 0.0
  %334 = vmatpush1.msra.mxu0 0.0
  %335 = vmatprep.subr.mxu0 0.0
  %336 = vmatpush1.msra.mxu0 0.0
  %337 = vmatprep.subr.mxu0 0.0
  %338 = vmatpush1.msra.mxu0 0.0
  %339 = vmatprep.subr.mxu0 0.0
  %340 = vmatpush1.msra.mxu0 0.0
  %341 = vmatprep.subr.mxu0 0.0
  %342 = vmatpush1.msra.mxu0 0.0
  %343 = vmatprep.subr.mxu0 0.0
  %344 = vmatpush1.msra.mxu0 0.0
  %345 = vmatprep.subr.mxu0 0.0
  %346 = vmatpush1.msra.mxu0 0.0
  %347 = vmatprep.subr.mxu0 0.0
  %348 = vmatpush1.msra.mxu0 0.0
  %349 = vmatprep.subr.mxu0 0.0
  %350 = vmatpush1.msra.mxu0 0.0
  %351 = vmatprep.subr.mxu0 0.0
  %352 = vmatpush1.msra.mxu0 0.0
  %353 = vmatprep.subr.mxu0 0.0
  %354 = vmatpush1.msra.mxu0 0.0
  %355 = vmatprep.subr.mxu0 0.0
  %356 = vmatpush1.msra.mxu0 0.0
  %357 = vmatprep.subr.mxu0 0.0
  %358 = vmatpush1.msra.mxu0 0.0
  %359 = vmatprep.subr.mxu0 0.0
  %360 = vmatpush1.msra.mxu0 0.0
  %361 = vmatprep.subr.mxu0 0.0
  %362 = vmatpush1.msra.mxu0 0.0
  %363 = vmatprep.mubr.f32.mxu0 0.0
  %364 = vmatmul.mubr.f32.gmra.mrb[0].mxu0 %v14
  %v365 = vpop.f32.mrb[0].mxu0
  %v366 = vadd.f32 0.0, %v365
  %v367 = vpop.f32.mrb[0].mxu0
  %v368 = vadd.f32 0.0, %v367
  %369 = vmatprep.mubr.f32.mxu0 0.0
  %370 = vmatmul.mubr.f32.gmra.mrb[0].mxu0 %v15
  %v371 = vpop.f32.mrb[0].mxu0
  %v372 = vadd.f32 0.0, %v371
  %v373 = vpop.f32.mrb[0].mxu0
  %v374 = vadd.f32 0.0, %v373
  %375 = vdwg.mxu0
  %376 = vmatprep.subr.mxu0 %v238
  %377 = vmatpush1.msra.mxu0 %v237
  %378 = vmatprep.subr.mxu0 %v242
  %379 = vmatpush1.msra.mxu0 %v241
  %380 = vmatprep.subr.mxu0 %v246
  %381 = vmatpush1.msra.mxu0 %v245
  %382 = vmatprep.subr.mxu0 %v250
  %383 = vmatpush1.msra.mxu0 %v249
  %384 = vmatprep.subr.mxu0 %v254
  %385 = vmatpush1.msra.mxu0 %v253
  %386 = vmatprep.subr.mxu0 %v258
  %387 = vmatpush1.msra.mxu0 %v257
  %388 = vmatprep.subr.mxu0 %v262
  %389 = vmatpush1.msra.mxu0 %v261
  %390 = vmatprep.subr.mxu0 %v266
  %391 = vmatpush1.msra.mxu0 %v265
  %392 = vmatprep.subr.mxu0 %v270
  %393 = vmatpush1.msra.mxu0 %v269
  %394 = vmatprep.subr.mxu0 %v274
  %395 = vmatpush1.msra.mxu0 %v273
  %396 = vmatprep.subr.mxu0 %v278
  %397 = vmatpush1.msra.mxu0 %v277
  %398 = vmatprep.subr.mxu0 %v282
  %399 = vmatpush1.msra.mxu0 %v281
  %400 = vmatprep.subr.mxu0 %v286
  %401 = vmatpush1.msra.mxu0 %v285
  %402 = vmatprep.subr.mxu0 %v290
  %403 = vmatpush1.msra.mxu0 %v289
  %404 = vmatprep.subr.mxu0 %v294
  %405 = vmatpush1.msra.mxu0 %v293
  %406 = vmatprep.subr.mxu0 %v298
  %407 = vmatpush1.msra.mxu0 %v297
  %408 = vmatprep.subr.mxu0 0.0
  %409 = vmatpush1.msra.mxu0 0.0
  %410 = vmatprep.subr.mxu0 0.0
  %411 = vmatpush1.msra.mxu0 0.0
  %412 = vmatprep.subr.mxu0 0.0
  %413 = vmatpush1.msra.mxu0 0.0
  %414 = vmatprep.subr.mxu0 0.0
  %415 = vmatpush1.msra.mxu0 0.0
  %416 = vmatprep.subr.mxu0 0.0
  %417 = vmatpush1.msra.mxu0 0.0
  %418 = vmatprep.subr.mxu0 0.0
  %419 = vmatpush1.msra.mxu0 0.0
  %420 = vmatprep.subr.mxu0 0.0
  %421 = vmatpush1.msra.mxu0 0.0
  %422 = vmatprep.subr.mxu0 0.0
  %423 = vmatpush1.msra.mxu0 0.0
  %424 = vmatprep.subr.mxu0 0.0
  %425 = vmatpush1.msra.mxu0 0.0
  %426 = vmatprep.subr.mxu0 0.0
  %427 = vmatpush1.msra.mxu0 0.0
  %428 = vmatprep.subr.mxu0 0.0
  %429 = vmatpush1.msra.mxu0 0.0
  %430 = vmatprep.subr.mxu0 0.0
  %431 = vmatpush1.msra.mxu0 0.0
  %432 = vmatprep.subr.mxu0 0.0
  %433 = vmatpush1.msra.mxu0 0.0
  %434 = vmatprep.subr.mxu0 0.0
  %435 = vmatpush1.msra.mxu0 0.0
  %436 = vmatprep.subr.mxu0 0.0
  %437 = vmatpush1.msra.mxu0 0.0
  %438 = vmatprep.subr.mxu0 0.0
  %439 = vmatpush1.msra.mxu0 0.0
  %440 = vmatprep.mubr.f32.mxu0 0.0
  %441 = vmatmul.mubr.f32.gmra.mrb[0].mxu0 %v14
  %v442 = vpop.f32.mrb[0].mxu0
  %v443 = vadd.f32 0.0, %v442
  %v444 = vpop.f32.mrb[0].mxu0
  %v445 = vadd.f32 0.0, %v444
  %446 = vmatprep.mubr.f32.mxu0 0.0
  %447 = vmatmul.mubr.f32.gmra.mrb[0].mxu0 %v15
  %v448 = vpop.f32.mrb[0].mxu0
  %v449 = vadd.f32 0.0, %v448
  %v450 = vpop.f32.mrb[0].mxu0
  %v451 = vadd.f32 0.0, %v450
  %452 = vdwg.mxu0
  %v453 = vmax.f32 %v147, %v366
  %v454 = vmax.f32 %v149, %v368
  %v455 = vmax.f32 %v224, %v443
  %v456 = vmax.f32 %v226, %v445
  %v457 = vmax.f32 %v153, %v372
  %v458 = vmax.f32 %v155, %v374
  %v459 = vmax.f32 %v230, %v449
  %v460 = vmax.f32 %v232, %v451
  %s461 = scalar_lea.vmem %s0, 1024
  %v462 = vld [vmem:[%s461] sm:$0xff]
  %v463 = vld [vmem:[%s461 + $0x8] sm:$0xff]
  %v464 = vld [vmem:[%s461 + $0x10] sm:$0xff]
  %v465 = vld [vmem:[%s461 + $0x18] sm:$0xff]
  %v466 = vld [vmem:[%s461 + $0x20] sm:$0xff]
  %v467 = vld [vmem:[%s461 + $0x28] sm:$0xff]
  %v468 = vld [vmem:[%s461 + $0x30] sm:$0xff]
  %v469 = vld [vmem:[%s461 + $0x38] sm:$0xff]
  %v470 = vld [vmem:[%s461 + $0x40] sm:$0xff]
  %v471 = vld [vmem:[%s461 + $0x48] sm:$0xff]
  %v472 = vld [vmem:[%s461 + $0x50] sm:$0xff]
  %v473 = vld [vmem:[%s461 + $0x58] sm:$0xff]
  %v474 = vld [vmem:[%s461 + $0x60] sm:$0xff]
  %v475 = vld [vmem:[%s461 + $0x68] sm:$0xff]
  %v476 = vld [vmem:[%s461 + $0x70] sm:$0xff]
  %v477 = vld [vmem:[%s461 + $0x78] sm:$0xff]
  %v478 = vld [vmem:[%s461 + $0x80] sm:$0xff]
  %v479 = vld [vmem:[%s461 + $0x88] sm:$0xff]
  %v480 = vld [vmem:[%s461 + $0x90] sm:$0xff]
  %v481 = vld [vmem:[%s461 + $0x98] sm:$0xff]
  %v482 = vld [vmem:[%s461 + $0xa0] sm:$0xff]
  %v483 = vld [vmem:[%s461 + $0xa8] sm:$0xff]
  %v484 = vld [vmem:[%s461 + $0xb0] sm:$0xff]
  %v485 = vld [vmem:[%s461 + $0xb8] sm:$0xff]
  %v486 = vld [vmem:[%s461 + $0xc0] sm:$0xff]
  %v487 = vld [vmem:[%s461 + $0xc8] sm:$0xff]
  %v488 = vld [vmem:[%s461 + $0xd0] sm:$0xff]
  %v489 = vld [vmem:[%s461 + $0xd8] sm:$0xff]
  %v490 = vld [vmem:[%s461 + $0xe0] sm:$0xff]
  %v491 = vld [vmem:[%s461 + $0xe8] sm:$0xff]
  %v492 = vld [vmem:[%s461 + $0xf0] sm:$0xff]
  %v493 = vld [vmem:[%s461 + $0xf8] sm:$0xff]
  %v494 = vld [vmem:[%s461 + $0x100] sm:$0xff]
  %v495 = vld [vmem:[%s461 + $0x108] sm:$0xff]
  %v496 = vld [vmem:[%s461 + $0x110] sm:$0xff]
  %v497 = vld [vmem:[%s461 + $0x118] sm:$0xff]
  %v498 = vld [vmem:[%s461 + $0x120] sm:$0xff]
  %v499 = vld [vmem:[%s461 + $0x128] sm:$0xff]
  %v500 = vld [vmem:[%s461 + $0x130] sm:$0xff]
  %v501 = vld [vmem:[%s461 + $0x138] sm:$0xff]
  %v502 = vld [vmem:[%s461 + $0x140] sm:$0xff]
  %v503 = vld [vmem:[%s461 + $0x148] sm:$0xff]
  %v504 = vld [vmem:[%s461 + $0x150] sm:$0xff]
  %v505 = vld [vmem:[%s461 + $0x158] sm:$0xff]
  %v506 = vld [vmem:[%s461 + $0x160] sm:$0xff]
  %v507 = vld [vmem:[%s461 + $0x168] sm:$0xff]
  %v508 = vld [vmem:[%s461 + $0x170] sm:$0xff]
  %v509 = vld [vmem:[%s461 + $0x178] sm:$0xff]
  %v510 = vld [vmem:[%s461 + $0x180] sm:$0xff]
  %v511 = vld [vmem:[%s461 + $0x188] sm:$0xff]
  %v512 = vld [vmem:[%s461 + $0x190] sm:$0xff]
  %v513 = vld [vmem:[%s461 + $0x198] sm:$0xff]
  %v514 = vld [vmem:[%s461 + $0x1a0] sm:$0xff]
  %v515 = vld [vmem:[%s461 + $0x1a8] sm:$0xff]
  %v516 = vld [vmem:[%s461 + $0x1b0] sm:$0xff]
  %v517 = vld [vmem:[%s461 + $0x1b8] sm:$0xff]
  %v518 = vld [vmem:[%s461 + $0x1c0] sm:$0xff]
  %v519 = vld [vmem:[%s461 + $0x1c8] sm:$0xff]
  %v520 = vld [vmem:[%s461 + $0x1d0] sm:$0xff]
  %v521 = vld [vmem:[%s461 + $0x1d8] sm:$0xff]
  %v522 = vld [vmem:[%s461 + $0x1e0] sm:$0xff]
  %v523 = vld [vmem:[%s461 + $0x1e8] sm:$0xff]
  %v524 = vld [vmem:[%s461 + $0x1f0] sm:$0xff]
  %v525 = vld [vmem:[%s461 + $0x1f8] sm:$0xff]
  %526 = vmatprep.subr.mxu0 %v463
  %527 = vmatpush1.msra.mxu0 %v462
  %528 = vmatprep.subr.mxu0 %v467
  %529 = vmatpush1.msra.mxu0 %v466
  %530 = vmatprep.subr.mxu0 %v471
  %531 = vmatpush1.msra.mxu0 %v470
  %532 = vmatprep.subr.mxu0 %v475
  %533 = vmatpush1.msra.mxu0 %v474
  %534 = vmatprep.subr.mxu0 %v479
  %535 = vmatpush1.msra.mxu0 %v478
  %536 = vmatprep.subr.mxu0 %v483
  %537 = vmatpush1.msra.mxu0 %v482
  %538 = vmatprep.subr.mxu0 %v487
  %539 = vmatpush1.msra.mxu0 %v486
  %540 = vmatprep.subr.mxu0 %v491
  %541 = vmatpush1.msra.mxu0 %v490
  %542 = vmatprep.subr.mxu0 %v495
  %543 = vmatpush1.msra.mxu0 %v494
  %544 = vmatprep.subr.mxu0 %v499
  %545 = vmatpush1.msra.mxu0 %v498
  %546 = vmatprep.subr.mxu0 %v503
  %547 = vmatpush1.msra.mxu0 %v502
  %548 = vmatprep.subr.mxu0 %v507
  %549 = vmatpush1.msra.mxu0 %v506
  %550 = vmatprep.subr.mxu0 %v511
  %551 = vmatpush1.msra.mxu0 %v510
  %552 = vmatprep.subr.mxu0 %v515
  %553 = vmatpush1.msra.mxu0 %v514
  %554 = vmatprep.subr.mxu0 %v519
  %555 = vmatpush1.msra.mxu0 %v518
  %556 = vmatprep.subr.mxu0 %v523
  %557 = vmatpush1.msra.mxu0 %v522
  %558 = vmatprep.subr.mxu0 0.0
  %559 = vmatpush1.msra.mxu0 0.0
  %560 = vmatprep.subr.mxu0 0.0
  %561 = vmatpush1.msra.mxu0 0.0
  %562 = vmatprep.subr.mxu0 0.0
  %563 = vmatpush1.msra.mxu0 0.0
  %564 = vmatprep.subr.mxu0 0.0
  %565 = vmatpush1.msra.mxu0 0.0
  %566 = vmatprep.subr.mxu0 0.0
  %567 = vmatpush1.msra.mxu0 0.0
  %568 = vmatprep.subr.mxu0 0.0
  %569 = vmatpush1.msra.mxu0 0.0
  %570 = vmatprep.subr.mxu0 0.0
  %571 = vmatpush1.msra.mxu0 0.0
  %572 = vmatprep.subr.mxu0 0.0
  %573 = vmatpush1.msra.mxu0 0.0
  %574 = vmatprep.subr.mxu0 0.0
  %575 = vmatpush1.msra.mxu0 0.0
  %576 = vmatprep.subr.mxu0 0.0
  %577 = vmatpush1.msra.mxu0 0.0
  %578 = vmatprep.subr.mxu0 0.0
  %579 = vmatpush1.msra.mxu0 0.0
  %580 = vmatprep.subr.mxu0 0.0
  %581 = vmatpush1.msra.mxu0 0.0
  %582 = vmatprep.subr.mxu0 0.0
  %583 = vmatpush1.msra.mxu0 0.0
  %584 = vmatprep.subr.mxu0 0.0
  %585 = vmatpush1.msra.mxu0 0.0
  %586 = vmatprep.subr.mxu0 0.0
  %587 = vmatpush1.msra.mxu0 0.0
  %588 = vmatprep.subr.mxu0 0.0
  %589 = vmatpush1.msra.mxu0 0.0
  %590 = vmatprep.mubr.f32.mxu0 0.0
  %591 = vmatmul.mubr.f32.gmra.mrb[0].mxu0 %v14
  %v592 = vpop.f32.mrb[0].mxu0
  %v593 = vadd.f32 0.0, %v592
  %v594 = vpop.f32.mrb[0].mxu0
  %v595 = vadd.f32 0.0, %v594
  %596 = vmatprep.mubr.f32.mxu0 0.0
  %597 = vmatmul.mubr.f32.gmra.mrb[0].mxu0 %v15
  %v598 = vpop.f32.mrb[0].mxu0
  %v599 = vadd.f32 0.0, %v598
  %v600 = vpop.f32.mrb[0].mxu0
  %v601 = vadd.f32 0.0, %v600
  %602 = vdwg.mxu0
  %603 = vmatprep.subr.mxu0 %v465
  %604 = vmatpush1.msra.mxu0 %v464
  %605 = vmatprep.subr.mxu0 %v469
  %606 = vmatpush1.msra.mxu0 %v468
  %607 = vmatprep.subr.mxu0 %v473
  %608 = vmatpush1.msra.mxu0 %v472
  %609 = vmatprep.subr.mxu0 %v477
  %610 = vmatpush1.msra.mxu0 %v476
  %611 = vmatprep.subr.mxu0 %v481
  %612 = vmatpush1.msra.mxu0 %v480
  %613 = vmatprep.subr.mxu0 %v485
  %614 = vmatpush1.msra.mxu0 %v484
  %615 = vmatprep.subr.mxu0 %v489
  %616 = vmatpush1.msra.mxu0 %v488
  %617 = vmatprep.subr.mxu0 %v493
  %618 = vmatpush1.msra.mxu0 %v492
  %619 = vmatprep.subr.mxu0 %v497
  %620 = vmatpush1.msra.mxu0 %v496
  %621 = vmatprep.subr.mxu0 %v501
  %622 = vmatpush1.msra.mxu0 %v500
  %623 = vmatprep.subr.mxu0 %v505
  %624 = vmatpush1.msra.mxu0 %v504
  %625 = vmatprep.subr.mxu0 %v509
  %626 = vmatpush1.msra.mxu0 %v508
  %627 = vmatprep.subr.mxu0 %v513
  %628 = vmatpush1.msra.mxu0 %v512
  %629 = vmatprep.subr.mxu0 %v517
  %630 = vmatpush1.msra.mxu0 %v516
  %631 = vmatprep.subr.mxu0 %v521
  %632 = vmatpush1.msra.mxu0 %v520
  %633 = vmatprep.subr.mxu0 %v525
  %634 = vmatpush1.msra.mxu0 %v524
  %635 = vmatprep.subr.mxu0 0.0
  %636 = vmatpush1.msra.mxu0 0.0
  %637 = vmatprep.subr.mxu0 0.0
  %638 = vmatpush1.msra.mxu0 0.0
  %639 = vmatprep.subr.mxu0 0.0
  %640 = vmatpush1.msra.mxu0 0.0
  %641 = vmatprep.subr.mxu0 0.0
  %642 = vmatpush1.msra.mxu0 0.0
  %643 = vmatprep.subr.mxu0 0.0
  %644 = vmatpush1.msra.mxu0 0.0
  %645 = vmatprep.subr.mxu0 0.0
  %646 = vmatpush1.msra.mxu0 0.0
  %647 = vmatprep.subr.mxu0 0.0
  %648 = vmatpush1.msra.mxu0 0.0
  %649 = vmatprep.subr.mxu0 0.0
  %650 = vmatpush1.msra.mxu0 0.0
  %651 = vmatprep.subr.mxu0 0.0
  %652 = vmatpush1.msra.mxu0 0.0
  %653 = vmatprep.subr.mxu0 0.0
  %654 = vmatpush1.msra.mxu0 0.0
  %655 = vmatprep.subr.mxu0 0.0
  %656 = vmatpush1.msra.mxu0 0.0
  %657 = vmatprep.subr.mxu0 0.0
  %658 = vmatpush1.msra.mxu0 0.0
  %659 = vmatprep.subr.mxu0 0.0
  %660 = vmatpush1.msra.mxu0 0.0
  %661 = vmatprep.subr.mxu0 0.0
  %662 = vmatpush1.msra.mxu0 0.0
  %663 = vmatprep.subr.mxu0 0.0
  %664 = vmatpush1.msra.mxu0 0.0
  %665 = vmatprep.subr.mxu0 0.0
  %666 = vmatpush1.msra.mxu0 0.0
  %667 = vmatprep.mubr.f32.mxu0 0.0
  %668 = vmatmul.mubr.f32.gmra.mrb[0].mxu0 %v14
  %v669 = vpop.f32.mrb[0].mxu0
  %v670 = vadd.f32 0.0, %v669
  %v671 = vpop.f32.mrb[0].mxu0
  %v672 = vadd.f32 0.0, %v671
  %673 = vmatprep.mubr.f32.mxu0 0.0
  %674 = vmatmul.mubr.f32.gmra.mrb[0].mxu0 %v15
  %v675 = vpop.f32.mrb[0].mxu0
  %v676 = vadd.f32 0.0, %v675
  %v677 = vpop.f32.mrb[0].mxu0
  %v678 = vadd.f32 0.0, %v677
  %679 = vdwg.mxu0
  %v680 = vmax.f32 %v453, %v593
  %v681 = vmax.f32 %v454, %v595
  %v682 = vmax.f32 %v455, %v670
  %v683 = vmax.f32 %v456, %v672
  %v684 = vmax.f32 %v457, %v599
  %v685 = vmax.f32 %v458, %v601
  %v686 = vmax.f32 %v459, %v676
  %v687 = vmax.f32 %v460, %v678
  %s688 = scalar_lea.vmem %s0, 1536
  %v689 = vld [vmem:[%s688] sm:$0xff]
  %v690 = vld [vmem:[%s688 + $0x8] sm:$0xff]
  %v691 = vld [vmem:[%s688 + $0x10] sm:$0xff]
  %v692 = vld [vmem:[%s688 + $0x18] sm:$0xff]
  %v693 = vld [vmem:[%s688 + $0x20] sm:$0xff]
  %v694 = vld [vmem:[%s688 + $0x28] sm:$0xff]
  %v695 = vld [vmem:[%s688 + $0x30] sm:$0xff]
  %v696 = vld [vmem:[%s688 + $0x38] sm:$0xff]
  %v697 = vld [vmem:[%s688 + $0x40] sm:$0xff]
  %v698 = vld [vmem:[%s688 + $0x48] sm:$0xff]
  %v699 = vld [vmem:[%s688 + $0x50] sm:$0xff]
  %v700 = vld [vmem:[%s688 + $0x58] sm:$0xff]
  %v701 = vld [vmem:[%s688 + $0x60] sm:$0xff]
  %v702 = vld [vmem:[%s688 + $0x68] sm:$0xff]
  %v703 = vld [vmem:[%s688 + $0x70] sm:$0xff]
  %v704 = vld [vmem:[%s688 + $0x78] sm:$0xff]
  %v705 = vld [vmem:[%s688 + $0x80] sm:$0xff]
  %v706 = vld [vmem:[%s688 + $0x88] sm:$0xff]
  %v707 = vld [vmem:[%s688 + $0x90] sm:$0xff]
  %v708 = vld [vmem:[%s688 + $0x98] sm:$0xff]
  %v709 = vld [vmem:[%s688 + $0xa0] sm:$0xff]
  %v710 = vld [vmem:[%s688 + $0xa8] sm:$0xff]
  %v711 = vld [vmem:[%s688 + $0xb0] sm:$0xff]
  %v712 = vld [vmem:[%s688 + $0xb8] sm:$0xff]
  %v713 = vld [vmem:[%s688 + $0xc0] sm:$0xff]
  %v714 = vld [vmem:[%s688 + $0xc8] sm:$0xff]
  %v715 = vld [vmem:[%s688 + $0xd0] sm:$0xff]
  %v716 = vld [vmem:[%s688 + $0xd8] sm:$0xff]
  %v717 = vld [vmem:[%s688 + $0xe0] sm:$0xff]
  %v718 = vld [vmem:[%s688 + $0xe8] sm:$0xff]
  %v719 = vld [vmem:[%s688 + $0xf0] sm:$0xff]
  %v720 = vld [vmem:[%s688 + $0xf8] sm:$0xff]
  %v721 = vld [vmem:[%s688 + $0x100] sm:$0xff]
  %v722 = vld [vmem:[%s688 + $0x108] sm:$0xff]
  %v723 = vld [vmem:[%s688 + $0x110] sm:$0xff]
  %v724 = vld [vmem:[%s688 + $0x118] sm:$0xff]
  %v725 = vld [vmem:[%s688 + $0x120] sm:$0xff]
  %v726 = vld [vmem:[%s688 + $0x128] sm:$0xff]
  %v727 = vld [vmem:[%s688 + $0x130] sm:$0xff]
  %v728 = vld [vmem:[%s688 + $0x138] sm:$0xff]
  %v729 = vld [vmem:[%s688 + $0x140] sm:$0xff]
  %v730 = vld [vmem:[%s688 + $0x148] sm:$0xff]
  %v731 = vld [vmem:[%s688 + $0x150] sm:$0xff]
  %v732 = vld [vmem:[%s688 + $0x158] sm:$0xff]
  %v733 = vld [vmem:[%s688 + $0x160] sm:$0xff]
  %v734 = vld [vmem:[%s688 + $0x168] sm:$0xff]
  %v735 = vld [vmem:[%s688 + $0x170] sm:$0xff]
  %v736 = vld [vmem:[%s688 + $0x178] sm:$0xff]
  %v737 = vld [vmem:[%s688 + $0x180] sm:$0xff]
  %v738 = vld [vmem:[%s688 + $0x188] sm:$0xff]
  %v739 = vld [vmem:[%s688 + $0x190] sm:$0xff]
  %v740 = vld [vmem:[%s688 + $0x198] sm:$0xff]
  %v741 = vld [vmem:[%s688 + $0x1a0] sm:$0xff]
  %v742 = vld [vmem:[%s688 + $0x1a8] sm:$0xff]
  %v743 = vld [vmem:[%s688 + $0x1b0] sm:$0xff]
  %v744 = vld [vmem:[%s688 + $0x1b8] sm:$0xff]
  %v745 = vld [vmem:[%s688 + $0x1c0] sm:$0xff]
  %v746 = vld [vmem:[%s688 + $0x1c8] sm:$0xff]
  %v747 = vld [vmem:[%s688 + $0x1d0] sm:$0xff]
  %v748 = vld [vmem:[%s688 + $0x1d8] sm:$0xff]
  %v749 = vld [vmem:[%s688 + $0x1e0] sm:$0xff]
  %v750 = vld [vmem:[%s688 + $0x1e8] sm:$0xff]
  %v751 = vld [vmem:[%s688 + $0x1f0] sm:$0xff]
  %v752 = vld [vmem:[%s688 + $0x1f8] sm:$0xff]
  %753 = vmatprep.subr.mxu0 %v690
  %754 = vmatpush1.msra.mxu0 %v689
  %755 = vmatprep.subr.mxu0 %v694
  %756 = vmatpush1.msra.mxu0 %v693
  %757 = vmatprep.subr.mxu0 %v698
  %758 = vmatpush1.msra.mxu0 %v697
  %759 = vmatprep.subr.mxu0 %v702
  %760 = vmatpush1.msra.mxu0 %v701
  %761 = vmatprep.subr.mxu0 %v706
  %762 = vmatpush1.msra.mxu0 %v705
  %763 = vmatprep.subr.mxu0 %v710
  %764 = vmatpush1.msra.mxu0 %v709
  %765 = vmatprep.subr.mxu0 %v714
  %766 = vmatpush1.msra.mxu0 %v713
  %767 = vmatprep.subr.mxu0 %v718
  %768 = vmatpush1.msra.mxu0 %v717
  %769 = vmatprep.subr.mxu0 %v722
  %770 = vmatpush1.msra.mxu0 %v721
  %771 = vmatprep.subr.mxu0 %v726
  %772 = vmatpush1.msra.mxu0 %v725
  %773 = vmatprep.subr.mxu0 %v730
  %774 = vmatpush1.msra.mxu0 %v729
  %775 = vmatprep.subr.mxu0 %v734
  %776 = vmatpush1.msra.mxu0 %v733
  %777 = vmatprep.subr.mxu0 %v738
  %778 = vmatpush1.msra.mxu0 %v737
  %779 = vmatprep.subr.mxu0 %v742
  %780 = vmatpush1.msra.mxu0 %v741
  %781 = vmatprep.subr.mxu0 %v746
  %782 = vmatpush1.msra.mxu0 %v745
  %783 = vmatprep.subr.mxu0 %v750
  %784 = vmatpush1.msra.mxu0 %v749
  %785 = vmatprep.subr.mxu0 0.0
  %786 = vmatpush1.msra.mxu0 0.0
  %787 = vmatprep.subr.mxu0 0.0
  %788 = vmatpush1.msra.mxu0 0.0
  %789 = vmatprep.subr.mxu0 0.0
  %790 = vmatpush1.msra.mxu0 0.0
  %791 = vmatprep.subr.mxu0 0.0
  %792 = vmatpush1.msra.mxu0 0.0
  %793 = vmatprep.subr.mxu0 0.0
  %794 = vmatpush1.msra.mxu0 0.0
  %795 = vmatprep.subr.mxu0 0.0
  %796 = vmatpush1.msra.mxu0 0.0
  %797 = vmatprep.subr.mxu0 0.0
  %798 = vmatpush1.msra.mxu0 0.0
  %799 = vmatprep.subr.mxu0 0.0
  %800 = vmatpush1.msra.mxu0 0.0
  %801 = vmatprep.subr.mxu0 0.0
  %802 = vmatpush1.msra.mxu0 0.0
  %803 = vmatprep.subr.mxu0 0.0
  %804 = vmatpush1.msra.mxu0 0.0
  %805 = vmatprep.subr.mxu0 0.0
  %806 = vmatpush1.msra.mxu0 0.0
  %807 = vmatprep.subr.mxu0 0.0
  %808 = vmatpush1.msra.mxu0 0.0
  %809 = vmatprep.subr.mxu0 0.0
  %810 = vmatpush1.msra.mxu0 0.0
  %811 = vmatprep.subr.mxu0 0.0
  %812 = vmatpush1.msra.mxu0 0.0
  %813 = vmatprep.subr.mxu0 0.0
  %814 = vmatpush1.msra.mxu0 0.0
  %815 = vmatprep.subr.mxu0 0.0
  %816 = vmatpush1.msra.mxu0 0.0
  %817 = vmatprep.mubr.f32.mxu0 0.0
  %818 = vmatmul.mubr.f32.gmra.mrb[0].mxu0 %v14
  %v819 = vpop.f32.mrb[0].mxu0
  %v820 = vadd.f32 0.0, %v819
  %v821 = vpop.f32.mrb[0].mxu0
  %v822 = vadd.f32 0.0, %v821
  %823 = vmatprep.mubr.f32.mxu0 0.0
  %824 = vmatmul.mubr.f32.gmra.mrb[0].mxu0 %v15
  %v825 = vpop.f32.mrb[0].mxu0
  %v826 = vadd.f32 0.0, %v825
  %v827 = vpop.f32.mrb[0].mxu0
  %v828 = vadd.f32 0.0, %v827
  %829 = vdwg.mxu0
  %830 = vmatprep.subr.mxu0 %v692
  %831 = vmatpush1.msra.mxu0 %v691
  %832 = vmatprep.subr.mxu0 %v696
  %833 = vmatpush1.msra.mxu0 %v695
  %834 = vmatprep.subr.mxu0 %v700
  %835 = vmatpush1.msra.mxu0 %v699
  %836 = vmatprep.subr.mxu0 %v704
  %837 = vmatpush1.msra.mxu0 %v703
  %838 = vmatprep.subr.mxu0 %v708
  %839 = vmatpush1.msra.mxu0 %v707
  %840 = vmatprep.subr.mxu0 %v712
  %841 = vmatpush1.msra.mxu0 %v711
  %842 = vmatprep.subr.mxu0 %v716
  %843 = vmatpush1.msra.mxu0 %v715
  %844 = vmatprep.subr.mxu0 %v720
  %845 = vmatpush1.msra.mxu0 %v719
  %846 = vmatprep.subr.mxu0 %v724
  %847 = vmatpush1.msra.mxu0 %v723
  %848 = vmatprep.subr.mxu0 %v728
  %849 = vmatpush1.msra.mxu0 %v727
  %850 = vmatprep.subr.mxu0 %v732
  %851 = vmatpush1.msra.mxu0 %v731
  %852 = vmatprep.subr.mxu0 %v736
  %853 = vmatpush1.msra.mxu0 %v735
  %854 = vmatprep.subr.mxu0 %v740
  %855 = vmatpush1.msra.mxu0 %v739
  %856 = vmatprep.subr.mxu0 %v744
  %857 = vmatpush1.msra.mxu0 %v743
  %858 = vmatprep.subr.mxu0 %v748
  %859 = vmatpush1.msra.mxu0 %v747
  %860 = vmatprep.subr.mxu0 %v752
  %861 = vmatpush1.msra.mxu0 %v751
  %862 = vmatprep.subr.mxu0 0.0
  %863 = vmatpush1.msra.mxu0 0.0
  %864 = vmatprep.subr.mxu0 0.0
  %865 = vmatpush1.msra.mxu0 0.0
  %866 = vmatprep.subr.mxu0 0.0
  %867 = vmatpush1.msra.mxu0 0.0
  %868 = vmatprep.subr.mxu0 0.0
  %869 = vmatpush1.msra.mxu0 0.0
  %870 = vmatprep.subr.mxu0 0.0
  %871 = vmatpush1.msra.mxu0 0.0
  %872 = vmatprep.subr.mxu0 0.0
  %873 = vmatpush1.msra.mxu0 0.0
  %874 = vmatprep.subr.mxu0 0.0
  %875 = vmatpush1.msra.mxu0 0.0
  %876 = vmatprep.subr.mxu0 0.0
  %877 = vmatpush1.msra.mxu0 0.0
  %878 = vmatprep.subr.mxu0 0.0
  %879 = vmatpush1.msra.mxu0 0.0
  %880 = vmatprep.subr.mxu0 0.0
  %881 = vmatpush1.msra.mxu0 0.0
  %882 = vmatprep.subr.mxu0 0.0
  %883 = vmatpush1.msra.mxu0 0.0
  %884 = vmatprep.subr.mxu0 0.0
  %885 = vmatpush1.msra.mxu0 0.0
  %886 = vmatprep.subr.mxu0 0.0
  %887 = vmatpush1.msra.mxu0 0.0
  %888 = vmatprep.subr.mxu0 0.0
  %889 = vmatpush1.msra.mxu0 0.0
  %890 = vmatprep.subr.mxu0 0.0
  %891 = vmatpush1.msra.mxu0 0.0
  %892 = vmatprep.subr.mxu0 0.0
  %893 = vmatpush1.msra.mxu0 0.0
  %894 = vmatprep.mubr.f32.mxu0 0.0
  %895 = vmatmul.mubr.f32.gmra.mrb[0].mxu0 %v14
  %v896 = vpop.f32.mrb[0].mxu0
  %v897 = vadd.f32 0.0, %v896
  %v898 = vpop.f32.mrb[0].mxu0
  %v899 = vadd.f32 0.0, %v898
  %900 = vmatprep.mubr.f32.mxu0 0.0
  %901 = vmatmul.mubr.f32.gmra.mrb[0].mxu0 %v15
  %v902 = vpop.f32.mrb[0].mxu0
  %v903 = vadd.f32 0.0, %v902
  %v904 = vpop.f32.mrb[0].mxu0
  %v905 = vadd.f32 0.0, %v904
  %906 = vdwg.mxu0
  %v907 = vmax.f32 %v680, %v820
  %v908 = vmax.f32 %v681, %v822
  %v909 = vmax.f32 %v682, %v897
  %v910 = vmax.f32 %v683, %v899
  %v911 = vmax.f32 %v684, %v826
  %v912 = vmax.f32 %v685, %v828
  %v913 = vmax.f32 %v686, %v903
  %v914 = vmax.f32 %v687, %v905
  %v915 = vld [vmem:[%s2] sm:$0xff]
  %v916 = vld [vmem:[%s2 + $0x8] sm:$0xff]
  %918 = vset.pattern.permute.xlu0 0
  %919 = vperm.xlu0 %918, %v915
  %v920 = vpop.permute.xlu0 %919
  %923 = vset.pattern.permute.xlu0 0
  %924 = vperm.xlu0 %923, %v916
  %v925 = vpop.permute.xlu0 %924
  %v927 = vadd.f32 %v907, %v920
  %v928 = vadd.f32 %v908, %v920
  %v929 = vadd.f32 %v909, %v920
  %v930 = vadd.f32 %v910, %v920
  %v931 = vadd.f32 %v911, %v925
  %v932 = vadd.f32 %v912, %v925
  %v933 = vadd.f32 %v913, %v925
  %v934 = vadd.f32 %v914, %v925
  %v935 = vmax.f32 %v927, 0.0
  %v936 = vmax.f32 %v928, 0.0
  %v937 = vmax.f32 %v929, 0.0
  %v938 = vmax.f32 %v930, 0.0
  %v939 = vmax.f32 %v931, 0.0
  %v940 = vmax.f32 %v932, 0.0
  %v941 = vmax.f32 %v933, 0.0
  %v942 = vmax.f32 %v934, 0.0
  %943 = vst [vmem:[%s3] sm:$0xff] %v935
  %944 = vst [vmem:[%s3 + $0x8] sm:$0xff] %v936
  %945 = vst [vmem:[%s3 + $0x10] sm:$0xff] %v937
  %946 = vst [vmem:[%s3 + $0x18] sm:$0xff] %v938
  %947 = vst [vmem:[%s3 + $0x20] sm:$0xff] %v939
  %948 = vst [vmem:[%s3 + $0x28] sm:$0xff] %v940
  %949 = vst [vmem:[%s3 + $0x30] sm:$0xff] %v941
  %950 = vst [vmem:[%s3 + $0x38] sm:$0xff] %v942
  // Predicated region
  $region14: #{net_forward.4} parent=0 // pred_check
    _
  $region15: #{net_forward.4} parent=0 // pred_check_branch
    %952 = sbr.rel (0) target = $region17
  $region16: #{net_forward.4} parent=0 // pred_region
    _
  $region17: #{net_forward.4} parent=0 // pred_fallthru
    _
  // Predicated region
  $region18: #{net_forward.4} parent=0 // pred_check
    _
  $region19: #{net_forward.4} parent=0 // pred_check_branch
    %954 = sbr.rel (0) target = $region21
  $region20: #{net_forward.4} parent=0 // pred_region
    _
  $region21: #{net_forward.4} parent=0 // pred_fallthru
    _

// kernel: net_forward.5
$region0: #{net_forward.5}
  #allocation0 [shape = 'u32[]', space=smem, size = 0x4, offset = 0x4, fixed_abs, tag = 'smem constant byte address 0x4 - core index']
  #allocation1 [shape = 'u32[144,128]{1,0:T(1,128)}', space=vmem, size = 0x12000, scoped, tag = 'internal scratch']
  %s0 = inlined_call_operand.vmem [shape: f32[4,400,128], index: 0, kind: input, shape index: {}]
  %s1 = inlined_call_operand.vmem [shape: f32[32,400], index: 1, kind: input, shape index: {}]
  %s2 = inlined_call_operand.vmem [shape: f32[32,1], index: 2, kind: input, shape index: {}]
  %s3 = inlined_call_operand.vmem [shape: f32[32,128], index: 3, kind: output, shape index: {}]
  %s4 = sld [smem:[#allocation0]]
  $region22: #{net_forward.5} parent=0
    _
  %s6 = ssub.s32 1, %s4
  %s7 = scalar_select 0, %s6, %s4
  // Predicated region
  $region2: #{net_forward.5} parent=0 // pred_check
    _
  $region3: #{net_forward.5} parent=0 // pred_check_branch
    %9 = sbr.rel (0) target = $region5
  $region4: #{net_forward.5} parent=0 // pred_region
    _
  $region5: #{net_forward.5} parent=0 // pred_fallthru
    _
  // Predicated region
  $region6: #{net_forward.5} parent=0 // pred_check
    _
  $region7: #{net_forward.5} parent=0 // pred_check_branch
    %11 = sbr.rel (0) target = $region9
  $region8: #{net_forward.5} parent=0 // pred_region
    _
  $region9: #{net_forward.5} parent=0 // pred_fallthru
    _
  // Predicated region
  $region10: #{net_forward.5} parent=0 // pred_check
    _
  $region11: #{net_forward.5} parent=0 // pred_check_branch
    %13 = sbr.rel (0) target = $region13
  $region12: #{net_forward.5} parent=0 // pred_region
    _
  $region13: #{net_forward.5} parent=0 // pred_fallthru
    _
  %v14 = vld [vmem:[%s1] sm:$0xff]
  %v15 = vld [vmem:[%s1 + $0x8] sm:$0xff]
  %v16 = vld [vmem:[%s1 + $0x10] sm:$0xff]
  %v17 = vld [vmem:[%s1 + $0x18] sm:$0xff]
  %v18 = vld [vmem:[%s1 + $0x20] sm:$0xff]
  %v19 = vld [vmem:[%s1 + $0x28] sm:$0xff]
  %v20 = vld [vmem:[%s1 + $0x30] sm:$0xff]
  %v21 = vld [vmem:[%s1 + $0x38] sm:$0xff]
  %v22 = vld [vmem:[%s1 + $0x40] sm:$0xff]
  %v23 = vld [vmem:[%s1 + $0x48] sm:$0xff]
  %v24 = vld [vmem:[%s1 + $0x50] sm:$0xff]
  %v25 = vld [vmem:[%s1 + $0x58] sm:$0xff]
  %v26 = vld [vmem:[%s1 + $0x60] sm:$0xff]
  %v27 = vld [vmem:[%s1 + $0x68] sm:$0xff]
  %v28 = vld [vmem:[%s1 + $0x70] sm:$0xff]
  %v29 = vld [vmem:[%s1 + $0x78] sm:$0xff]
  %v30 = vld [vmem:[%s0] sm:$0xff]
  %v31 = vld [vmem:[%s0 + $0x8] sm:$0xff]
  %v32 = vld [vmem:[%s0 + $0x10] sm:$0xff]
  %v33 = vld [vmem:[%s0 + $0x18] sm:$0xff]
  %v34 = vld [vmem:[%s0 + $0x20] sm:$0xff]
  %v35 = vld [vmem:[%s0 + $0x28] sm:$0xff]
  %v36 = vld [vmem:[%s0 + $0x30] sm:$0xff]
  %v37 = vld [vmem:[%s0 + $0x38] sm:$0xff]
  %v38 = vld [vmem:[%s0 + $0x40] sm:$0xff]
  %v39 = vld [vmem:[%s0 + $0x48] sm:$0xff]
  %v40 = vld [vmem:[%s0 + $0x50] sm:$0xff]
  %v41 = vld [vmem:[%s0 + $0x58] sm:$0xff]
  %v42 = vld [vmem:[%s0 + $0x60] sm:$0xff]
  %v43 = vld [vmem:[%s0 + $0x68] sm:$0xff]
  %v44 = vld [vmem:[%s0 + $0x70] sm:$0xff]
  %v45 = vld [vmem:[%s0 + $0x78] sm:$0xff]
  %v46 = vld [vmem:[%s0 + $0x80] sm:$0xff]
  %v47 = vld [vmem:[%s0 + $0x88] sm:$0xff]
  %v48 = vld [vmem:[%s0 + $0x90] sm:$0xff]
  %v49 = vld [vmem:[%s0 + $0x98] sm:$0xff]
  %v50 = vld [vmem:[%s0 + $0xa0] sm:$0xff]
  %v51 = vld [vmem:[%s0 + $0xa8] sm:$0xff]
  %v52 = vld [vmem:[%s0 + $0xb0] sm:$0xff]
  %v53 = vld [vmem:[%s0 + $0xb8] sm:$0xff]
  %v54 = vld [vmem:[%s0 + $0xc0] sm:$0xff]
  %v55 = vld [vmem:[%s0 + $0xc8] sm:$0xff]
  %v56 = vld [vmem:[%s0 + $0xd0] sm:$0xff]
  %v57 = vld [vmem:[%s0 + $0xd8] sm:$0xff]
  %v58 = vld [vmem:[%s0 + $0xe0] sm:$0xff]
  %v59 = vld [vmem:[%s0 + $0xe8] sm:$0xff]
  %v60 = vld [vmem:[%s0 + $0xf0] sm:$0xff]
  %v61 = vld [vmem:[%s0 + $0xf8] sm:$0xff]
  %v62 = vld [vmem:[%s0 + $0x100] sm:$0xff]
  %v63 = vld [vmem:[%s0 + $0x108] sm:$0xff]
  %v64 = vld [vmem:[%s0 + $0x110] sm:$0xff]
  %v65 = vld [vmem:[%s0 + $0x118] sm:$0xff]
  %v66 = vld [vmem:[%s0 + $0x120] sm:$0xff]
  %v67 = vld [vmem:[%s0 + $0x128] sm:$0xff]
  %v68 = vld [vmem:[%s0 + $0x130] sm:$0xff]
  %v69 = vld [vmem:[%s0 + $0x138] sm:$0xff]
  %v70 = vld [vmem:[%s0 + $0x140] sm:$0xff]
  %v71 = vld [vmem:[%s0 + $0x148] sm:$0xff]
  %v72 = vld [vmem:[%s0 + $0x150] sm:$0xff]
  %v73 = vld [vmem:[%s0 + $0x158] sm:$0xff]
  %v74 = vld [vmem:[%s0 + $0x160] sm:$0xff]
  %v75 = vld [vmem:[%s0 + $0x168] sm:$0xff]
  %v76 = vld [vmem:[%s0 + $0x170] sm:$0xff]
  %v77 = vld [vmem:[%s0 + $0x178] sm:$0xff]
  %v78 = vld [vmem:[%s0 + $0x180] sm:$0xff]
  %v79 = vld [vmem:[%s0 + $0x188] sm:$0xff]
  %vm80 = vcmask 130048
  %v82 = vsel %vm80, %v17, 0
  %v85 = vsel %vm80, %v21, 0
  %v88 = vsel %vm80, %v25, 0
  %v91 = vsel %vm80, %v29, 0
  %93 = vmatprep.subr.mxu0 0.0
  %94 = vmatpush1.msra.mxu0 %v30
  %95 = vmatprep.subr.mxu0 0.0
  %96 = vmatpush1.msra.mxu0 %v31
  %97 = vmatprep.subr.mxu0 0.0
  %98 = vmatpush1.msra.mxu0 %v32
  %99 = vmatprep.subr.mxu0 0.0
  %100 = vmatpush1.msra.mxu0 %v33
  %101 = vmatprep.subr.mxu0 0.0
  %102 = vmatpush1.msra.mxu0 %v34
  %103 = vmatprep.subr.mxu0 0.0
  %104 = vmatpush1.msra.mxu0 %v35
  %105 = vmatprep.subr.mxu0 0.0
  %106 = vmatpush1.msra.mxu0 %v36
  %107 = vmatprep.subr.mxu0 0.0
  %108 = vmatpush1.msra.mxu0 %v37
  %109 = vmatprep.subr.mxu0 0.0
  %110 = vmatpush1.msra.mxu0 %v38
  %111 = vmatprep.subr.mxu0 0.0
  %112 = vmatpush1.msra.mxu0 %v39
  %113 = vmatprep.subr.mxu0 0.0
  %114 = vmatpush1.msra.mxu0 %v40
  %115 = vmatprep.subr.mxu0 0.0
  %116 = vmatpush1.msra.mxu0 %v41
  %117 = vmatprep.subr.mxu0 0.0
  %118 = vmatpush1.msra.mxu0 %v42
  %119 = vmatprep.subr.mxu0 0.0
  %120 = vmatpush1.msra.mxu0 %v43
  %121 = vmatprep.subr.mxu0 0.0
  %122 = vmatpush1.msra.mxu0 %v44
  %123 = vmatprep.subr.mxu0 0.0
  %124 = vmatpush1.msra.mxu0 %v45
  %125 = vmatprep.subr.mxu0 0.0
  %126 = vmatpush1.msra.mxu0 %v46
  %127 = vmatprep.subr.mxu0 0.0
  %128 = vmatpush1.msra.mxu0 %v47
  %129 = vmatprep.subr.mxu0 0.0
  %130 = vmatpush1.msra.mxu0 %v48
  %131 = vmatprep.subr.mxu0 0.0
  %132 = vmatpush1.msra.mxu0 %v49
  %133 = vmatprep.subr.mxu0 0.0
  %134 = vmatpush1.msra.mxu0 %v50
  %135 = vmatprep.subr.mxu0 0.0
  %136 = vmatpush1.msra.mxu0 %v51
  %137 = vmatprep.subr.mxu0 0.0
  %138 = vmatpush1.msra.mxu0 %v52
  %139 = vmatprep.subr.mxu0 0.0
  %140 = vmatpush1.msra.mxu0 %v53
  %141 = vmatprep.subr.mxu0 0.0
  %142 = vmatpush1.msra.mxu0 %v54
  %143 = vmatprep.subr.mxu0 0.0
  %144 = vmatpush1.msra.mxu0 %v55
  %145 = vmatprep.subr.mxu0 0.0
  %146 = vmatpush1.msra.mxu0 %v56
  %147 = vmatprep.subr.mxu0 0.0
  %148 = vmatpush1.msra.mxu0 %v57
  %149 = vmatprep.subr.mxu0 0.0
  %150 = vmatpush1.msra.mxu0 %v58
  %151 = vmatprep.subr.mxu0 0.0
  %152 = vmatpush1.msra.mxu0 %v59
  %153 = vmatprep.subr.mxu0 0.0
  %154 = vmatpush1.msra.mxu0 %v60
  %155 = vmatprep.subr.mxu0 0.0
  %156 = vmatpush1.msra.mxu0 %v61
  %157 = vmatprep.mubr.f32.mxu0 %v15
  %158 = vmatmul.mubr.f32.gmra.mrb[0].mxu0 %v14
  %v159 = vpop.f32.mrb[0].mxu0
  %v160 = vadd.f32 0.0, %v159
  %v161 = vpop.f32.mrb[0].mxu0
  %162 = vmatprep.mubr.f32.mxu0 %v19
  %163 = vmatmul.mubr.f32.gmra.mrb[0].mxu0 %v18
  %v164 = vpop.f32.mrb[0].mxu0
  %v165 = vadd.f32 0.0, %v164
  %v166 = vpop.f32.mrb[0].mxu0
  %167 = vmatprep.mubr.f32.mxu0 %v23
  %168 = vmatmul.mubr.f32.gmra.mrb[0].mxu0 %v22
  %v169 = vpop.f32.mrb[0].mxu0
  %v170 = vadd.f32 0.0, %v169
  %v171 = vpop.f32.mrb[0].mxu0
  %172 = vmatprep.mubr.f32.mxu0 %v27
  %173 = vmatmul.mubr.f32.gmra.mrb[0].mxu0 %v26
  %v174 = vpop.f32.mrb[0].mxu0
  %v175 = vadd.f32 0.0, %v174
  %v176 = vpop.f32.mrb[0].mxu0
  %177 = vdwg.mxu0
  %178 = vmatprep.subr.mxu0 0.0
  %179 = vmatpush1.msra.mxu0 %v62
  %180 = vmatprep.subr.mxu0 0.0
  %181 = vmatpush1.msra.mxu0 %v63
  %182 = vmatprep.subr.mxu0 0.0
  %183 = vmatpush1.msra.mxu0 %v64
  %184 = vmatprep.subr.mxu0 0.0
  %185 = vmatpush1.msra.mxu0 %v65
  %186 = vmatprep.subr.mxu0 0.0
  %187 = vmatpush1.msra.mxu0 %v66
  %188 = vmatprep.subr.mxu0 0.0
  %189 = vmatpush1.msra.mxu0 %v67
  %190 = vmatprep.subr.mxu0 0.0
  %191 = vmatpush1.msra.mxu0 %v68
  %192 = vmatprep.subr.mxu0 0.0
  %193 = vmatpush1.msra.mxu0 %v69
  %194 = vmatprep.subr.mxu0 0.0
  %195 = vmatpush1.msra.mxu0 %v70
  %196 = vmatprep.subr.mxu0 0.0
  %197 = vmatpush1.msra.mxu0 %v71
  %198 = vmatprep.subr.mxu0 0.0
  %199 = vmatpush1.msra.mxu0 %v72
  %200 = vmatprep.subr.mxu0 0.0
  %201 = vmatpush1.msra.mxu0 %v73
  %202 = vmatprep.subr.mxu0 0.0
  %203 = vmatpush1.msra.mxu0 %v74
  %204 = vmatprep.subr.mxu0 0.0
  %205 = vmatpush1.msra.mxu0 %v75
  %206 = vmatprep.subr.mxu0 0.0
  %207 = vmatpush1.msra.mxu0 %v76
  %208 = vmatprep.subr.mxu0 0.0
  %209 = vmatpush1.msra.mxu0 %v77
  %210 = vmatprep.subr.mxu0 0.0
  %211 = vmatpush1.msra.mxu0 %v78
  %212 = vmatprep.subr.mxu0 0.0
  %213 = vmatpush1.msra.mxu0 %v79
  %214 = vmatprep.subr.mxu0 0.0
  %215 = vmatpush1.msra.mxu0 0.0
  %216 = vmatprep.subr.mxu0 0.0
  %217 = vmatpush1.msra.mxu0 0.0
  %218 = vmatprep.subr.mxu0 0.0
  %219 = vmatpush1.msra.mxu0 0.0
  %220 = vmatprep.subr.mxu0 0.0
  %221 = vmatpush1.msra.mxu0 0.0
  %222 = vmatprep.subr.mxu0 0.0
  %223 = vmatpush1.msra.mxu0 0.0
  %224 = vmatprep.subr.mxu0 0.0
  %225 = vmatpush1.msra.mxu0 0.0
  %226 = vmatprep.subr.mxu0 0.0
  %227 = vmatpush1.msra.mxu0 0.0
  %228 = vmatprep.subr.mxu0 0.0
  %229 = vmatpush1.msra.mxu0 0.0
  %230 = vmatprep.subr.mxu0 0.0
  %231 = vmatpush1.msra.mxu0 0.0
  %232 = vmatprep.subr.mxu0 0.0
  %233 = vmatpush1.msra.mxu0 0.0
  %234 = vmatprep.subr.mxu0 0.0
  %235 = vmatpush1.msra.mxu0 0.0
  %236 = vmatprep.subr.mxu0 0.0
  %237 = vmatpush1.msra.mxu0 0.0
  %238 = vmatprep.subr.mxu0 0.0
  %239 = vmatpush1.msra.mxu0 0.0
  %240 = vmatprep.subr.mxu0 0.0
  %241 = vmatpush1.msra.mxu0 0.0
  %242 = vmatprep.mubr.f32.mxu0 %v82
  %243 = vmatmul.mubr.f32.gmra.mrb[0].mxu0 %v16
  %v244 = vpop.f32.mrb[0].mxu0
  %v245 = vadd.f32 %v160, %v244
  %v246 = vpop.f32.mrb[0].mxu0
  %247 = vmatprep.mubr.f32.mxu0 %v85
  %248 = vmatmul.mubr.f32.gmra.mrb[0].mxu0 %v20
  %v249 = vpop.f32.mrb[0].mxu0
  %v250 = vadd.f32 %v165, %v249
  %v251 = vpop.f32.mrb[0].mxu0
  %252 = vmatprep.mubr.f32.mxu0 %v88
  %253 = vmatmul.mubr.f32.gmra.mrb[0].mxu0 %v24
  %v254 = vpop.f32.mrb[0].mxu0
  %v255 = vadd.f32 %v170, %v254
  %v256 = vpop.f32.mrb[0].mxu0
  %257 = vmatprep.mubr.f32.mxu0 %v91
  %258 = vmatmul.mubr.f32.gmra.mrb[0].mxu0 %v28
  %v259 = vpop.f32.mrb[0].mxu0
  %v260 = vadd.f32 %v175, %v259
  %v261 = vpop.f32.mrb[0].mxu0
  %262 = vdwg.mxu0
  %s263 = scalar_lea.vmem %s0, 400
  %v264 = vld [vmem:[%s263] sm:$0xff]
  %v265 = vld [vmem:[%s263 + $0x8] sm:$0xff]
  %v266 = vld [vmem:[%s263 + $0x10] sm:$0xff]
  %v267 = vld [vmem:[%s263 + $0x18] sm:$0xff]
  %v268 = vld [vmem:[%s263 + $0x20] sm:$0xff]
  %v269 = vld [vmem:[%s263 + $0x28] sm:$0xff]
  %v270 = vld [vmem:[%s263 + $0x30] sm:$0xff]
  %v271 = vld [vmem:[%s263 + $0x38] sm:$0xff]
  %v272 = vld [vmem:[%s263 + $0x40] sm:$0xff]
  %v273 = vld [vmem:[%s263 + $0x48] sm:$0xff]
  %v274 = vld [vmem:[%s263 + $0x50] sm:$0xff]
  %v275 = vld [vmem:[%s263 + $0x58] sm:$0xff]
  %v276 = vld [vmem:[%s263 + $0x60] sm:$0xff]
  %v277 = vld [vmem:[%s263 + $0x68] sm:$0xff]
  %v278 = vld [vmem:[%s263 + $0x70] sm:$0xff]
  %v279 = vld [vmem:[%s263 + $0x78] sm:$0xff]
  %v280 = vld [vmem:[%s263 + $0x80] sm:$0xff]
  %v281 = vld [vmem:[%s263 + $0x88] sm:$0xff]
  %v282 = vld [vmem:[%s263 + $0x90] sm:$0xff]
  %v283 = vld [vmem:[%s263 + $0x98] sm:$0xff]
  %v284 = vld [vmem:[%s263 + $0xa0] sm:$0xff]
  %v285 = vld [vmem:[%s263 + $0xa8] sm:$0xff]
  %v286 = vld [vmem:[%s263 + $0xb0] sm:$0xff]
  %v287 = vld [vmem:[%s263 + $0xb8] sm:$0xff]
  %v288 = vld [vmem:[%s263 + $0xc0] sm:$0xff]
  %v289 = vld [vmem:[%s263 + $0xc8] sm:$0xff]
  %v290 = vld [vmem:[%s263 + $0xd0] sm:$0xff]
  %v291 = vld [vmem:[%s263 + $0xd8] sm:$0xff]
  %v292 = vld [vmem:[%s263 + $0xe0] sm:$0xff]
  %v293 = vld [vmem:[%s263 + $0xe8] sm:$0xff]
  %v294 = vld [vmem:[%s263 + $0xf0] sm:$0xff]
  %v295 = vld [vmem:[%s263 + $0xf8] sm:$0xff]
  %v296 = vld [vmem:[%s263 + $0x100] sm:$0xff]
  %v297 = vld [vmem:[%s263 + $0x108] sm:$0xff]
  %v298 = vld [vmem:[%s263 + $0x110] sm:$0xff]
  %v299 = vld [vmem:[%s263 + $0x118] sm:$0xff]
  %v300 = vld [vmem:[%s263 + $0x120] sm:$0xff]
  %v301 = vld [vmem:[%s263 + $0x128] sm:$0xff]
  %v302 = vld [vmem:[%s263 + $0x130] sm:$0xff]
  %v303 = vld [vmem:[%s263 + $0x138] sm:$0xff]
  %v304 = vld [vmem:[%s263 + $0x140] sm:$0xff]
  %v305 = vld [vmem:[%s263 + $0x148] sm:$0xff]
  %v306 = vld [vmem:[%s263 + $0x150] sm:$0xff]
  %v307 = vld [vmem:[%s263 + $0x158] sm:$0xff]
  %v308 = vld [vmem:[%s263 + $0x160] sm:$0xff]
  %v309 = vld [vmem:[%s263 + $0x168] sm:$0xff]
  %v310 = vld [vmem:[%s263 + $0x170] sm:$0xff]
  %v311 = vld [vmem:[%s263 + $0x178] sm:$0xff]
  %v312 = vld [vmem:[%s263 + $0x180] sm:$0xff]
  %v313 = vld [vmem:[%s263 + $0x188] sm:$0xff]
  %314 = vmatprep.subr.mxu0 0.0
  %315 = vmatpush1.msra.mxu0 %v264
  %316 = vmatprep.subr.mxu0 0.0
  %317 = vmatpush1.msra.mxu0 %v265
  %318 = vmatprep.subr.mxu0 0.0
  %319 = vmatpush1.msra.mxu0 %v266
  %320 = vmatprep.subr.mxu0 0.0
  %321 = vmatpush1.msra.mxu0 %v267
  %322 = vmatprep.subr.mxu0 0.0
  %323 = vmatpush1.msra.mxu0 %v268
  %324 = vmatprep.subr.mxu0 0.0
  %325 = vmatpush1.msra.mxu0 %v269
  %326 = vmatprep.subr.mxu0 0.0
  %327 = vmatpush1.msra.mxu0 %v270
  %328 = vmatprep.subr.mxu0 0.0
  %329 = vmatpush1.msra.mxu0 %v271
  %330 = vmatprep.subr.mxu0 0.0
  %331 = vmatpush1.msra.mxu0 %v272
  %332 = vmatprep.subr.mxu0 0.0
  %333 = vmatpush1.msra.mxu0 %v273
  %334 = vmatprep.subr.mxu0 0.0
  %335 = vmatpush1.msra.mxu0 %v274
  %336 = vmatprep.subr.mxu0 0.0
  %337 = vmatpush1.msra.mxu0 %v275
  %338 = vmatprep.subr.mxu0 0.0
  %339 = vmatpush1.msra.mxu0 %v276
  %340 = vmatprep.subr.mxu0 0.0
  %341 = vmatpush1.msra.mxu0 %v277
  %342 = vmatprep.subr.mxu0 0.0
  %343 = vmatpush1.msra.mxu0 %v278
  %344 = vmatprep.subr.mxu0 0.0
  %345 = vmatpush1.msra.mxu0 %v279
  %346 = vmatprep.subr.mxu0 0.0
  %347 = vmatpush1.msra.mxu0 %v280
  %348 = vmatprep.subr.mxu0 0.0
  %349 = vmatpush1.msra.mxu0 %v281
  %350 = vmatprep.subr.mxu0 0.0
  %351 = vmatpush1.msra.mxu0 %v282
  %352 = vmatprep.subr.mxu0 0.0
  %353 = vmatpush1.msra.mxu0 %v283
  %354 = vmatprep.subr.mxu0 0.0
  %355 = vmatpush1.msra.mxu0 %v284
  %356 = vmatprep.subr.mxu0 0.0
  %357 = vmatpush1.msra.mxu0 %v285
  %358 = vmatprep.subr.mxu0 0.0
  %359 = vmatpush1.msra.mxu0 %v286
  %360 = vmatprep.subr.mxu0 0.0
  %361 = vmatpush1.msra.mxu0 %v287
  %362 = vmatprep.subr.mxu0 0.0
  %363 = vmatpush1.msra.mxu0 %v288
  %364 = vmatprep.subr.mxu0 0.0
  %365 = vmatpush1.msra.mxu0 %v289
  %366 = vmatprep.subr.mxu0 0.0
  %367 = vmatpush1.msra.mxu0 %v290
  %368 = vmatprep.subr.mxu0 0.0
  %369 = vmatpush1.msra.mxu0 %v291
  %370 = vmatprep.subr.mxu0 0.0
  %371 = vmatpush1.msra.mxu0 %v292
  %372 = vmatprep.subr.mxu0 0.0
  %373 = vmatpush1.msra.mxu0 %v293
  %374 = vmatprep.subr.mxu0 0.0
  %375 = vmatpush1.msra.mxu0 %v294
  %376 = vmatprep.subr.mxu0 0.0
  %377 = vmatpush1.msra.mxu0 %v295
  %378 = vmatprep.mubr.f32.mxu0 %v15
  %379 = vmatmul.mubr.f32.gmra.mrb[0].mxu0 %v14
  %v380 = vpop.f32.mrb[0].mxu0
  %v381 = vadd.f32 0.0, %v380
  %v382 = vpop.f32.mrb[0].mxu0
  %383 = vmatprep.mubr.f32.mxu0 %v19
  %384 = vmatmul.mubr.f32.gmra.mrb[0].mxu0 %v18
  %v385 = vpop.f32.mrb[0].mxu0
  %v386 = vadd.f32 0.0, %v385
  %v387 = vpop.f32.mrb[0].mxu0
  %388 = vmatprep.mubr.f32.mxu0 %v23
  %389 = vmatmul.mubr.f32.gmra.mrb[0].mxu0 %v22
  %v390 = vpop.f32.mrb[0].mxu0
  %v391 = vadd.f32 0.0, %v390
  %v392 = vpop.f32.mrb[0].mxu0
  %393 = vmatprep.mubr.f32.mxu0 %v27
  %394 = vmatmul.mubr.f32.gmra.mrb[0].mxu0 %v26
  %v395 = vpop.f32.mrb[0].mxu0
  %v396 = vadd.f32 0.0, %v395
  %v397 = vpop.f32.mrb[0].mxu0
  %398 = vdwg.mxu0
  %399 = vmatprep.subr.mxu0 0.0
  %400 = vmatpush1.msra.mxu0 %v296
  %401 = vmatprep.subr.mxu0 0.0
  %402 = vmatpush1.msra.mxu0 %v297
  %403 = vmatprep.subr.mxu0 0.0
  %404 = vmatpush1.msra.mxu0 %v298
  %405 = vmatprep.subr.mxu0 0.0
  %406 = vmatpush1.msra.mxu0 %v299
  %407 = vmatprep.subr.mxu0 0.0
  %408 = vmatpush1.msra.mxu0 %v300
  %409 = vmatprep.subr.mxu0 0.0
  %410 = vmatpush1.msra.mxu0 %v301
  %411 = vmatprep.subr.mxu0 0.0
  %412 = vmatpush1.msra.mxu0 %v302
  %413 = vmatprep.subr.mxu0 0.0
  %414 = vmatpush1.msra.mxu0 %v303
  %415 = vmatprep.subr.mxu0 0.0
  %416 = vmatpush1.msra.mxu0 %v304
  %417 = vmatprep.subr.mxu0 0.0
  %418 = vmatpush1.msra.mxu0 %v305
  %419 = vmatprep.subr.mxu0 0.0
  %420 = vmatpush1.msra.mxu0 %v306
  %421 = vmatprep.subr.mxu0 0.0
  %422 = vmatpush1.msra.mxu0 %v307
  %423 = vmatprep.subr.mxu0 0.0
  %424 = vmatpush1.msra.mxu0 %v308
  %425 = vmatprep.subr.mxu0 0.0
  %426 = vmatpush1.msra.mxu0 %v309
  %427 = vmatprep.subr.mxu0 0.0
  %428 = vmatpush1.msra.mxu0 %v310
  %429 = vmatprep.subr.mxu0 0.0
  %430 = vmatpush1.msra.mxu0 %v311
  %431 = vmatprep.subr.mxu0 0.0
  %432 = vmatpush1.msra.mxu0 %v312
  %433 = vmatprep.subr.mxu0 0.0
  %434 = vmatpush1.msra.mxu0 %v313
  %435 = vmatprep.subr.mxu0 0.0
  %436 = vmatpush1.msra.mxu0 0.0
  %437 = vmatprep.subr.mxu0 0.0
  %438 = vmatpush1.msra.mxu0 0.0
  %439 = vmatprep.subr.mxu0 0.0
  %440 = vmatpush1.msra.mxu0 0.0
  %441 = vmatprep.subr.mxu0 0.0
  %442 = vmatpush1.msra.mxu0 0.0
  %443 = vmatprep.subr.mxu0 0.0
  %444 = vmatpush1.msra.mxu0 0.0
  %445 = vmatprep.subr.mxu0 0.0
  %446 = vmatpush1.msra.mxu0 0.0
  %447 = vmatprep.subr.mxu0 0.0
  %448 = vmatpush1.msra.mxu0 0.0
  %449 = vmatprep.subr.mxu0 0.0
  %450 = vmatpush1.msra.mxu0 0.0
  %451 = vmatprep.subr.mxu0 0.0
  %452 = vmatpush1.msra.mxu0 0.0
  %453 = vmatprep.subr.mxu0 0.0
  %454 = vmatpush1.msra.mxu0 0.0
  %455 = vmatprep.subr.mxu0 0.0
  %456 = vmatpush1.msra.mxu0 0.0
  %457 = vmatprep.subr.mxu0 0.0
  %458 = vmatpush1.msra.mxu0 0.0
  %459 = vmatprep.subr.mxu0 0.0
  %460 = vmatpush1.msra.mxu0 0.0
  %461 = vmatprep.subr.mxu0 0.0
  %462 = vmatpush1.msra.mxu0 0.0
  %463 = vmatprep.mubr.f32.mxu0 %v82
  %464 = vmatmul.mubr.f32.gmra.mrb[0].mxu0 %v16
  %v465 = vpop.f32.mrb[0].mxu0
  %v466 = vadd.f32 %v381, %v465
  %v467 = vpop.f32.mrb[0].mxu0
  %468 = vmatprep.mubr.f32.mxu0 %v85
  %469 = vmatmul.mubr.f32.gmra.mrb[0].mxu0 %v20
  %v470 = vpop.f32.mrb[0].mxu0
  %v471 = vadd.f32 %v386, %v470
  %v472 = vpop.f32.mrb[0].mxu0
  %473 = vmatprep.mubr.f32.mxu0 %v88
  %474 = vmatmul.mubr.f32.gmra.mrb[0].mxu0 %v24
  %v475 = vpop.f32.mrb[0].mxu0
  %v476 = vadd.f32 %v391, %v475
  %v477 = vpop.f32.mrb[0].mxu0
  %478 = vmatprep.mubr.f32.mxu0 %v91
  %479 = vmatmul.mubr.f32.gmra.mrb[0].mxu0 %v28
  %v480 = vpop.f32.mrb[0].mxu0
  %v481 = vadd.f32 %v396, %v480
  %v482 = vpop.f32.mrb[0].mxu0
  %483 = vdwg.mxu0
  %v484 = vmax.f32 %v245, %v466
  %v485 = vmax.f32 %v250, %v471
  %v486 = vmax.f32 %v255, %v476
  %v487 = vmax.f32 %v260, %v481
  %s488 = scalar_lea.vmem %s0, 800
  %v489 = vld [vmem:[%s488] sm:$0xff]
  %v490 = vld [vmem:[%s488 + $0x8] sm:$0xff]
  %v491 = vld [vmem:[%s488 + $0x10] sm:$0xff]
  %v492 = vld [vmem:[%s488 + $0x18] sm:$0xff]
  %v493 = vld [vmem:[%s488 + $0x20] sm:$0xff]
  %v494 = vld [vmem:[%s488 + $0x28] sm:$0xff]
  %v495 = vld [vmem:[%s488 + $0x30] sm:$0xff]
  %v496 = vld [vmem:[%s488 + $0x38] sm:$0xff]
  %v497 = vld [vmem:[%s488 + $0x40] sm:$0xff]
  %v498 = vld [vmem:[%s488 + $0x48] sm:$0xff]
  %v499 = vld [vmem:[%s488 + $0x50] sm:$0xff]
  %v500 = vld [vmem:[%s488 + $0x58] sm:$0xff]
  %v501 = vld [vmem:[%s488 + $0x60] sm:$0xff]
  %v502 = vld [vmem:[%s488 + $0x68] sm:$0xff]
  %v503 = vld [vmem:[%s488 + $0x70] sm:$0xff]
  %v504 = vld [vmem:[%s488 + $0x78] sm:$0xff]
  %v505 = vld [vmem:[%s488 + $0x80] sm:$0xff]
  %v506 = vld [vmem:[%s488 + $0x88] sm:$0xff]
  %v507 = vld [vmem:[%s488 + $0x90] sm:$0xff]
  %v508 = vld [vmem:[%s488 + $0x98] sm:$0xff]
  %v509 = vld [vmem:[%s488 + $0xa0] sm:$0xff]
  %v510 = vld [vmem:[%s488 + $0xa8] sm:$0xff]
  %v511 = vld [vmem:[%s488 + $0xb0] sm:$0xff]
  %v512 = vld [vmem:[%s488 + $0xb8] sm:$0xff]
  %v513 = vld [vmem:[%s488 + $0xc0] sm:$0xff]
  %v514 = vld [vmem:[%s488 + $0xc8] sm:$0xff]
  %v515 = vld [vmem:[%s488 + $0xd0] sm:$0xff]
  %v516 = vld [vmem:[%s488 + $0xd8] sm:$0xff]
  %v517 = vld [vmem:[%s488 + $0xe0] sm:$0xff]
  %v518 = vld [vmem:[%s488 + $0xe8] sm:$0xff]
  %v519 = vld [vmem:[%s488 + $0xf0] sm:$0xff]
  %v520 = vld [vmem:[%s488 + $0xf8] sm:$0xff]
  %v521 = vld [vmem:[%s488 + $0x100] sm:$0xff]
  %v522 = vld [vmem:[%s488 + $0x108] sm:$0xff]
  %v523 = vld [vmem:[%s488 + $0x110] sm:$0xff]
  %v524 = vld [vmem:[%s488 + $0x118] sm:$0xff]
  %v525 = vld [vmem:[%s488 + $0x120] sm:$0xff]
  %v526 = vld [vmem:[%s488 + $0x128] sm:$0xff]
  %v527 = vld [vmem:[%s488 + $0x130] sm:$0xff]
  %v528 = vld [vmem:[%s488 + $0x138] sm:$0xff]
  %v529 = vld [vmem:[%s488 + $0x140] sm:$0xff]
  %v530 = vld [vmem:[%s488 + $0x148] sm:$0xff]
  %v531 = vld [vmem:[%s488 + $0x150] sm:$0xff]
  %v532 = vld [vmem:[%s488 + $0x158] sm:$0xff]
  %v533 = vld [vmem:[%s488 + $0x160] sm:$0xff]
  %v534 = vld [vmem:[%s488 + $0x168] sm:$0xff]
  %v535 = vld [vmem:[%s488 + $0x170] sm:$0xff]
  %v536 = vld [vmem:[%s488 + $0x178] sm:$0xff]
  %v537 = vld [vmem:[%s488 + $0x180] sm:$0xff]
  %v538 = vld [vmem:[%s488 + $0x188] sm:$0xff]
  %539 = vmatprep.subr.mxu0 0.0
  %540 = vmatpush1.msra.mxu0 %v489
  %541 = vmatprep.subr.mxu0 0.0
  %542 = vmatpush1.msra.mxu0 %v490
  %543 = vmatprep.subr.mxu0 0.0
  %544 = vmatpush1.msra.mxu0 %v491
  %545 = vmatprep.subr.mxu0 0.0
  %546 = vmatpush1.msra.mxu0 %v492
  %547 = vmatprep.subr.mxu0 0.0
  %548 = vmatpush1.msra.mxu0 %v493
  %549 = vmatprep.subr.mxu0 0.0
  %550 = vmatpush1.msra.mxu0 %v494
  %551 = vmatprep.subr.mxu0 0.0
  %552 = vmatpush1.msra.mxu0 %v495
  %553 = vmatprep.subr.mxu0 0.0
  %554 = vmatpush1.msra.mxu0 %v496
  %555 = vmatprep.subr.mxu0 0.0
  %556 = vmatpush1.msra.mxu0 %v497
  %557 = vmatprep.subr.mxu0 0.0
  %558 = vmatpush1.msra.mxu0 %v498
  %559 = vmatprep.subr.mxu0 0.0
  %560 = vmatpush1.msra.mxu0 %v499
  %561 = vmatprep.subr.mxu0 0.0
  %562 = vmatpush1.msra.mxu0 %v500
  %563 = vmatprep.subr.mxu0 0.0
  %564 = vmatpush1.msra.mxu0 %v501
  %565 = vmatprep.subr.mxu0 0.0
  %566 = vmatpush1.msra.mxu0 %v502
  %567 = vmatprep.subr.mxu0 0.0
  %568 = vmatpush1.msra.mxu0 %v503
  %569 = vmatprep.subr.mxu0 0.0
  %570 = vmatpush1.msra.mxu0 %v504
  %571 = vmatprep.subr.mxu0 0.0
  %572 = vmatpush1.msra.mxu0 %v505
  %573 = vmatprep.subr.mxu0 0.0
  %574 = vmatpush1.msra.mxu0 %v506
  %575 = vmatprep.subr.mxu0 0.0
  %576 = vmatpush1.msra.mxu0 %v507
  %577 = vmatprep.subr.mxu0 0.0
  %578 = vmatpush1.msra.mxu0 %v508
  %579 = vmatprep.subr.mxu0 0.0
  %580 = vmatpush1.msra.mxu0 %v509
  %581 = vmatprep.subr.mxu0 0.0
  %582 = vmatpush1.msra.mxu0 %v510
  %583 = vmatprep.subr.mxu0 0.0
  %584 = vmatpush1.msra.mxu0 %v511
  %585 = vmatprep.subr.mxu0 0.0
  %586 = vmatpush1.msra.mxu0 %v512
  %587 = vmatprep.subr.mxu0 0.0
  %588 = vmatpush1.msra.mxu0 %v513
  %589 = vmatprep.subr.mxu0 0.0
  %590 = vmatpush1.msra.mxu0 %v514
  %591 = vmatprep.subr.mxu0 0.0
  %592 = vmatpush1.msra.mxu0 %v515
  %593 = vmatprep.subr.mxu0 0.0
  %594 = vmatpush1.msra.mxu0 %v516
  %595 = vmatprep.subr.mxu0 0.0
  %596 = vmatpush1.msra.mxu0 %v517
  %597 = vmatprep.subr.mxu0 0.0
  %598 = vmatpush1.msra.mxu0 %v518
  %599 = vmatprep.subr.mxu0 0.0
  %600 = vmatpush1.msra.mxu0 %v519
  %601 = vmatprep.subr.mxu0 0.0
  %602 = vmatpush1.msra.mxu0 %v520
  %603 = vmatprep.mubr.f32.mxu0 %v15
  %604 = vmatmul.mubr.f32.gmra.mrb[0].mxu0 %v14
  %v605 = vpop.f32.mrb[0].mxu0
  %v606 = vadd.f32 0.0, %v605
  %v607 = vpop.f32.mrb[0].mxu0
  %608 = vmatprep.mubr.f32.mxu0 %v19
  %609 = vmatmul.mubr.f32.gmra.mrb[0].mxu0 %v18
  %v610 = vpop.f32.mrb[0].mxu0
  %v611 = vadd.f32 0.0, %v610
  %v612 = vpop.f32.mrb[0].mxu0
  %613 = vmatprep.mubr.f32.mxu0 %v23
  %614 = vmatmul.mubr.f32.gmra.mrb[0].mxu0 %v22
  %v615 = vpop.f32.mrb[0].mxu0
  %v616 = vadd.f32 0.0, %v615
  %v617 = vpop.f32.mrb[0].mxu0
  %618 = vmatprep.mubr.f32.mxu0 %v27
  %619 = vmatmul.mubr.f32.gmra.mrb[0].mxu0 %v26
  %v620 = vpop.f32.mrb[0].mxu0
  %v621 = vadd.f32 0.0, %v620
  %v622 = vpop.f32.mrb[0].mxu0
  %623 = vdwg.mxu0
  %624 = vmatprep.subr.mxu0 0.0
  %625 = vmatpush1.msra.mxu0 %v521
  %626 = vmatprep.subr.mxu0 0.0
  %627 = vmatpush1.msra.mxu0 %v522
  %628 = vmatprep.subr.mxu0 0.0
  %629 = vmatpush1.msra.mxu0 %v523
  %630 = vmatprep.subr.mxu0 0.0
  %631 = vmatpush1.msra.mxu0 %v524
  %632 = vmatprep.subr.mxu0 0.0
  %633 = vmatpush1.msra.mxu0 %v525
  %634 = vmatprep.subr.mxu0 0.0
  %635 = vmatpush1.msra.mxu0 %v526
  %636 = vmatprep.subr.mxu0 0.0
  %637 = vmatpush1.msra.mxu0 %v527
  %638 = vmatprep.subr.mxu0 0.0
  %639 = vmatpush1.msra.mxu0 %v528
  %640 = vmatprep.subr.mxu0 0.0
  %641 = vmatpush1.msra.mxu0 %v529
  %642 = vmatprep.subr.mxu0 0.0
  %643 = vmatpush1.msra.mxu0 %v530
  %644 = vmatprep.subr.mxu0 0.0
  %645 = vmatpush1.msra.mxu0 %v531
  %646 = vmatprep.subr.mxu0 0.0
  %647 = vmatpush1.msra.mxu0 %v532
  %648 = vmatprep.subr.mxu0 0.0
  %649 = vmatpush1.msra.mxu0 %v533
  %650 = vmatprep.subr.mxu0 0.0
  %651 = vmatpush1.msra.mxu0 %v534
  %652 = vmatprep.subr.mxu0 0.0
  %653 = vmatpush1.msra.mxu0 %v535
  %654 = vmatprep.subr.mxu0 0.0
  %655 = vmatpush1.msra.mxu0 %v536
  %656 = vmatprep.subr.mxu0 0.0
  %657 = vmatpush1.msra.mxu0 %v537
  %658 = vmatprep.subr.mxu0 0.0
  %659 = vmatpush1.msra.mxu0 %v538
  %660 = vmatprep.subr.mxu0 0.0
  %661 = vmatpush1.msra.mxu0 0.0
  %662 = vmatprep.subr.mxu0 0.0
  %663 = vmatpush1.msra.mxu0 0.0
  %664 = vmatprep.subr.mxu0 0.0
  %665 = vmatpush1.msra.mxu0 0.0
  %666 = vmatprep.subr.mxu0 0.0
  %667 = vmatpush1.msra.mxu0 0.0
  %668 = vmatprep.subr.mxu0 0.0
  %669 = vmatpush1.msra.mxu0 0.0
  %670 = vmatprep.subr.mxu0 0.0
  %671 = vmatpush1.msra.mxu0 0.0
  %672 = vmatprep.subr.mxu0 0.0
  %673 = vmatpush1.msra.mxu0 0.0
  %674 = vmatprep.subr.mxu0 0.0
  %675 = vmatpush1.msra.mxu0 0.0
  %676 = vmatprep.subr.mxu0 0.0
  %677 = vmatpush1.msra.mxu0 0.0
  %678 = vmatprep.subr.mxu0 0.0
  %679 = vmatpush1.msra.mxu0 0.0
  %680 = vmatprep.subr.mxu0 0.0
  %681 = vmatpush1.msra.mxu0 0.0
  %682 = vmatprep.subr.mxu0 0.0
  %683 = vmatpush1.msra.mxu0 0.0
  %684 = vmatprep.subr.mxu0 0.0
  %685 = vmatpush1.msra.mxu0 0.0
  %686 = vmatprep.subr.mxu0 0.0
  %687 = vmatpush1.msra.mxu0 0.0
  %688 = vmatprep.mubr.f32.mxu0 %v82
  %689 = vmatmul.mubr.f32.gmra.mrb[0].mxu0 %v16
  %v690 = vpop.f32.mrb[0].mxu0
  %v691 = vadd.f32 %v606, %v690
  %v692 = vpop.f32.mrb[0].mxu0
  %693 = vmatprep.mubr.f32.mxu0 %v85
  %694 = vmatmul.mubr.f32.gmra.mrb[0].mxu0 %v20
  %v695 = vpop.f32.mrb[0].mxu0
  %v696 = vadd.f32 %v611, %v695
  %v697 = vpop.f32.mrb[0].mxu0
  %698 = vmatprep.mubr.f32.mxu0 %v88
  %699 = vmatmul.mubr.f32.gmra.mrb[0].mxu0 %v24
  %v700 = vpop.f32.mrb[0].mxu0
  %v701 = vadd.f32 %v616, %v700
  %v702 = vpop.f32.mrb[0].mxu0
  %703 = vmatprep.mubr.f32.mxu0 %v91
  %704 = vmatmul.mubr.f32.gmra.mrb[0].mxu0 %v28
  %v705 = vpop.f32.mrb[0].mxu0
  %v706 = vadd.f32 %v621, %v705
  %v707 = vpop.f32.mrb[0].mxu0
  %708 = vdwg.mxu0
  %v709 = vmax.f32 %v484, %v691
  %v710 = vmax.f32 %v485, %v696
  %v711 = vmax.f32 %v486, %v701
  %v712 = vmax.f32 %v487, %v706
  %s713 = scalar_lea.vmem %s0, 1200
  %v714 = vld [vmem:[%s713] sm:$0xff]
  %v715 = vld [vmem:[%s713 + $0x8] sm:$0xff]
  %v716 = vld [vmem:[%s713 + $0x10] sm:$0xff]
  %v717 = vld [vmem:[%s713 + $0x18] sm:$0xff]
  %v718 = vld [vmem:[%s713 + $0x20] sm:$0xff]
  %v719 = vld [vmem:[%s713 + $0x28] sm:$0xff]
  %v720 = vld [vmem:[%s713 + $0x30] sm:$0xff]
  %v721 = vld [vmem:[%s713 + $0x38] sm:$0xff]
  %v722 = vld [vmem:[%s713 + $0x40] sm:$0xff]
  %v723 = vld [vmem:[%s713 + $0x48] sm:$0xff]
  %v724 = vld [vmem:[%s713 + $0x50] sm:$0xff]
  %v725 = vld [vmem:[%s713 + $0x58] sm:$0xff]
  %v726 = vld [vmem:[%s713 + $0x60] sm:$0xff]
  %v727 = vld [vmem:[%s713 + $0x68] sm:$0xff]
  %v728 = vld [vmem:[%s713 + $0x70] sm:$0xff]
  %v729 = vld [vmem:[%s713 + $0x78] sm:$0xff]
  %v730 = vld [vmem:[%s713 + $0x80] sm:$0xff]
  %v731 = vld [vmem:[%s713 + $0x88] sm:$0xff]
  %v732 = vld [vmem:[%s713 + $0x90] sm:$0xff]
  %v733 = vld [vmem:[%s713 + $0x98] sm:$0xff]
  %v734 = vld [vmem:[%s713 + $0xa0] sm:$0xff]
  %v735 = vld [vmem:[%s713 + $0xa8] sm:$0xff]
  %v736 = vld [vmem:[%s713 + $0xb0] sm:$0xff]
  %v737 = vld [vmem:[%s713 + $0xb8] sm:$0xff]
  %v738 = vld [vmem:[%s713 + $0xc0] sm:$0xff]
  %v739 = vld [vmem:[%s713 + $0xc8] sm:$0xff]
  %v740 = vld [vmem:[%s713 + $0xd0] sm:$0xff]
  %v741 = vld [vmem:[%s713 + $0xd8] sm:$0xff]
  %v742 = vld [vmem:[%s713 + $0xe0] sm:$0xff]
  %v743 = vld [vmem:[%s713 + $0xe8] sm:$0xff]
  %v744 = vld [vmem:[%s713 + $0xf0] sm:$0xff]
  %v745 = vld [vmem:[%s713 + $0xf8] sm:$0xff]
  %v746 = vld [vmem:[%s713 + $0x100] sm:$0xff]
  %v747 = vld [vmem:[%s713 + $0x108] sm:$0xff]
  %v748 = vld [vmem:[%s713 + $0x110] sm:$0xff]
  %v749 = vld [vmem:[%s713 + $0x118] sm:$0xff]
  %v750 = vld [vmem:[%s713 + $0x120] sm:$0xff]
  %v751 = vld [vmem:[%s713 + $0x128] sm:$0xff]
  %v752 = vld [vmem:[%s713 + $0x130] sm:$0xff]
  %v753 = vld [vmem:[%s713 + $0x138] sm:$0xff]
  %v754 = vld [vmem:[%s713 + $0x140] sm:$0xff]
  %v755 = vld [vmem:[%s713 + $0x148] sm:$0xff]
  %v756 = vld [vmem:[%s713 + $0x150] sm:$0xff]
  %v757 = vld [vmem:[%s713 + $0x158] sm:$0xff]
  %v758 = vld [vmem:[%s713 + $0x160] sm:$0xff]
  %v759 = vld [vmem:[%s713 + $0x168] sm:$0xff]
  %v760 = vld [vmem:[%s713 + $0x170] sm:$0xff]
  %v761 = vld [vmem:[%s713 + $0x178] sm:$0xff]
  %v762 = vld [vmem:[%s713 + $0x180] sm:$0xff]
  %v763 = vld [vmem:[%s713 + $0x188] sm:$0xff]
  %764 = vmatprep.subr.mxu0 0.0
  %765 = vmatpush1.msra.mxu0 %v714
  %766 = vmatprep.subr.mxu0 0.0
  %767 = vmatpush1.msra.mxu0 %v715
  %768 = vmatprep.subr.mxu0 0.0
  %769 = vmatpush1.msra.mxu0 %v716
  %770 = vmatprep.subr.mxu0 0.0
  %771 = vmatpush1.msra.mxu0 %v717
  %772 = vmatprep.subr.mxu0 0.0
  %773 = vmatpush1.msra.mxu0 %v718
  %774 = vmatprep.subr.mxu0 0.0
  %775 = vmatpush1.msra.mxu0 %v719
  %776 = vmatprep.subr.mxu0 0.0
  %777 = vmatpush1.msra.mxu0 %v720
  %778 = vmatprep.subr.mxu0 0.0
  %779 = vmatpush1.msra.mxu0 %v721
  %780 = vmatprep.subr.mxu0 0.0
  %781 = vmatpush1.msra.mxu0 %v722
  %782 = vmatprep.subr.mxu0 0.0
  %783 = vmatpush1.msra.mxu0 %v723
  %784 = vmatprep.subr.mxu0 0.0
  %785 = vmatpush1.msra.mxu0 %v724
  %786 = vmatprep.subr.mxu0 0.0
  %787 = vmatpush1.msra.mxu0 %v725
  %788 = vmatprep.subr.mxu0 0.0
  %789 = vmatpush1.msra.mxu0 %v726
  %790 = vmatprep.subr.mxu0 0.0
  %791 = vmatpush1.msra.mxu0 %v727
  %792 = vmatprep.subr.mxu0 0.0
  %793 = vmatpush1.msra.mxu0 %v728
  %794 = vmatprep.subr.mxu0 0.0
  %795 = vmatpush1.msra.mxu0 %v729
  %796 = vmatprep.subr.mxu0 0.0
  %797 = vmatpush1.msra.mxu0 %v730
  %798 = vmatprep.subr.mxu0 0.0
  %799 = vmatpush1.msra.mxu0 %v731
  %800 = vmatprep.subr.mxu0 0.0
  %801 = vmatpush1.msra.mxu0 %v732
  %802 = vmatprep.subr.mxu0 0.0
  %803 = vmatpush1.msra.mxu0 %v733
  %804 = vmatprep.subr.mxu0 0.0
  %805 = vmatpush1.msra.mxu0 %v734
  %806 = vmatprep.subr.mxu0 0.0
  %807 = vmatpush1.msra.mxu0 %v735
  %808 = vmatprep.subr.mxu0 0.0
  %809 = vmatpush1.msra.mxu0 %v736
  %810 = vmatprep.subr.mxu0 0.0
  %811 = vmatpush1.msra.mxu0 %v737
  %812 = vmatprep.subr.mxu0 0.0
  %813 = vmatpush1.msra.mxu0 %v738
  %814 = vmatprep.subr.mxu0 0.0
  %815 = vmatpush1.msra.mxu0 %v739
  %816 = vmatprep.subr.mxu0 0.0
  %817 = vmatpush1.msra.mxu0 %v740
  %818 = vmatprep.subr.mxu0 0.0
  %819 = vmatpush1.msra.mxu0 %v741
  %820 = vmatprep.subr.mxu0 0.0
  %821 = vmatpush1.msra.mxu0 %v742
  %822 = vmatprep.subr.mxu0 0.0
  %823 = vmatpush1.msra.mxu0 %v743
  %824 = vmatprep.subr.mxu0 0.0
  %825 = vmatpush1.msra.mxu0 %v744
  %826 = vmatprep.subr.mxu0 0.0
  %827 = vmatpush1.msra.mxu0 %v745
  %828 = vmatprep.mubr.f32.mxu0 %v15
  %829 = vmatmul.mubr.f32.gmra.mrb[0].mxu0 %v14
  %v830 = vpop.f32.mrb[0].mxu0
  %v831 = vadd.f32 0.0, %v830
  %v832 = vpop.f32.mrb[0].mxu0
  %833 = vmatprep.mubr.f32.mxu0 %v19
  %834 = vmatmul.mubr.f32.gmra.mrb[0].mxu0 %v18
  %v835 = vpop.f32.mrb[0].mxu0
  %v836 = vadd.f32 0.0, %v835
  %v837 = vpop.f32.mrb[0].mxu0
  %838 = vmatprep.mubr.f32.mxu0 %v23
  %839 = vmatmul.mubr.f32.gmra.mrb[0].mxu0 %v22
  %v840 = vpop.f32.mrb[0].mxu0
  %v841 = vadd.f32 0.0, %v840
  %v842 = vpop.f32.mrb[0].mxu0
  %843 = vmatprep.mubr.f32.mxu0 %v27
  %844 = vmatmul.mubr.f32.gmra.mrb[0].mxu0 %v26
  %v845 = vpop.f32.mrb[0].mxu0
  %v846 = vadd.f32 0.0, %v845
  %v847 = vpop.f32.mrb[0].mxu0
  %848 = vdwg.mxu0
  %849 = vmatprep.subr.mxu0 0.0
  %850 = vmatpush1.msra.mxu0 %v746
  %851 = vmatprep.subr.mxu0 0.0
  %852 = vmatpush1.msra.mxu0 %v747
  %853 = vmatprep.subr.mxu0 0.0
  %854 = vmatpush1.msra.mxu0 %v748
  %855 = vmatprep.subr.mxu0 0.0
  %856 = vmatpush1.msra.mxu0 %v749
  %857 = vmatprep.subr.mxu0 0.0
  %858 = vmatpush1.msra.mxu0 %v750
  %859 = vmatprep.subr.mxu0 0.0
  %860 = vmatpush1.msra.mxu0 %v751
  %861 = vmatprep.subr.mxu0 0.0
  %862 = vmatpush1.msra.mxu0 %v752
  %863 = vmatprep.subr.mxu0 0.0
  %864 = vmatpush1.msra.mxu0 %v753
  %865 = vmatprep.subr.mxu0 0.0
  %866 = vmatpush1.msra.mxu0 %v754
  %867 = vmatprep.subr.mxu0 0.0
  %868 = vmatpush1.msra.mxu0 %v755
  %869 = vmatprep.subr.mxu0 0.0
  %870 = vmatpush1.msra.mxu0 %v756
  %871 = vmatprep.subr.mxu0 0.0
  %872 = vmatpush1.msra.mxu0 %v757
  %873 = vmatprep.subr.mxu0 0.0
  %874 = vmatpush1.msra.mxu0 %v758
  %875 = vmatprep.subr.mxu0 0.0
  %876 = vmatpush1.msra.mxu0 %v759
  %877 = vmatprep.subr.mxu0 0.0
  %878 = vmatpush1.msra.mxu0 %v760
  %879 = vmatprep.subr.mxu0 0.0
  %880 = vmatpush1.msra.mxu0 %v761
  %881 = vmatprep.subr.mxu0 0.0
  %882 = vmatpush1.msra.mxu0 %v762
  %883 = vmatprep.subr.mxu0 0.0
  %884 = vmatpush1.msra.mxu0 %v763
  %885 = vmatprep.subr.mxu0 0.0
  %886 = vmatpush1.msra.mxu0 0.0
  %887 = vmatprep.subr.mxu0 0.0
  %888 = vmatpush1.msra.mxu0 0.0
  %889 = vmatprep.subr.mxu0 0.0
  %890 = vmatpush1.msra.mxu0 0.0
  %891 = vmatprep.subr.mxu0 0.0
  %892 = vmatpush1.msra.mxu0 0.0
  %893 = vmatprep.subr.mxu0 0.0
  %894 = vmatpush1.msra.mxu0 0.0
  %895 = vmatprep.subr.mxu0 0.0
  %896 = vmatpush1.msra.mxu0 0.0
  %897 = vmatprep.subr.mxu0 0.0
  %898 = vmatpush1.msra.mxu0 0.0
  %899 = vmatprep.subr.mxu0 0.0
  %900 = vmatpush1.msra.mxu0 0.0
  %901 = vmatprep.subr.mxu0 0.0
  %902 = vmatpush1.msra.mxu0 0.0
  %903 = vmatprep.subr.mxu0 0.0
  %904 = vmatpush1.msra.mxu0 0.0
  %905 = vmatprep.subr.mxu0 0.0
  %906 = vmatpush1.msra.mxu0 0.0
  %907 = vmatprep.subr.mxu0 0.0
  %908 = vmatpush1.msra.mxu0 0.0
  %909 = vmatprep.subr.mxu0 0.0
  %910 = vmatpush1.msra.mxu0 0.0
  %911 = vmatprep.subr.mxu0 0.0
  %912 = vmatpush1.msra.mxu0 0.0
  %913 = vmatprep.mubr.f32.mxu0 %v82
  %914 = vmatmul.mubr.f32.gmra.mrb[0].mxu0 %v16
  %v915 = vpop.f32.mrb[0].mxu0
  %v916 = vadd.f32 %v831, %v915
  %v917 = vpop.f32.mrb[0].mxu0
  %918 = vmatprep.mubr.f32.mxu0 %v85
  %919 = vmatmul.mubr.f32.gmra.mrb[0].mxu0 %v20
  %v920 = vpop.f32.mrb[0].mxu0
  %v921 = vadd.f32 %v836, %v920
  %v922 = vpop.f32.mrb[0].mxu0
  %923 = vmatprep.mubr.f32.mxu0 %v88
  %924 = vmatmul.mubr.f32.gmra.mrb[0].mxu0 %v24
  %v925 = vpop.f32.mrb[0].mxu0
  %v926 = vadd.f32 %v841, %v925
  %v927 = vpop.f32.mrb[0].mxu0
  %928 = vmatprep.mubr.f32.mxu0 %v91
  %929 = vmatmul.mubr.f32.gmra.mrb[0].mxu0 %v28
  %v930 = vpop.f32.mrb[0].mxu0
  %v931 = vadd.f32 %v846, %v930
  %v932 = vpop.f32.mrb[0].mxu0
  %933 = vdwg.mxu0
  %v934 = vmax.f32 %v709, %v916
  %v935 = vmax.f32 %v710, %v921
  %v936 = vmax.f32 %v711, %v926
  %v937 = vmax.f32 %v712, %v931
  %v938 = vld [vmem:[%s2] sm:$0xff]
  %v939 = vld [vmem:[%s2 + $0x8] sm:$0xff]
  %v940 = vld [vmem:[%s2 + $0x10] sm:$0xff]
  %v941 = vld [vmem:[%s2 + $0x18] sm:$0xff]
  %943 = vset.pattern.permute.xlu0 0
  %944 = vperm.xlu0 %943, %v938
  %v945 = vpop.permute.xlu0 %944
  %948 = vset.pattern.permute.xlu0 0
  %949 = vperm.xlu0 %948, %v939
  %v950 = vpop.permute.xlu0 %949
  %953 = vset.pattern.permute.xlu0 0
  %954 = vperm.xlu0 %953, %v940
  %v955 = vpop.permute.xlu0 %954
  %958 = vset.pattern.permute.xlu0 0
  %959 = vperm.xlu0 %958, %v941
  %v960 = vpop.permute.xlu0 %959
  %v962 = vadd.f32 %v934, %v945
  %v963 = vadd.f32 %v935, %v950
  %v964 = vadd.f32 %v936, %v955
  %v965 = vadd.f32 %v937, %v960
  %v966 = vmax.f32 %v962, 0.0
  %v967 = vmax.f32 %v963, 0.0
  %v968 = vmax.f32 %v964, 0.0
  %v969 = vmax.f32 %v965, 0.0
  %970 = vst [vmem:[%s3] sm:$0xff] %v966
  %971 = vst [vmem:[%s3 + $0x8] sm:$0xff] %v967
  %972 = vst [vmem:[%s3 + $0x10] sm:$0xff] %v968
  %973 = vst [vmem:[%s3 + $0x18] sm:$0xff] %v969
  // Predicated region
  $region14: #{net_forward.5} parent=0 // pred_check
    _
  $region15: #{net_forward.5} parent=0 // pred_check_branch
    %975 = sbr.rel (0) target = $region17
  $region16: #{net_forward.5} parent=0 // pred_region
    _
  $region17: #{net_forward.5} parent=0 // pred_fallthru
    _
  // Predicated region
  $region18: #{net_forward.5} parent=0 // pred_check
    _
  $region19: #{net_forward.5} parent=0 // pred_check_branch
    %977 = sbr.rel (0) target = $region21
  $region20: #{net_forward.5} parent=0 // pred_region
    _
  $region21: #{net_forward.5} parent=0 // pred_fallthru
    _

// kernel: net_forward.6
$region0: #{net_forward.6}
  #allocation0 [shape = 'u32[]', space=smem, size = 0x4, offset = 0x4, fixed_abs, tag = 'smem constant byte address 0x4 - core index']
  #allocation1 [shape = 'u32[144,128]{1,0:T(1,128)}', space=vmem, size = 0x12000, scoped, tag = 'internal scratch']
  %s0 = inlined_call_operand.vmem [shape: f32[4,32,800], index: 0, kind: input, shape index: {}]
  %s1 = inlined_call_operand.vmem [shape: f32[800,64], index: 1, kind: input, shape index: {}]
  %s2 = inlined_call_operand.vmem [shape: f32[1,64], index: 2, kind: input, shape index: {}]
  %s3 = inlined_call_operand.vmem [shape: f32[32,64], index: 3, kind: output, shape index: {}]
  %s4 = sld [smem:[#allocation0]]
  $region22: #{net_forward.6} parent=0
    _
  %s6 = ssub.s32 1, %s4
  %s7 = scalar_select 0, %s6, %s4
  // Predicated region
  $region2: #{net_forward.6} parent=0 // pred_check
    _
  $region3: #{net_forward.6} parent=0 // pred_check_branch
    %9 = sbr.rel (0) target = $region5
  $region4: #{net_forward.6} parent=0 // pred_region
    _
  $region5: #{net_forward.6} parent=0 // pred_fallthru
    _
  // Predicated region
  $region6: #{net_forward.6} parent=0 // pred_check
    _
  $region7: #{net_forward.6} parent=0 // pred_check_branch
    %11 = sbr.rel (0) target = $region9
  $region8: #{net_forward.6} parent=0 // pred_region
    _
  $region9: #{net_forward.6} parent=0 // pred_fallthru
    _
  // Predicated region
  $region10: #{net_forward.6} parent=0 // pred_check
    _
  $region11: #{net_forward.6} parent=0 // pred_check_branch
    %13 = sbr.rel (0) target = $region13
  $region12: #{net_forward.6} parent=0 // pred_region
    _
  $region13: #{net_forward.6} parent=0 // pred_fallthru
    _
  %v14 = vld [vmem:[%s1] sm:$0xff]
  %v15 = vld [vmem:[%s1 + $0x8] sm:$0xff]
  %v16 = vld [vmem:[%s1 + $0x10] sm:$0xff]
  %v17 = vld [vmem:[%s1 + $0x18] sm:$0xff]
  %v18 = vld [vmem:[%s1 + $0x20] sm:$0xff]
  %v19 = vld [vmem:[%s1 + $0x28] sm:$0xff]
  %v20 = vld [vmem:[%s1 + $0x30] sm:$0xff]
  %v21 = vld [vmem:[%s1 + $0x38] sm:$0xff]
  %v22 = vld [vmem:[%s1 + $0x40] sm:$0xff]
  %v23 = vld [vmem:[%s1 + $0x48] sm:$0xff]
  %v24 = vld [vmem:[%s1 + $0x50] sm:$0xff]
  %v25 = vld [vmem:[%s1 + $0x58] sm:$0xff]
  %v26 = vld [vmem:[%s1 + $0x60] sm:$0xff]
  %v27 = vld [vmem:[%s1 + $0x68] sm:$0xff]
  %v28 = vld [vmem:[%s1 + $0x70] sm:$0xff]
  %v29 = vld [vmem:[%s1 + $0x78] sm:$0xff]
  %v30 = vld [vmem:[%s1 + $0x80] sm:$0xff]
  %v31 = vld [vmem:[%s1 + $0x88] sm:$0xff]
  %v32 = vld [vmem:[%s1 + $0x90] sm:$0xff]
  %v33 = vld [vmem:[%s1 + $0x98] sm:$0xff]
  %v34 = vld [vmem:[%s1 + $0xa0] sm:$0xff]
  %v35 = vld [vmem:[%s1 + $0xa8] sm:$0xff]
  %v36 = vld [vmem:[%s1 + $0xb0] sm:$0xff]
  %v37 = vld [vmem:[%s1 + $0xb8] sm:$0xff]
  %v38 = vld [vmem:[%s1 + $0xc0] sm:$0xff]
  %v39 = vld [vmem:[%s1 + $0xc8] sm:$0xff]
  %v40 = vld [vmem:[%s1 + $0xd0] sm:$0xff]
  %v41 = vld [vmem:[%s1 + $0xd8] sm:$0xff]
  %v42 = vld [vmem:[%s1 + $0xe0] sm:$0xff]
  %v43 = vld [vmem:[%s1 + $0xe8] sm:$0xff]
  %v44 = vld [vmem:[%s1 + $0xf0] sm:$0xff]
  %v45 = vld [vmem:[%s1 + $0xf8] sm:$0xff]
  %v46 = vld [vmem:[%s1 + $0x100] sm:$0xff]
  %v47 = vld [vmem:[%s1 + $0x108] sm:$0xff]
  %v48 = vld [vmem:[%s1 + $0x110] sm:$0xff]
  %v49 = vld [vmem:[%s1 + $0x118] sm:$0xff]
  %v50 = vld [vmem:[%s1 + $0x120] sm:$0xff]
  %v51 = vld [vmem:[%s1 + $0x128] sm:$0xff]
  %v52 = vld [vmem:[%s1 + $0x130] sm:$0xff]
  %v53 = vld [vmem:[%s1 + $0x138] sm:$0xff]
  %v54 = vld [vmem:[%s1 + $0x140] sm:$0xff]
  %v55 = vld [vmem:[%s1 + $0x148] sm:$0xff]
  %v56 = vld [vmem:[%s1 + $0x150] sm:$0xff]
  %v57 = vld [vmem:[%s1 + $0x158] sm:$0xff]
  %v58 = vld [vmem:[%s1 + $0x160] sm:$0xff]
  %v59 = vld [vmem:[%s1 + $0x168] sm:$0xff]
  %v60 = vld [vmem:[%s1 + $0x170] sm:$0xff]
  %v61 = vld [vmem:[%s1 + $0x178] sm:$0xff]
  %v62 = vld [vmem:[%s1 + $0x180] sm:$0xff]
  %v63 = vld [vmem:[%s1 + $0x188] sm:$0xff]
  %v64 = vld [vmem:[%s1 + $0x190] sm:$0xff]
  %v65 = vld [vmem:[%s1 + $0x198] sm:$0xff]
  %v66 = vld [vmem:[%s1 + $0x1a0] sm:$0xff]
  %v67 = vld [vmem:[%s1 + $0x1a8] sm:$0xff]
  %v68 = vld [vmem:[%s1 + $0x1b0] sm:$0xff]
  %v69 = vld [vmem:[%s1 + $0x1b8] sm:$0xff]
  %v70 = vld [vmem:[%s1 + $0x1c0] sm:$0xff]
  %v71 = vld [vmem:[%s1 + $0x1c8] sm:$0xff]
  %v72 = vld [vmem:[%s1 + $0x1d0] sm:$0xff]
  %v73 = vld [vmem:[%s1 + $0x1d8] sm:$0xff]
  %v74 = vld [vmem:[%s1 + $0x1e0] sm:$0xff]
  %v75 = vld [vmem:[%s1 + $0x1e8] sm:$0xff]
  %v76 = vld [vmem:[%s1 + $0x1f0] sm:$0xff]
  %v77 = vld [vmem:[%s1 + $0x1f8] sm:$0xff]
  %v78 = vld [vmem:[%s1 + $0x200] sm:$0xff]
  %v79 = vld [vmem:[%s1 + $0x208] sm:$0xff]
  %v80 = vld [vmem:[%s1 + $0x210] sm:$0xff]
  %v81 = vld [vmem:[%s1 + $0x218] sm:$0xff]
  %v82 = vld [vmem:[%s1 + $0x220] sm:$0xff]
  %v83 = vld [vmem:[%s1 + $0x228] sm:$0xff]
  %v84 = vld [vmem:[%s1 + $0x230] sm:$0xff]
  %v85 = vld [vmem:[%s1 + $0x238] sm:$0xff]
  %v86 = vld [vmem:[%s1 + $0x240] sm:$0xff]
  %v87 = vld [vmem:[%s1 + $0x248] sm:$0xff]
  %v88 = vld [vmem:[%s1 + $0x250] sm:$0xff]
  %v89 = vld [vmem:[%s1 + $0x258] sm:$0xff]
  %v90 = vld [vmem:[%s1 + $0x260] sm:$0xff]
  %v91 = vld [vmem:[%s1 + $0x268] sm:$0xff]
  %v92 = vld [vmem:[%s1 + $0x270] sm:$0xff]
  %v93 = vld [vmem:[%s1 + $0x278] sm:$0xff]
  %v94 = vld [vmem:[%s1 + $0x280] sm:$0xff]
  %v95 = vld [vmem:[%s1 + $0x288] sm:$0xff]
  %v96 = vld [vmem:[%s1 + $0x290] sm:$0xff]
  %v97 = vld [vmem:[%s1 + $0x298] sm:$0xff]
  %v98 = vld [vmem:[%s1 + $0x2a0] sm:$0xff]
  %v99 = vld [vmem:[%s1 + $0x2a8] sm:$0xff]
  %v100 = vld [vmem:[%s1 + $0x2b0] sm:$0xff]
  %v101 = vld [vmem:[%s1 + $0x2b8] sm:$0xff]
  %v102 = vld [vmem:[%s1 + $0x2c0] sm:$0xff]
  %v103 = vld [vmem:[%s1 + $0x2c8] sm:$0xff]
  %v104 = vld [vmem:[%s1 + $0x2d0] sm:$0xff]
  %v105 = vld [vmem:[%s1 + $0x2d8] sm:$0xff]
  %v106 = vld [vmem:[%s1 + $0x2e0] sm:$0xff]
  %v107 = vld [vmem:[%s1 + $0x2e8] sm:$0xff]
  %v108 = vld [vmem:[%s1 + $0x2f0] sm:$0xff]
  %v109 = vld [vmem:[%s1 + $0x2f8] sm:$0xff]
  %v110 = vld [vmem:[%s1 + $0x300] sm:$0xff]
  %v111 = vld [vmem:[%s1 + $0x308] sm:$0xff]
  %v112 = vld [vmem:[%s1 + $0x310] sm:$0xff]
  %v113 = vld [vmem:[%s1 + $0x318] sm:$0xff]
  %v114 = vld [vmem:[%s0] sm:$0xff]
  %v115 = vld [vmem:[%s0 + $0x8] sm:$0xff]
  %v116 = vld [vmem:[%s0 + $0x10] sm:$0xff]
  %v117 = vld [vmem:[%s0 + $0x18] sm:$0xff]
  %v118 = vld [vmem:[%s0 + $0x20] sm:$0xff]
  %v119 = vld [vmem:[%s0 + $0x28] sm:$0xff]
  %v120 = vld [vmem:[%s0 + $0x30] sm:$0xff]
  %v121 = vld [vmem:[%s0 + $0x38] sm:$0xff]
  %v122 = vld [vmem:[%s0 + $0x40] sm:$0xff]
  %v123 = vld [vmem:[%s0 + $0x48] sm:$0xff]
  %v124 = vld [vmem:[%s0 + $0x50] sm:$0xff]
  %v125 = vld [vmem:[%s0 + $0x58] sm:$0xff]
  %v126 = vld [vmem:[%s0 + $0x60] sm:$0xff]
  %v127 = vld [vmem:[%s0 + $0x68] sm:$0xff]
  %v128 = vld [vmem:[%s0 + $0x70] sm:$0xff]
  %v129 = vld [vmem:[%s0 + $0x78] sm:$0xff]
  %v130 = vld [vmem:[%s0 + $0x80] sm:$0xff]
  %v131 = vld [vmem:[%s0 + $0x88] sm:$0xff]
  %v132 = vld [vmem:[%s0 + $0x90] sm:$0xff]
  %v133 = vld [vmem:[%s0 + $0x98] sm:$0xff]
  %v134 = vld [vmem:[%s0 + $0xa0] sm:$0xff]
  %v135 = vld [vmem:[%s0 + $0xa8] sm:$0xff]
  %v136 = vld [vmem:[%s0 + $0xb0] sm:$0xff]
  %v137 = vld [vmem:[%s0 + $0xb8] sm:$0xff]
  %v138 = vld [vmem:[%s0 + $0xc0] sm:$0xff]
  %v139 = vld [vmem:[%s0 + $0xc8] sm:$0xff]
  %v140 = vld [vmem:[%s0 + $0xd0] sm:$0xff]
  %v141 = vld [vmem:[%s0 + $0xd8] sm:$0xff]
  %vm142 = vcmask 261120
  %v144 = vsel %vm142, %v120, 0
  %v147 = vsel %vm142, %v127, 0
  %v150 = vsel %vm142, %v134, 0
  %v153 = vsel %vm142, %v141, 0
  %155 = vmatprep.subr.mxu0 0.0
  %156 = vmatpush1.msra.mxu0 %v14
  %157 = vmatprep.subr.mxu0 0.0
  %158 = vmatpush1.msra.mxu0 %v15
  %159 = vmatprep.subr.mxu0 0.0
  %160 = vmatpush1.msra.mxu0 %v16
  %161 = vmatprep.subr.mxu0 0.0
  %162 = vmatpush1.msra.mxu0 %v17
  %163 = vmatprep.subr.mxu0 0.0
  %164 = vmatpush1.msra.mxu0 %v18
  %165 = vmatprep.subr.mxu0 0.0
  %166 = vmatpush1.msra.mxu0 %v19
  %167 = vmatprep.subr.mxu0 0.0
  %168 = vmatpush1.msra.mxu0 %v20
  %169 = vmatprep.subr.mxu0 0.0
  %170 = vmatpush1.msra.mxu0 %v21
  %171 = vmatprep.subr.mxu0 0.0
  %172 = vmatpush1.msra.mxu0 %v22
  %173 = vmatprep.subr.mxu0 0.0
  %174 = vmatpush1.msra.mxu0 %v23
  %175 = vmatprep.subr.mxu0 0.0
  %176 = vmatpush1.msra.mxu0 %v24
  %177 = vmatprep.subr.mxu0 0.0
  %178 = vmatpush1.msra.mxu0 %v25
  %179 = vmatprep.subr.mxu0 0.0
  %180 = vmatpush1.msra.mxu0 %v26
  %181 = vmatprep.subr.mxu0 0.0
  %182 = vmatpush1.msra.mxu0 %v27
  %183 = vmatprep.subr.mxu0 0.0
  %184 = vmatpush1.msra.mxu0 %v28
  %185 = vmatprep.subr.mxu0 0.0
  %186 = vmatpush1.msra.mxu0 %v29
  %187 = vmatprep.subr.mxu0 0.0
  %188 = vmatpush1.msra.mxu0 %v30
  %189 = vmatprep.subr.mxu0 0.0
  %190 = vmatpush1.msra.mxu0 %v31
  %191 = vmatprep.subr.mxu0 0.0
  %192 = vmatpush1.msra.mxu0 %v32
  %193 = vmatprep.subr.mxu0 0.0
  %194 = vmatpush1.msra.mxu0 %v33
  %195 = vmatprep.subr.mxu0 0.0
  %196 = vmatpush1.msra.mxu0 %v34
  %197 = vmatprep.subr.mxu0 0.0
  %198 = vmatpush1.msra.mxu0 %v35
  %199 = vmatprep.subr.mxu0 0.0
  %200 = vmatpush1.msra.mxu0 %v36
  %201 = vmatprep.subr.mxu0 0.0
  %202 = vmatpush1.msra.mxu0 %v37
  %203 = vmatprep.subr.mxu0 0.0
  %204 = vmatpush1.msra.mxu0 %v38
  %205 = vmatprep.subr.mxu0 0.0
  %206 = vmatpush1.msra.mxu0 %v39
  %207 = vmatprep.subr.mxu0 0.0
  %208 = vmatpush1.msra.mxu0 %v40
  %209 = vmatprep.subr.mxu0 0.0
  %210 = vmatpush1.msra.mxu0 %v41
  %211 = vmatprep.subr.mxu0 0.0
  %212 = vmatpush1.msra.mxu0 %v42
  %213 = vmatprep.subr.mxu0 0.0
  %214 = vmatpush1.msra.mxu0 %v43
  %215 = vmatprep.subr.mxu0 0.0
  %216 = vmatpush1.msra.mxu0 %v44
  %217 = vmatprep.subr.mxu0 0.0
  %218 = vmatpush1.msra.mxu0 %v45
  %219 = vmatprep.mubr.f32.mxu0 %v115
  %220 = vmatmul.mubr.f32.gmra.mrb[0].mxu0 %v114
  %v221 = vpop.f32.mrb[0].mxu0
  %v222 = vadd.f32 0.0, %v221
  %v223 = vpop.f32.mrb[0].mxu0
  %224 = vmatprep.mubr.f32.mxu0 %v122
  %225 = vmatmul.mubr.f32.gmra.mrb[0].mxu0 %v121
  %v226 = vpop.f32.mrb[0].mxu0
  %v227 = vadd.f32 0.0, %v226
  %v228 = vpop.f32.mrb[0].mxu0
  %229 = vmatprep.mubr.f32.mxu0 %v129
  %230 = vmatmul.mubr.f32.gmra.mrb[0].mxu0 %v128
  %v231 = vpop.f32.mrb[0].mxu0
  %v232 = vadd.f32 0.0, %v231
  %v233 = vpop.f32.mrb[0].mxu0
  %234 = vmatprep.mubr.f32.mxu0 %v136
  %235 = vmatmul.mubr.f32.gmra.mrb[0].mxu0 %v135
  %v236 = vpop.f32.mrb[0].mxu0
  %v237 = vadd.f32 0.0, %v236
  %v238 = vpop.f32.mrb[0].mxu0
  %239 = vdwg.mxu0
  %240 = vmatprep.subr.mxu0 0.0
  %241 = vmatpush1.msra.mxu0 %v46
  %242 = vmatprep.subr.mxu0 0.0
  %243 = vmatpush1.msra.mxu0 %v47
  %244 = vmatprep.subr.mxu0 0.0
  %245 = vmatpush1.msra.mxu0 %v48
  %246 = vmatprep.subr.mxu0 0.0
  %247 = vmatpush1.msra.mxu0 %v49
  %248 = vmatprep.subr.mxu0 0.0
  %249 = vmatpush1.msra.mxu0 %v50
  %250 = vmatprep.subr.mxu0 0.0
  %251 = vmatpush1.msra.mxu0 %v51
  %252 = vmatprep.subr.mxu0 0.0
  %253 = vmatpush1.msra.mxu0 %v52
  %254 = vmatprep.subr.mxu0 0.0
  %255 = vmatpush1.msra.mxu0 %v53
  %256 = vmatprep.subr.mxu0 0.0
  %257 = vmatpush1.msra.mxu0 %v54
  %258 = vmatprep.subr.mxu0 0.0
  %259 = vmatpush1.msra.mxu0 %v55
  %260 = vmatprep.subr.mxu0 0.0
  %261 = vmatpush1.msra.mxu0 %v56
  %262 = vmatprep.subr.mxu0 0.0
  %263 = vmatpush1.msra.mxu0 %v57
  %264 = vmatprep.subr.mxu0 0.0
  %265 = vmatpush1.msra.mxu0 %v58
  %266 = vmatprep.subr.mxu0 0.0
  %267 = vmatpush1.msra.mxu0 %v59
  %268 = vmatprep.subr.mxu0 0.0
  %269 = vmatpush1.msra.mxu0 %v60
  %270 = vmatprep.subr.mxu0 0.0
  %271 = vmatpush1.msra.mxu0 %v61
  %272 = vmatprep.subr.mxu0 0.0
  %273 = vmatpush1.msra.mxu0 %v62
  %274 = vmatprep.subr.mxu0 0.0
  %275 = vmatpush1.msra.mxu0 %v63
  %276 = vmatprep.subr.mxu0 0.0
  %277 = vmatpush1.msra.mxu0 %v64
  %278 = vmatprep.subr.mxu0 0.0
  %279 = vmatpush1.msra.mxu0 %v65
  %280 = vmatprep.subr.mxu0 0.0
  %281 = vmatpush1.msra.mxu0 %v66
  %282 = vmatprep.subr.mxu0 0.0
  %283 = vmatpush1.msra.mxu0 %v67
  %284 = vmatprep.subr.mxu0 0.0
  %285 = vmatpush1.msra.mxu0 %v68
  %286 = vmatprep.subr.mxu0 0.0
  %287 = vmatpush1.msra.mxu0 %v69
  %288 = vmatprep.subr.mxu0 0.0
  %289 = vmatpush1.msra.mxu0 %v70
  %290 = vmatprep.subr.mxu0 0.0
  %291 = vmatpush1.msra.mxu0 %v71
  %292 = vmatprep.subr.mxu0 0.0
  %293 = vmatpush1.msra.mxu0 %v72
  %294 = vmatprep.subr.mxu0 0.0
  %295 = vmatpush1.msra.mxu0 %v73
  %296 = vmatprep.subr.mxu0 0.0
  %297 = vmatpush1.msra.mxu0 %v74
  %298 = vmatprep.subr.mxu0 0.0
  %299 = vmatpush1.msra.mxu0 %v75
  %300 = vmatprep.subr.mxu0 0.0
  %301 = vmatpush1.msra.mxu0 %v76
  %302 = vmatprep.subr.mxu0 0.0
  %303 = vmatpush1.msra.mxu0 %v77
  %304 = vmatprep.mubr.f32.mxu0 %v117
  %305 = vmatmul.mubr.f32.gmra.mrb[0].mxu0 %v116
  %v306 = vpop.f32.mrb[0].mxu0
  %v307 = vadd.f32 %v222, %v306
  %v308 = vpop.f32.mrb[0].mxu0
  %309 = vmatprep.mubr.f32.mxu0 %v124
  %310 = vmatmul.mubr.f32.gmra.mrb[0].mxu0 %v123
  %v311 = vpop.f32.mrb[0].mxu0
  %v312 = vadd.f32 %v227, %v311
  %v313 = vpop.f32.mrb[0].mxu0
  %314 = vmatprep.mubr.f32.mxu0 %v131
  %315 = vmatmul.mubr.f32.gmra.mrb[0].mxu0 %v130
  %v316 = vpop.f32.mrb[0].mxu0
  %v317 = vadd.f32 %v232, %v316
  %v318 = vpop.f32.mrb[0].mxu0
  %319 = vmatprep.mubr.f32.mxu0 %v138
  %320 = vmatmul.mubr.f32.gmra.mrb[0].mxu0 %v137
  %v321 = vpop.f32.mrb[0].mxu0
  %v322 = vadd.f32 %v237, %v321
  %v323 = vpop.f32.mrb[0].mxu0
  %324 = vdwg.mxu0
  %325 = vmatprep.subr.mxu0 0.0
  %326 = vmatpush1.msra.mxu0 %v78
  %327 = vmatprep.subr.mxu0 0.0
  %328 = vmatpush1.msra.mxu0 %v79
  %329 = vmatprep.subr.mxu0 0.0
  %330 = vmatpush1.msra.mxu0 %v80
  %331 = vmatprep.subr.mxu0 0.0
  %332 = vmatpush1.msra.mxu0 %v81
  %333 = vmatprep.subr.mxu0 0.0
  %334 = vmatpush1.msra.mxu0 %v82
  %335 = vmatprep.subr.mxu0 0.0
  %336 = vmatpush1.msra.mxu0 %v83
  %337 = vmatprep.subr.mxu0 0.0
  %338 = vmatpush1.msra.mxu0 %v84
  %339 = vmatprep.subr.mxu0 0.0
  %340 = vmatpush1.msra.mxu0 %v85
  %341 = vmatprep.subr.mxu0 0.0
  %342 = vmatpush1.msra.mxu0 %v86
  %343 = vmatprep.subr.mxu0 0.0
  %344 = vmatpush1.msra.mxu0 %v87
  %345 = vmatprep.subr.mxu0 0.0
  %346 = vmatpush1.msra.mxu0 %v88
  %347 = vmatprep.subr.mxu0 0.0
  %348 = vmatpush1.msra.mxu0 %v89
  %349 = vmatprep.subr.mxu0 0.0
  %350 = vmatpush1.msra.mxu0 %v90
  %351 = vmatprep.subr.mxu0 0.0
  %352 = vmatpush1.msra.mxu0 %v91
  %353 = vmatprep.subr.mxu0 0.0
  %354 = vmatpush1.msra.mxu0 %v92
  %355 = vmatprep.subr.mxu0 0.0
  %356 = vmatpush1.msra.mxu0 %v93
  %357 = vmatprep.subr.mxu0 0.0
  %358 = vmatpush1.msra.mxu0 %v94
  %359 = vmatprep.subr.mxu0 0.0
  %360 = vmatpush1.msra.mxu0 %v95
  %361 = vmatprep.subr.mxu0 0.0
  %362 = vmatpush1.msra.mxu0 %v96
  %363 = vmatprep.subr.mxu0 0.0
  %364 = vmatpush1.msra.mxu0 %v97
  %365 = vmatprep.subr.mxu0 0.0
  %366 = vmatpush1.msra.mxu0 %v98
  %367 = vmatprep.subr.mxu0 0.0
  %368 = vmatpush1.msra.mxu0 %v99
  %369 = vmatprep.subr.mxu0 0.0
  %370 = vmatpush1.msra.mxu0 %v100
  %371 = vmatprep.subr.mxu0 0.0
  %372 = vmatpush1.msra.mxu0 %v101
  %373 = vmatprep.subr.mxu0 0.0
  %374 = vmatpush1.msra.mxu0 %v102
  %375 = vmatprep.subr.mxu0 0.0
  %376 = vmatpush1.msra.mxu0 %v103
  %377 = vmatprep.subr.mxu0 0.0
  %378 = vmatpush1.msra.mxu0 %v104
  %379 = vmatprep.subr.mxu0 0.0
  %380 = vmatpush1.msra.mxu0 %v105
  %381 = vmatprep.subr.mxu0 0.0
  %382 = vmatpush1.msra.mxu0 %v106
  %383 = vmatprep.subr.mxu0 0.0
  %384 = vmatpush1.msra.mxu0 %v107
  %385 = vmatprep.subr.mxu0 0.0
  %386 = vmatpush1.msra.mxu0 %v108
  %387 = vmatprep.subr.mxu0 0.0
  %388 = vmatpush1.msra.mxu0 %v109
  %389 = vmatprep.mubr.f32.mxu0 %v119
  %390 = vmatmul.mubr.f32.gmra.mrb[0].mxu0 %v118
  %v391 = vpop.f32.mrb[0].mxu0
  %v392 = vadd.f32 %v307, %v391
  %v393 = vpop.f32.mrb[0].mxu0
  %394 = vmatprep.mubr.f32.mxu0 %v126
  %395 = vmatmul.mubr.f32.gmra.mrb[0].mxu0 %v125
  %v396 = vpop.f32.mrb[0].mxu0
  %v397 = vadd.f32 %v312, %v396
  %v398 = vpop.f32.mrb[0].mxu0
  %399 = vmatprep.mubr.f32.mxu0 %v133
  %400 = vmatmul.mubr.f32.gmra.mrb[0].mxu0 %v132
  %v401 = vpop.f32.mrb[0].mxu0
  %v402 = vadd.f32 %v317, %v401
  %v403 = vpop.f32.mrb[0].mxu0
  %404 = vmatprep.mubr.f32.mxu0 %v140
  %405 = vmatmul.mubr.f32.gmra.mrb[0].mxu0 %v139
  %v406 = vpop.f32.mrb[0].mxu0
  %v407 = vadd.f32 %v322, %v406
  %v408 = vpop.f32.mrb[0].mxu0
  %409 = vdwg.mxu0
  %410 = vmatprep.subr.mxu0 0.0
  %411 = vmatpush1.msra.mxu0 %v110
  %412 = vmatprep.subr.mxu0 0.0
  %413 = vmatpush1.msra.mxu0 %v111
  %414 = vmatprep.subr.mxu0 0.0
  %415 = vmatpush1.msra.mxu0 %v112
  %416 = vmatprep.subr.mxu0 0.0
  %417 = vmatpush1.msra.mxu0 %v113
  %418 = vmatprep.subr.mxu0 0.0
  %419 = vmatpush1.msra.mxu0 0.0
  %420 = vmatprep.subr.mxu0 0.0
  %421 = vmatpush1.msra.mxu0 0.0
  %422 = vmatprep.subr.mxu0 0.0
  %423 = vmatpush1.msra.mxu0 0.0
  %424 = vmatprep.subr.mxu0 0.0
  %425 = vmatpush1.msra.mxu0 0.0
  %426 = vmatprep.subr.mxu0 0.0
  %427 = vmatpush1.msra.mxu0 0.0
  %428 = vmatprep.subr.mxu0 0.0
  %429 = vmatpush1.msra.mxu0 0.0
  %430 = vmatprep.subr.mxu0 0.0
  %431 = vmatpush1.msra.mxu0 0.0
  %432 = vmatprep.subr.mxu0 0.0
  %433 = vmatpush1.msra.mxu0 0.0
  %434 = vmatprep.subr.mxu0 0.0
  %435 = vmatpush1.msra.mxu0 0.0
  %436 = vmatprep.subr.mxu0 0.0
  %437 = vmatpush1.msra.mxu0 0.0
  %438 = vmatprep.subr.mxu0 0.0
  %439 = vmatpush1.msra.mxu0 0.0
  %440 = vmatprep.subr.mxu0 0.0
  %441 = vmatpush1.msra.mxu0 0.0
  %442 = vmatprep.subr.mxu0 0.0
  %443 = vmatpush1.msra.mxu0 0.0
  %444 = vmatprep.subr.mxu0 0.0
  %445 = vmatpush1.msra.mxu0 0.0
  %446 = vmatprep.subr.mxu0 0.0
  %447 = vmatpush1.msra.mxu0 0.0
  %448 = vmatprep.subr.mxu0 0.0
  %449 = vmatpush1.msra.mxu0 0.0
  %450 = vmatprep.subr.mxu0 0.0
  %451 = vmatpush1.msra.mxu0 0.0
  %452 = vmatprep.subr.mxu0 0.0
  %453 = vmatpush1.msra.mxu0 0.0
  %454 = vmatprep.subr.mxu0 0.0
  %455 = vmatpush1.msra.mxu0 0.0
  %456 = vmatprep.subr.mxu0 0.0
  %457 = vmatpush1.msra.mxu0 0.0
  %458 = vmatprep.subr.mxu0 0.0
  %459 = vmatpush1.msra.mxu0 0.0
  %460 = vmatprep.subr.mxu0 0.0
  %461 = vmatpush1.msra.mxu0 0.0
  %462 = vmatprep.subr.mxu0 0.0
  %463 = vmatpush1.msra.mxu0 0.0
  %464 = vmatprep.subr.mxu0 0.0
  %465 = vmatpush1.msra.mxu0 0.0
  %466 = vmatprep.subr.mxu0 0.0
  %467 = vmatpush1.msra.mxu0 0.0
  %468 = vmatprep.subr.mxu0 0.0
  %469 = vmatpush1.msra.mxu0 0.0
  %470 = vmatprep.subr.mxu0 0.0
  %471 = vmatpush1.msra.mxu0 0.0
  %472 = vmatprep.subr.mxu0 0.0
  %473 = vmatpush1.msra.mxu0 0.0
  %474 = vmatprep.mubr.f32.mxu0 0.0
  %475 = vmatmul.mubr.f32.gmra.mrb[0].mxu0 %v144
  %v476 = vpop.f32.mrb[0].mxu0
  %v477 = vadd.f32 %v392, %v476
  %v478 = vpop.f32.mrb[0].mxu0
  %479 = vmatprep.mubr.f32.mxu0 0.0
  %480 = vmatmul.mubr.f32.gmra.mrb[0].mxu0 %v147
  %v481 = vpop.f32.mrb[0].mxu0
  %v482 = vadd.f32 %v397, %v481
  %v483 = vpop.f32.mrb[0].mxu0
  %484 = vmatprep.mubr.f32.mxu0 0.0
  %485 = vmatmul.mubr.f32.gmra.mrb[0].mxu0 %v150
  %v486 = vpop.f32.mrb[0].mxu0
  %v487 = vadd.f32 %v402, %v486
  %v488 = vpop.f32.mrb[0].mxu0
  %489 = vmatprep.mubr.f32.mxu0 0.0
  %490 = vmatmul.mubr.f32.gmra.mrb[0].mxu0 %v153
  %v491 = vpop.f32.mrb[0].mxu0
  %v492 = vadd.f32 %v407, %v491
  %v493 = vpop.f32.mrb[0].mxu0
  %494 = vdwg.mxu0
  %s495 = scalar_lea.vmem %s0, 224
  %v496 = vld [vmem:[%s495] sm:$0xff]
  %v497 = vld [vmem:[%s495 + $0x8] sm:$0xff]
  %v498 = vld [vmem:[%s495 + $0x10] sm:$0xff]
  %v499 = vld [vmem:[%s495 + $0x18] sm:$0xff]
  %v500 = vld [vmem:[%s495 + $0x20] sm:$0xff]
  %v501 = vld [vmem:[%s495 + $0x28] sm:$0xff]
  %v502 = vld [vmem:[%s495 + $0x30] sm:$0xff]
  %v503 = vld [vmem:[%s495 + $0x38] sm:$0xff]
  %v504 = vld [vmem:[%s495 + $0x40] sm:$0xff]
  %v505 = vld [vmem:[%s495 + $0x48] sm:$0xff]
  %v506 = vld [vmem:[%s495 + $0x50] sm:$0xff]
  %v507 = vld [vmem:[%s495 + $0x58] sm:$0xff]
  %v508 = vld [vmem:[%s495 + $0x60] sm:$0xff]
  %v509 = vld [vmem:[%s495 + $0x68] sm:$0xff]
  %v510 = vld [vmem:[%s495 + $0x70] sm:$0xff]
  %v511 = vld [vmem:[%s495 + $0x78] sm:$0xff]
  %v512 = vld [vmem:[%s495 + $0x80] sm:$0xff]
  %v513 = vld [vmem:[%s495 + $0x88] sm:$0xff]
  %v514 = vld [vmem:[%s495 + $0x90] sm:$0xff]
  %v515 = vld [vmem:[%s495 + $0x98] sm:$0xff]
  %v516 = vld [vmem:[%s495 + $0xa0] sm:$0xff]
  %v517 = vld [vmem:[%s495 + $0xa8] sm:$0xff]
  %v518 = vld [vmem:[%s495 + $0xb0] sm:$0xff]
  %v519 = vld [vmem:[%s495 + $0xb8] sm:$0xff]
  %v520 = vld [vmem:[%s495 + $0xc0] sm:$0xff]
  %v521 = vld [vmem:[%s495 + $0xc8] sm:$0xff]
  %v522 = vld [vmem:[%s495 + $0xd0] sm:$0xff]
  %v523 = vld [vmem:[%s495 + $0xd8] sm:$0xff]
  %v525 = vsel %vm142, %v502, 0
  %v528 = vsel %vm142, %v509, 0
  %v531 = vsel %vm142, %v516, 0
  %v534 = vsel %vm142, %v523, 0
  %536 = vmatprep.subr.mxu0 0.0
  %537 = vmatpush1.msra.mxu0 %v14
  %538 = vmatprep.subr.mxu0 0.0
  %539 = vmatpush1.msra.mxu0 %v15
  %540 = vmatprep.subr.mxu0 0.0
  %541 = vmatpush1.msra.mxu0 %v16
  %542 = vmatprep.subr.mxu0 0.0
  %543 = vmatpush1.msra.mxu0 %v17
  %544 = vmatprep.subr.mxu0 0.0
  %545 = vmatpush1.msra.mxu0 %v18
  %546 = vmatprep.subr.mxu0 0.0
  %547 = vmatpush1.msra.mxu0 %v19
  %548 = vmatprep.subr.mxu0 0.0
  %549 = vmatpush1.msra.mxu0 %v20
  %550 = vmatprep.subr.mxu0 0.0
  %551 = vmatpush1.msra.mxu0 %v21
  %552 = vmatprep.subr.mxu0 0.0
  %553 = vmatpush1.msra.mxu0 %v22
  %554 = vmatprep.subr.mxu0 0.0
  %555 = vmatpush1.msra.mxu0 %v23
  %556 = vmatprep.subr.mxu0 0.0
  %557 = vmatpush1.msra.mxu0 %v24
  %558 = vmatprep.subr.mxu0 0.0
  %559 = vmatpush1.msra.mxu0 %v25
  %560 = vmatprep.subr.mxu0 0.0
  %561 = vmatpush1.msra.mxu0 %v26
  %562 = vmatprep.subr.mxu0 0.0
  %563 = vmatpush1.msra.mxu0 %v27
  %564 = vmatprep.subr.mxu0 0.0
  %565 = vmatpush1.msra.mxu0 %v28
  %566 = vmatprep.subr.mxu0 0.0
  %567 = vmatpush1.msra.mxu0 %v29
  %568 = vmatprep.subr.mxu0 0.0
  %569 = vmatpush1.msra.mxu0 %v30
  %570 = vmatprep.subr.mxu0 0.0
  %571 = vmatpush1.msra.mxu0 %v31
  %572 = vmatprep.subr.mxu0 0.0
  %573 = vmatpush1.msra.mxu0 %v32
  %574 = vmatprep.subr.mxu0 0.0
  %575 = vmatpush1.msra.mxu0 %v33
  %576 = vmatprep.subr.mxu0 0.0
  %577 = vmatpush1.msra.mxu0 %v34
  %578 = vmatprep.subr.mxu0 0.0
  %579 = vmatpush1.msra.mxu0 %v35
  %580 = vmatprep.subr.mxu0 0.0
  %581 = vmatpush1.msra.mxu0 %v36
  %582 = vmatprep.subr.mxu0 0.0
  %583 = vmatpush1.msra.mxu0 %v37
  %584 = vmatprep.subr.mxu0 0.0
  %585 = vmatpush1.msra.mxu0 %v38
  %586 = vmatprep.subr.mxu0 0.0
  %587 = vmatpush1.msra.mxu0 %v39
  %588 = vmatprep.subr.mxu0 0.0
  %589 = vmatpush1.msra.mxu0 %v40
  %590 = vmatprep.subr.mxu0 0.0
  %591 = vmatpush1.msra.mxu0 %v41
  %592 = vmatprep.subr.mxu0 0.0
  %593 = vmatpush1.msra.mxu0 %v42
  %594 = vmatprep.subr.mxu0 0.0
  %595 = vmatpush1.msra.mxu0 %v43
  %596 = vmatprep.subr.mxu0 0.0
  %597 = vmatpush1.msra.mxu0 %v44
  %598 = vmatprep.subr.mxu0 0.0
  %599 = vmatpush1.msra.mxu0 %v45
  %600 = vmatprep.mubr.f32.mxu0 %v497
  %601 = vmatmul.mubr.f32.gmra.mrb[0].mxu0 %v496
  %v602 = vpop.f32.mrb[0].mxu0
  %v603 = vadd.f32 0.0, %v602
  %v604 = vpop.f32.mrb[0].mxu0
  %605 = vmatprep.mubr.f32.mxu0 %v504
  %606 = vmatmul.mubr.f32.gmra.mrb[0].mxu0 %v503
  %v607 = vpop.f32.mrb[0].mxu0
  %v608 = vadd.f32 0.0, %v607
  %v609 = vpop.f32.mrb[0].mxu0
  %610 = vmatprep.mubr.f32.mxu0 %v511
  %611 = vmatmul.mubr.f32.gmra.mrb[0].mxu0 %v510
  %v612 = vpop.f32.mrb[0].mxu0
  %v613 = vadd.f32 0.0, %v612
  %v614 = vpop.f32.mrb[0].mxu0
  %615 = vmatprep.mubr.f32.mxu0 %v518
  %616 = vmatmul.mubr.f32.gmra.mrb[0].mxu0 %v517
  %v617 = vpop.f32.mrb[0].mxu0
  %v618 = vadd.f32 0.0, %v617
  %v619 = vpop.f32.mrb[0].mxu0
  %620 = vdwg.mxu0
  %621 = vmatprep.subr.mxu0 0.0
  %622 = vmatpush1.msra.mxu0 %v46
  %623 = vmatprep.subr.mxu0 0.0
  %624 = vmatpush1.msra.mxu0 %v47
  %625 = vmatprep.subr.mxu0 0.0
  %626 = vmatpush1.msra.mxu0 %v48
  %627 = vmatprep.subr.mxu0 0.0
  %628 = vmatpush1.msra.mxu0 %v49
  %629 = vmatprep.subr.mxu0 0.0
  %630 = vmatpush1.msra.mxu0 %v50
  %631 = vmatprep.subr.mxu0 0.0
  %632 = vmatpush1.msra.mxu0 %v51
  %633 = vmatprep.subr.mxu0 0.0
  %634 = vmatpush1.msra.mxu0 %v52
  %635 = vmatprep.subr.mxu0 0.0
  %636 = vmatpush1.msra.mxu0 %v53
  %637 = vmatprep.subr.mxu0 0.0
  %638 = vmatpush1.msra.mxu0 %v54
  %639 = vmatprep.subr.mxu0 0.0
  %640 = vmatpush1.msra.mxu0 %v55
  %641 = vmatprep.subr.mxu0 0.0
  %642 = vmatpush1.msra.mxu0 %v56
  %643 = vmatprep.subr.mxu0 0.0
  %644 = vmatpush1.msra.mxu0 %v57
  %645 = vmatprep.subr.mxu0 0.0
  %646 = vmatpush1.msra.mxu0 %v58
  %647 = vmatprep.subr.mxu0 0.0
  %648 = vmatpush1.msra.mxu0 %v59
  %649 = vmatprep.subr.mxu0 0.0
  %650 = vmatpush1.msra.mxu0 %v60
  %651 = vmatprep.subr.mxu0 0.0
  %652 = vmatpush1.msra.mxu0 %v61
  %653 = vmatprep.subr.mxu0 0.0
  %654 = vmatpush1.msra.mxu0 %v62
  %655 = vmatprep.subr.mxu0 0.0
  %656 = vmatpush1.msra.mxu0 %v63
  %657 = vmatprep.subr.mxu0 0.0
  %658 = vmatpush1.msra.mxu0 %v64
  %659 = vmatprep.subr.mxu0 0.0
  %660 = vmatpush1.msra.mxu0 %v65
  %661 = vmatprep.subr.mxu0 0.0
  %662 = vmatpush1.msra.mxu0 %v66
  %663 = vmatprep.subr.mxu0 0.0
  %664 = vmatpush1.msra.mxu0 %v67
  %665 = vmatprep.subr.mxu0 0.0
  %666 = vmatpush1.msra.mxu0 %v68
  %667 = vmatprep.subr.mxu0 0.0
  %668 = vmatpush1.msra.mxu0 %v69
  %669 = vmatprep.subr.mxu0 0.0
  %670 = vmatpush1.msra.mxu0 %v70
  %671 = vmatprep.subr.mxu0 0.0
  %672 = vmatpush1.msra.mxu0 %v71
  %673 = vmatprep.subr.mxu0 0.0
  %674 = vmatpush1.msra.mxu0 %v72
  %675 = vmatprep.subr.mxu0 0.0
  %676 = vmatpush1.msra.mxu0 %v73
  %677 = vmatprep.subr.mxu0 0.0
  %678 = vmatpush1.msra.mxu0 %v74
  %679 = vmatprep.subr.mxu0 0.0
  %680 = vmatpush1.msra.mxu0 %v75
  %681 = vmatprep.subr.mxu0 0.0
  %682 = vmatpush1.msra.mxu0 %v76
  %683 = vmatprep.subr.mxu0 0.0
  %684 = vmatpush1.msra.mxu0 %v77
  %685 = vmatprep.mubr.f32.mxu0 %v499
  %686 = vmatmul.mubr.f32.gmra.mrb[0].mxu0 %v498
  %v687 = vpop.f32.mrb[0].mxu0
  %v688 = vadd.f32 %v603, %v687
  %v689 = vpop.f32.mrb[0].mxu0
  %690 = vmatprep.mubr.f32.mxu0 %v506
  %691 = vmatmul.mubr.f32.gmra.mrb[0].mxu0 %v505
  %v692 = vpop.f32.mrb[0].mxu0
  %v693 = vadd.f32 %v608, %v692
  %v694 = vpop.f32.mrb[0].mxu0
  %695 = vmatprep.mubr.f32.mxu0 %v513
  %696 = vmatmul.mubr.f32.gmra.mrb[0].mxu0 %v512
  %v697 = vpop.f32.mrb[0].mxu0
  %v698 = vadd.f32 %v613, %v697
  %v699 = vpop.f32.mrb[0].mxu0
  %700 = vmatprep.mubr.f32.mxu0 %v520
  %701 = vmatmul.mubr.f32.gmra.mrb[0].mxu0 %v519
  %v702 = vpop.f32.mrb[0].mxu0
  %v703 = vadd.f32 %v618, %v702
  %v704 = vpop.f32.mrb[0].mxu0
  %705 = vdwg.mxu0
  %706 = vmatprep.subr.mxu0 0.0
  %707 = vmatpush1.msra.mxu0 %v78
  %708 = vmatprep.subr.mxu0 0.0
  %709 = vmatpush1.msra.mxu0 %v79
  %710 = vmatprep.subr.mxu0 0.0
  %711 = vmatpush1.msra.mxu0 %v80
  %712 = vmatprep.subr.mxu0 0.0
  %713 = vmatpush1.msra.mxu0 %v81
  %714 = vmatprep.subr.mxu0 0.0
  %715 = vmatpush1.msra.mxu0 %v82
  %716 = vmatprep.subr.mxu0 0.0
  %717 = vmatpush1.msra.mxu0 %v83
  %718 = vmatprep.subr.mxu0 0.0
  %719 = vmatpush1.msra.mxu0 %v84
  %720 = vmatprep.subr.mxu0 0.0
  %721 = vmatpush1.msra.mxu0 %v85
  %722 = vmatprep.subr.mxu0 0.0
  %723 = vmatpush1.msra.mxu0 %v86
  %724 = vmatprep.subr.mxu0 0.0
  %725 = vmatpush1.msra.mxu0 %v87
  %726 = vmatprep.subr.mxu0 0.0
  %727 = vmatpush1.msra.mxu0 %v88
  %728 = vmatprep.subr.mxu0 0.0
  %729 = vmatpush1.msra.mxu0 %v89
  %730 = vmatprep.subr.mxu0 0.0
  %731 = vmatpush1.msra.mxu0 %v90
  %732 = vmatprep.subr.mxu0 0.0
  %733 = vmatpush1.msra.mxu0 %v91
  %734 = vmatprep.subr.mxu0 0.0
  %735 = vmatpush1.msra.mxu0 %v92
  %736 = vmatprep.subr.mxu0 0.0
  %737 = vmatpush1.msra.mxu0 %v93
  %738 = vmatprep.subr.mxu0 0.0
  %739 = vmatpush1.msra.mxu0 %v94
  %740 = vmatprep.subr.mxu0 0.0
  %741 = vmatpush1.msra.mxu0 %v95
  %742 = vmatprep.subr.mxu0 0.0
  %743 = vmatpush1.msra.mxu0 %v96
  %744 = vmatprep.subr.mxu0 0.0
  %745 = vmatpush1.msra.mxu0 %v97
  %746 = vmatprep.subr.mxu0 0.0
  %747 = vmatpush1.msra.mxu0 %v98
  %748 = vmatprep.subr.mxu0 0.0
  %749 = vmatpush1.msra.mxu0 %v99
  %750 = vmatprep.subr.mxu0 0.0
  %751 = vmatpush1.msra.mxu0 %v100
  %752 = vmatprep.subr.mxu0 0.0
  %753 = vmatpush1.msra.mxu0 %v101
  %754 = vmatprep.subr.mxu0 0.0
  %755 = vmatpush1.msra.mxu0 %v102
  %756 = vmatprep.subr.mxu0 0.0
  %757 = vmatpush1.msra.mxu0 %v103
  %758 = vmatprep.subr.mxu0 0.0
  %759 = vmatpush1.msra.mxu0 %v104
  %760 = vmatprep.subr.mxu0 0.0
  %761 = vmatpush1.msra.mxu0 %v105
  %762 = vmatprep.subr.mxu0 0.0
  %763 = vmatpush1.msra.mxu0 %v106
  %764 = vmatprep.subr.mxu0 0.0
  %765 = vmatpush1.msra.mxu0 %v107
  %766 = vmatprep.subr.mxu0 0.0
  %767 = vmatpush1.msra.mxu0 %v108
  %768 = vmatprep.subr.mxu0 0.0
  %769 = vmatpush1.msra.mxu0 %v109
  %770 = vmatprep.mubr.f32.mxu0 %v501
  %771 = vmatmul.mubr.f32.gmra.mrb[0].mxu0 %v500
  %v772 = vpop.f32.mrb[0].mxu0
  %v773 = vadd.f32 %v688, %v772
  %v774 = vpop.f32.mrb[0].mxu0
  %775 = vmatprep.mubr.f32.mxu0 %v508
  %776 = vmatmul.mubr.f32.gmra.mrb[0].mxu0 %v507
  %v777 = vpop.f32.mrb[0].mxu0
  %v778 = vadd.f32 %v693, %v777
  %v779 = vpop.f32.mrb[0].mxu0
  %780 = vmatprep.mubr.f32.mxu0 %v515
  %781 = vmatmul.mubr.f32.gmra.mrb[0].mxu0 %v514
  %v782 = vpop.f32.mrb[0].mxu0
  %v783 = vadd.f32 %v698, %v782
  %v784 = vpop.f32.mrb[0].mxu0
  %785 = vmatprep.mubr.f32.mxu0 %v522
  %786 = vmatmul.mubr.f32.gmra.mrb[0].mxu0 %v521
  %v787 = vpop.f32.mrb[0].mxu0
  %v788 = vadd.f32 %v703, %v787
  %v789 = vpop.f32.mrb[0].mxu0
  %790 = vdwg.mxu0
  %791 = vmatprep.subr.mxu0 0.0
  %792 = vmatpush1.msra.mxu0 %v110
  %793 = vmatprep.subr.mxu0 0.0
  %794 = vmatpush1.msra.mxu0 %v111
  %795 = vmatprep.subr.mxu0 0.0
  %796 = vmatpush1.msra.mxu0 %v112
  %797 = vmatprep.subr.mxu0 0.0
  %798 = vmatpush1.msra.mxu0 %v113
  %799 = vmatprep.subr.mxu0 0.0
  %800 = vmatpush1.msra.mxu0 0.0
  %801 = vmatprep.subr.mxu0 0.0
  %802 = vmatpush1.msra.mxu0 0.0
  %803 = vmatprep.subr.mxu0 0.0
  %804 = vmatpush1.msra.mxu0 0.0
  %805 = vmatprep.subr.mxu0 0.0
  %806 = vmatpush1.msra.mxu0 0.0
  %807 = vmatprep.subr.mxu0 0.0
  %808 = vmatpush1.msra.mxu0 0.0
  %809 = vmatprep.subr.mxu0 0.0
  %810 = vmatpush1.msra.mxu0 0.0
  %811 = vmatprep.subr.mxu0 0.0
  %812 = vmatpush1.msra.mxu0 0.0
  %813 = vmatprep.subr.mxu0 0.0
  %814 = vmatpush1.msra.mxu0 0.0
  %815 = vmatprep.subr.mxu0 0.0
  %816 = vmatpush1.msra.mxu0 0.0
  %817 = vmatprep.subr.mxu0 0.0
  %818 = vmatpush1.msra.mxu0 0.0
  %819 = vmatprep.subr.mxu0 0.0
  %820 = vmatpush1.msra.mxu0 0.0
  %821 = vmatprep.subr.mxu0 0.0
  %822 = vmatpush1.msra.mxu0 0.0
  %823 = vmatprep.subr.mxu0 0.0
  %824 = vmatpush1.msra.mxu0 0.0
  %825 = vmatprep.subr.mxu0 0.0
  %826 = vmatpush1.msra.mxu0 0.0
  %827 = vmatprep.subr.mxu0 0.0
  %828 = vmatpush1.msra.mxu0 0.0
  %829 = vmatprep.subr.mxu0 0.0
  %830 = vmatpush1.msra.mxu0 0.0
  %831 = vmatprep.subr.mxu0 0.0
  %832 = vmatpush1.msra.mxu0 0.0
  %833 = vmatprep.subr.mxu0 0.0
  %834 = vmatpush1.msra.mxu0 0.0
  %835 = vmatprep.subr.mxu0 0.0
  %836 = vmatpush1.msra.mxu0 0.0
  %837 = vmatprep.subr.mxu0 0.0
  %838 = vmatpush1.msra.mxu0 0.0
  %839 = vmatprep.subr.mxu0 0.0
  %840 = vmatpush1.msra.mxu0 0.0
  %841 = vmatprep.subr.mxu0 0.0
  %842 = vmatpush1.msra.mxu0 0.0
  %843 = vmatprep.subr.mxu0 0.0
  %844 = vmatpush1.msra.mxu0 0.0
  %845 = vmatprep.subr.mxu0 0.0
  %846 = vmatpush1.msra.mxu0 0.0
  %847 = vmatprep.subr.mxu0 0.0
  %848 = vmatpush1.msra.mxu0 0.0
  %849 = vmatprep.subr.mxu0 0.0
  %850 = vmatpush1.msra.mxu0 0.0
  %851 = vmatprep.subr.mxu0 0.0
  %852 = vmatpush1.msra.mxu0 0.0
  %853 = vmatprep.subr.mxu0 0.0
  %854 = vmatpush1.msra.mxu0 0.0
  %855 = vmatprep.mubr.f32.mxu0 0.0
  %856 = vmatmul.mubr.f32.gmra.mrb[0].mxu0 %v525
  %v857 = vpop.f32.mrb[0].mxu0
  %v858 = vadd.f32 %v773, %v857
  %v859 = vpop.f32.mrb[0].mxu0
  %860 = vmatprep.mubr.f32.mxu0 0.0
  %861 = vmatmul.mubr.f32.gmra.mrb[0].mxu0 %v528
  %v862 = vpop.f32.mrb[0].mxu0
  %v863 = vadd.f32 %v778, %v862
  %v864 = vpop.f32.mrb[0].mxu0
  %865 = vmatprep.mubr.f32.mxu0 0.0
  %866 = vmatmul.mubr.f32.gmra.mrb[0].mxu0 %v531
  %v867 = vpop.f32.mrb[0].mxu0
  %v868 = vadd.f32 %v783, %v867
  %v869 = vpop.f32.mrb[0].mxu0
  %870 = vmatprep.mubr.f32.mxu0 0.0
  %871 = vmatmul.mubr.f32.gmra.mrb[0].mxu0 %v534
  %v872 = vpop.f32.mrb[0].mxu0
  %v873 = vadd.f32 %v788, %v872
  %v874 = vpop.f32.mrb[0].mxu0
  %875 = vdwg.mxu0
  %v876 = vmax.f32 %v477, %v858
  %v877 = vmax.f32 %v482, %v863
  %v878 = vmax.f32 %v487, %v868
  %v879 = vmax.f32 %v492, %v873
  %s880 = scalar_lea.vmem %s0, 448
  %v881 = vld [vmem:[%s880] sm:$0xff]
  %v882 = vld [vmem:[%s880 + $0x8] sm:$0xff]
  %v883 = vld [vmem:[%s880 + $0x10] sm:$0xff]
  %v884 = vld [vmem:[%s880 + $0x18] sm:$0xff]
  %v885 = vld [vmem:[%s880 + $0x20] sm:$0xff]
  %v886 = vld [vmem:[%s880 + $0x28] sm:$0xff]
  %v887 = vld [vmem:[%s880 + $0x30] sm:$0xff]
  %v888 = vld [vmem:[%s880 + $0x38] sm:$0xff]
  %v889 = vld [vmem:[%s880 + $0x40] sm:$0xff]
  %v890 = vld [vmem:[%s880 + $0x48] sm:$0xff]
  %v891 = vld [vmem:[%s880 + $0x50] sm:$0xff]
  %v892 = vld [vmem:[%s880 + $0x58] sm:$0xff]
  %v893 = vld [vmem:[%s880 + $0x60] sm:$0xff]
  %v894 = vld [vmem:[%s880 + $0x68] sm:$0xff]
  %v895 = vld [vmem:[%s880 + $0x70] sm:$0xff]
  %v896 = vld [vmem:[%s880 + $0x78] sm:$0xff]
  %v897 = vld [vmem:[%s880 + $0x80] sm:$0xff]
  %v898 = vld [vmem:[%s880 + $0x88] sm:$0xff]
  %v899 = vld [vmem:[%s880 + $0x90] sm:$0xff]
  %v900 = vld [vmem:[%s880 + $0x98] sm:$0xff]
  %v901 = vld [vmem:[%s880 + $0xa0] sm:$0xff]
  %v902 = vld [vmem:[%s880 + $0xa8] sm:$0xff]
  %v903 = vld [vmem:[%s880 + $0xb0] sm:$0xff]
  %v904 = vld [vmem:[%s880 + $0xb8] sm:$0xff]
  %v905 = vld [vmem:[%s880 + $0xc0] sm:$0xff]
  %v906 = vld [vmem:[%s880 + $0xc8] sm:$0xff]
  %v907 = vld [vmem:[%s880 + $0xd0] sm:$0xff]
  %v908 = vld [vmem:[%s880 + $0xd8] sm:$0xff]
  %v910 = vsel %vm142, %v887, 0
  %v913 = vsel %vm142, %v894, 0
  %v916 = vsel %vm142, %v901, 0
  %v919 = vsel %vm142, %v908, 0
  %921 = vmatprep.subr.mxu0 0.0
  %922 = vmatpush1.msra.mxu0 %v14
  %923 = vmatprep.subr.mxu0 0.0
  %924 = vmatpush1.msra.mxu0 %v15
  %925 = vmatprep.subr.mxu0 0.0
  %926 = vmatpush1.msra.mxu0 %v16
  %927 = vmatprep.subr.mxu0 0.0
  %928 = vmatpush1.msra.mxu0 %v17
  %929 = vmatprep.subr.mxu0 0.0
  %930 = vmatpush1.msra.mxu0 %v18
  %931 = vmatprep.subr.mxu0 0.0
  %932 = vmatpush1.msra.mxu0 %v19
  %933 = vmatprep.subr.mxu0 0.0
  %934 = vmatpush1.msra.mxu0 %v20
  %935 = vmatprep.subr.mxu0 0.0
  %936 = vmatpush1.msra.mxu0 %v21
  %937 = vmatprep.subr.mxu0 0.0
  %938 = vmatpush1.msra.mxu0 %v22
  %939 = vmatprep.subr.mxu0 0.0
  %940 = vmatpush1.msra.mxu0 %v23
  %941 = vmatprep.subr.mxu0 0.0
  %942 = vmatpush1.msra.mxu0 %v24
  %943 = vmatprep.subr.mxu0 0.0
  %944 = vmatpush1.msra.mxu0 %v25
  %945 = vmatprep.subr.mxu0 0.0
  %946 = vmatpush1.msra.mxu0 %v26
  %947 = vmatprep.subr.mxu0 0.0
  %948 = vmatpush1.msra.mxu0 %v27
  %949 = vmatprep.subr.mxu0 0.0
  %950 = vmatpush1.msra.mxu0 %v28
  %951 = vmatprep.subr.mxu0 0.0
  %952 = vmatpush1.msra.mxu0 %v29
  %953 = vmatprep.subr.mxu0 0.0
  %954 = vmatpush1.msra.mxu0 %v30
  %955 = vmatprep.subr.mxu0 0.0
  %956 = vmatpush1.msra.mxu0 %v31
  %957 = vmatprep.subr.mxu0 0.0
  %958 = vmatpush1.msra.mxu0 %v32
  %959 = vmatprep.subr.mxu0 0.0
  %960 = vmatpush1.msra.mxu0 %v33
  %961 = vmatprep.subr.mxu0 0.0
  %962 = vmatpush1.msra.mxu0 %v34
  %963 = vmatprep.subr.mxu0 0.0
  %964 = vmatpush1.msra.mxu0 %v35
  %965 = vmatprep.subr.mxu0 0.0
  %966 = vmatpush1.msra.mxu0 %v36
  %967 = vmatprep.subr.mxu0 0.0
  %968 = vmatpush1.msra.mxu0 %v37
  %969 = vmatprep.subr.mxu0 0.0
  %970 = vmatpush1.msra.mxu0 %v38
  %971 = vmatprep.subr.mxu0 0.0
  %972 = vmatpush1.msra.mxu0 %v39
  %973 = vmatprep.subr.mxu0 0.0
  %974 = vmatpush1.msra.mxu0 %v40
  %975 = vmatprep.subr.mxu0 0.0
  %976 = vmatpush1.msra.mxu0 %v41
  %977 = vmatprep.subr.mxu0 0.0
  %978 = vmatpush1.msra.mxu0 %v42
  %979 = vmatprep.subr.mxu0 0.0
  %980 = vmatpush1.msra.mxu0 %v43
  %981 = vmatprep.subr.mxu0 0.0
  %982 = vmatpush1.msra.mxu0 %v44
  %983 = vmatprep.subr.mxu0 0.0
  %984 = vmatpush1.msra.mxu0 %v45
  %985 = vmatprep.mubr.f32.mxu0 %v882
  %986 = vmatmul.mubr.f32.gmra.mrb[0].mxu0 %v881
  %v987 = vpop.f32.mrb[0].mxu0
  %v988 = vadd.f32 0.0, %v987
  %v989 = vpop.f32.mrb[0].mxu0
  %990 = vmatprep.mubr.f32.mxu0 %v889
  %991 = vmatmul.mubr.f32.gmra.mrb[0].mxu0 %v888
  %v992 = vpop.f32.mrb[0].mxu0
  %v993 = vadd.f32 0.0, %v992
  %v994 = vpop.f32.mrb[0].mxu0
  %995 = vmatprep.mubr.f32.mxu0 %v896
  %996 = vmatmul.mubr.f32.gmra.mrb[0].mxu0 %v895
  %v997 = vpop.f32.mrb[0].mxu0
  %v998 = vadd.f32 0.0, %v997
  %v999 = vpop.f32.mrb[0].mxu0
  %1000 = vmatprep.mubr.f32.mxu0 %v903
  %1001 = vmatmul.mubr.f32.gmra.mrb[0].mxu0 %v902
  %v1002 = vpop.f32.mrb[0].mxu0
  %v1003 = vadd.f32 0.0, %v1002
  %v1004 = vpop.f32.mrb[0].mxu0
  %1005 = vdwg.mxu0
  %1006 = vmatprep.subr.mxu0 0.0
  %1007 = vmatpush1.msra.mxu0 %v46
  %1008 = vmatprep.subr.mxu0 0.0
  %1009 = vmatpush1.msra.mxu0 %v47
  %1010 = vmatprep.subr.mxu0 0.0
  %1011 = vmatpush1.msra.mxu0 %v48
  %1012 = vmatprep.subr.mxu0 0.0
  %1013 = vmatpush1.msra.mxu0 %v49
  %1014 = vmatprep.subr.mxu0 0.0
  %1015 = vmatpush1.msra.mxu0 %v50
  %1016 = vmatprep.subr.mxu0 0.0
  %1017 = vmatpush1.msra.mxu0 %v51
  %1018 = vmatprep.subr.mxu0 0.0
  %1019 = vmatpush1.msra.mxu0 %v52
  %1020 = vmatprep.subr.mxu0 0.0
  %1021 = vmatpush1.msra.mxu0 %v53
  %1022 = vmatprep.subr.mxu0 0.0
  %1023 = vmatpush1.msra.mxu0 %v54
  %1024 = vmatprep.subr.mxu0 0.0
  %1025 = vmatpush1.msra.mxu0 %v55
  %1026 = vmatprep.subr.mxu0 0.0
  %1027 = vmatpush1.msra.mxu0 %v56
  %1028 = vmatprep.subr.mxu0 0.0
  %1029 = vmatpush1.msra.mxu0 %v57
  %1030 = vmatprep.subr.mxu0 0.0
  %1031 = vmatpush1.msra.mxu0 %v58
  %1032 = vmatprep.subr.mxu0 0.0
  %1033 = vmatpush1.msra.mxu0 %v59
  %1034 = vmatprep.subr.mxu0 0.0
  %1035 = vmatpush1.msra.mxu0 %v60
  %1036 = vmatprep.subr.mxu0 0.0
  %1037 = vmatpush1.msra.mxu0 %v61
  %1038 = vmatprep.subr.mxu0 0.0
  %1039 = vmatpush1.msra.mxu0 %v62
  %1040 = vmatprep.subr.mxu0 0.0
  %1041 = vmatpush1.msra.mxu0 %v63
  %1042 = vmatprep.subr.mxu0 0.0
  %1043 = vmatpush1.msra.mxu0 %v64
  %1044 = vmatprep.subr.mxu0 0.0
  %1045 = vmatpush1.msra.mxu0 %v65
  %1046 = vmatprep.subr.mxu0 0.0
  %1047 = vmatpush1.msra.mxu0 %v66
  %1048 = vmatprep.subr.mxu0 0.0
  %1049 = vmatpush1.msra.mxu0 %v67
  %1050 = vmatprep.subr.mxu0 0.0
  %1051 = vmatpush1.msra.mxu0 %v68
  %1052 = vmatprep.subr.mxu0 0.0
  %1053 = vmatpush1.msra.mxu0 %v69
  %1054 = vmatprep.subr.mxu0 0.0
  %1055 = vmatpush1.msra.mxu0 %v70
  %1056 = vmatprep.subr.mxu0 0.0
  %1057 = vmatpush1.msra.mxu0 %v71
  %1058 = vmatprep.subr.mxu0 0.0
  %1059 = vmatpush1.msra.mxu0 %v72
  %1060 = vmatprep.subr.mxu0 0.0
  %1061 = vmatpush1.msra.mxu0 %v73
  %1062 = vmatprep.subr.mxu0 0.0
  %1063 = vmatpush1.msra.mxu0 %v74
  %1064 = vmatprep.subr.mxu0 0.0
  %1065 = vmatpush1.msra.mxu0 %v75
  %1066 = vmatprep.subr.mxu0 0.0
  %1067 = vmatpush1.msra.mxu0 %v76
  %1068 = vmatprep.subr.mxu0 0.0
  %1069 = vmatpush1.msra.mxu0 %v77
  %1070 = vmatprep.mubr.f32.mxu0 %v884
  %1071 = vmatmul.mubr.f32.gmra.mrb[0].mxu0 %v883
  %v1072 = vpop.f32.mrb[0].mxu0
  %v1073 = vadd.f32 %v988, %v1072
  %v1074 = vpop.f32.mrb[0].mxu0
  %1075 = vmatprep.mubr.f32.mxu0 %v891
  %1076 = vmatmul.mubr.f32.gmra.mrb[0].mxu0 %v890
  %v1077 = vpop.f32.mrb[0].mxu0
  %v1078 = vadd.f32 %v993, %v1077
  %v1079 = vpop.f32.mrb[0].mxu0
  %1080 = vmatprep.mubr.f32.mxu0 %v898
  %1081 = vmatmul.mubr.f32.gmra.mrb[0].mxu0 %v897
  %v1082 = vpop.f32.mrb[0].mxu0
  %v1083 = vadd.f32 %v998, %v1082
  %v1084 = vpop.f32.mrb[0].mxu0
  %1085 = vmatprep.mubr.f32.mxu0 %v905
  %1086 = vmatmul.mubr.f32.gmra.mrb[0].mxu0 %v904
  %v1087 = vpop.f32.mrb[0].mxu0
  %v1088 = vadd.f32 %v1003, %v1087
  %v1089 = vpop.f32.mrb[0].mxu0
  %1090 = vdwg.mxu0
  %1091 = vmatprep.subr.mxu0 0.0
  %1092 = vmatpush1.msra.mxu0 %v78
  %1093 = vmatprep.subr.mxu0 0.0
  %1094 = vmatpush1.msra.mxu0 %v79
  %1095 = vmatprep.subr.mxu0 0.0
  %1096 = vmatpush1.msra.mxu0 %v80
  %1097 = vmatprep.subr.mxu0 0.0
  %1098 = vmatpush1.msra.mxu0 %v81
  %1099 = vmatprep.subr.mxu0 0.0
  %1100 = vmatpush1.msra.mxu0 %v82
  %1101 = vmatprep.subr.mxu0 0.0
  %1102 = vmatpush1.msra.mxu0 %v83
  %1103 = vmatprep.subr.mxu0 0.0
  %1104 = vmatpush1.msra.mxu0 %v84
  %1105 = vmatprep.subr.mxu0 0.0
  %1106 = vmatpush1.msra.mxu0 %v85
  %1107 = vmatprep.subr.mxu0 0.0
  %1108 = vmatpush1.msra.mxu0 %v86
  %1109 = vmatprep.subr.mxu0 0.0
  %1110 = vmatpush1.msra.mxu0 %v87
  %1111 = vmatprep.subr.mxu0 0.0
  %1112 = vmatpush1.msra.mxu0 %v88
  %1113 = vmatprep.subr.mxu0 0.0
  %1114 = vmatpush1.msra.mxu0 %v89
  %1115 = vmatprep.subr.mxu0 0.0
  %1116 = vmatpush1.msra.mxu0 %v90
  %1117 = vmatprep.subr.mxu0 0.0
  %1118 = vmatpush1.msra.mxu0 %v91
  %1119 = vmatprep.subr.mxu0 0.0
  %1120 = vmatpush1.msra.mxu0 %v92
  %1121 = vmatprep.subr.mxu0 0.0
  %1122 = vmatpush1.msra.mxu0 %v93
  %1123 = vmatprep.subr.mxu0 0.0
  %1124 = vmatpush1.msra.mxu0 %v94
  %1125 = vmatprep.subr.mxu0 0.0
  %1126 = vmatpush1.msra.mxu0 %v95
  %1127 = vmatprep.subr.mxu0 0.0
  %1128 = vmatpush1.msra.mxu0 %v96
  %1129 = vmatprep.subr.mxu0 0.0
  %1130 = vmatpush1.msra.mxu0 %v97
  %1131 = vmatprep.subr.mxu0 0.0
  %1132 = vmatpush1.msra.mxu0 %v98
  %1133 = vmatprep.subr.mxu0 0.0
  %1134 = vmatpush1.msra.mxu0 %v99
  %1135 = vmatprep.subr.mxu0 0.0
  %1136 = vmatpush1.msra.mxu0 %v100
  %1137 = vmatprep.subr.mxu0 0.0
  %1138 = vmatpush1.msra.mxu0 %v101
  %1139 = vmatprep.subr.mxu0 0.0
  %1140 = vmatpush1.msra.mxu0 %v102
  %1141 = vmatprep.subr.mxu0 0.0
  %1142 = vmatpush1.msra.mxu0 %v103
  %1143 = vmatprep.subr.mxu0 0.0
  %1144 = vmatpush1.msra.mxu0 %v104
  %1145 = vmatprep.subr.mxu0 0.0
  %1146 = vmatpush1.msra.mxu0 %v105
  %1147 = vmatprep.subr.mxu0 0.0
  %1148 = vmatpush1.msra.mxu0 %v106
  %1149 = vmatprep.subr.mxu0 0.0
  %1150 = vmatpush1.msra.mxu0 %v107
  %1151 = vmatprep.subr.mxu0 0.0
  %1152 = vmatpush1.msra.mxu0 %v108
  %1153 = vmatprep.subr.mxu0 0.0
  %1154 = vmatpush1.msra.mxu0 %v109
  %1155 = vmatprep.mubr.f32.mxu0 %v886
  %1156 = vmatmul.mubr.f32.gmra.mrb[0].mxu0 %v885
  %v1157 = vpop.f32.mrb[0].mxu0
  %v1158 = vadd.f32 %v1073, %v1157
  %v1159 = vpop.f32.mrb[0].mxu0
  %1160 = vmatprep.mubr.f32.mxu0 %v893
  %1161 = vmatmul.mubr.f32.gmra.mrb[0].mxu0 %v892
  %v1162 = vpop.f32.mrb[0].mxu0
  %v1163 = vadd.f32 %v1078, %v1162
  %v1164 = vpop.f32.mrb[0].mxu0
  %1165 = vmatprep.mubr.f32.mxu0 %v900
  %1166 = vmatmul.mubr.f32.gmra.mrb[0].mxu0 %v899
  %v1167 = vpop.f32.mrb[0].mxu0
  %v1168 = vadd.f32 %v1083, %v1167
  %v1169 = vpop.f32.mrb[0].mxu0
  %1170 = vmatprep.mubr.f32.mxu0 %v907
  %1171 = vmatmul.mubr.f32.gmra.mrb[0].mxu0 %v906
  %v1172 = vpop.f32.mrb[0].mxu0
  %v1173 = vadd.f32 %v1088, %v1172
  %v1174 = vpop.f32.mrb[0].mxu0
  %1175 = vdwg.mxu0
  %1176 = vmatprep.subr.mxu0 0.0
  %1177 = vmatpush1.msra.mxu0 %v110
  %1178 = vmatprep.subr.mxu0 0.0
  %1179 = vmatpush1.msra.mxu0 %v111
  %1180 = vmatprep.subr.mxu0 0.0
  %1181 = vmatpush1.msra.mxu0 %v112
  %1182 = vmatprep.subr.mxu0 0.0
  %1183 = vmatpush1.msra.mxu0 %v113
  %1184 = vmatprep.subr.mxu0 0.0
  %1185 = vmatpush1.msra.mxu0 0.0
  %1186 = vmatprep.subr.mxu0 0.0
  %1187 = vmatpush1.msra.mxu0 0.0
  %1188 = vmatprep.subr.mxu0 0.0
  %1189 = vmatpush1.msra.mxu0 0.0
  %1190 = vmatprep.subr.mxu0 0.0
  %1191 = vmatpush1.msra.mxu0 0.0
  %1192 = vmatprep.subr.mxu0 0.0
  %1193 = vmatpush1.msra.mxu0 0.0
  %1194 = vmatprep.subr.mxu0 0.0
  %1195 = vmatpush1.msra.mxu0 0.0
  %1196 = vmatprep.subr.mxu0 0.0
  %1197 = vmatpush1.msra.mxu0 0.0
  %1198 = vmatprep.subr.mxu0 0.0
  %1199 = vmatpush1.msra.mxu0 0.0
  %1200 = vmatprep.subr.mxu0 0.0
  %1201 = vmatpush1.msra.mxu0 0.0
  %1202 = vmatprep.subr.mxu0 0.0
  %1203 = vmatpush1.msra.mxu0 0.0
  %1204 = vmatprep.subr.mxu0 0.0
  %1205 = vmatpush1.msra.mxu0 0.0
  %1206 = vmatprep.subr.mxu0 0.0
  %1207 = vmatpush1.msra.mxu0 0.0
  %1208 = vmatprep.subr.mxu0 0.0
  %1209 = vmatpush1.msra.mxu0 0.0
  %1210 = vmatprep.subr.mxu0 0.0
  %1211 = vmatpush1.msra.mxu0 0.0
  %1212 = vmatprep.subr.mxu0 0.0
  %1213 = vmatpush1.msra.mxu0 0.0
  %1214 = vmatprep.subr.mxu0 0.0
  %1215 = vmatpush1.msra.mxu0 0.0
  %1216 = vmatprep.subr.mxu0 0.0
  %1217 = vmatpush1.msra.mxu0 0.0
  %1218 = vmatprep.subr.mxu0 0.0
  %1219 = vmatpush1.msra.mxu0 0.0
  %1220 = vmatprep.subr.mxu0 0.0
  %1221 = vmatpush1.msra.mxu0 0.0
  %1222 = vmatprep.subr.mxu0 0.0
  %1223 = vmatpush1.msra.mxu0 0.0
  %1224 = vmatprep.subr.mxu0 0.0
  %1225 = vmatpush1.msra.mxu0 0.0
  %1226 = vmatprep.subr.mxu0 0.0
  %1227 = vmatpush1.msra.mxu0 0.0
  %1228 = vmatprep.subr.mxu0 0.0
  %1229 = vmatpush1.msra.mxu0 0.0
  %1230 = vmatprep.subr.mxu0 0.0
  %1231 = vmatpush1.msra.mxu0 0.0
  %1232 = vmatprep.subr.mxu0 0.0
  %1233 = vmatpush1.msra.mxu0 0.0
  %1234 = vmatprep.subr.mxu0 0.0
  %1235 = vmatpush1.msra.mxu0 0.0
  %1236 = vmatprep.subr.mxu0 0.0
  %1237 = vmatpush1.msra.mxu0 0.0
  %1238 = vmatprep.subr.mxu0 0.0
  %1239 = vmatpush1.msra.mxu0 0.0
  %1240 = vmatprep.mubr.f32.mxu0 0.0
  %1241 = vmatmul.mubr.f32.gmra.mrb[0].mxu0 %v910
  %v1242 = vpop.f32.mrb[0].mxu0
  %v1243 = vadd.f32 %v1158, %v1242
  %v1244 = vpop.f32.mrb[0].mxu0
  %1245 = vmatprep.mubr.f32.mxu0 0.0
  %1246 = vmatmul.mubr.f32.gmra.mrb[0].mxu0 %v913
  %v1247 = vpop.f32.mrb[0].mxu0
  %v1248 = vadd.f32 %v1163, %v1247
  %v1249 = vpop.f32.mrb[0].mxu0
  %1250 = vmatprep.mubr.f32.mxu0 0.0
  %1251 = vmatmul.mubr.f32.gmra.mrb[0].mxu0 %v916
  %v1252 = vpop.f32.mrb[0].mxu0
  %v1253 = vadd.f32 %v1168, %v1252
  %v1254 = vpop.f32.mrb[0].mxu0
  %1255 = vmatprep.mubr.f32.mxu0 0.0
  %1256 = vmatmul.mubr.f32.gmra.mrb[0].mxu0 %v919
  %v1257 = vpop.f32.mrb[0].mxu0
  %v1258 = vadd.f32 %v1173, %v1257
  %v1259 = vpop.f32.mrb[0].mxu0
  %1260 = vdwg.mxu0
  %v1261 = vmax.f32 %v876, %v1243
  %v1262 = vmax.f32 %v877, %v1248
  %v1263 = vmax.f32 %v878, %v1253
  %v1264 = vmax.f32 %v879, %v1258
  %s1265 = scalar_lea.vmem %s0, 672
  %v1266 = vld [vmem:[%s1265] sm:$0xff]
  %v1267 = vld [vmem:[%s1265 + $0x8] sm:$0xff]
  %v1268 = vld [vmem:[%s1265 + $0x10] sm:$0xff]
  %v1269 = vld [vmem:[%s1265 + $0x18] sm:$0xff]
  %v1270 = vld [vmem:[%s1265 + $0x20] sm:$0xff]
  %v1271 = vld [vmem:[%s1265 + $0x28] sm:$0xff]
  %v1272 = vld [vmem:[%s1265 + $0x30] sm:$0xff]
  %v1273 = vld [vmem:[%s1265 + $0x38] sm:$0xff]
  %v1274 = vld [vmem:[%s1265 + $0x40] sm:$0xff]
  %v1275 = vld [vmem:[%s1265 + $0x48] sm:$0xff]
  %v1276 = vld [vmem:[%s1265 + $0x50] sm:$0xff]
  %v1277 = vld [vmem:[%s1265 + $0x58] sm:$0xff]
  %v1278 = vld [vmem:[%s1265 + $0x60] sm:$0xff]
  %v1279 = vld [vmem:[%s1265 + $0x68] sm:$0xff]
  %v1280 = vld [vmem:[%s1265 + $0x70] sm:$0xff]
  %v1281 = vld [vmem:[%s1265 + $0x78] sm:$0xff]
  %v1282 = vld [vmem:[%s1265 + $0x80] sm:$0xff]
  %v1283 = vld [vmem:[%s1265 + $0x88] sm:$0xff]
  %v1284 = vld [vmem:[%s1265 + $0x90] sm:$0xff]
  %v1285 = vld [vmem:[%s1265 + $0x98] sm:$0xff]
  %v1286 = vld [vmem:[%s1265 + $0xa0] sm:$0xff]
  %v1287 = vld [vmem:[%s1265 + $0xa8] sm:$0xff]
  %v1288 = vld [vmem:[%s1265 + $0xb0] sm:$0xff]
  %v1289 = vld [vmem:[%s1265 + $0xb8] sm:$0xff]
  %v1290 = vld [vmem:[%s1265 + $0xc0] sm:$0xff]
  %v1291 = vld [vmem:[%s1265 + $0xc8] sm:$0xff]
  %v1292 = vld [vmem:[%s1265 + $0xd0] sm:$0xff]
  %v1293 = vld [vmem:[%s1265 + $0xd8] sm:$0xff]
  %v1295 = vsel %vm142, %v1272, 0
  %v1298 = vsel %vm142, %v1279, 0
  %v1301 = vsel %vm142, %v1286, 0
  %v1304 = vsel %vm142, %v1293, 0
  %1306 = vmatprep.subr.mxu0 0.0
  %1307 = vmatpush1.msra.mxu0 %v14
  %1308 = vmatprep.subr.mxu0 0.0
  %1309 = vmatpush1.msra.mxu0 %v15
  %1310 = vmatprep.subr.mxu0 0.0
  %1311 = vmatpush1.msra.mxu0 %v16
  %1312 = vmatprep.subr.mxu0 0.0
  %1313 = vmatpush1.msra.mxu0 %v17
  %1314 = vmatprep.subr.mxu0 0.0
  %1315 = vmatpush1.msra.mxu0 %v18
  %1316 = vmatprep.subr.mxu0 0.0
  %1317 = vmatpush1.msra.mxu0 %v19
  %1318 = vmatprep.subr.mxu0 0.0
  %1319 = vmatpush1.msra.mxu0 %v20
  %1320 = vmatprep.subr.mxu0 0.0
  %1321 = vmatpush1.msra.mxu0 %v21
  %1322 = vmatprep.subr.mxu0 0.0
  %1323 = vmatpush1.msra.mxu0 %v22
  %1324 = vmatprep.subr.mxu0 0.0
  %1325 = vmatpush1.msra.mxu0 %v23
  %1326 = vmatprep.subr.mxu0 0.0
  %1327 = vmatpush1.msra.mxu0 %v24
  %1328 = vmatprep.subr.mxu0 0.0
  %1329 = vmatpush1.msra.mxu0 %v25
  %1330 = vmatprep.subr.mxu0 0.0
  %1331 = vmatpush1.msra.mxu0 %v26
  %1332 = vmatprep.subr.mxu0 0.0
  %1333 = vmatpush1.msra.mxu0 %v27
  %1334 = vmatprep.subr.mxu0 0.0
  %1335 = vmatpush1.msra.mxu0 %v28
  %1336 = vmatprep.subr.mxu0 0.0
  %1337 = vmatpush1.msra.mxu0 %v29
  %1338 = vmatprep.subr.mxu0 0.0
  %1339 = vmatpush1.msra.mxu0 %v30
  %1340 = vmatprep.subr.mxu0 0.0
  %1341 = vmatpush1.msra.mxu0 %v31
  %1342 = vmatprep.subr.mxu0 0.0
  %1343 = vmatpush1.msra.mxu0 %v32
  %1344 = vmatprep.subr.mxu0 0.0
  %1345 = vmatpush1.msra.mxu0 %v33
  %1346 = vmatprep.subr.mxu0 0.0
  %1347 = vmatpush1.msra.mxu0 %v34
  %1348 = vmatprep.subr.mxu0 0.0
  %1349 = vmatpush1.msra.mxu0 %v35
  %1350 = vmatprep.subr.mxu0 0.0
  %1351 = vmatpush1.msra.mxu0 %v36
  %1352 = vmatprep.subr.mxu0 0.0
  %1353 = vmatpush1.msra.mxu0 %v37
  %1354 = vmatprep.subr.mxu0 0.0
  %1355 = vmatpush1.msra.mxu0 %v38
  %1356 = vmatprep.subr.mxu0 0.0
  %1357 = vmatpush1.msra.mxu0 %v39
  %1358 = vmatprep.subr.mxu0 0.0
  %1359 = vmatpush1.msra.mxu0 %v40
  %1360 = vmatprep.subr.mxu0 0.0
  %1361 = vmatpush1.msra.mxu0 %v41
  %1362 = vmatprep.subr.mxu0 0.0
  %1363 = vmatpush1.msra.mxu0 %v42
  %1364 = vmatprep.subr.mxu0 0.0
  %1365 = vmatpush1.msra.mxu0 %v43
  %1366 = vmatprep.subr.mxu0 0.0
  %1367 = vmatpush1.msra.mxu0 %v44
  %1368 = vmatprep.subr.mxu0 0.0
  %1369 = vmatpush1.msra.mxu0 %v45
  %1370 = vmatprep.mubr.f32.mxu0 %v1267
  %1371 = vmatmul.mubr.f32.gmra.mrb[0].mxu0 %v1266
  %v1372 = vpop.f32.mrb[0].mxu0
  %v1373 = vadd.f32 0.0, %v1372
  %v1374 = vpop.f32.mrb[0].mxu0
  %1375 = vmatprep.mubr.f32.mxu0 %v1274
  %1376 = vmatmul.mubr.f32.gmra.mrb[0].mxu0 %v1273
  %v1377 = vpop.f32.mrb[0].mxu0
  %v1378 = vadd.f32 0.0, %v1377
  %v1379 = vpop.f32.mrb[0].mxu0
  %1380 = vmatprep.mubr.f32.mxu0 %v1281
  %1381 = vmatmul.mubr.f32.gmra.mrb[0].mxu0 %v1280
  %v1382 = vpop.f32.mrb[0].mxu0
  %v1383 = vadd.f32 0.0, %v1382
  %v1384 = vpop.f32.mrb[0].mxu0
  %1385 = vmatprep.mubr.f32.mxu0 %v1288
  %1386 = vmatmul.mubr.f32.gmra.mrb[0].mxu0 %v1287
  %v1387 = vpop.f32.mrb[0].mxu0
  %v1388 = vadd.f32 0.0, %v1387
  %v1389 = vpop.f32.mrb[0].mxu0
  %1390 = vdwg.mxu0
  %1391 = vmatprep.subr.mxu0 0.0
  %1392 = vmatpush1.msra.mxu0 %v46
  %1393 = vmatprep.subr.mxu0 0.0
  %1394 = vmatpush1.msra.mxu0 %v47
  %1395 = vmatprep.subr.mxu0 0.0
  %1396 = vmatpush1.msra.mxu0 %v48
  %1397 = vmatprep.subr.mxu0 0.0
  %1398 = vmatpush1.msra.mxu0 %v49
  %1399 = vmatprep.subr.mxu0 0.0
  %1400 = vmatpush1.msra.mxu0 %v50
  %1401 = vmatprep.subr.mxu0 0.0
  %1402 = vmatpush1.msra.mxu0 %v51
  %1403 = vmatprep.subr.mxu0 0.0
  %1404 = vmatpush1.msra.mxu0 %v52
  %1405 = vmatprep.subr.mxu0 0.0
  %1406 = vmatpush1.msra.mxu0 %v53
  %1407 = vmatprep.subr.mxu0 0.0
  %1408 = vmatpush1.msra.mxu0 %v54
  %1409 = vmatprep.subr.mxu0 0.0
  %1410 = vmatpush1.msra.mxu0 %v55
  %1411 = vmatprep.subr.mxu0 0.0
  %1412 = vmatpush1.msra.mxu0 %v56
  %1413 = vmatprep.subr.mxu0 0.0
  %1414 = vmatpush1.msra.mxu0 %v57
  %1415 = vmatprep.subr.mxu0 0.0
  %1416 = vmatpush1.msra.mxu0 %v58
  %1417 = vmatprep.subr.mxu0 0.0
  %1418 = vmatpush1.msra.mxu0 %v59
  %1419 = vmatprep.subr.mxu0 0.0
  %1420 = vmatpush1.msra.mxu0 %v60
  %1421 = vmatprep.subr.mxu0 0.0
  %1422 = vmatpush1.msra.mxu0 %v61
  %1423 = vmatprep.subr.mxu0 0.0
  %1424 = vmatpush1.msra.mxu0 %v62
  %1425 = vmatprep.subr.mxu0 0.0
  %1426 = vmatpush1.msra.mxu0 %v63
  %1427 = vmatprep.subr.mxu0 0.0
  %1428 = vmatpush1.msra.mxu0 %v64
  %1429 = vmatprep.subr.mxu0 0.0
  %1430 = vmatpush1.msra.mxu0 %v65
  %1431 = vmatprep.subr.mxu0 0.0
  %1432 = vmatpush1.msra.mxu0 %v66
  %1433 = vmatprep.subr.mxu0 0.0
  %1434 = vmatpush1.msra.mxu0 %v67
  %1435 = vmatprep.subr.mxu0 0.0
  %1436 = vmatpush1.msra.mxu0 %v68
  %1437 = vmatprep.subr.mxu0 0.0
  %1438 = vmatpush1.msra.mxu0 %v69
  %1439 = vmatprep.subr.mxu0 0.0
  %1440 = vmatpush1.msra.mxu0 %v70
  %1441 = vmatprep.subr.mxu0 0.0
  %1442 = vmatpush1.msra.mxu0 %v71
  %1443 = vmatprep.subr.mxu0 0.0
  %1444 = vmatpush1.msra.mxu0 %v72
  %1445 = vmatprep.subr.mxu0 0.0
  %1446 = vmatpush1.msra.mxu0 %v73
  %1447 = vmatprep.subr.mxu0 0.0
  %1448 = vmatpush1.msra.mxu0 %v74
  %1449 = vmatprep.subr.mxu0 0.0
  %1450 = vmatpush1.msra.mxu0 %v75
  %1451 = vmatprep.subr.mxu0 0.0
  %1452 = vmatpush1.msra.mxu0 %v76
  %1453 = vmatprep.subr.mxu0 0.0
  %1454 = vmatpush1.msra.mxu0 %v77
  %1455 = vmatprep.mubr.f32.mxu0 %v1269
  %1456 = vmatmul.mubr.f32.gmra.mrb[0].mxu0 %v1268
  %v1457 = vpop.f32.mrb[0].mxu0
  %v1458 = vadd.f32 %v1373, %v1457
  %v1459 = vpop.f32.mrb[0].mxu0
  %1460 = vmatprep.mubr.f32.mxu0 %v1276
  %1461 = vmatmul.mubr.f32.gmra.mrb[0].mxu0 %v1275
  %v1462 = vpop.f32.mrb[0].mxu0
  %v1463 = vadd.f32 %v1378, %v1462
  %v1464 = vpop.f32.mrb[0].mxu0
  %1465 = vmatprep.mubr.f32.mxu0 %v1283
  %1466 = vmatmul.mubr.f32.gmra.mrb[0].mxu0 %v1282
  %v1467 = vpop.f32.mrb[0].mxu0
  %v1468 = vadd.f32 %v1383, %v1467
  %v1469 = vpop.f32.mrb[0].mxu0
  %1470 = vmatprep.mubr.f32.mxu0 %v1290
  %1471 = vmatmul.mubr.f32.gmra.mrb[0].mxu0 %v1289
  %v1472 = vpop.f32.mrb[0].mxu0
  %v1473 = vadd.f32 %v1388, %v1472
  %v1474 = vpop.f32.mrb[0].mxu0
  %1475 = vdwg.mxu0
  %1476 = vmatprep.subr.mxu0 0.0
  %1477 = vmatpush1.msra.mxu0 %v78
  %1478 = vmatprep.subr.mxu0 0.0
  %1479 = vmatpush1.msra.mxu0 %v79
  %1480 = vmatprep.subr.mxu0 0.0
  %1481 = vmatpush1.msra.mxu0 %v80
  %1482 = vmatprep.subr.mxu0 0.0
  %1483 = vmatpush1.msra.mxu0 %v81
  %1484 = vmatprep.subr.mxu0 0.0
  %1485 = vmatpush1.msra.mxu0 %v82
  %1486 = vmatprep.subr.mxu0 0.0
  %1487 = vmatpush1.msra.mxu0 %v83
  %1488 = vmatprep.subr.mxu0 0.0
  %1489 = vmatpush1.msra.mxu0 %v84
  %1490 = vmatprep.subr.mxu0 0.0
  %1491 = vmatpush1.msra.mxu0 %v85
  %1492 = vmatprep.subr.mxu0 0.0
  %1493 = vmatpush1.msra.mxu0 %v86
  %1494 = vmatprep.subr.mxu0 0.0
  %1495 = vmatpush1.msra.mxu0 %v87
  %1496 = vmatprep.subr.mxu0 0.0
  %1497 = vmatpush1.msra.mxu0 %v88
  %1498 = vmatprep.subr.mxu0 0.0
  %1499 = vmatpush1.msra.mxu0 %v89
  %1500 = vmatprep.subr.mxu0 0.0
  %1501 = vmatpush1.msra.mxu0 %v90
  %1502 = vmatprep.subr.mxu0 0.0
  %1503 = vmatpush1.msra.mxu0 %v91
  %1504 = vmatprep.subr.mxu0 0.0
  %1505 = vmatpush1.msra.mxu0 %v92
  %1506 = vmatprep.subr.mxu0 0.0
  %1507 = vmatpush1.msra.mxu0 %v93
  %1508 = vmatprep.subr.mxu0 0.0
  %1509 = vmatpush1.msra.mxu0 %v94
  %1510 = vmatprep.subr.mxu0 0.0
  %1511 = vmatpush1.msra.mxu0 %v95
  %1512 = vmatprep.subr.mxu0 0.0
  %1513 = vmatpush1.msra.mxu0 %v96
  %1514 = vmatprep.subr.mxu0 0.0
  %1515 = vmatpush1.msra.mxu0 %v97
  %1516 = vmatprep.subr.mxu0 0.0
  %1517 = vmatpush1.msra.mxu0 %v98
  %1518 = vmatprep.subr.mxu0 0.0
  %1519 = vmatpush1.msra.mxu0 %v99
  %1520 = vmatprep.subr.mxu0 0.0
  %1521 = vmatpush1.msra.mxu0 %v100
  %1522 = vmatprep.subr.mxu0 0.0
  %1523 = vmatpush1.msra.mxu0 %v101
  %1524 = vmatprep.subr.mxu0 0.0
  %1525 = vmatpush1.msra.mxu0 %v102
  %1526 = vmatprep.subr.mxu0 0.0
  %1527 = vmatpush1.msra.mxu0 %v103
  %1528 = vmatprep.subr.mxu0 0.0
  %1529 = vmatpush1.msra.mxu0 %v104
  %1530 = vmatprep.subr.mxu0 0.0
  %1531 = vmatpush1.msra.mxu0 %v105
  %1532 = vmatprep.subr.mxu0 0.0
  %1533 = vmatpush1.msra.mxu0 %v106
  %1534 = vmatprep.subr.mxu0 0.0
  %1535 = vmatpush1.msra.mxu0 %v107
  %1536 = vmatprep.subr.mxu0 0.0
  %1537 = vmatpush1.msra.mxu0 %v108
  %1538 = vmatprep.subr.mxu0 0.0
  %1539 = vmatpush1.msra.mxu0 %v109
  %1540 = vmatprep.mubr.f32.mxu0 %v1271
  %1541 = vmatmul.mubr.f32.gmra.mrb[0].mxu0 %v1270
  %v1542 = vpop.f32.mrb[0].mxu0
  %v1543 = vadd.f32 %v1458, %v1542
  %v1544 = vpop.f32.mrb[0].mxu0
  %1545 = vmatprep.mubr.f32.mxu0 %v1278
  %1546 = vmatmul.mubr.f32.gmra.mrb[0].mxu0 %v1277
  %v1547 = vpop.f32.mrb[0].mxu0
  %v1548 = vadd.f32 %v1463, %v1547
  %v1549 = vpop.f32.mrb[0].mxu0
  %1550 = vmatprep.mubr.f32.mxu0 %v1285
  %1551 = vmatmul.mubr.f32.gmra.mrb[0].mxu0 %v1284
  %v1552 = vpop.f32.mrb[0].mxu0
  %v1553 = vadd.f32 %v1468, %v1552
  %v1554 = vpop.f32.mrb[0].mxu0
  %1555 = vmatprep.mubr.f32.mxu0 %v1292
  %1556 = vmatmul.mubr.f32.gmra.mrb[0].mxu0 %v1291
  %v1557 = vpop.f32.mrb[0].mxu0
  %v1558 = vadd.f32 %v1473, %v1557
  %v1559 = vpop.f32.mrb[0].mxu0
  %1560 = vdwg.mxu0
  %1561 = vmatprep.subr.mxu0 0.0
  %1562 = vmatpush1.msra.mxu0 %v110
  %1563 = vmatprep.subr.mxu0 0.0
  %1564 = vmatpush1.msra.mxu0 %v111
  %1565 = vmatprep.subr.mxu0 0.0
  %1566 = vmatpush1.msra.mxu0 %v112
  %1567 = vmatprep.subr.mxu0 0.0
  %1568 = vmatpush1.msra.mxu0 %v113
  %1569 = vmatprep.subr.mxu0 0.0
  %1570 = vmatpush1.msra.mxu0 0.0
  %1571 = vmatprep.subr.mxu0 0.0
  %1572 = vmatpush1.msra.mxu0 0.0
  %1573 = vmatprep.subr.mxu0 0.0
  %1574 = vmatpush1.msra.mxu0 0.0
  %1575 = vmatprep.subr.mxu0 0.0
  %1576 = vmatpush1.msra.mxu0 0.0
  %1577 = vmatprep.subr.mxu0 0.0
  %1578 = vmatpush1.msra.mxu0 0.0
  %1579 = vmatprep.subr.mxu0 0.0
  %1580 = vmatpush1.msra.mxu0 0.0
  %1581 = vmatprep.subr.mxu0 0.0
  %1582 = vmatpush1.msra.mxu0 0.0
  %1583 = vmatprep.subr.mxu0 0.0
  %1584 = vmatpush1.msra.mxu0 0.0
  %1585 = vmatprep.subr.mxu0 0.0
  %1586 = vmatpush1.msra.mxu0 0.0
  %1587 = vmatprep.subr.mxu0 0.0
  %1588 = vmatpush1.msra.mxu0 0.0
  %1589 = vmatprep.subr.mxu0 0.0
  %1590 = vmatpush1.msra.mxu0 0.0
  %1591 = vmatprep.subr.mxu0 0.0
  %1592 = vmatpush1.msra.mxu0 0.0
  %1593 = vmatprep.subr.mxu0 0.0
  %1594 = vmatpush1.msra.mxu0 0.0
  %1595 = vmatprep.subr.mxu0 0.0
  %1596 = vmatpush1.msra.mxu0 0.0
  %1597 = vmatprep.subr.mxu0 0.0
  %1598 = vmatpush1.msra.mxu0 0.0
  %1599 = vmatprep.subr.mxu0 0.0
  %1600 = vmatpush1.msra.mxu0 0.0
  %1601 = vmatprep.subr.mxu0 0.0
  %1602 = vmatpush1.msra.mxu0 0.0
  %1603 = vmatprep.subr.mxu0 0.0
  %1604 = vmatpush1.msra.mxu0 0.0
  %1605 = vmatprep.subr.mxu0 0.0
  %1606 = vmatpush1.msra.mxu0 0.0
  %1607 = vmatprep.subr.mxu0 0.0
  %1608 = vmatpush1.msra.mxu0 0.0
  %1609 = vmatprep.subr.mxu0 0.0
  %1610 = vmatpush1.msra.mxu0 0.0
  %1611 = vmatprep.subr.mxu0 0.0
  %1612 = vmatpush1.msra.mxu0 0.0
  %1613 = vmatprep.subr.mxu0 0.0
  %1614 = vmatpush1.msra.mxu0 0.0
  %1615 = vmatprep.subr.mxu0 0.0
  %1616 = vmatpush1.msra.mxu0 0.0
  %1617 = vmatprep.subr.mxu0 0.0
  %1618 = vmatpush1.msra.mxu0 0.0
  %1619 = vmatprep.subr.mxu0 0.0
  %1620 = vmatpush1.msra.mxu0 0.0
  %1621 = vmatprep.subr.mxu0 0.0
  %1622 = vmatpush1.msra.mxu0 0.0
  %1623 = vmatprep.subr.mxu0 0.0
  %1624 = vmatpush1.msra.mxu0 0.0
  %1625 = vmatprep.mubr.f32.mxu0 0.0
  %1626 = vmatmul.mubr.f32.gmra.mrb[0].mxu0 %v1295
  %v1627 = vpop.f32.mrb[0].mxu0
  %v1628 = vadd.f32 %v1543, %v1627
  %v1629 = vpop.f32.mrb[0].mxu0
  %1630 = vmatprep.mubr.f32.mxu0 0.0
  %1631 = vmatmul.mubr.f32.gmra.mrb[0].mxu0 %v1298
  %v1632 = vpop.f32.mrb[0].mxu0
  %v1633 = vadd.f32 %v1548, %v1632
  %v1634 = vpop.f32.mrb[0].mxu0
  %1635 = vmatprep.mubr.f32.mxu0 0.0
  %1636 = vmatmul.mubr.f32.gmra.mrb[0].mxu0 %v1301
  %v1637 = vpop.f32.mrb[0].mxu0
  %v1638 = vadd.f32 %v1553, %v1637
  %v1639 = vpop.f32.mrb[0].mxu0
  %1640 = vmatprep.mubr.f32.mxu0 0.0
  %1641 = vmatmul.mubr.f32.gmra.mrb[0].mxu0 %v1304
  %v1642 = vpop.f32.mrb[0].mxu0
  %v1643 = vadd.f32 %v1558, %v1642
  %v1644 = vpop.f32.mrb[0].mxu0
  %1645 = vdwg.mxu0
  %v1646 = vmax.f32 %v1261, %v1628
  %v1647 = vmax.f32 %v1262, %v1633
  %v1648 = vmax.f32 %v1263, %v1638
  %v1649 = vmax.f32 %v1264, %v1643
  %v1650 = vld [vmem:[%s2] sm:$0x1]
  %v1652 = vlaneseq
  %v1653 = vshrl.u32 %v1652, 7
  %v1654 = vsub.s32 0, %v1653
  %v1655 = vrot.slane %v1650, %v1654
  %v1657 = vadd.f32 %v1646, %v1655
  %v1658 = vadd.f32 %v1647, %v1655
  %v1659 = vadd.f32 %v1648, %v1655
  %v1660 = vadd.f32 %v1649, %v1655
  %v1661 = vmax.f32 %v1657, 0.0
  %v1662 = vmax.f32 %v1658, 0.0
  %v1663 = vmax.f32 %v1659, 0.0
  %v1664 = vmax.f32 %v1660, 0.0
  %vm1665 = vcmask 523264
  %1666 = vst.msk [vmem:[%s3] sm:$0xff] %vm1665, %v1661
  %1667 = vst.msk [vmem:[%s3 + $0x8] sm:$0xff] %vm1665, %v1662
  %1668 = vst.msk [vmem:[%s3 + $0x10] sm:$0xff] %vm1665, %v1663
  %1669 = vst.msk [vmem:[%s3 + $0x18] sm:$0xff] %vm1665, %v1664
  // Predicated region
  $region14: #{net_forward.6} parent=0 // pred_check
    _
  $region15: #{net_forward.6} parent=0 // pred_check_branch
    %1671 = sbr.rel (0) target = $region17
  $region16: #{net_forward.6} parent=0 // pred_region
    _
  $region17: #{net_forward.6} parent=0 // pred_fallthru
    _
  // Predicated region
  $region18: #{net_forward.6} parent=0 // pred_check
    _
  $region19: #{net_forward.6} parent=0 // pred_check_branch
    %1673 = sbr.rel (0) target = $region21
  $region20: #{net_forward.6} parent=0 // pred_region
    _
  $region21: #{net_forward.6} parent=0 // pred_fallthru
    _

// kernel: net_forward.7
$region0: #{net_forward.7}
  #allocation0 [shape = 'u32[]', space=smem, size = 0x4, offset = 0x4, fixed_abs, tag = 'smem constant byte address 0x4 - core index']
  #allocation1 [shape = 'u32[144,128]{1,0:T(1,128)}', space=vmem, size = 0x12000, scoped, tag = 'internal scratch']
  %s0 = inlined_call_operand.vmem [shape: f32[2,1024], index: 0, kind: input, shape index: {}]
  %s1 = inlined_call_operand.vmem [shape: f32[1024,512], index: 1, kind: input, shape index: {}]
  %s2 = inlined_call_operand.vmem [shape: f32[1,512], index: 2, kind: input, shape index: {}]
  %s3 = inlined_call_operand.vmem [shape: f32[512,400], index: 3, kind: input, shape index: {}]
  %s4 = inlined_call_operand.vmem [shape: f32[1,400], index: 4, kind: input, shape index: {}]
  %s5 = inlined_call_operand.vmem [shape: f32[400,256], index: 5, kind: input, shape index: {}]
  %s6 = inlined_call_operand.vmem [shape: f32[1,256], index: 6, kind: input, shape index: {}]
  %s7 = inlined_call_operand.vmem [shape: f32[256,128], index: 7, kind: input, shape index: {}]
  %s8 = inlined_call_operand.vmem [shape: f32[1,128], index: 8, kind: input, shape index: {}]
  %s9 = inlined_call_operand.vmem [shape: f32[128,64], index: 9, kind: input, shape index: {}]
  %s10 = inlined_call_operand.vmem [shape: f32[1,64], index: 10, kind: input, shape index: {}]
  %s11 = inlined_call_operand.vmem [shape: f32[64,32], index: 11, kind: input, shape index: {}]
  %s12 = inlined_call_operand.vmem [shape: f32[1,32], index: 12, kind: input, shape index: {}]
  %s13 = inlined_call_operand.vmem [shape: f32[32,10], index: 13, kind: input, shape index: {}]
  %s14 = inlined_call_operand.vmem [shape: f32[1,10], index: 14, kind: input, shape index: {}]
  %s15 = inlined_call_operand.hbm [shape: f32[2,10], index: 15, kind: output, shape index: {}]
  %s16 = sld [smem:[#allocation0]]
  $region70: #{net_forward.7} parent=0
    _
  %s18 = ssub.s32 1, %s16
  %s19 = scalar_select 0, %s18, %s16
  $region1: #{net_forward.7} parent=0
    #allocation2 [shape = 'u8[1024]{0}', space=vmem, size = 0x400, scoped, tag = 'output window, operand 0, single buffered']
    #allocation3 [shape = 's32[1]{0}', space=sflag, size = 0x4, scoped, tag = 'scoped memory for net_forward.7']
    %20 = vsyncpa [#allocation3], 0
    // Predicated region
    $region2: #{net_forward.7} parent=1 // pred_check
      _
    $region3: #{net_forward.7} parent=1 // pred_check_branch
      %22 = sbr.rel (0) target = $region5
    $region4: #{net_forward.7} parent=1 // pred_region
      _
    $region5: #{net_forward.7} parent=1 // pred_fallthru
      _
    // Predicated region
    $region6: #{net_forward.7} parent=1 // pred_check
      _
    $region7: #{net_forward.7} parent=1 // pred_check_branch
      %24 = sbr.rel (0) target = $region9
    $region8: #{net_forward.7} parent=1 // pred_region
      _
    $region9: #{net_forward.7} parent=1 // pred_fallthru
      _
    // Predicated region
    $region10: #{net_forward.7} parent=1 // pred_check
      _
    $region11: #{net_forward.7} parent=1 // pred_check_branch
      %26 = sbr.rel (0) target = $region13
    $region12: #{net_forward.7} parent=1 // pred_region
      _
    $region13: #{net_forward.7} parent=1 // pred_fallthru
      _
    // Predicated region
    $region14: #{net_forward.7} parent=1 // pred_check
      _
    $region15: #{net_forward.7} parent=1 // pred_check_branch
      %28 = sbr.rel (0) target = $region17
    $region16: #{net_forward.7} parent=1 // pred_region
      _
    $region17: #{net_forward.7} parent=1 // pred_fallthru
      _
    // Predicated region
    $region18: #{net_forward.7} parent=1 // pred_check
      _
    $region19: #{net_forward.7} parent=1 // pred_check_branch
      %30 = sbr.rel (0) target = $region21
    $region20: #{net_forward.7} parent=1 // pred_region
      _
    $region21: #{net_forward.7} parent=1 // pred_fallthru
      _
    // Predicated region
    $region22: #{net_forward.7} parent=1 // pred_check
      _
    $region23: #{net_forward.7} parent=1 // pred_check_branch
      %32 = sbr.rel (0) target = $region25
    $region24: #{net_forward.7} parent=1 // pred_region
      _
    $region25: #{net_forward.7} parent=1 // pred_fallthru
      _
    // Predicated region
    $region26: #{net_forward.7} parent=1 // pred_check
      _
    $region27: #{net_forward.7} parent=1 // pred_check_branch
      %34 = sbr.rel (0) target = $region29
    $region28: #{net_forward.7} parent=1 // pred_region
      _
    $region29: #{net_forward.7} parent=1 // pred_fallthru
      _
    // Predicated region
    $region30: #{net_forward.7} parent=1 // pred_check
      _
    $region31: #{net_forward.7} parent=1 // pred_check_branch
      %36 = sbr.rel (0) target = $region33
    $region32: #{net_forward.7} parent=1 // pred_region
      _
    $region33: #{net_forward.7} parent=1 // pred_fallthru
      _
    // Predicated region
    $region34: #{net_forward.7} parent=1 // pred_check
      _
    $region35: #{net_forward.7} parent=1 // pred_check_branch
      %38 = sbr.rel (0) target = $region37
    $region36: #{net_forward.7} parent=1 // pred_region
      _
    $region37: #{net_forward.7} parent=1 // pred_fallthru
      _
    // Predicated region
    $region38: #{net_forward.7} parent=1 // pred_check
      _
    $region39: #{net_forward.7} parent=1 // pred_check_branch
      %40 = sbr.rel (0) target = $region41
    $region40: #{net_forward.7} parent=1 // pred_region
      _
    $region41: #{net_forward.7} parent=1 // pred_fallthru
      _
    // Predicated region
    $region42: #{net_forward.7} parent=1 // pred_check
      _
    $region43: #{net_forward.7} parent=1 // pred_check_branch
      %42 = sbr.rel (0) target = $region45
    $region44: #{net_forward.7} parent=1 // pred_region
      _
    $region45: #{net_forward.7} parent=1 // pred_fallthru
      _
    // Predicated region
    $region46: #{net_forward.7} parent=1 // pred_check
      _
    $region47: #{net_forward.7} parent=1 // pred_check_branch
      %44 = sbr.rel (0) target = $region49
    $region48: #{net_forward.7} parent=1 // pred_region
      _
    $region49: #{net_forward.7} parent=1 // pred_fallthru
      _
    // Predicated region
    $region50: #{net_forward.7} parent=1 // pred_check
      _
    $region51: #{net_forward.7} parent=1 // pred_check_branch
      %46 = sbr.rel (0) target = $region53
    $region52: #{net_forward.7} parent=1 // pred_region
      _
    $region53: #{net_forward.7} parent=1 // pred_fallthru
      _
    // Predicated region
    $region54: #{net_forward.7} parent=1 // pred_check
      _
    $region55: #{net_forward.7} parent=1 // pred_check_branch
      %48 = sbr.rel (0) target = $region57
    $region56: #{net_forward.7} parent=1 // pred_region
      _
    $region57: #{net_forward.7} parent=1 // pred_fallthru
      _
    // Predicated region
    $region58: #{net_forward.7} parent=1 // pred_check
      _
    $region59: #{net_forward.7} parent=1 // pred_check_branch
      %50 = sbr.rel (0) target = $region61
    $region60: #{net_forward.7} parent=1 // pred_region
      _
    $region61: #{net_forward.7} parent=1 // pred_fallthru
      _
    %v51 = vld [vmem:[%s0] sm:$0xff]
    %v52 = vld [vmem:[%s0 + $0x8] sm:$0xff]
    %v53 = vld [vmem:[%s1] sm:$0xff]
    %v54 = vld [vmem:[%s1 + $0x8] sm:$0xff]
    %v55 = vld [vmem:[%s1 + $0x10] sm:$0xff]
    %v56 = vld [vmem:[%s1 + $0x18] sm:$0xff]
    %v57 = vld [vmem:[%s1 + $0x20] sm:$0xff]
    %v58 = vld [vmem:[%s1 + $0x28] sm:$0xff]
    %v59 = vld [vmem:[%s1 + $0x30] sm:$0xff]
    %v60 = vld [vmem:[%s1 + $0x38] sm:$0xff]
    %v61 = vld [vmem:[%s1 + $0x40] sm:$0xff]
    %v62 = vld [vmem:[%s1 + $0x48] sm:$0xff]
    %v63 = vld [vmem:[%s1 + $0x50] sm:$0xff]
    %v64 = vld [vmem:[%s1 + $0x58] sm:$0xff]
    %v65 = vld [vmem:[%s1 + $0x60] sm:$0xff]
    %v66 = vld [vmem:[%s1 + $0x68] sm:$0xff]
    %v67 = vld [vmem:[%s1 + $0x70] sm:$0xff]
    %v68 = vld [vmem:[%s1 + $0x78] sm:$0xff]
    %v69 = vld [vmem:[%s1 + $0x80] sm:$0xff]
    %v70 = vld [vmem:[%s1 + $0x88] sm:$0xff]
    %v71 = vld [vmem:[%s1 + $0x90] sm:$0xff]
    %v72 = vld [vmem:[%s1 + $0x98] sm:$0xff]
    %v73 = vld [vmem:[%s1 + $0xa0] sm:$0xff]
    %v74 = vld [vmem:[%s1 + $0xa8] sm:$0xff]
    %v75 = vld [vmem:[%s1 + $0xb0] sm:$0xff]
    %v76 = vld [vmem:[%s1 + $0xb8] sm:$0xff]
    %v77 = vld [vmem:[%s1 + $0xc0] sm:$0xff]
    %v78 = vld [vmem:[%s1 + $0xc8] sm:$0xff]
    %v79 = vld [vmem:[%s1 + $0xd0] sm:$0xff]
    %v80 = vld [vmem:[%s1 + $0xd8] sm:$0xff]
    %v81 = vld [vmem:[%s1 + $0xe0] sm:$0xff]
    %v82 = vld [vmem:[%s1 + $0xe8] sm:$0xff]
    %v83 = vld [vmem:[%s1 + $0xf0] sm:$0xff]
    %v84 = vld [vmem:[%s1 + $0xf8] sm:$0xff]
    %v85 = vld [vmem:[%s1 + $0x100] sm:$0xff]
    %v86 = vld [vmem:[%s1 + $0x108] sm:$0xff]
    %v87 = vld [vmem:[%s1 + $0x110] sm:$0xff]
    %v88 = vld [vmem:[%s1 + $0x118] sm:$0xff]
    %v89 = vld [vmem:[%s1 + $0x120] sm:$0xff]
    %v90 = vld [vmem:[%s1 + $0x128] sm:$0xff]
    %v91 = vld [vmem:[%s1 + $0x130] sm:$0xff]
    %v92 = vld [vmem:[%s1 + $0x138] sm:$0xff]
    %v93 = vld [vmem:[%s1 + $0x140] sm:$0xff]
    %v94 = vld [vmem:[%s1 + $0x148] sm:$0xff]
    %v95 = vld [vmem:[%s1 + $0x150] sm:$0xff]
    %v96 = vld [vmem:[%s1 + $0x158] sm:$0xff]
    %v97 = vld [vmem:[%s1 + $0x160] sm:$0xff]
    %v98 = vld [vmem:[%s1 + $0x168] sm:$0xff]
    %v99 = vld [vmem:[%s1 + $0x170] sm:$0xff]
    %v100 = vld [vmem:[%s1 + $0x178] sm:$0xff]
    %v101 = vld [vmem:[%s1 + $0x180] sm:$0xff]
    %v102 = vld [vmem:[%s1 + $0x188] sm:$0xff]
    %v103 = vld [vmem:[%s1 + $0x190] sm:$0xff]
    %v104 = vld [vmem:[%s1 + $0x198] sm:$0xff]
    %v105 = vld [vmem:[%s1 + $0x1a0] sm:$0xff]
    %v106 = vld [vmem:[%s1 + $0x1a8] sm:$0xff]
    %v107 = vld [vmem:[%s1 + $0x1b0] sm:$0xff]
    %v108 = vld [vmem:[%s1 + $0x1b8] sm:$0xff]
    %v109 = vld [vmem:[%s1 + $0x1c0] sm:$0xff]
    %v110 = vld [vmem:[%s1 + $0x1c8] sm:$0xff]
    %v111 = vld [vmem:[%s1 + $0x1d0] sm:$0xff]
    %v112 = vld [vmem:[%s1 + $0x1d8] sm:$0xff]
    %v113 = vld [vmem:[%s1 + $0x1e0] sm:$0xff]
    %v114 = vld [vmem:[%s1 + $0x1e8] sm:$0xff]
    %v115 = vld [vmem:[%s1 + $0x1f0] sm:$0xff]
    %v116 = vld [vmem:[%s1 + $0x1f8] sm:$0xff]
    %v117 = vld [vmem:[%s1 + $0x200] sm:$0xff]
    %v118 = vld [vmem:[%s1 + $0x208] sm:$0xff]
    %v119 = vld [vmem:[%s1 + $0x210] sm:$0xff]
    %v120 = vld [vmem:[%s1 + $0x218] sm:$0xff]
    %v121 = vld [vmem:[%s1 + $0x220] sm:$0xff]
    %v122 = vld [vmem:[%s1 + $0x228] sm:$0xff]
    %v123 = vld [vmem:[%s1 + $0x230] sm:$0xff]
    %v124 = vld [vmem:[%s1 + $0x238] sm:$0xff]
    %v125 = vld [vmem:[%s1 + $0x240] sm:$0xff]
    %v126 = vld [vmem:[%s1 + $0x248] sm:$0xff]
    %v127 = vld [vmem:[%s1 + $0x250] sm:$0xff]
    %v128 = vld [vmem:[%s1 + $0x258] sm:$0xff]
    %v129 = vld [vmem:[%s1 + $0x260] sm:$0xff]
    %v130 = vld [vmem:[%s1 + $0x268] sm:$0xff]
    %v131 = vld [vmem:[%s1 + $0x270] sm:$0xff]
    %v132 = vld [vmem:[%s1 + $0x278] sm:$0xff]
    %v133 = vld [vmem:[%s1 + $0x280] sm:$0xff]
    %v134 = vld [vmem:[%s1 + $0x288] sm:$0xff]
    %v135 = vld [vmem:[%s1 + $0x290] sm:$0xff]
    %v136 = vld [vmem:[%s1 + $0x298] sm:$0xff]
    %v137 = vld [vmem:[%s1 + $0x2a0] sm:$0xff]
    %v138 = vld [vmem:[%s1 + $0x2a8] sm:$0xff]
    %v139 = vld [vmem:[%s1 + $0x2b0] sm:$0xff]
    %v140 = vld [vmem:[%s1 + $0x2b8] sm:$0xff]
    %v141 = vld [vmem:[%s1 + $0x2c0] sm:$0xff]
    %v142 = vld [vmem:[%s1 + $0x2c8] sm:$0xff]
    %v143 = vld [vmem:[%s1 + $0x2d0] sm:$0xff]
    %v144 = vld [vmem:[%s1 + $0x2d8] sm:$0xff]
    %v145 = vld [vmem:[%s1 + $0x2e0] sm:$0xff]
    %v146 = vld [vmem:[%s1 + $0x2e8] sm:$0xff]
    %v147 = vld [vmem:[%s1 + $0x2f0] sm:$0xff]
    %v148 = vld [vmem:[%s1 + $0x2f8] sm:$0xff]
    %v149 = vld [vmem:[%s1 + $0x300] sm:$0xff]
    %v150 = vld [vmem:[%s1 + $0x308] sm:$0xff]
    %v151 = vld [vmem:[%s1 + $0x310] sm:$0xff]
    %v152 = vld [vmem:[%s1 + $0x318] sm:$0xff]
    %v153 = vld [vmem:[%s1 + $0x320] sm:$0xff]
    %v154 = vld [vmem:[%s1 + $0x328] sm:$0xff]
    %v155 = vld [vmem:[%s1 + $0x330] sm:$0xff]
    %v156 = vld [vmem:[%s1 + $0x338] sm:$0xff]
    %v157 = vld [vmem:[%s1 + $0x340] sm:$0xff]
    %v158 = vld [vmem:[%s1 + $0x348] sm:$0xff]
    %v159 = vld [vmem:[%s1 + $0x350] sm:$0xff]
    %v160 = vld [vmem:[%s1 + $0x358] sm:$0xff]
    %v161 = vld [vmem:[%s1 + $0x360] sm:$0xff]
    %v162 = vld [vmem:[%s1 + $0x368] sm:$0xff]
    %v163 = vld [vmem:[%s1 + $0x370] sm:$0xff]
    %v164 = vld [vmem:[%s1 + $0x378] sm:$0xff]
    %v165 = vld [vmem:[%s1 + $0x380] sm:$0xff]
    %v166 = vld [vmem:[%s1 + $0x388] sm:$0xff]
    %v167 = vld [vmem:[%s1 + $0x390] sm:$0xff]
    %v168 = vld [vmem:[%s1 + $0x398] sm:$0xff]
    %v169 = vld [vmem:[%s1 + $0x3a0] sm:$0xff]
    %v170 = vld [vmem:[%s1 + $0x3a8] sm:$0xff]
    %v171 = vld [vmem:[%s1 + $0x3b0] sm:$0xff]
    %v172 = vld [vmem:[%s1 + $0x3b8] sm:$0xff]
    %v173 = vld [vmem:[%s1 + $0x3c0] sm:$0xff]
    %v174 = vld [vmem:[%s1 + $0x3c8] sm:$0xff]
    %v175 = vld [vmem:[%s1 + $0x3d0] sm:$0xff]
    %v176 = vld [vmem:[%s1 + $0x3d8] sm:$0xff]
    %v177 = vld [vmem:[%s1 + $0x3e0] sm:$0xff]
    %v178 = vld [vmem:[%s1 + $0x3e8] sm:$0xff]
    %v179 = vld [vmem:[%s1 + $0x3f0] sm:$0xff]
    %v180 = vld [vmem:[%s1 + $0x3f8] sm:$0xff]
    %v181 = vld [vmem:[%s1 + $0x400] sm:$0xff]
    %v182 = vld [vmem:[%s1 + $0x408] sm:$0xff]
    %v183 = vld [vmem:[%s1 + $0x410] sm:$0xff]
    %v184 = vld [vmem:[%s1 + $0x418] sm:$0xff]
    %v185 = vld [vmem:[%s1 + $0x420] sm:$0xff]
    %v186 = vld [vmem:[%s1 + $0x428] sm:$0xff]
    %v187 = vld [vmem:[%s1 + $0x430] sm:$0xff]
    %v188 = vld [vmem:[%s1 + $0x438] sm:$0xff]
    %v189 = vld [vmem:[%s1 + $0x440] sm:$0xff]
    %v190 = vld [vmem:[%s1 + $0x448] sm:$0xff]
    %v191 = vld [vmem:[%s1 + $0x450] sm:$0xff]
    %v192 = vld [vmem:[%s1 + $0x458] sm:$0xff]
    %v193 = vld [vmem:[%s1 + $0x460] sm:$0xff]
    %v194 = vld [vmem:[%s1 + $0x468] sm:$0xff]
    %v195 = vld [vmem:[%s1 + $0x470] sm:$0xff]
    %v196 = vld [vmem:[%s1 + $0x478] sm:$0xff]
    %v197 = vld [vmem:[%s1 + $0x480] sm:$0xff]
    %v198 = vld [vmem:[%s1 + $0x488] sm:$0xff]
    %v199 = vld [vmem:[%s1 + $0x490] sm:$0xff]
    %v200 = vld [vmem:[%s1 + $0x498] sm:$0xff]
    %v201 = vld [vmem:[%s1 + $0x4a0] sm:$0xff]
    %v202 = vld [vmem:[%s1 + $0x4a8] sm:$0xff]
    %v203 = vld [vmem:[%s1 + $0x4b0] sm:$0xff]
    %v204 = vld [vmem:[%s1 + $0x4b8] sm:$0xff]
    %v205 = vld [vmem:[%s1 + $0x4c0] sm:$0xff]
    %v206 = vld [vmem:[%s1 + $0x4c8] sm:$0xff]
    %v207 = vld [vmem:[%s1 + $0x4d0] sm:$0xff]
    %v208 = vld [vmem:[%s1 + $0x4d8] sm:$0xff]
    %v209 = vld [vmem:[%s1 + $0x4e0] sm:$0xff]
    %v210 = vld [vmem:[%s1 + $0x4e8] sm:$0xff]
    %v211 = vld [vmem:[%s1 + $0x4f0] sm:$0xff]
    %v212 = vld [vmem:[%s1 + $0x4f8] sm:$0xff]
    %v213 = vld [vmem:[%s1 + $0x500] sm:$0xff]
    %v214 = vld [vmem:[%s1 + $0x508] sm:$0xff]
    %v215 = vld [vmem:[%s1 + $0x510] sm:$0xff]
    %v216 = vld [vmem:[%s1 + $0x518] sm:$0xff]
    %v217 = vld [vmem:[%s1 + $0x520] sm:$0xff]
    %v218 = vld [vmem:[%s1 + $0x528] sm:$0xff]
    %v219 = vld [vmem:[%s1 + $0x530] sm:$0xff]
    %v220 = vld [vmem:[%s1 + $0x538] sm:$0xff]
    %v221 = vld [vmem:[%s1 + $0x540] sm:$0xff]
    %v222 = vld [vmem:[%s1 + $0x548] sm:$0xff]
    %v223 = vld [vmem:[%s1 + $0x550] sm:$0xff]
    %v224 = vld [vmem:[%s1 + $0x558] sm:$0xff]
    %v225 = vld [vmem:[%s1 + $0x560] sm:$0xff]
    %v226 = vld [vmem:[%s1 + $0x568] sm:$0xff]
    %v227 = vld [vmem:[%s1 + $0x570] sm:$0xff]
    %v228 = vld [vmem:[%s1 + $0x578] sm:$0xff]
    %v229 = vld [vmem:[%s1 + $0x580] sm:$0xff]
    %v230 = vld [vmem:[%s1 + $0x588] sm:$0xff]
    %v231 = vld [vmem:[%s1 + $0x590] sm:$0xff]
    %v232 = vld [vmem:[%s1 + $0x598] sm:$0xff]
    %v233 = vld [vmem:[%s1 + $0x5a0] sm:$0xff]
    %v234 = vld [vmem:[%s1 + $0x5a8] sm:$0xff]
    %v235 = vld [vmem:[%s1 + $0x5b0] sm:$0xff]
    %v236 = vld [vmem:[%s1 + $0x5b8] sm:$0xff]
    %v237 = vld [vmem:[%s1 + $0x5c0] sm:$0xff]
    %v238 = vld [vmem:[%s1 + $0x5c8] sm:$0xff]
    %v239 = vld [vmem:[%s1 + $0x5d0] sm:$0xff]
    %v240 = vld [vmem:[%s1 + $0x5d8] sm:$0xff]
    %v241 = vld [vmem:[%s1 + $0x5e0] sm:$0xff]
    %v242 = vld [vmem:[%s1 + $0x5e8] sm:$0xff]
    %v243 = vld [vmem:[%s1 + $0x5f0] sm:$0xff]
    %v244 = vld [vmem:[%s1 + $0x5f8] sm:$0xff]
    %v245 = vld [vmem:[%s1 + $0x600] sm:$0xff]
    %v246 = vld [vmem:[%s1 + $0x608] sm:$0xff]
    %v247 = vld [vmem:[%s1 + $0x610] sm:$0xff]
    %v248 = vld [vmem:[%s1 + $0x618] sm:$0xff]
    %v249 = vld [vmem:[%s1 + $0x620] sm:$0xff]
    %v250 = vld [vmem:[%s1 + $0x628] sm:$0xff]
    %v251 = vld [vmem:[%s1 + $0x630] sm:$0xff]
    %v252 = vld [vmem:[%s1 + $0x638] sm:$0xff]
    %v253 = vld [vmem:[%s1 + $0x640] sm:$0xff]
    %v254 = vld [vmem:[%s1 + $0x648] sm:$0xff]
    %v255 = vld [vmem:[%s1 + $0x650] sm:$0xff]
    %v256 = vld [vmem:[%s1 + $0x658] sm:$0xff]
    %v257 = vld [vmem:[%s1 + $0x660] sm:$0xff]
    %v258 = vld [vmem:[%s1 + $0x668] sm:$0xff]
    %v259 = vld [vmem:[%s1 + $0x670] sm:$0xff]
    %v260 = vld [vmem:[%s1 + $0x678] sm:$0xff]
    %v261 = vld [vmem:[%s1 + $0x680] sm:$0xff]
    %v262 = vld [vmem:[%s1 + $0x688] sm:$0xff]
    %v263 = vld [vmem:[%s1 + $0x690] sm:$0xff]
    %v264 = vld [vmem:[%s1 + $0x698] sm:$0xff]
    %v265 = vld [vmem:[%s1 + $0x6a0] sm:$0xff]
    %v266 = vld [vmem:[%s1 + $0x6a8] sm:$0xff]
    %v267 = vld [vmem:[%s1 + $0x6b0] sm:$0xff]
    %v268 = vld [vmem:[%s1 + $0x6b8] sm:$0xff]
    %v269 = vld [vmem:[%s1 + $0x6c0] sm:$0xff]
    %v270 = vld [vmem:[%s1 + $0x6c8] sm:$0xff]
    %v271 = vld [vmem:[%s1 + $0x6d0] sm:$0xff]
    %v272 = vld [vmem:[%s1 + $0x6d8] sm:$0xff]
    %v273 = vld [vmem:[%s1 + $0x6e0] sm:$0xff]
    %v274 = vld [vmem:[%s1 + $0x6e8] sm:$0xff]
    %v275 = vld [vmem:[%s1 + $0x6f0] sm:$0xff]
    %v276 = vld [vmem:[%s1 + $0x6f8] sm:$0xff]
    %v277 = vld [vmem:[%s1 + $0x700] sm:$0xff]
    %v278 = vld [vmem:[%s1 + $0x708] sm:$0xff]
    %v279 = vld [vmem:[%s1 + $0x710] sm:$0xff]
    %v280 = vld [vmem:[%s1 + $0x718] sm:$0xff]
    %v281 = vld [vmem:[%s1 + $0x720] sm:$0xff]
    %v282 = vld [vmem:[%s1 + $0x728] sm:$0xff]
    %v283 = vld [vmem:[%s1 + $0x730] sm:$0xff]
    %v284 = vld [vmem:[%s1 + $0x738] sm:$0xff]
    %v285 = vld [vmem:[%s1 + $0x740] sm:$0xff]
    %v286 = vld [vmem:[%s1 + $0x748] sm:$0xff]
    %v287 = vld [vmem:[%s1 + $0x750] sm:$0xff]
    %v288 = vld [vmem:[%s1 + $0x758] sm:$0xff]
    %v289 = vld [vmem:[%s1 + $0x760] sm:$0xff]
    %v290 = vld [vmem:[%s1 + $0x768] sm:$0xff]
    %v291 = vld [vmem:[%s1 + $0x770] sm:$0xff]
    %v292 = vld [vmem:[%s1 + $0x778] sm:$0xff]
    %v293 = vld [vmem:[%s1 + $0x780] sm:$0xff]
    %v294 = vld [vmem:[%s1 + $0x788] sm:$0xff]
    %v295 = vld [vmem:[%s1 + $0x790] sm:$0xff]
    %v296 = vld [vmem:[%s1 + $0x798] sm:$0xff]
    %v297 = vld [vmem:[%s1 + $0x7a0] sm:$0xff]
    %v298 = vld [vmem:[%s1 + $0x7a8] sm:$0xff]
    %v299 = vld [vmem:[%s1 + $0x7b0] sm:$0xff]
    %v300 = vld [vmem:[%s1 + $0x7b8] sm:$0xff]
    %v301 = vld [vmem:[%s1 + $0x7c0] sm:$0xff]
    %v302 = vld [vmem:[%s1 + $0x7c8] sm:$0xff]
    %v303 = vld [vmem:[%s1 + $0x7d0] sm:$0xff]
    %v304 = vld [vmem:[%s1 + $0x7d8] sm:$0xff]
    %v305 = vld [vmem:[%s1 + $0x7e0] sm:$0xff]
    %v306 = vld [vmem:[%s1 + $0x7e8] sm:$0xff]
    %v307 = vld [vmem:[%s1 + $0x7f0] sm:$0xff]
    %v308 = vld [vmem:[%s1 + $0x7f8] sm:$0xff]
    %v309 = vld [vmem:[%s1 + $0x800] sm:$0xff]
    %v310 = vld [vmem:[%s1 + $0x808] sm:$0xff]
    %v311 = vld [vmem:[%s1 + $0x810] sm:$0xff]
    %v312 = vld [vmem:[%s1 + $0x818] sm:$0xff]
    %v313 = vld [vmem:[%s1 + $0x820] sm:$0xff]
    %v314 = vld [vmem:[%s1 + $0x828] sm:$0xff]
    %v315 = vld [vmem:[%s1 + $0x830] sm:$0xff]
    %v316 = vld [vmem:[%s1 + $0x838] sm:$0xff]
    %v317 = vld [vmem:[%s1 + $0x840] sm:$0xff]
    %v318 = vld [vmem:[%s1 + $0x848] sm:$0xff]
    %v319 = vld [vmem:[%s1 + $0x850] sm:$0xff]
    %v320 = vld [vmem:[%s1 + $0x858] sm:$0xff]
    %v321 = vld [vmem:[%s1 + $0x860] sm:$0xff]
    %v322 = vld [vmem:[%s1 + $0x868] sm:$0xff]
    %v323 = vld [vmem:[%s1 + $0x870] sm:$0xff]
    %v324 = vld [vmem:[%s1 + $0x878] sm:$0xff]
    %v325 = vld [vmem:[%s1 + $0x880] sm:$0xff]
    %v326 = vld [vmem:[%s1 + $0x888] sm:$0xff]
    %v327 = vld [vmem:[%s1 + $0x890] sm:$0xff]
    %v328 = vld [vmem:[%s1 + $0x898] sm:$0xff]
    %v329 = vld [vmem:[%s1 + $0x8a0] sm:$0xff]
    %v330 = vld [vmem:[%s1 + $0x8a8] sm:$0xff]
    %v331 = vld [vmem:[%s1 + $0x8b0] sm:$0xff]
    %v332 = vld [vmem:[%s1 + $0x8b8] sm:$0xff]
    %v333 = vld [vmem:[%s1 + $0x8c0] sm:$0xff]
    %v334 = vld [vmem:[%s1 + $0x8c8] sm:$0xff]
    %v335 = vld [vmem:[%s1 + $0x8d0] sm:$0xff]
    %v336 = vld [vmem:[%s1 + $0x8d8] sm:$0xff]
    %v337 = vld [vmem:[%s1 + $0x8e0] sm:$0xff]
    %v338 = vld [vmem:[%s1 + $0x8e8] sm:$0xff]
    %v339 = vld [vmem:[%s1 + $0x8f0] sm:$0xff]
    %v340 = vld [vmem:[%s1 + $0x8f8] sm:$0xff]
    %v341 = vld [vmem:[%s1 + $0x900] sm:$0xff]
    %v342 = vld [vmem:[%s1 + $0x908] sm:$0xff]
    %v343 = vld [vmem:[%s1 + $0x910] sm:$0xff]
    %v344 = vld [vmem:[%s1 + $0x918] sm:$0xff]
    %v345 = vld [vmem:[%s1 + $0x920] sm:$0xff]
    %v346 = vld [vmem:[%s1 + $0x928] sm:$0xff]
    %v347 = vld [vmem:[%s1 + $0x930] sm:$0xff]
    %v348 = vld [vmem:[%s1 + $0x938] sm:$0xff]
    %v349 = vld [vmem:[%s1 + $0x940] sm:$0xff]
    %v350 = vld [vmem:[%s1 + $0x948] sm:$0xff]
    %v351 = vld [vmem:[%s1 + $0x950] sm:$0xff]
    %v352 = vld [vmem:[%s1 + $0x958] sm:$0xff]
    %v353 = vld [vmem:[%s1 + $0x960] sm:$0xff]
    %v354 = vld [vmem:[%s1 + $0x968] sm:$0xff]
    %v355 = vld [vmem:[%s1 + $0x970] sm:$0xff]
    %v356 = vld [vmem:[%s1 + $0x978] sm:$0xff]
    %v357 = vld [vmem:[%s1 + $0x980] sm:$0xff]
    %v358 = vld [vmem:[%s1 + $0x988] sm:$0xff]
    %v359 = vld [vmem:[%s1 + $0x990] sm:$0xff]
    %v360 = vld [vmem:[%s1 + $0x998] sm:$0xff]
    %v361 = vld [vmem:[%s1 + $0x9a0] sm:$0xff]
    %v362 = vld [vmem:[%s1 + $0x9a8] sm:$0xff]
    %v363 = vld [vmem:[%s1 + $0x9b0] sm:$0xff]
    %v364 = vld [vmem:[%s1 + $0x9b8] sm:$0xff]
    %v365 = vld [vmem:[%s1 + $0x9c0] sm:$0xff]
    %v366 = vld [vmem:[%s1 + $0x9c8] sm:$0xff]
    %v367 = vld [vmem:[%s1 + $0x9d0] sm:$0xff]
    %v368 = vld [vmem:[%s1 + $0x9d8] sm:$0xff]
    %v369 = vld [vmem:[%s1 + $0x9e0] sm:$0xff]
    %v370 = vld [vmem:[%s1 + $0x9e8] sm:$0xff]
    %v371 = vld [vmem:[%s1 + $0x9f0] sm:$0xff]
    %v372 = vld [vmem:[%s1 + $0x9f8] sm:$0xff]
    %v373 = vld [vmem:[%s1 + $0xa00] sm:$0xff]
    %v374 = vld [vmem:[%s1 + $0xa08] sm:$0xff]
    %v375 = vld [vmem:[%s1 + $0xa10] sm:$0xff]
    %v376 = vld [vmem:[%s1 + $0xa18] sm:$0xff]
    %v377 = vld [vmem:[%s1 + $0xa20] sm:$0xff]
    %v378 = vld [vmem:[%s1 + $0xa28] sm:$0xff]
    %v379 = vld [vmem:[%s1 + $0xa30] sm:$0xff]
    %v380 = vld [vmem:[%s1 + $0xa38] sm:$0xff]
    %v381 = vld [vmem:[%s1 + $0xa40] sm:$0xff]
    %v382 = vld [vmem:[%s1 + $0xa48] sm:$0xff]
    %v383 = vld [vmem:[%s1 + $0xa50] sm:$0xff]
    %v384 = vld [vmem:[%s1 + $0xa58] sm:$0xff]
    %v385 = vld [vmem:[%s1 + $0xa60] sm:$0xff]
    %v386 = vld [vmem:[%s1 + $0xa68] sm:$0xff]
    %v387 = vld [vmem:[%s1 + $0xa70] sm:$0xff]
    %v388 = vld [vmem:[%s1 + $0xa78] sm:$0xff]
    %v389 = vld [vmem:[%s1 + $0xa80] sm:$0xff]
    %v390 = vld [vmem:[%s1 + $0xa88] sm:$0xff]
    %v391 = vld [vmem:[%s1 + $0xa90] sm:$0xff]
    %v392 = vld [vmem:[%s1 + $0xa98] sm:$0xff]
    %v393 = vld [vmem:[%s1 + $0xaa0] sm:$0xff]
    %v394 = vld [vmem:[%s1 + $0xaa8] sm:$0xff]
    %v395 = vld [vmem:[%s1 + $0xab0] sm:$0xff]
    %v396 = vld [vmem:[%s1 + $0xab8] sm:$0xff]
    %v397 = vld [vmem:[%s1 + $0xac0] sm:$0xff]
    %v398 = vld [vmem:[%s1 + $0xac8] sm:$0xff]
    %v399 = vld [vmem:[%s1 + $0xad0] sm:$0xff]
    %v400 = vld [vmem:[%s1 + $0xad8] sm:$0xff]
    %v401 = vld [vmem:[%s1 + $0xae0] sm:$0xff]
    %v402 = vld [vmem:[%s1 + $0xae8] sm:$0xff]
    %v403 = vld [vmem:[%s1 + $0xaf0] sm:$0xff]
    %v404 = vld [vmem:[%s1 + $0xaf8] sm:$0xff]
    %v405 = vld [vmem:[%s1 + $0xb00] sm:$0xff]
    %v406 = vld [vmem:[%s1 + $0xb08] sm:$0xff]
    %v407 = vld [vmem:[%s1 + $0xb10] sm:$0xff]
    %v408 = vld [vmem:[%s1 + $0xb18] sm:$0xff]
    %v409 = vld [vmem:[%s1 + $0xb20] sm:$0xff]
    %v410 = vld [vmem:[%s1 + $0xb28] sm:$0xff]
    %v411 = vld [vmem:[%s1 + $0xb30] sm:$0xff]
    %v412 = vld [vmem:[%s1 + $0xb38] sm:$0xff]
    %v413 = vld [vmem:[%s1 + $0xb40] sm:$0xff]
    %v414 = vld [vmem:[%s1 + $0xb48] sm:$0xff]
    %v415 = vld [vmem:[%s1 + $0xb50] sm:$0xff]
    %v416 = vld [vmem:[%s1 + $0xb58] sm:$0xff]
    %v417 = vld [vmem:[%s1 + $0xb60] sm:$0xff]
    %v418 = vld [vmem:[%s1 + $0xb68] sm:$0xff]
    %v419 = vld [vmem:[%s1 + $0xb70] sm:$0xff]
    %v420 = vld [vmem:[%s1 + $0xb78] sm:$0xff]
    %v421 = vld [vmem:[%s1 + $0xb80] sm:$0xff]
    %v422 = vld [vmem:[%s1 + $0xb88] sm:$0xff]
    %v423 = vld [vmem:[%s1 + $0xb90] sm:$0xff]
    %v424 = vld [vmem:[%s1 + $0xb98] sm:$0xff]
    %v425 = vld [vmem:[%s1 + $0xba0] sm:$0xff]
    %v426 = vld [vmem:[%s1 + $0xba8] sm:$0xff]
    %v427 = vld [vmem:[%s1 + $0xbb0] sm:$0xff]
    %v428 = vld [vmem:[%s1 + $0xbb8] sm:$0xff]
    %v429 = vld [vmem:[%s1 + $0xbc0] sm:$0xff]
    %v430 = vld [vmem:[%s1 + $0xbc8] sm:$0xff]
    %v431 = vld [vmem:[%s1 + $0xbd0] sm:$0xff]
    %v432 = vld [vmem:[%s1 + $0xbd8] sm:$0xff]
    %v433 = vld [vmem:[%s1 + $0xbe0] sm:$0xff]
    %v434 = vld [vmem:[%s1 + $0xbe8] sm:$0xff]
    %v435 = vld [vmem:[%s1 + $0xbf0] sm:$0xff]
    %v436 = vld [vmem:[%s1 + $0xbf8] sm:$0xff]
    %v437 = vld [vmem:[%s1 + $0xc00] sm:$0xff]
    %v438 = vld [vmem:[%s1 + $0xc08] sm:$0xff]
    %v439 = vld [vmem:[%s1 + $0xc10] sm:$0xff]
    %v440 = vld [vmem:[%s1 + $0xc18] sm:$0xff]
    %v441 = vld [vmem:[%s1 + $0xc20] sm:$0xff]
    %v442 = vld [vmem:[%s1 + $0xc28] sm:$0xff]
    %v443 = vld [vmem:[%s1 + $0xc30] sm:$0xff]
    %v444 = vld [vmem:[%s1 + $0xc38] sm:$0xff]
    %v445 = vld [vmem:[%s1 + $0xc40] sm:$0xff]
    %v446 = vld [vmem:[%s1 + $0xc48] sm:$0xff]
    %v447 = vld [vmem:[%s1 + $0xc50] sm:$0xff]
    %v448 = vld [vmem:[%s1 + $0xc58] sm:$0xff]
    %v449 = vld [vmem:[%s1 + $0xc60] sm:$0xff]
    %v450 = vld [vmem:[%s1 + $0xc68] sm:$0xff]
    %v451 = vld [vmem:[%s1 + $0xc70] sm:$0xff]
    %v452 = vld [vmem:[%s1 + $0xc78] sm:$0xff]
    %v453 = vld [vmem:[%s1 + $0xc80] sm:$0xff]
    %v454 = vld [vmem:[%s1 + $0xc88] sm:$0xff]
    %v455 = vld [vmem:[%s1 + $0xc90] sm:$0xff]
    %v456 = vld [vmem:[%s1 + $0xc98] sm:$0xff]
    %v457 = vld [vmem:[%s1 + $0xca0] sm:$0xff]
    %v458 = vld [vmem:[%s1 + $0xca8] sm:$0xff]
    %v459 = vld [vmem:[%s1 + $0xcb0] sm:$0xff]
    %v460 = vld [vmem:[%s1 + $0xcb8] sm:$0xff]
    %v461 = vld [vmem:[%s1 + $0xcc0] sm:$0xff]
    %v462 = vld [vmem:[%s1 + $0xcc8] sm:$0xff]
    %v463 = vld [vmem:[%s1 + $0xcd0] sm:$0xff]
    %v464 = vld [vmem:[%s1 + $0xcd8] sm:$0xff]
    %v465 = vld [vmem:[%s1 + $0xce0] sm:$0xff]
    %v466 = vld [vmem:[%s1 + $0xce8] sm:$0xff]
    %v467 = vld [vmem:[%s1 + $0xcf0] sm:$0xff]
    %v468 = vld [vmem:[%s1 + $0xcf8] sm:$0xff]
    %v469 = vld [vmem:[%s1 + $0xd00] sm:$0xff]
    %v470 = vld [vmem:[%s1 + $0xd08] sm:$0xff]
    %v471 = vld [vmem:[%s1 + $0xd10] sm:$0xff]
    %v472 = vld [vmem:[%s1 + $0xd18] sm:$0xff]
    %v473 = vld [vmem:[%s1 + $0xd20] sm:$0xff]
    %v474 = vld [vmem:[%s1 + $0xd28] sm:$0xff]
    %v475 = vld [vmem:[%s1 + $0xd30] sm:$0xff]
    %v476 = vld [vmem:[%s1 + $0xd38] sm:$0xff]
    %v477 = vld [vmem:[%s1 + $0xd40] sm:$0xff]
    %v478 = vld [vmem:[%s1 + $0xd48] sm:$0xff]
    %v479 = vld [vmem:[%s1 + $0xd50] sm:$0xff]
    %v480 = vld [vmem:[%s1 + $0xd58] sm:$0xff]
    %v481 = vld [vmem:[%s1 + $0xd60] sm:$0xff]
    %v482 = vld [vmem:[%s1 + $0xd68] sm:$0xff]
    %v483 = vld [vmem:[%s1 + $0xd70] sm:$0xff]
    %v484 = vld [vmem:[%s1 + $0xd78] sm:$0xff]
    %v485 = vld [vmem:[%s1 + $0xd80] sm:$0xff]
    %v486 = vld [vmem:[%s1 + $0xd88] sm:$0xff]
    %v487 = vld [vmem:[%s1 + $0xd90] sm:$0xff]
    %v488 = vld [vmem:[%s1 + $0xd98] sm:$0xff]
    %v489 = vld [vmem:[%s1 + $0xda0] sm:$0xff]
    %v490 = vld [vmem:[%s1 + $0xda8] sm:$0xff]
    %v491 = vld [vmem:[%s1 + $0xdb0] sm:$0xff]
    %v492 = vld [vmem:[%s1 + $0xdb8] sm:$0xff]
    %v493 = vld [vmem:[%s1 + $0xdc0] sm:$0xff]
    %v494 = vld [vmem:[%s1 + $0xdc8] sm:$0xff]
    %v495 = vld [vmem:[%s1 + $0xdd0] sm:$0xff]
    %v496 = vld [vmem:[%s1 + $0xdd8] sm:$0xff]
    %v497 = vld [vmem:[%s1 + $0xde0] sm:$0xff]
    %v498 = vld [vmem:[%s1 + $0xde8] sm:$0xff]
    %v499 = vld [vmem:[%s1 + $0xdf0] sm:$0xff]
    %v500 = vld [vmem:[%s1 + $0xdf8] sm:$0xff]
    %v501 = vld [vmem:[%s1 + $0xe00] sm:$0xff]
    %v502 = vld [vmem:[%s1 + $0xe08] sm:$0xff]
    %v503 = vld [vmem:[%s1 + $0xe10] sm:$0xff]
    %v504 = vld [vmem:[%s1 + $0xe18] sm:$0xff]
    %v505 = vld [vmem:[%s1 + $0xe20] sm:$0xff]
    %v506 = vld [vmem:[%s1 + $0xe28] sm:$0xff]
    %v507 = vld [vmem:[%s1 + $0xe30] sm:$0xff]
    %v508 = vld [vmem:[%s1 + $0xe38] sm:$0xff]
    %v509 = vld [vmem:[%s1 + $0xe40] sm:$0xff]
    %v510 = vld [vmem:[%s1 + $0xe48] sm:$0xff]
    %v511 = vld [vmem:[%s1 + $0xe50] sm:$0xff]
    %v512 = vld [vmem:[%s1 + $0xe58] sm:$0xff]
    %v513 = vld [vmem:[%s1 + $0xe60] sm:$0xff]
    %v514 = vld [vmem:[%s1 + $0xe68] sm:$0xff]
    %v515 = vld [vmem:[%s1 + $0xe70] sm:$0xff]
    %v516 = vld [vmem:[%s1 + $0xe78] sm:$0xff]
    %v517 = vld [vmem:[%s1 + $0xe80] sm:$0xff]
    %v518 = vld [vmem:[%s1 + $0xe88] sm:$0xff]
    %v519 = vld [vmem:[%s1 + $0xe90] sm:$0xff]
    %v520 = vld [vmem:[%s1 + $0xe98] sm:$0xff]
    %v521 = vld [vmem:[%s1 + $0xea0] sm:$0xff]
    %v522 = vld [vmem:[%s1 + $0xea8] sm:$0xff]
    %v523 = vld [vmem:[%s1 + $0xeb0] sm:$0xff]
    %v524 = vld [vmem:[%s1 + $0xeb8] sm:$0xff]
    %v525 = vld [vmem:[%s1 + $0xec0] sm:$0xff]
    %v526 = vld [vmem:[%s1 + $0xec8] sm:$0xff]
    %v527 = vld [vmem:[%s1 + $0xed0] sm:$0xff]
    %v528 = vld [vmem:[%s1 + $0xed8] sm:$0xff]
    %v529 = vld [vmem:[%s1 + $0xee0] sm:$0xff]
    %v530 = vld [vmem:[%s1 + $0xee8] sm:$0xff]
    %v531 = vld [vmem:[%s1 + $0xef0] sm:$0xff]
    %v532 = vld [vmem:[%s1 + $0xef8] sm:$0xff]
    %v533 = vld [vmem:[%s1 + $0xf00] sm:$0xff]
    %v534 = vld [vmem:[%s1 + $0xf08] sm:$0xff]
    %v535 = vld [vmem:[%s1 + $0xf10] sm:$0xff]
    %v536 = vld [vmem:[%s1 + $0xf18] sm:$0xff]
    %v537 = vld [vmem:[%s1 + $0xf20] sm:$0xff]
    %v538 = vld [vmem:[%s1 + $0xf28] sm:$0xff]
    %v539 = vld [vmem:[%s1 + $0xf30] sm:$0xff]
    %v540 = vld [vmem:[%s1 + $0xf38] sm:$0xff]
    %v541 = vld [vmem:[%s1 + $0xf40] sm:$0xff]
    %v542 = vld [vmem:[%s1 + $0xf48] sm:$0xff]
    %v543 = vld [vmem:[%s1 + $0xf50] sm:$0xff]
    %v544 = vld [vmem:[%s1 + $0xf58] sm:$0xff]
    %v545 = vld [vmem:[%s1 + $0xf60] sm:$0xff]
    %v546 = vld [vmem:[%s1 + $0xf68] sm:$0xff]
    %v547 = vld [vmem:[%s1 + $0xf70] sm:$0xff]
    %v548 = vld [vmem:[%s1 + $0xf78] sm:$0xff]
    %v549 = vld [vmem:[%s1 + $0xf80] sm:$0xff]
    %v550 = vld [vmem:[%s1 + $0xf88] sm:$0xff]
    %v551 = vld [vmem:[%s1 + $0xf90] sm:$0xff]
    %v552 = vld [vmem:[%s1 + $0xf98] sm:$0xff]
    %v553 = vld [vmem:[%s1 + $0xfa0] sm:$0xff]
    %v554 = vld [vmem:[%s1 + $0xfa8] sm:$0xff]
    %v555 = vld [vmem:[%s1 + $0xfb0] sm:$0xff]
    %v556 = vld [vmem:[%s1 + $0xfb8] sm:$0xff]
    %v557 = vld [vmem:[%s1 + $0xfc0] sm:$0xff]
    %v558 = vld [vmem:[%s1 + $0xfc8] sm:$0xff]
    %v559 = vld [vmem:[%s1 + $0xfd0] sm:$0xff]
    %v560 = vld [vmem:[%s1 + $0xfd8] sm:$0xff]
    %v561 = vld [vmem:[%s1 + $0xfe0] sm:$0xff]
    %v562 = vld [vmem:[%s1 + $0xfe8] sm:$0xff]
    %v563 = vld [vmem:[%s1 + $0xff0] sm:$0xff]
    %v564 = vld [vmem:[%s1 + $0xff8] sm:$0xff]
    %v565 = vld [vmem:[%s2] sm:$0xf]
    %v567 = vlaneseq
    %v568 = vshrl.u32 %v567, 7
    %v569 = vsub.s32 0, %v568
    %v570 = vrot.slane %v565, %v569
    %v571 = vlaneseq
    %v572 = vshrl.u32 %v571, 7
    %v573 = vsub.s32 1, %v572
    %v574 = vrot.slane %v565, %v573
    %v575 = vlaneseq
    %v576 = vshrl.u32 %v575, 7
    %v577 = vsub.s32 2, %v576
    %v578 = vrot.slane %v565, %v577
    %v579 = vlaneseq
    %v580 = vshrl.u32 %v579, 7
    %v581 = vsub.s32 3, %v580
    %v582 = vrot.slane %v565, %v581
    %v589 = vcombine.high %v51, %v51
    %v591 = vunpack.c.l.s4 1983009808
    %v592 = vunpack.c.0.s8 %v591
    %v593 = vlaneseq
    %v594 = vshrl.u32 %v593, 7
    %v595 = vsub.s32 %v592, %v594
    %v596 = vrot.slane %v51, %v595
    %v598 = vunpack.c.l.s4 1983009808
    %v599 = vunpack.c.0.s8 %v598
    %v600 = vlaneseq
    %v601 = vshrl.u32 %v600, 7
    %v602 = vsub.s32 %v599, %v601
    %v603 = vrot.slane %v589, %v602
    %v604 = vcombine.high %v596, %v596
    %v605 = vcombine.high %v603, %v603
    %v606 = vcombine.high %v52, %v52
    %v608 = vunpack.c.l.s4 1983009808
    %v609 = vunpack.c.0.s8 %v608
    %v610 = vlaneseq
    %v611 = vshrl.u32 %v610, 7
    %v612 = vsub.s32 %v609, %v611
    %v613 = vrot.slane %v52, %v612
    %v615 = vunpack.c.l.s4 1983009808
    %v616 = vunpack.c.0.s8 %v615
    %v617 = vlaneseq
    %v618 = vshrl.u32 %v617, 7
    %v619 = vsub.s32 %v616, %v618
    %v620 = vrot.slane %v606, %v619
    %v621 = vcombine.high %v613, %v613
    %v622 = vcombine.high %v620, %v620
    %631 = vmatprep.subr.mxu0 %v54
    %632 = vmatpush1.msra.mxu0 %v53
    %633 = vmatprep.subr.mxu0 %v58
    %634 = vmatpush1.msra.mxu0 %v57
    %635 = vmatprep.subr.mxu0 %v62
    %636 = vmatpush1.msra.mxu0 %v61
    %637 = vmatprep.subr.mxu0 %v66
    %638 = vmatpush1.msra.mxu0 %v65
    %639 = vmatprep.subr.mxu0 %v70
    %640 = vmatpush1.msra.mxu0 %v69
    %641 = vmatprep.subr.mxu0 %v74
    %642 = vmatpush1.msra.mxu0 %v73
    %643 = vmatprep.subr.mxu0 %v78
    %644 = vmatpush1.msra.mxu0 %v77
    %645 = vmatprep.subr.mxu0 %v82
    %646 = vmatpush1.msra.mxu0 %v81
    %647 = vmatprep.subr.mxu0 %v86
    %648 = vmatpush1.msra.mxu0 %v85
    %649 = vmatprep.subr.mxu0 %v90
    %650 = vmatpush1.msra.mxu0 %v89
    %651 = vmatprep.subr.mxu0 %v94
    %652 = vmatpush1.msra.mxu0 %v93
    %653 = vmatprep.subr.mxu0 %v98
    %654 = vmatpush1.msra.mxu0 %v97
    %655 = vmatprep.subr.mxu0 %v102
    %656 = vmatpush1.msra.mxu0 %v101
    %657 = vmatprep.subr.mxu0 %v106
    %658 = vmatpush1.msra.mxu0 %v105
    %659 = vmatprep.subr.mxu0 %v110
    %660 = vmatpush1.msra.mxu0 %v109
    %661 = vmatprep.subr.mxu0 %v114
    %662 = vmatpush1.msra.mxu0 %v113
    %663 = vmatprep.subr.mxu0 %v118
    %664 = vmatpush1.msra.mxu0 %v117
    %665 = vmatprep.subr.mxu0 %v122
    %666 = vmatpush1.msra.mxu0 %v121
    %667 = vmatprep.subr.mxu0 %v126
    %668 = vmatpush1.msra.mxu0 %v125
    %669 = vmatprep.subr.mxu0 %v130
    %670 = vmatpush1.msra.mxu0 %v129
    %671 = vmatprep.subr.mxu0 %v134
    %672 = vmatpush1.msra.mxu0 %v133
    %673 = vmatprep.subr.mxu0 %v138
    %674 = vmatpush1.msra.mxu0 %v137
    %675 = vmatprep.subr.mxu0 %v142
    %676 = vmatpush1.msra.mxu0 %v141
    %677 = vmatprep.subr.mxu0 %v146
    %678 = vmatpush1.msra.mxu0 %v145
    %679 = vmatprep.subr.mxu0 %v150
    %680 = vmatpush1.msra.mxu0 %v149
    %681 = vmatprep.subr.mxu0 %v154
    %682 = vmatpush1.msra.mxu0 %v153
    %683 = vmatprep.subr.mxu0 %v158
    %684 = vmatpush1.msra.mxu0 %v157
    %685 = vmatprep.subr.mxu0 %v162
    %686 = vmatpush1.msra.mxu0 %v161
    %687 = vmatprep.subr.mxu0 %v166
    %688 = vmatpush1.msra.mxu0 %v165
    %689 = vmatprep.subr.mxu0 %v170
    %690 = vmatpush1.msra.mxu0 %v169
    %691 = vmatprep.subr.mxu0 %v174
    %692 = vmatpush1.msra.mxu0 %v173
    %693 = vmatprep.subr.mxu0 %v178
    %694 = vmatpush1.msra.mxu0 %v177
    %695 = vmatprep.mubr.f32.mxu0 %v604
    %696 = vmatmul.mubr.f32.gmra.mrb[0].mxu0 %v596
    %v697 = vpop.f32.mrb[0].mxu0
    %v698 = vadd.f32 %v570, %v697
    %v699 = vpop.f32.mrb[0].mxu0
    %v700 = vadd.f32 %v574, %v699
    %701 = vdwg.mxu0
    %702 = vmatprep.subr.mxu0 %v182
    %703 = vmatpush1.msra.mxu0 %v181
    %704 = vmatprep.subr.mxu0 %v186
    %705 = vmatpush1.msra.mxu0 %v185
    %706 = vmatprep.subr.mxu0 %v190
    %707 = vmatpush1.msra.mxu0 %v189
    %708 = vmatprep.subr.mxu0 %v194
    %709 = vmatpush1.msra.mxu0 %v193
    %710 = vmatprep.subr.mxu0 %v198
    %711 = vmatpush1.msra.mxu0 %v197
    %712 = vmatprep.subr.mxu0 %v202
    %713 = vmatpush1.msra.mxu0 %v201
    %714 = vmatprep.subr.mxu0 %v206
    %715 = vmatpush1.msra.mxu0 %v205
    %716 = vmatprep.subr.mxu0 %v210
    %717 = vmatpush1.msra.mxu0 %v209
    %718 = vmatprep.subr.mxu0 %v214
    %719 = vmatpush1.msra.mxu0 %v213
    %720 = vmatprep.subr.mxu0 %v218
    %721 = vmatpush1.msra.mxu0 %v217
    %722 = vmatprep.subr.mxu0 %v222
    %723 = vmatpush1.msra.mxu0 %v221
    %724 = vmatprep.subr.mxu0 %v226
    %725 = vmatpush1.msra.mxu0 %v225
    %726 = vmatprep.subr.mxu0 %v230
    %727 = vmatpush1.msra.mxu0 %v229
    %728 = vmatprep.subr.mxu0 %v234
    %729 = vmatpush1.msra.mxu0 %v233
    %730 = vmatprep.subr.mxu0 %v238
    %731 = vmatpush1.msra.mxu0 %v237
    %732 = vmatprep.subr.mxu0 %v242
    %733 = vmatpush1.msra.mxu0 %v241
    %734 = vmatprep.subr.mxu0 %v246
    %735 = vmatpush1.msra.mxu0 %v245
    %736 = vmatprep.subr.mxu0 %v250
    %737 = vmatpush1.msra.mxu0 %v249
    %738 = vmatprep.subr.mxu0 %v254
    %739 = vmatpush1.msra.mxu0 %v253
    %740 = vmatprep.subr.mxu0 %v258
    %741 = vmatpush1.msra.mxu0 %v257
    %742 = vmatprep.subr.mxu0 %v262
    %743 = vmatpush1.msra.mxu0 %v261
    %744 = vmatprep.subr.mxu0 %v266
    %745 = vmatpush1.msra.mxu0 %v265
    %746 = vmatprep.subr.mxu0 %v270
    %747 = vmatpush1.msra.mxu0 %v269
    %748 = vmatprep.subr.mxu0 %v274
    %749 = vmatpush1.msra.mxu0 %v273
    %750 = vmatprep.subr.mxu0 %v278
    %751 = vmatpush1.msra.mxu0 %v277
    %752 = vmatprep.subr.mxu0 %v282
    %753 = vmatpush1.msra.mxu0 %v281
    %754 = vmatprep.subr.mxu0 %v286
    %755 = vmatpush1.msra.mxu0 %v285
    %756 = vmatprep.subr.mxu0 %v290
    %757 = vmatpush1.msra.mxu0 %v289
    %758 = vmatprep.subr.mxu0 %v294
    %759 = vmatpush1.msra.mxu0 %v293
    %760 = vmatprep.subr.mxu0 %v298
    %761 = vmatpush1.msra.mxu0 %v297
    %762 = vmatprep.subr.mxu0 %v302
    %763 = vmatpush1.msra.mxu0 %v301
    %764 = vmatprep.subr.mxu0 %v306
    %765 = vmatpush1.msra.mxu0 %v305
    %766 = vmatprep.mubr.f32.mxu0 %v605
    %767 = vmatmul.mubr.f32.gmra.mrb[0].mxu0 %v603
    %v768 = vpop.f32.mrb[0].mxu0
    %v769 = vadd.f32 %v698, %v768
    %v770 = vpop.f32.mrb[0].mxu0
    %v771 = vadd.f32 %v700, %v770
    %772 = vdwg.mxu0
    %773 = vmatprep.subr.mxu0 %v310
    %774 = vmatpush1.msra.mxu0 %v309
    %775 = vmatprep.subr.mxu0 %v314
    %776 = vmatpush1.msra.mxu0 %v313
    %777 = vmatprep.subr.mxu0 %v318
    %778 = vmatpush1.msra.mxu0 %v317
    %779 = vmatprep.subr.mxu0 %v322
    %780 = vmatpush1.msra.mxu0 %v321
    %781 = vmatprep.subr.mxu0 %v326
    %782 = vmatpush1.msra.mxu0 %v325
    %783 = vmatprep.subr.mxu0 %v330
    %784 = vmatpush1.msra.mxu0 %v329
    %785 = vmatprep.subr.mxu0 %v334
    %786 = vmatpush1.msra.mxu0 %v333
    %787 = vmatprep.subr.mxu0 %v338
    %788 = vmatpush1.msra.mxu0 %v337
    %789 = vmatprep.subr.mxu0 %v342
    %790 = vmatpush1.msra.mxu0 %v341
    %791 = vmatprep.subr.mxu0 %v346
    %792 = vmatpush1.msra.mxu0 %v345
    %793 = vmatprep.subr.mxu0 %v350
    %794 = vmatpush1.msra.mxu0 %v349
    %795 = vmatprep.subr.mxu0 %v354
    %796 = vmatpush1.msra.mxu0 %v353
    %797 = vmatprep.subr.mxu0 %v358
    %798 = vmatpush1.msra.mxu0 %v357
    %799 = vmatprep.subr.mxu0 %v362
    %800 = vmatpush1.msra.mxu0 %v361
    %801 = vmatprep.subr.mxu0 %v366
    %802 = vmatpush1.msra.mxu0 %v365
    %803 = vmatprep.subr.mxu0 %v370
    %804 = vmatpush1.msra.mxu0 %v369
    %805 = vmatprep.subr.mxu0 %v374
    %806 = vmatpush1.msra.mxu0 %v373
    %807 = vmatprep.subr.mxu0 %v378
    %808 = vmatpush1.msra.mxu0 %v377
    %809 = vmatprep.subr.mxu0 %v382
    %810 = vmatpush1.msra.mxu0 %v381
    %811 = vmatprep.subr.mxu0 %v386
    %812 = vmatpush1.msra.mxu0 %v385
    %813 = vmatprep.subr.mxu0 %v390
    %814 = vmatpush1.msra.mxu0 %v389
    %815 = vmatprep.subr.mxu0 %v394
    %816 = vmatpush1.msra.mxu0 %v393
    %817 = vmatprep.subr.mxu0 %v398
    %818 = vmatpush1.msra.mxu0 %v397
    %819 = vmatprep.subr.mxu0 %v402
    %820 = vmatpush1.msra.mxu0 %v401
    %821 = vmatprep.subr.mxu0 %v406
    %822 = vmatpush1.msra.mxu0 %v405
    %823 = vmatprep.subr.mxu0 %v410
    %824 = vmatpush1.msra.mxu0 %v409
    %825 = vmatprep.subr.mxu0 %v414
    %826 = vmatpush1.msra.mxu0 %v413
    %827 = vmatprep.subr.mxu0 %v418
    %828 = vmatpush1.msra.mxu0 %v417
    %829 = vmatprep.subr.mxu0 %v422
    %830 = vmatpush1.msra.mxu0 %v421
    %831 = vmatprep.subr.mxu0 %v426
    %832 = vmatpush1.msra.mxu0 %v425
    %833 = vmatprep.subr.mxu0 %v430
    %834 = vmatpush1.msra.mxu0 %v429
    %835 = vmatprep.subr.mxu0 %v434
    %836 = vmatpush1.msra.mxu0 %v433
    %837 = vmatprep.mubr.f32.mxu0 %v621
    %838 = vmatmul.mubr.f32.gmra.mrb[0].mxu0 %v613
    %v839 = vpop.f32.mrb[0].mxu0
    %v840 = vadd.f32 %v769, %v839
    %v841 = vpop.f32.mrb[0].mxu0
    %v842 = vadd.f32 %v771, %v841
    %843 = vdwg.mxu0
    %844 = vmatprep.subr.mxu0 %v438
    %845 = vmatpush1.msra.mxu0 %v437
    %846 = vmatprep.subr.mxu0 %v442
    %847 = vmatpush1.msra.mxu0 %v441
    %848 = vmatprep.subr.mxu0 %v446
    %849 = vmatpush1.msra.mxu0 %v445
    %850 = vmatprep.subr.mxu0 %v450
    %851 = vmatpush1.msra.mxu0 %v449
    %852 = vmatprep.subr.mxu0 %v454
    %853 = vmatpush1.msra.mxu0 %v453
    %854 = vmatprep.subr.mxu0 %v458
    %855 = vmatpush1.msra.mxu0 %v457
    %856 = vmatprep.subr.mxu0 %v462
    %857 = vmatpush1.msra.mxu0 %v461
    %858 = vmatprep.subr.mxu0 %v466
    %859 = vmatpush1.msra.mxu0 %v465
    %860 = vmatprep.subr.mxu0 %v470
    %861 = vmatpush1.msra.mxu0 %v469
    %862 = vmatprep.subr.mxu0 %v474
    %863 = vmatpush1.msra.mxu0 %v473
    %864 = vmatprep.subr.mxu0 %v478
    %865 = vmatpush1.msra.mxu0 %v477
    %866 = vmatprep.subr.mxu0 %v482
    %867 = vmatpush1.msra.mxu0 %v481
    %868 = vmatprep.subr.mxu0 %v486
    %869 = vmatpush1.msra.mxu0 %v485
    %870 = vmatprep.subr.mxu0 %v490
    %871 = vmatpush1.msra.mxu0 %v489
    %872 = vmatprep.subr.mxu0 %v494
    %873 = vmatpush1.msra.mxu0 %v493
    %874 = vmatprep.subr.mxu0 %v498
    %875 = vmatpush1.msra.mxu0 %v497
    %876 = vmatprep.subr.mxu0 %v502
    %877 = vmatpush1.msra.mxu0 %v501
    %878 = vmatprep.subr.mxu0 %v506
    %879 = vmatpush1.msra.mxu0 %v505
    %880 = vmatprep.subr.mxu0 %v510
    %881 = vmatpush1.msra.mxu0 %v509
    %882 = vmatprep.subr.mxu0 %v514
    %883 = vmatpush1.msra.mxu0 %v513
    %884 = vmatprep.subr.mxu0 %v518
    %885 = vmatpush1.msra.mxu0 %v517
    %886 = vmatprep.subr.mxu0 %v522
    %887 = vmatpush1.msra.mxu0 %v521
    %888 = vmatprep.subr.mxu0 %v526
    %889 = vmatpush1.msra.mxu0 %v525
    %890 = vmatprep.subr.mxu0 %v530
    %891 = vmatpush1.msra.mxu0 %v529
    %892 = vmatprep.subr.mxu0 %v534
    %893 = vmatpush1.msra.mxu0 %v533
    %894 = vmatprep.subr.mxu0 %v538
    %895 = vmatpush1.msra.mxu0 %v537
    %896 = vmatprep.subr.mxu0 %v542
    %897 = vmatpush1.msra.mxu0 %v541
    %898 = vmatprep.subr.mxu0 %v546
    %899 = vmatpush1.msra.mxu0 %v545
    %900 = vmatprep.subr.mxu0 %v550
    %901 = vmatpush1.msra.mxu0 %v549
    %902 = vmatprep.subr.mxu0 %v554
    %903 = vmatpush1.msra.mxu0 %v553
    %904 = vmatprep.subr.mxu0 %v558
    %905 = vmatpush1.msra.mxu0 %v557
    %906 = vmatprep.subr.mxu0 %v562
    %907 = vmatpush1.msra.mxu0 %v561
    %908 = vmatprep.mubr.f32.mxu0 %v622
    %909 = vmatmul.mubr.f32.gmra.mrb[0].mxu0 %v620
    %v910 = vpop.f32.mrb[0].mxu0
    %v911 = vadd.f32 %v840, %v910
    %v912 = vpop.f32.mrb[0].mxu0
    %v913 = vadd.f32 %v842, %v912
    %914 = vdwg.mxu0
    %915 = vmatprep.subr.mxu0 %v56
    %916 = vmatpush1.msra.mxu0 %v55
    %917 = vmatprep.subr.mxu0 %v60
    %918 = vmatpush1.msra.mxu0 %v59
    %919 = vmatprep.subr.mxu0 %v64
    %920 = vmatpush1.msra.mxu0 %v63
    %921 = vmatprep.subr.mxu0 %v68
    %922 = vmatpush1.msra.mxu0 %v67
    %923 = vmatprep.subr.mxu0 %v72
    %924 = vmatpush1.msra.mxu0 %v71
    %925 = vmatprep.subr.mxu0 %v76
    %926 = vmatpush1.msra.mxu0 %v75
    %927 = vmatprep.subr.mxu0 %v80
    %928 = vmatpush1.msra.mxu0 %v79
    %929 = vmatprep.subr.mxu0 %v84
    %930 = vmatpush1.msra.mxu0 %v83
    %931 = vmatprep.subr.mxu0 %v88
    %932 = vmatpush1.msra.mxu0 %v87
    %933 = vmatprep.subr.mxu0 %v92
    %934 = vmatpush1.msra.mxu0 %v91
    %935 = vmatprep.subr.mxu0 %v96
    %936 = vmatpush1.msra.mxu0 %v95
    %937 = vmatprep.subr.mxu0 %v100
    %938 = vmatpush1.msra.mxu0 %v99
    %939 = vmatprep.subr.mxu0 %v104
    %940 = vmatpush1.msra.mxu0 %v103
    %941 = vmatprep.subr.mxu0 %v108
    %942 = vmatpush1.msra.mxu0 %v107
    %943 = vmatprep.subr.mxu0 %v112
    %944 = vmatpush1.msra.mxu0 %v111
    %945 = vmatprep.subr.mxu0 %v116
    %946 = vmatpush1.msra.mxu0 %v115
    %947 = vmatprep.subr.mxu0 %v120
    %948 = vmatpush1.msra.mxu0 %v119
    %949 = vmatprep.subr.mxu0 %v124
    %950 = vmatpush1.msra.mxu0 %v123
    %951 = vmatprep.subr.mxu0 %v128
    %952 = vmatpush1.msra.mxu0 %v127
    %953 = vmatprep.subr.mxu0 %v132
    %954 = vmatpush1.msra.mxu0 %v131
    %955 = vmatprep.subr.mxu0 %v136
    %956 = vmatpush1.msra.mxu0 %v135
    %957 = vmatprep.subr.mxu0 %v140
    %958 = vmatpush1.msra.mxu0 %v139
    %959 = vmatprep.subr.mxu0 %v144
    %960 = vmatpush1.msra.mxu0 %v143
    %961 = vmatprep.subr.mxu0 %v148
    %962 = vmatpush1.msra.mxu0 %v147
    %963 = vmatprep.subr.mxu0 %v152
    %964 = vmatpush1.msra.mxu0 %v151
    %965 = vmatprep.subr.mxu0 %v156
    %966 = vmatpush1.msra.mxu0 %v155
    %967 = vmatprep.subr.mxu0 %v160
    %968 = vmatpush1.msra.mxu0 %v159
    %969 = vmatprep.subr.mxu0 %v164
    %970 = vmatpush1.msra.mxu0 %v163
    %971 = vmatprep.subr.mxu0 %v168
    %972 = vmatpush1.msra.mxu0 %v167
    %973 = vmatprep.subr.mxu0 %v172
    %974 = vmatpush1.msra.mxu0 %v171
    %975 = vmatprep.subr.mxu0 %v176
    %976 = vmatpush1.msra.mxu0 %v175
    %977 = vmatprep.subr.mxu0 %v180
    %978 = vmatpush1.msra.mxu0 %v179
    %979 = vmatprep.mubr.f32.mxu0 %v604
    %980 = vmatmul.mubr.f32.gmra.mrb[0].mxu0 %v596
    %v981 = vpop.f32.mrb[0].mxu0
    %v982 = vadd.f32 %v578, %v981
    %v983 = vpop.f32.mrb[0].mxu0
    %v984 = vadd.f32 %v582, %v983
    %985 = vdwg.mxu0
    %986 = vmatprep.subr.mxu0 %v184
    %987 = vmatpush1.msra.mxu0 %v183
    %988 = vmatprep.subr.mxu0 %v188
    %989 = vmatpush1.msra.mxu0 %v187
    %990 = vmatprep.subr.mxu0 %v192
    %991 = vmatpush1.msra.mxu0 %v191
    %992 = vmatprep.subr.mxu0 %v196
    %993 = vmatpush1.msra.mxu0 %v195
    %994 = vmatprep.subr.mxu0 %v200
    %995 = vmatpush1.msra.mxu0 %v199
    %996 = vmatprep.subr.mxu0 %v204
    %997 = vmatpush1.msra.mxu0 %v203
    %998 = vmatprep.subr.mxu0 %v208
    %999 = vmatpush1.msra.mxu0 %v207
    %1000 = vmatprep.subr.mxu0 %v212
    %1001 = vmatpush1.msra.mxu0 %v211
    %1002 = vmatprep.subr.mxu0 %v216
    %1003 = vmatpush1.msra.mxu0 %v215
    %1004 = vmatprep.subr.mxu0 %v220
    %1005 = vmatpush1.msra.mxu0 %v219
    %1006 = vmatprep.subr.mxu0 %v224
    %1007 = vmatpush1.msra.mxu0 %v223
    %1008 = vmatprep.subr.mxu0 %v228
    %1009 = vmatpush1.msra.mxu0 %v227
    %1010 = vmatprep.subr.mxu0 %v232
    %1011 = vmatpush1.msra.mxu0 %v231
    %1012 = vmatprep.subr.mxu0 %v236
    %1013 = vmatpush1.msra.mxu0 %v235
    %1014 = vmatprep.subr.mxu0 %v240
    %1015 = vmatpush1.msra.mxu0 %v239
    %1016 = vmatprep.subr.mxu0 %v244
    %1017 = vmatpush1.msra.mxu0 %v243
    %1018 = vmatprep.subr.mxu0 %v248
    %1019 = vmatpush1.msra.mxu0 %v247
    %1020 = vmatprep.subr.mxu0 %v252
    %1021 = vmatpush1.msra.mxu0 %v251
    %1022 = vmatprep.subr.mxu0 %v256
    %1023 = vmatpush1.msra.mxu0 %v255
    %1024 = vmatprep.subr.mxu0 %v260
    %1025 = vmatpush1.msra.mxu0 %v259
    %1026 = vmatprep.subr.mxu0 %v264
    %1027 = vmatpush1.msra.mxu0 %v263
    %1028 = vmatprep.subr.mxu0 %v268
    %1029 = vmatpush1.msra.mxu0 %v267
    %1030 = vmatprep.subr.mxu0 %v272
    %1031 = vmatpush1.msra.mxu0 %v271
    %1032 = vmatprep.subr.mxu0 %v276
    %1033 = vmatpush1.msra.mxu0 %v275
    %1034 = vmatprep.subr.mxu0 %v280
    %1035 = vmatpush1.msra.mxu0 %v279
    %1036 = vmatprep.subr.mxu0 %v284
    %1037 = vmatpush1.msra.mxu0 %v283
    %1038 = vmatprep.subr.mxu0 %v288
    %1039 = vmatpush1.msra.mxu0 %v287
    %1040 = vmatprep.subr.mxu0 %v292
    %1041 = vmatpush1.msra.mxu0 %v291
    %1042 = vmatprep.subr.mxu0 %v296
    %1043 = vmatpush1.msra.mxu0 %v295
    %1044 = vmatprep.subr.mxu0 %v300
    %1045 = vmatpush1.msra.mxu0 %v299
    %1046 = vmatprep.subr.mxu0 %v304
    %1047 = vmatpush1.msra.mxu0 %v303
    %1048 = vmatprep.subr.mxu0 %v308
    %1049 = vmatpush1.msra.mxu0 %v307
    %1050 = vmatprep.mubr.f32.mxu0 %v605
    %1051 = vmatmul.mubr.f32.gmra.mrb[0].mxu0 %v603
    %v1052 = vpop.f32.mrb[0].mxu0
    %v1053 = vadd.f32 %v982, %v1052
    %v1054 = vpop.f32.mrb[0].mxu0
    %v1055 = vadd.f32 %v984, %v1054
    %1056 = vdwg.mxu0
    %1057 = vmatprep.subr.mxu0 %v312
    %1058 = vmatpush1.msra.mxu0 %v311
    %1059 = vmatprep.subr.mxu0 %v316
    %1060 = vmatpush1.msra.mxu0 %v315
    %1061 = vmatprep.subr.mxu0 %v320
    %1062 = vmatpush1.msra.mxu0 %v319
    %1063 = vmatprep.subr.mxu0 %v324
    %1064 = vmatpush1.msra.mxu0 %v323
    %1065 = vmatprep.subr.mxu0 %v328
    %1066 = vmatpush1.msra.mxu0 %v327
    %1067 = vmatprep.subr.mxu0 %v332
    %1068 = vmatpush1.msra.mxu0 %v331
    %1069 = vmatprep.subr.mxu0 %v336
    %1070 = vmatpush1.msra.mxu0 %v335
    %1071 = vmatprep.subr.mxu0 %v340
    %1072 = vmatpush1.msra.mxu0 %v339
    %1073 = vmatprep.subr.mxu0 %v344
    %1074 = vmatpush1.msra.mxu0 %v343
    %1075 = vmatprep.subr.mxu0 %v348
    %1076 = vmatpush1.msra.mxu0 %v347
    %1077 = vmatprep.subr.mxu0 %v352
    %1078 = vmatpush1.msra.mxu0 %v351
    %1079 = vmatprep.subr.mxu0 %v356
    %1080 = vmatpush1.msra.mxu0 %v355
    %1081 = vmatprep.subr.mxu0 %v360
    %1082 = vmatpush1.msra.mxu0 %v359
    %1083 = vmatprep.subr.mxu0 %v364
    %1084 = vmatpush1.msra.mxu0 %v363
    %1085 = vmatprep.subr.mxu0 %v368
    %1086 = vmatpush1.msra.mxu0 %v367
    %1087 = vmatprep.subr.mxu0 %v372
    %1088 = vmatpush1.msra.mxu0 %v371
    %1089 = vmatprep.subr.mxu0 %v376
    %1090 = vmatpush1.msra.mxu0 %v375
    %1091 = vmatprep.subr.mxu0 %v380
    %1092 = vmatpush1.msra.mxu0 %v379
    %1093 = vmatprep.subr.mxu0 %v384
    %1094 = vmatpush1.msra.mxu0 %v383
    %1095 = vmatprep.subr.mxu0 %v388
    %1096 = vmatpush1.msra.mxu0 %v387
    %1097 = vmatprep.subr.mxu0 %v392
    %1098 = vmatpush1.msra.mxu0 %v391
    %1099 = vmatprep.subr.mxu0 %v396
    %1100 = vmatpush1.msra.mxu0 %v395
    %1101 = vmatprep.subr.mxu0 %v400
    %1102 = vmatpush1.msra.mxu0 %v399
    %1103 = vmatprep.subr.mxu0 %v404
    %1104 = vmatpush1.msra.mxu0 %v403
    %1105 = vmatprep.subr.mxu0 %v408
    %1106 = vmatpush1.msra.mxu0 %v407
    %1107 = vmatprep.subr.mxu0 %v412
    %1108 = vmatpush1.msra.mxu0 %v411
    %1109 = vmatprep.subr.mxu0 %v416
    %1110 = vmatpush1.msra.mxu0 %v415
    %1111 = vmatprep.subr.mxu0 %v420
    %1112 = vmatpush1.msra.mxu0 %v419
    %1113 = vmatprep.subr.mxu0 %v424
    %1114 = vmatpush1.msra.mxu0 %v423
    %1115 = vmatprep.subr.mxu0 %v428
    %1116 = vmatpush1.msra.mxu0 %v427
    %1117 = vmatprep.subr.mxu0 %v432
    %1118 = vmatpush1.msra.mxu0 %v431
    %1119 = vmatprep.subr.mxu0 %v436
    %1120 = vmatpush1.msra.mxu0 %v435
    %1121 = vmatprep.mubr.f32.mxu0 %v621
    %1122 = vmatmul.mubr.f32.gmra.mrb[0].mxu0 %v613
    %v1123 = vpop.f32.mrb[0].mxu0
    %v1124 = vadd.f32 %v1053, %v1123
    %v1125 = vpop.f32.mrb[0].mxu0
    %v1126 = vadd.f32 %v1055, %v1125
    %1127 = vdwg.mxu0
    %1128 = vmatprep.subr.mxu0 %v440
    %1129 = vmatpush1.msra.mxu0 %v439
    %1130 = vmatprep.subr.mxu0 %v444
    %1131 = vmatpush1.msra.mxu0 %v443
    %1132 = vmatprep.subr.mxu0 %v448
    %1133 = vmatpush1.msra.mxu0 %v447
    %1134 = vmatprep.subr.mxu0 %v452
    %1135 = vmatpush1.msra.mxu0 %v451
    %1136 = vmatprep.subr.mxu0 %v456
    %1137 = vmatpush1.msra.mxu0 %v455
    %1138 = vmatprep.subr.mxu0 %v460
    %1139 = vmatpush1.msra.mxu0 %v459
    %1140 = vmatprep.subr.mxu0 %v464
    %1141 = vmatpush1.msra.mxu0 %v463
    %1142 = vmatprep.subr.mxu0 %v468
    %1143 = vmatpush1.msra.mxu0 %v467
    %1144 = vmatprep.subr.mxu0 %v472
    %1145 = vmatpush1.msra.mxu0 %v471
    %1146 = vmatprep.subr.mxu0 %v476
    %1147 = vmatpush1.msra.mxu0 %v475
    %1148 = vmatprep.subr.mxu0 %v480
    %1149 = vmatpush1.msra.mxu0 %v479
    %1150 = vmatprep.subr.mxu0 %v484
    %1151 = vmatpush1.msra.mxu0 %v483
    %1152 = vmatprep.subr.mxu0 %v488
    %1153 = vmatpush1.msra.mxu0 %v487
    %1154 = vmatprep.subr.mxu0 %v492
    %1155 = vmatpush1.msra.mxu0 %v491
    %1156 = vmatprep.subr.mxu0 %v496
    %1157 = vmatpush1.msra.mxu0 %v495
    %1158 = vmatprep.subr.mxu0 %v500
    %1159 = vmatpush1.msra.mxu0 %v499
    %1160 = vmatprep.subr.mxu0 %v504
    %1161 = vmatpush1.msra.mxu0 %v503
    %1162 = vmatprep.subr.mxu0 %v508
    %1163 = vmatpush1.msra.mxu0 %v507
    %1164 = vmatprep.subr.mxu0 %v512
    %1165 = vmatpush1.msra.mxu0 %v511
    %1166 = vmatprep.subr.mxu0 %v516
    %1167 = vmatpush1.msra.mxu0 %v515
    %1168 = vmatprep.subr.mxu0 %v520
    %1169 = vmatpush1.msra.mxu0 %v519
    %1170 = vmatprep.subr.mxu0 %v524
    %1171 = vmatpush1.msra.mxu0 %v523
    %1172 = vmatprep.subr.mxu0 %v528
    %1173 = vmatpush1.msra.mxu0 %v527
    %1174 = vmatprep.subr.mxu0 %v532
    %1175 = vmatpush1.msra.mxu0 %v531
    %1176 = vmatprep.subr.mxu0 %v536
    %1177 = vmatpush1.msra.mxu0 %v535
    %1178 = vmatprep.subr.mxu0 %v540
    %1179 = vmatpush1.msra.mxu0 %v539
    %1180 = vmatprep.subr.mxu0 %v544
    %1181 = vmatpush1.msra.mxu0 %v543
    %1182 = vmatprep.subr.mxu0 %v548
    %1183 = vmatpush1.msra.mxu0 %v547
    %1184 = vmatprep.subr.mxu0 %v552
    %1185 = vmatpush1.msra.mxu0 %v551
    %1186 = vmatprep.subr.mxu0 %v556
    %1187 = vmatpush1.msra.mxu0 %v555
    %1188 = vmatprep.subr.mxu0 %v560
    %1189 = vmatpush1.msra.mxu0 %v559
    %1190 = vmatprep.subr.mxu0 %v564
    %1191 = vmatpush1.msra.mxu0 %v563
    %1192 = vmatprep.mubr.f32.mxu0 %v622
    %1193 = vmatmul.mubr.f32.gmra.mrb[0].mxu0 %v620
    %v1194 = vpop.f32.mrb[0].mxu0
    %v1195 = vadd.f32 %v1124, %v1194
    %v1196 = vpop.f32.mrb[0].mxu0
    %v1197 = vadd.f32 %v1126, %v1196
    %1198 = vdwg.mxu0
    %v1199 = vmax.f32 %v911, 0.0
    %v1200 = vmax.f32 %v913, 0.0
    %v1201 = vmax.f32 %v1195, 0.0
    %v1202 = vmax.f32 %v1197, 0.0
    %v1203 = vld [vmem:[%s3] sm:$0xff]
    %v1204 = vld [vmem:[%s3 + $0x8] sm:$0xff]
    %v1205 = vld [vmem:[%s3 + $0x10] sm:$0xff]
    %v1206 = vld [vmem:[%s3 + $0x18] sm:$0xff]
    %v1207 = vld [vmem:[%s3 + $0x20] sm:$0xff]
    %v1208 = vld [vmem:[%s3 + $0x28] sm:$0xff]
    %v1209 = vld [vmem:[%s3 + $0x30] sm:$0xff]
    %v1210 = vld [vmem:[%s3 + $0x38] sm:$0xff]
    %v1211 = vld [vmem:[%s3 + $0x40] sm:$0xff]
    %v1212 = vld [vmem:[%s3 + $0x48] sm:$0xff]
    %v1213 = vld [vmem:[%s3 + $0x50] sm:$0xff]
    %v1214 = vld [vmem:[%s3 + $0x58] sm:$0xff]
    %v1215 = vld [vmem:[%s3 + $0x60] sm:$0xff]
    %v1216 = vld [vmem:[%s3 + $0x68] sm:$0xff]
    %v1217 = vld [vmem:[%s3 + $0x70] sm:$0xff]
    %v1218 = vld [vmem:[%s3 + $0x78] sm:$0xff]
    %v1219 = vld [vmem:[%s3 + $0x80] sm:$0xff]
    %v1220 = vld [vmem:[%s3 + $0x88] sm:$0xff]
    %v1221 = vld [vmem:[%s3 + $0x90] sm:$0xff]
    %v1222 = vld [vmem:[%s3 + $0x98] sm:$0xff]
    %v1223 = vld [vmem:[%s3 + $0xa0] sm:$0xff]
    %v1224 = vld [vmem:[%s3 + $0xa8] sm:$0xff]
    %v1225 = vld [vmem:[%s3 + $0xb0] sm:$0xff]
    %v1226 = vld [vmem:[%s3 + $0xb8] sm:$0xff]
    %v1227 = vld [vmem:[%s3 + $0xc0] sm:$0xff]
    %v1228 = vld [vmem:[%s3 + $0xc8] sm:$0xff]
    %v1229 = vld [vmem:[%s3 + $0xd0] sm:$0xff]
    %v1230 = vld [vmem:[%s3 + $0xd8] sm:$0xff]
    %v1231 = vld [vmem:[%s3 + $0xe0] sm:$0xff]
    %v1232 = vld [vmem:[%s3 + $0xe8] sm:$0xff]
    %v1233 = vld [vmem:[%s3 + $0xf0] sm:$0xff]
    %v1234 = vld [vmem:[%s3 + $0xf8] sm:$0xff]
    %v1235 = vld [vmem:[%s3 + $0x100] sm:$0xff]
    %v1236 = vld [vmem:[%s3 + $0x108] sm:$0xff]
    %v1237 = vld [vmem:[%s3 + $0x110] sm:$0xff]
    %v1238 = vld [vmem:[%s3 + $0x118] sm:$0xff]
    %v1239 = vld [vmem:[%s3 + $0x120] sm:$0xff]
    %v1240 = vld [vmem:[%s3 + $0x128] sm:$0xff]
    %v1241 = vld [vmem:[%s3 + $0x130] sm:$0xff]
    %v1242 = vld [vmem:[%s3 + $0x138] sm:$0xff]
    %v1243 = vld [vmem:[%s3 + $0x140] sm:$0xff]
    %v1244 = vld [vmem:[%s3 + $0x148] sm:$0xff]
    %v1245 = vld [vmem:[%s3 + $0x150] sm:$0xff]
    %v1246 = vld [vmem:[%s3 + $0x158] sm:$0xff]
    %v1247 = vld [vmem:[%s3 + $0x160] sm:$0xff]
    %v1248 = vld [vmem:[%s3 + $0x168] sm:$0xff]
    %v1249 = vld [vmem:[%s3 + $0x170] sm:$0xff]
    %v1250 = vld [vmem:[%s3 + $0x178] sm:$0xff]
    %v1251 = vld [vmem:[%s3 + $0x180] sm:$0xff]
    %v1252 = vld [vmem:[%s3 + $0x188] sm:$0xff]
    %v1253 = vld [vmem:[%s3 + $0x190] sm:$0xff]
    %v1254 = vld [vmem:[%s3 + $0x198] sm:$0xff]
    %v1255 = vld [vmem:[%s3 + $0x1a0] sm:$0xff]
    %v1256 = vld [vmem:[%s3 + $0x1a8] sm:$0xff]
    %v1257 = vld [vmem:[%s3 + $0x1b0] sm:$0xff]
    %v1258 = vld [vmem:[%s3 + $0x1b8] sm:$0xff]
    %v1259 = vld [vmem:[%s3 + $0x1c0] sm:$0xff]
    %v1260 = vld [vmem:[%s3 + $0x1c8] sm:$0xff]
    %v1261 = vld [vmem:[%s3 + $0x1d0] sm:$0xff]
    %v1262 = vld [vmem:[%s3 + $0x1d8] sm:$0xff]
    %v1263 = vld [vmem:[%s3 + $0x1e0] sm:$0xff]
    %v1264 = vld [vmem:[%s3 + $0x1e8] sm:$0xff]
    %v1265 = vld [vmem:[%s3 + $0x1f0] sm:$0xff]
    %v1266 = vld [vmem:[%s3 + $0x1f8] sm:$0xff]
    %v1267 = vld [vmem:[%s3 + $0x200] sm:$0xff]
    %v1268 = vld [vmem:[%s3 + $0x208] sm:$0xff]
    %v1269 = vld [vmem:[%s3 + $0x210] sm:$0xff]
    %v1270 = vld [vmem:[%s3 + $0x218] sm:$0xff]
    %v1271 = vld [vmem:[%s3 + $0x220] sm:$0xff]
    %v1272 = vld [vmem:[%s3 + $0x228] sm:$0xff]
    %v1273 = vld [vmem:[%s3 + $0x230] sm:$0xff]
    %v1274 = vld [vmem:[%s3 + $0x238] sm:$0xff]
    %v1275 = vld [vmem:[%s3 + $0x240] sm:$0xff]
    %v1276 = vld [vmem:[%s3 + $0x248] sm:$0xff]
    %v1277 = vld [vmem:[%s3 + $0x250] sm:$0xff]
    %v1278 = vld [vmem:[%s3 + $0x258] sm:$0xff]
    %v1279 = vld [vmem:[%s3 + $0x260] sm:$0xff]
    %v1280 = vld [vmem:[%s3 + $0x268] sm:$0xff]
    %v1281 = vld [vmem:[%s3 + $0x270] sm:$0xff]
    %v1282 = vld [vmem:[%s3 + $0x278] sm:$0xff]
    %v1283 = vld [vmem:[%s3 + $0x280] sm:$0xff]
    %v1284 = vld [vmem:[%s3 + $0x288] sm:$0xff]
    %v1285 = vld [vmem:[%s3 + $0x290] sm:$0xff]
    %v1286 = vld [vmem:[%s3 + $0x298] sm:$0xff]
    %v1287 = vld [vmem:[%s3 + $0x2a0] sm:$0xff]
    %v1288 = vld [vmem:[%s3 + $0x2a8] sm:$0xff]
    %v1289 = vld [vmem:[%s3 + $0x2b0] sm:$0xff]
    %v1290 = vld [vmem:[%s3 + $0x2b8] sm:$0xff]
    %v1291 = vld [vmem:[%s3 + $0x2c0] sm:$0xff]
    %v1292 = vld [vmem:[%s3 + $0x2c8] sm:$0xff]
    %v1293 = vld [vmem:[%s3 + $0x2d0] sm:$0xff]
    %v1294 = vld [vmem:[%s3 + $0x2d8] sm:$0xff]
    %v1295 = vld [vmem:[%s3 + $0x2e0] sm:$0xff]
    %v1296 = vld [vmem:[%s3 + $0x2e8] sm:$0xff]
    %v1297 = vld [vmem:[%s3 + $0x2f0] sm:$0xff]
    %v1298 = vld [vmem:[%s3 + $0x2f8] sm:$0xff]
    %v1299 = vld [vmem:[%s3 + $0x300] sm:$0xff]
    %v1300 = vld [vmem:[%s3 + $0x308] sm:$0xff]
    %v1301 = vld [vmem:[%s3 + $0x310] sm:$0xff]
    %v1302 = vld [vmem:[%s3 + $0x318] sm:$0xff]
    %v1303 = vld [vmem:[%s3 + $0x320] sm:$0xff]
    %v1304 = vld [vmem:[%s3 + $0x328] sm:$0xff]
    %v1305 = vld [vmem:[%s3 + $0x330] sm:$0xff]
    %v1306 = vld [vmem:[%s3 + $0x338] sm:$0xff]
    %v1307 = vld [vmem:[%s3 + $0x340] sm:$0xff]
    %v1308 = vld [vmem:[%s3 + $0x348] sm:$0xff]
    %v1309 = vld [vmem:[%s3 + $0x350] sm:$0xff]
    %v1310 = vld [vmem:[%s3 + $0x358] sm:$0xff]
    %v1311 = vld [vmem:[%s3 + $0x360] sm:$0xff]
    %v1312 = vld [vmem:[%s3 + $0x368] sm:$0xff]
    %v1313 = vld [vmem:[%s3 + $0x370] sm:$0xff]
    %v1314 = vld [vmem:[%s3 + $0x378] sm:$0xff]
    %v1315 = vld [vmem:[%s3 + $0x380] sm:$0xff]
    %v1316 = vld [vmem:[%s3 + $0x388] sm:$0xff]
    %v1317 = vld [vmem:[%s3 + $0x390] sm:$0xff]
    %v1318 = vld [vmem:[%s3 + $0x398] sm:$0xff]
    %v1319 = vld [vmem:[%s3 + $0x3a0] sm:$0xff]
    %v1320 = vld [vmem:[%s3 + $0x3a8] sm:$0xff]
    %v1321 = vld [vmem:[%s3 + $0x3b0] sm:$0xff]
    %v1322 = vld [vmem:[%s3 + $0x3b8] sm:$0xff]
    %v1323 = vld [vmem:[%s3 + $0x3c0] sm:$0xff]
    %v1324 = vld [vmem:[%s3 + $0x3c8] sm:$0xff]
    %v1325 = vld [vmem:[%s3 + $0x3d0] sm:$0xff]
    %v1326 = vld [vmem:[%s3 + $0x3d8] sm:$0xff]
    %v1327 = vld [vmem:[%s3 + $0x3e0] sm:$0xff]
    %v1328 = vld [vmem:[%s3 + $0x3e8] sm:$0xff]
    %v1329 = vld [vmem:[%s3 + $0x3f0] sm:$0xff]
    %v1330 = vld [vmem:[%s3 + $0x3f8] sm:$0xff]
    %v1331 = vld [vmem:[%s3 + $0x400] sm:$0xff]
    %v1332 = vld [vmem:[%s3 + $0x408] sm:$0xff]
    %v1333 = vld [vmem:[%s3 + $0x410] sm:$0xff]
    %v1334 = vld [vmem:[%s3 + $0x418] sm:$0xff]
    %v1335 = vld [vmem:[%s3 + $0x420] sm:$0xff]
    %v1336 = vld [vmem:[%s3 + $0x428] sm:$0xff]
    %v1337 = vld [vmem:[%s3 + $0x430] sm:$0xff]
    %v1338 = vld [vmem:[%s3 + $0x438] sm:$0xff]
    %v1339 = vld [vmem:[%s3 + $0x440] sm:$0xff]
    %v1340 = vld [vmem:[%s3 + $0x448] sm:$0xff]
    %v1341 = vld [vmem:[%s3 + $0x450] sm:$0xff]
    %v1342 = vld [vmem:[%s3 + $0x458] sm:$0xff]
    %v1343 = vld [vmem:[%s3 + $0x460] sm:$0xff]
    %v1344 = vld [vmem:[%s3 + $0x468] sm:$0xff]
    %v1345 = vld [vmem:[%s3 + $0x470] sm:$0xff]
    %v1346 = vld [vmem:[%s3 + $0x478] sm:$0xff]
    %v1347 = vld [vmem:[%s3 + $0x480] sm:$0xff]
    %v1348 = vld [vmem:[%s3 + $0x488] sm:$0xff]
    %v1349 = vld [vmem:[%s3 + $0x490] sm:$0xff]
    %v1350 = vld [vmem:[%s3 + $0x498] sm:$0xff]
    %v1351 = vld [vmem:[%s3 + $0x4a0] sm:$0xff]
    %v1352 = vld [vmem:[%s3 + $0x4a8] sm:$0xff]
    %v1353 = vld [vmem:[%s3 + $0x4b0] sm:$0xff]
    %v1354 = vld [vmem:[%s3 + $0x4b8] sm:$0xff]
    %v1355 = vld [vmem:[%s3 + $0x4c0] sm:$0xff]
    %v1356 = vld [vmem:[%s3 + $0x4c8] sm:$0xff]
    %v1357 = vld [vmem:[%s3 + $0x4d0] sm:$0xff]
    %v1358 = vld [vmem:[%s3 + $0x4d8] sm:$0xff]
    %v1359 = vld [vmem:[%s3 + $0x4e0] sm:$0xff]
    %v1360 = vld [vmem:[%s3 + $0x4e8] sm:$0xff]
    %v1361 = vld [vmem:[%s3 + $0x4f0] sm:$0xff]
    %v1362 = vld [vmem:[%s3 + $0x4f8] sm:$0xff]
    %v1363 = vld [vmem:[%s3 + $0x500] sm:$0xff]
    %v1364 = vld [vmem:[%s3 + $0x508] sm:$0xff]
    %v1365 = vld [vmem:[%s3 + $0x510] sm:$0xff]
    %v1366 = vld [vmem:[%s3 + $0x518] sm:$0xff]
    %v1367 = vld [vmem:[%s3 + $0x520] sm:$0xff]
    %v1368 = vld [vmem:[%s3 + $0x528] sm:$0xff]
    %v1369 = vld [vmem:[%s3 + $0x530] sm:$0xff]
    %v1370 = vld [vmem:[%s3 + $0x538] sm:$0xff]
    %v1371 = vld [vmem:[%s3 + $0x540] sm:$0xff]
    %v1372 = vld [vmem:[%s3 + $0x548] sm:$0xff]
    %v1373 = vld [vmem:[%s3 + $0x550] sm:$0xff]
    %v1374 = vld [vmem:[%s3 + $0x558] sm:$0xff]
    %v1375 = vld [vmem:[%s3 + $0x560] sm:$0xff]
    %v1376 = vld [vmem:[%s3 + $0x568] sm:$0xff]
    %v1377 = vld [vmem:[%s3 + $0x570] sm:$0xff]
    %v1378 = vld [vmem:[%s3 + $0x578] sm:$0xff]
    %v1379 = vld [vmem:[%s3 + $0x580] sm:$0xff]
    %v1380 = vld [vmem:[%s3 + $0x588] sm:$0xff]
    %v1381 = vld [vmem:[%s3 + $0x590] sm:$0xff]
    %v1382 = vld [vmem:[%s3 + $0x598] sm:$0xff]
    %v1383 = vld [vmem:[%s3 + $0x5a0] sm:$0xff]
    %v1384 = vld [vmem:[%s3 + $0x5a8] sm:$0xff]
    %v1385 = vld [vmem:[%s3 + $0x5b0] sm:$0xff]
    %v1386 = vld [vmem:[%s3 + $0x5b8] sm:$0xff]
    %v1387 = vld [vmem:[%s3 + $0x5c0] sm:$0xff]
    %v1388 = vld [vmem:[%s3 + $0x5c8] sm:$0xff]
    %v1389 = vld [vmem:[%s3 + $0x5d0] sm:$0xff]
    %v1390 = vld [vmem:[%s3 + $0x5d8] sm:$0xff]
    %v1391 = vld [vmem:[%s3 + $0x5e0] sm:$0xff]
    %v1392 = vld [vmem:[%s3 + $0x5e8] sm:$0xff]
    %v1393 = vld [vmem:[%s3 + $0x5f0] sm:$0xff]
    %v1394 = vld [vmem:[%s3 + $0x5f8] sm:$0xff]
    %v1395 = vld [vmem:[%s3 + $0x600] sm:$0xff]
    %v1396 = vld [vmem:[%s3 + $0x608] sm:$0xff]
    %v1397 = vld [vmem:[%s3 + $0x610] sm:$0xff]
    %v1398 = vld [vmem:[%s3 + $0x618] sm:$0xff]
    %v1399 = vld [vmem:[%s3 + $0x620] sm:$0xff]
    %v1400 = vld [vmem:[%s3 + $0x628] sm:$0xff]
    %v1401 = vld [vmem:[%s3 + $0x630] sm:$0xff]
    %v1402 = vld [vmem:[%s3 + $0x638] sm:$0xff]
    %v1403 = vld [vmem:[%s3 + $0x640] sm:$0xff]
    %v1404 = vld [vmem:[%s3 + $0x648] sm:$0xff]
    %v1405 = vld [vmem:[%s3 + $0x650] sm:$0xff]
    %v1406 = vld [vmem:[%s3 + $0x658] sm:$0xff]
    %v1407 = vld [vmem:[%s3 + $0x660] sm:$0xff]
    %v1408 = vld [vmem:[%s3 + $0x668] sm:$0xff]
    %v1409 = vld [vmem:[%s3 + $0x670] sm:$0xff]
    %v1410 = vld [vmem:[%s3 + $0x678] sm:$0xff]
    %v1411 = vld [vmem:[%s3 + $0x680] sm:$0xff]
    %v1412 = vld [vmem:[%s3 + $0x688] sm:$0xff]
    %v1413 = vld [vmem:[%s3 + $0x690] sm:$0xff]
    %v1414 = vld [vmem:[%s3 + $0x698] sm:$0xff]
    %v1415 = vld [vmem:[%s3 + $0x6a0] sm:$0xff]
    %v1416 = vld [vmem:[%s3 + $0x6a8] sm:$0xff]
    %v1417 = vld [vmem:[%s3 + $0x6b0] sm:$0xff]
    %v1418 = vld [vmem:[%s3 + $0x6b8] sm:$0xff]
    %v1419 = vld [vmem:[%s3 + $0x6c0] sm:$0xff]
    %v1420 = vld [vmem:[%s3 + $0x6c8] sm:$0xff]
    %v1421 = vld [vmem:[%s3 + $0x6d0] sm:$0xff]
    %v1422 = vld [vmem:[%s3 + $0x6d8] sm:$0xff]
    %v1423 = vld [vmem:[%s3 + $0x6e0] sm:$0xff]
    %v1424 = vld [vmem:[%s3 + $0x6e8] sm:$0xff]
    %v1425 = vld [vmem:[%s3 + $0x6f0] sm:$0xff]
    %v1426 = vld [vmem:[%s3 + $0x6f8] sm:$0xff]
    %v1427 = vld [vmem:[%s3 + $0x700] sm:$0xff]
    %v1428 = vld [vmem:[%s3 + $0x708] sm:$0xff]
    %v1429 = vld [vmem:[%s3 + $0x710] sm:$0xff]
    %v1430 = vld [vmem:[%s3 + $0x718] sm:$0xff]
    %v1431 = vld [vmem:[%s3 + $0x720] sm:$0xff]
    %v1432 = vld [vmem:[%s3 + $0x728] sm:$0xff]
    %v1433 = vld [vmem:[%s3 + $0x730] sm:$0xff]
    %v1434 = vld [vmem:[%s3 + $0x738] sm:$0xff]
    %v1435 = vld [vmem:[%s3 + $0x740] sm:$0xff]
    %v1436 = vld [vmem:[%s3 + $0x748] sm:$0xff]
    %v1437 = vld [vmem:[%s3 + $0x750] sm:$0xff]
    %v1438 = vld [vmem:[%s3 + $0x758] sm:$0xff]
    %v1439 = vld [vmem:[%s3 + $0x760] sm:$0xff]
    %v1440 = vld [vmem:[%s3 + $0x768] sm:$0xff]
    %v1441 = vld [vmem:[%s3 + $0x770] sm:$0xff]
    %v1442 = vld [vmem:[%s3 + $0x778] sm:$0xff]
    %v1443 = vld [vmem:[%s3 + $0x780] sm:$0xff]
    %v1444 = vld [vmem:[%s3 + $0x788] sm:$0xff]
    %v1445 = vld [vmem:[%s3 + $0x790] sm:$0xff]
    %v1446 = vld [vmem:[%s3 + $0x798] sm:$0xff]
    %v1447 = vld [vmem:[%s3 + $0x7a0] sm:$0xff]
    %v1448 = vld [vmem:[%s3 + $0x7a8] sm:$0xff]
    %v1449 = vld [vmem:[%s3 + $0x7b0] sm:$0xff]
    %v1450 = vld [vmem:[%s3 + $0x7b8] sm:$0xff]
    %v1451 = vld [vmem:[%s3 + $0x7c0] sm:$0xff]
    %v1452 = vld [vmem:[%s3 + $0x7c8] sm:$0xff]
    %v1453 = vld [vmem:[%s3 + $0x7d0] sm:$0xff]
    %v1454 = vld [vmem:[%s3 + $0x7d8] sm:$0xff]
    %v1455 = vld [vmem:[%s3 + $0x7e0] sm:$0xff]
    %v1456 = vld [vmem:[%s3 + $0x7e8] sm:$0xff]
    %v1457 = vld [vmem:[%s3 + $0x7f0] sm:$0xff]
    %v1458 = vld [vmem:[%s3 + $0x7f8] sm:$0xff]
    %v1459 = vld [vmem:[%s4] sm:$0xf]
    %v1461 = vlaneseq
    %v1462 = vshrl.u32 %v1461, 7
    %v1463 = vsub.s32 0, %v1462
    %v1464 = vrot.slane %v1459, %v1463
    %v1465 = vlaneseq
    %v1466 = vshrl.u32 %v1465, 7
    %v1467 = vsub.s32 1, %v1466
    %v1468 = vrot.slane %v1459, %v1467
    %v1469 = vlaneseq
    %v1470 = vshrl.u32 %v1469, 7
    %v1471 = vsub.s32 2, %v1470
    %v1472 = vrot.slane %v1459, %v1471
    %v1473 = vlaneseq
    %v1474 = vshrl.u32 %v1473, 7
    %v1475 = vsub.s32 3, %v1474
    %v1476 = vrot.slane %v1459, %v1475
    %1481 = vmatprep.subr.mxu0 %v1204
    %1482 = vmatpush1.msra.mxu0 %v1203
    %1483 = vmatprep.subr.mxu0 %v1208
    %1484 = vmatpush1.msra.mxu0 %v1207
    %1485 = vmatprep.subr.mxu0 %v1212
    %1486 = vmatpush1.msra.mxu0 %v1211
    %1487 = vmatprep.subr.mxu0 %v1216
    %1488 = vmatpush1.msra.mxu0 %v1215
    %1489 = vmatprep.subr.mxu0 %v1220
    %1490 = vmatpush1.msra.mxu0 %v1219
    %1491 = vmatprep.subr.mxu0 %v1224
    %1492 = vmatpush1.msra.mxu0 %v1223
    %1493 = vmatprep.subr.mxu0 %v1228
    %1494 = vmatpush1.msra.mxu0 %v1227
    %1495 = vmatprep.subr.mxu0 %v1232
    %1496 = vmatpush1.msra.mxu0 %v1231
    %1497 = vmatprep.subr.mxu0 %v1236
    %1498 = vmatpush1.msra.mxu0 %v1235
    %1499 = vmatprep.subr.mxu0 %v1240
    %1500 = vmatpush1.msra.mxu0 %v1239
    %1501 = vmatprep.subr.mxu0 %v1244
    %1502 = vmatpush1.msra.mxu0 %v1243
    %1503 = vmatprep.subr.mxu0 %v1248
    %1504 = vmatpush1.msra.mxu0 %v1247
    %1505 = vmatprep.subr.mxu0 %v1252
    %1506 = vmatpush1.msra.mxu0 %v1251
    %1507 = vmatprep.subr.mxu0 %v1256
    %1508 = vmatpush1.msra.mxu0 %v1255
    %1509 = vmatprep.subr.mxu0 %v1260
    %1510 = vmatpush1.msra.mxu0 %v1259
    %1511 = vmatprep.subr.mxu0 %v1264
    %1512 = vmatpush1.msra.mxu0 %v1263
    %1513 = vmatprep.subr.mxu0 %v1268
    %1514 = vmatpush1.msra.mxu0 %v1267
    %1515 = vmatprep.subr.mxu0 %v1272
    %1516 = vmatpush1.msra.mxu0 %v1271
    %1517 = vmatprep.subr.mxu0 %v1276
    %1518 = vmatpush1.msra.mxu0 %v1275
    %1519 = vmatprep.subr.mxu0 %v1280
    %1520 = vmatpush1.msra.mxu0 %v1279
    %1521 = vmatprep.subr.mxu0 %v1284
    %1522 = vmatpush1.msra.mxu0 %v1283
    %1523 = vmatprep.subr.mxu0 %v1288
    %1524 = vmatpush1.msra.mxu0 %v1287
    %1525 = vmatprep.subr.mxu0 %v1292
    %1526 = vmatpush1.msra.mxu0 %v1291
    %1527 = vmatprep.subr.mxu0 %v1296
    %1528 = vmatpush1.msra.mxu0 %v1295
    %1529 = vmatprep.subr.mxu0 %v1300
    %1530 = vmatpush1.msra.mxu0 %v1299
    %1531 = vmatprep.subr.mxu0 %v1304
    %1532 = vmatpush1.msra.mxu0 %v1303
    %1533 = vmatprep.subr.mxu0 %v1308
    %1534 = vmatpush1.msra.mxu0 %v1307
    %1535 = vmatprep.subr.mxu0 %v1312
    %1536 = vmatpush1.msra.mxu0 %v1311
    %1537 = vmatprep.subr.mxu0 %v1316
    %1538 = vmatpush1.msra.mxu0 %v1315
    %1539 = vmatprep.subr.mxu0 %v1320
    %1540 = vmatpush1.msra.mxu0 %v1319
    %1541 = vmatprep.subr.mxu0 %v1324
    %1542 = vmatpush1.msra.mxu0 %v1323
    %1543 = vmatprep.subr.mxu0 %v1328
    %1544 = vmatpush1.msra.mxu0 %v1327
    %1545 = vmatprep.mubr.f32.mxu0 %v1200
    %1546 = vmatmul.mubr.f32.gmra.mrb[0].mxu0 %v1199
    %v1547 = vpop.f32.mrb[0].mxu0
    %v1548 = vadd.f32 %v1464, %v1547
    %v1549 = vpop.f32.mrb[0].mxu0
    %v1550 = vadd.f32 %v1468, %v1549
    %1551 = vdwg.mxu0
    %1552 = vmatprep.subr.mxu0 %v1332
    %1553 = vmatpush1.msra.mxu0 %v1331
    %1554 = vmatprep.subr.mxu0 %v1336
    %1555 = vmatpush1.msra.mxu0 %v1335
    %1556 = vmatprep.subr.mxu0 %v1340
    %1557 = vmatpush1.msra.mxu0 %v1339
    %1558 = vmatprep.subr.mxu0 %v1344
    %1559 = vmatpush1.msra.mxu0 %v1343
    %1560 = vmatprep.subr.mxu0 %v1348
    %1561 = vmatpush1.msra.mxu0 %v1347
    %1562 = vmatprep.subr.mxu0 %v1352
    %1563 = vmatpush1.msra.mxu0 %v1351
    %1564 = vmatprep.subr.mxu0 %v1356
    %1565 = vmatpush1.msra.mxu0 %v1355
    %1566 = vmatprep.subr.mxu0 %v1360
    %1567 = vmatpush1.msra.mxu0 %v1359
    %1568 = vmatprep.subr.mxu0 %v1364
    %1569 = vmatpush1.msra.mxu0 %v1363
    %1570 = vmatprep.subr.mxu0 %v1368
    %1571 = vmatpush1.msra.mxu0 %v1367
    %1572 = vmatprep.subr.mxu0 %v1372
    %1573 = vmatpush1.msra.mxu0 %v1371
    %1574 = vmatprep.subr.mxu0 %v1376
    %1575 = vmatpush1.msra.mxu0 %v1375
    %1576 = vmatprep.subr.mxu0 %v1380
    %1577 = vmatpush1.msra.mxu0 %v1379
    %1578 = vmatprep.subr.mxu0 %v1384
    %1579 = vmatpush1.msra.mxu0 %v1383
    %1580 = vmatprep.subr.mxu0 %v1388
    %1581 = vmatpush1.msra.mxu0 %v1387
    %1582 = vmatprep.subr.mxu0 %v1392
    %1583 = vmatpush1.msra.mxu0 %v1391
    %1584 = vmatprep.subr.mxu0 %v1396
    %1585 = vmatpush1.msra.mxu0 %v1395
    %1586 = vmatprep.subr.mxu0 %v1400
    %1587 = vmatpush1.msra.mxu0 %v1399
    %1588 = vmatprep.subr.mxu0 %v1404
    %1589 = vmatpush1.msra.mxu0 %v1403
    %1590 = vmatprep.subr.mxu0 %v1408
    %1591 = vmatpush1.msra.mxu0 %v1407
    %1592 = vmatprep.subr.mxu0 %v1412
    %1593 = vmatpush1.msra.mxu0 %v1411
    %1594 = vmatprep.subr.mxu0 %v1416
    %1595 = vmatpush1.msra.mxu0 %v1415
    %1596 = vmatprep.subr.mxu0 %v1420
    %1597 = vmatpush1.msra.mxu0 %v1419
    %1598 = vmatprep.subr.mxu0 %v1424
    %1599 = vmatpush1.msra.mxu0 %v1423
    %1600 = vmatprep.subr.mxu0 %v1428
    %1601 = vmatpush1.msra.mxu0 %v1427
    %1602 = vmatprep.subr.mxu0 %v1432
    %1603 = vmatpush1.msra.mxu0 %v1431
    %1604 = vmatprep.subr.mxu0 %v1436
    %1605 = vmatpush1.msra.mxu0 %v1435
    %1606 = vmatprep.subr.mxu0 %v1440
    %1607 = vmatpush1.msra.mxu0 %v1439
    %1608 = vmatprep.subr.mxu0 %v1444
    %1609 = vmatpush1.msra.mxu0 %v1443
    %1610 = vmatprep.subr.mxu0 %v1448
    %1611 = vmatpush1.msra.mxu0 %v1447
    %1612 = vmatprep.subr.mxu0 %v1452
    %1613 = vmatpush1.msra.mxu0 %v1451
    %1614 = vmatprep.subr.mxu0 %v1456
    %1615 = vmatpush1.msra.mxu0 %v1455
    %1616 = vmatprep.mubr.f32.mxu0 %v1202
    %1617 = vmatmul.mubr.f32.gmra.mrb[0].mxu0 %v1201
    %v1618 = vpop.f32.mrb[0].mxu0
    %v1619 = vadd.f32 %v1548, %v1618
    %v1620 = vpop.f32.mrb[0].mxu0
    %v1621 = vadd.f32 %v1550, %v1620
    %1622 = vdwg.mxu0
    %1623 = vmatprep.subr.mxu0 %v1206
    %1624 = vmatpush1.msra.mxu0 %v1205
    %1625 = vmatprep.subr.mxu0 %v1210
    %1626 = vmatpush1.msra.mxu0 %v1209
    %1627 = vmatprep.subr.mxu0 %v1214
    %1628 = vmatpush1.msra.mxu0 %v1213
    %1629 = vmatprep.subr.mxu0 %v1218
    %1630 = vmatpush1.msra.mxu0 %v1217
    %1631 = vmatprep.subr.mxu0 %v1222
    %1632 = vmatpush1.msra.mxu0 %v1221
    %1633 = vmatprep.subr.mxu0 %v1226
    %1634 = vmatpush1.msra.mxu0 %v1225
    %1635 = vmatprep.subr.mxu0 %v1230
    %1636 = vmatpush1.msra.mxu0 %v1229
    %1637 = vmatprep.subr.mxu0 %v1234
    %1638 = vmatpush1.msra.mxu0 %v1233
    %1639 = vmatprep.subr.mxu0 %v1238
    %1640 = vmatpush1.msra.mxu0 %v1237
    %1641 = vmatprep.subr.mxu0 %v1242
    %1642 = vmatpush1.msra.mxu0 %v1241
    %1643 = vmatprep.subr.mxu0 %v1246
    %1644 = vmatpush1.msra.mxu0 %v1245
    %1645 = vmatprep.subr.mxu0 %v1250
    %1646 = vmatpush1.msra.mxu0 %v1249
    %1647 = vmatprep.subr.mxu0 %v1254
    %1648 = vmatpush1.msra.mxu0 %v1253
    %1649 = vmatprep.subr.mxu0 %v1258
    %1650 = vmatpush1.msra.mxu0 %v1257
    %1651 = vmatprep.subr.mxu0 %v1262
    %1652 = vmatpush1.msra.mxu0 %v1261
    %1653 = vmatprep.subr.mxu0 %v1266
    %1654 = vmatpush1.msra.mxu0 %v1265
    %1655 = vmatprep.subr.mxu0 %v1270
    %1656 = vmatpush1.msra.mxu0 %v1269
    %1657 = vmatprep.subr.mxu0 %v1274
    %1658 = vmatpush1.msra.mxu0 %v1273
    %1659 = vmatprep.subr.mxu0 %v1278
    %1660 = vmatpush1.msra.mxu0 %v1277
    %1661 = vmatprep.subr.mxu0 %v1282
    %1662 = vmatpush1.msra.mxu0 %v1281
    %1663 = vmatprep.subr.mxu0 %v1286
    %1664 = vmatpush1.msra.mxu0 %v1285
    %1665 = vmatprep.subr.mxu0 %v1290
    %1666 = vmatpush1.msra.mxu0 %v1289
    %1667 = vmatprep.subr.mxu0 %v1294
    %1668 = vmatpush1.msra.mxu0 %v1293
    %1669 = vmatprep.subr.mxu0 %v1298
    %1670 = vmatpush1.msra.mxu0 %v1297
    %1671 = vmatprep.subr.mxu0 %v1302
    %1672 = vmatpush1.msra.mxu0 %v1301
    %1673 = vmatprep.subr.mxu0 %v1306
    %1674 = vmatpush1.msra.mxu0 %v1305
    %1675 = vmatprep.subr.mxu0 %v1310
    %1676 = vmatpush1.msra.mxu0 %v1309
    %1677 = vmatprep.subr.mxu0 %v1314
    %1678 = vmatpush1.msra.mxu0 %v1313
    %1679 = vmatprep.subr.mxu0 %v1318
    %1680 = vmatpush1.msra.mxu0 %v1317
    %1681 = vmatprep.subr.mxu0 %v1322
    %1682 = vmatpush1.msra.mxu0 %v1321
    %1683 = vmatprep.subr.mxu0 %v1326
    %1684 = vmatpush1.msra.mxu0 %v1325
    %1685 = vmatprep.subr.mxu0 %v1330
    %1686 = vmatpush1.msra.mxu0 %v1329
    %1687 = vmatprep.mubr.f32.mxu0 %v1200
    %1688 = vmatmul.mubr.f32.gmra.mrb[0].mxu0 %v1199
    %v1689 = vpop.f32.mrb[0].mxu0
    %v1690 = vadd.f32 %v1472, %v1689
    %v1691 = vpop.f32.mrb[0].mxu0
    %v1692 = vadd.f32 %v1476, %v1691
    %1693 = vdwg.mxu0
    %1694 = vmatprep.subr.mxu0 %v1334
    %1695 = vmatpush1.msra.mxu0 %v1333
    %1696 = vmatprep.subr.mxu0 %v1338
    %1697 = vmatpush1.msra.mxu0 %v1337
    %1698 = vmatprep.subr.mxu0 %v1342
    %1699 = vmatpush1.msra.mxu0 %v1341
    %1700 = vmatprep.subr.mxu0 %v1346
    %1701 = vmatpush1.msra.mxu0 %v1345
    %1702 = vmatprep.subr.mxu0 %v1350
    %1703 = vmatpush1.msra.mxu0 %v1349
    %1704 = vmatprep.subr.mxu0 %v1354
    %1705 = vmatpush1.msra.mxu0 %v1353
    %1706 = vmatprep.subr.mxu0 %v1358
    %1707 = vmatpush1.msra.mxu0 %v1357
    %1708 = vmatprep.subr.mxu0 %v1362
    %1709 = vmatpush1.msra.mxu0 %v1361
    %1710 = vmatprep.subr.mxu0 %v1366
    %1711 = vmatpush1.msra.mxu0 %v1365
    %1712 = vmatprep.subr.mxu0 %v1370
    %1713 = vmatpush1.msra.mxu0 %v1369
    %1714 = vmatprep.subr.mxu0 %v1374
    %1715 = vmatpush1.msra.mxu0 %v1373
    %1716 = vmatprep.subr.mxu0 %v1378
    %1717 = vmatpush1.msra.mxu0 %v1377
    %1718 = vmatprep.subr.mxu0 %v1382
    %1719 = vmatpush1.msra.mxu0 %v1381
    %1720 = vmatprep.subr.mxu0 %v1386
    %1721 = vmatpush1.msra.mxu0 %v1385
    %1722 = vmatprep.subr.mxu0 %v1390
    %1723 = vmatpush1.msra.mxu0 %v1389
    %1724 = vmatprep.subr.mxu0 %v1394
    %1725 = vmatpush1.msra.mxu0 %v1393
    %1726 = vmatprep.subr.mxu0 %v1398
    %1727 = vmatpush1.msra.mxu0 %v1397
    %1728 = vmatprep.subr.mxu0 %v1402
    %1729 = vmatpush1.msra.mxu0 %v1401
    %1730 = vmatprep.subr.mxu0 %v1406
    %1731 = vmatpush1.msra.mxu0 %v1405
    %1732 = vmatprep.subr.mxu0 %v1410
    %1733 = vmatpush1.msra.mxu0 %v1409
    %1734 = vmatprep.subr.mxu0 %v1414
    %1735 = vmatpush1.msra.mxu0 %v1413
    %1736 = vmatprep.subr.mxu0 %v1418
    %1737 = vmatpush1.msra.mxu0 %v1417
    %1738 = vmatprep.subr.mxu0 %v1422
    %1739 = vmatpush1.msra.mxu0 %v1421
    %1740 = vmatprep.subr.mxu0 %v1426
    %1741 = vmatpush1.msra.mxu0 %v1425
    %1742 = vmatprep.subr.mxu0 %v1430
    %1743 = vmatpush1.msra.mxu0 %v1429
    %1744 = vmatprep.subr.mxu0 %v1434
    %1745 = vmatpush1.msra.mxu0 %v1433
    %1746 = vmatprep.subr.mxu0 %v1438
    %1747 = vmatpush1.msra.mxu0 %v1437
    %1748 = vmatprep.subr.mxu0 %v1442
    %1749 = vmatpush1.msra.mxu0 %v1441
    %1750 = vmatprep.subr.mxu0 %v1446
    %1751 = vmatpush1.msra.mxu0 %v1445
    %1752 = vmatprep.subr.mxu0 %v1450
    %1753 = vmatpush1.msra.mxu0 %v1449
    %1754 = vmatprep.subr.mxu0 %v1454
    %1755 = vmatpush1.msra.mxu0 %v1453
    %1756 = vmatprep.subr.mxu0 %v1458
    %1757 = vmatpush1.msra.mxu0 %v1457
    %1758 = vmatprep.mubr.f32.mxu0 %v1202
    %1759 = vmatmul.mubr.f32.gmra.mrb[0].mxu0 %v1201
    %v1760 = vpop.f32.mrb[0].mxu0
    %v1761 = vadd.f32 %v1690, %v1760
    %v1762 = vpop.f32.mrb[0].mxu0
    %v1763 = vadd.f32 %v1692, %v1762
    %1764 = vdwg.mxu0
    %v1765 = vmax.f32 %v1619, 0.0
    %v1766 = vmax.f32 %v1621, 0.0
    %v1767 = vmax.f32 %v1761, 0.0
    %v1768 = vmax.f32 %v1763, 0.0
    %v1769 = vld [vmem:[%s5] sm:$0xff]
    %v1770 = vld [vmem:[%s5 + $0x8] sm:$0xff]
    %v1771 = vld [vmem:[%s5 + $0x10] sm:$0xff]
    %v1772 = vld [vmem:[%s5 + $0x18] sm:$0xff]
    %v1773 = vld [vmem:[%s5 + $0x20] sm:$0xff]
    %v1774 = vld [vmem:[%s5 + $0x28] sm:$0xff]
    %v1775 = vld [vmem:[%s5 + $0x30] sm:$0xff]
    %v1776 = vld [vmem:[%s5 + $0x38] sm:$0xff]
    %v1777 = vld [vmem:[%s5 + $0x40] sm:$0xff]
    %v1778 = vld [vmem:[%s5 + $0x48] sm:$0xff]
    %v1779 = vld [vmem:[%s5 + $0x50] sm:$0xff]
    %v1780 = vld [vmem:[%s5 + $0x58] sm:$0xff]
    %v1781 = vld [vmem:[%s5 + $0x60] sm:$0xff]
    %v1782 = vld [vmem:[%s5 + $0x68] sm:$0xff]
    %v1783 = vld [vmem:[%s5 + $0x70] sm:$0xff]
    %v1784 = vld [vmem:[%s5 + $0x78] sm:$0xff]
    %v1785 = vld [vmem:[%s5 + $0x80] sm:$0xff]
    %v1786 = vld [vmem:[%s5 + $0x88] sm:$0xff]
    %v1787 = vld [vmem:[%s5 + $0x90] sm:$0xff]
    %v1788 = vld [vmem:[%s5 + $0x98] sm:$0xff]
    %v1789 = vld [vmem:[%s5 + $0xa0] sm:$0xff]
    %v1790 = vld [vmem:[%s5 + $0xa8] sm:$0xff]
    %v1791 = vld [vmem:[%s5 + $0xb0] sm:$0xff]
    %v1792 = vld [vmem:[%s5 + $0xb8] sm:$0xff]
    %v1793 = vld [vmem:[%s5 + $0xc0] sm:$0xff]
    %v1794 = vld [vmem:[%s5 + $0xc8] sm:$0xff]
    %v1795 = vld [vmem:[%s5 + $0xd0] sm:$0xff]
    %v1796 = vld [vmem:[%s5 + $0xd8] sm:$0xff]
    %v1797 = vld [vmem:[%s5 + $0xe0] sm:$0xff]
    %v1798 = vld [vmem:[%s5 + $0xe8] sm:$0xff]
    %v1799 = vld [vmem:[%s5 + $0xf0] sm:$0xff]
    %v1800 = vld [vmem:[%s5 + $0xf8] sm:$0xff]
    %v1801 = vld [vmem:[%s5 + $0x100] sm:$0xff]
    %v1802 = vld [vmem:[%s5 + $0x108] sm:$0xff]
    %v1803 = vld [vmem:[%s5 + $0x110] sm:$0xff]
    %v1804 = vld [vmem:[%s5 + $0x118] sm:$0xff]
    %v1805 = vld [vmem:[%s5 + $0x120] sm:$0xff]
    %v1806 = vld [vmem:[%s5 + $0x128] sm:$0xff]
    %v1807 = vld [vmem:[%s5 + $0x130] sm:$0xff]
    %v1808 = vld [vmem:[%s5 + $0x138] sm:$0xff]
    %v1809 = vld [vmem:[%s5 + $0x140] sm:$0xff]
    %v1810 = vld [vmem:[%s5 + $0x148] sm:$0xff]
    %v1811 = vld [vmem:[%s5 + $0x150] sm:$0xff]
    %v1812 = vld [vmem:[%s5 + $0x158] sm:$0xff]
    %v1813 = vld [vmem:[%s5 + $0x160] sm:$0xff]
    %v1814 = vld [vmem:[%s5 + $0x168] sm:$0xff]
    %v1815 = vld [vmem:[%s5 + $0x170] sm:$0xff]
    %v1816 = vld [vmem:[%s5 + $0x178] sm:$0xff]
    %v1817 = vld [vmem:[%s5 + $0x180] sm:$0xff]
    %v1818 = vld [vmem:[%s5 + $0x188] sm:$0xff]
    %v1819 = vld [vmem:[%s5 + $0x190] sm:$0xff]
    %v1820 = vld [vmem:[%s5 + $0x198] sm:$0xff]
    %v1821 = vld [vmem:[%s5 + $0x1a0] sm:$0xff]
    %v1822 = vld [vmem:[%s5 + $0x1a8] sm:$0xff]
    %v1823 = vld [vmem:[%s5 + $0x1b0] sm:$0xff]
    %v1824 = vld [vmem:[%s5 + $0x1b8] sm:$0xff]
    %v1825 = vld [vmem:[%s5 + $0x1c0] sm:$0xff]
    %v1826 = vld [vmem:[%s5 + $0x1c8] sm:$0xff]
    %v1827 = vld [vmem:[%s5 + $0x1d0] sm:$0xff]
    %v1828 = vld [vmem:[%s5 + $0x1d8] sm:$0xff]
    %v1829 = vld [vmem:[%s5 + $0x1e0] sm:$0xff]
    %v1830 = vld [vmem:[%s5 + $0x1e8] sm:$0xff]
    %v1831 = vld [vmem:[%s5 + $0x1f0] sm:$0xff]
    %v1832 = vld [vmem:[%s5 + $0x1f8] sm:$0xff]
    %v1833 = vld [vmem:[%s5 + $0x200] sm:$0xff]
    %v1834 = vld [vmem:[%s5 + $0x208] sm:$0xff]
    %v1835 = vld [vmem:[%s5 + $0x210] sm:$0xff]
    %v1836 = vld [vmem:[%s5 + $0x218] sm:$0xff]
    %v1837 = vld [vmem:[%s5 + $0x220] sm:$0xff]
    %v1838 = vld [vmem:[%s5 + $0x228] sm:$0xff]
    %v1839 = vld [vmem:[%s5 + $0x230] sm:$0xff]
    %v1840 = vld [vmem:[%s5 + $0x238] sm:$0xff]
    %v1841 = vld [vmem:[%s5 + $0x240] sm:$0xff]
    %v1842 = vld [vmem:[%s5 + $0x248] sm:$0xff]
    %v1843 = vld [vmem:[%s5 + $0x250] sm:$0xff]
    %v1844 = vld [vmem:[%s5 + $0x258] sm:$0xff]
    %v1845 = vld [vmem:[%s5 + $0x260] sm:$0xff]
    %v1846 = vld [vmem:[%s5 + $0x268] sm:$0xff]
    %v1847 = vld [vmem:[%s5 + $0x270] sm:$0xff]
    %v1848 = vld [vmem:[%s5 + $0x278] sm:$0xff]
    %v1849 = vld [vmem:[%s5 + $0x280] sm:$0xff]
    %v1850 = vld [vmem:[%s5 + $0x288] sm:$0xff]
    %v1851 = vld [vmem:[%s5 + $0x290] sm:$0xff]
    %v1852 = vld [vmem:[%s5 + $0x298] sm:$0xff]
    %v1853 = vld [vmem:[%s5 + $0x2a0] sm:$0xff]
    %v1854 = vld [vmem:[%s5 + $0x2a8] sm:$0xff]
    %v1855 = vld [vmem:[%s5 + $0x2b0] sm:$0xff]
    %v1856 = vld [vmem:[%s5 + $0x2b8] sm:$0xff]
    %v1857 = vld [vmem:[%s5 + $0x2c0] sm:$0xff]
    %v1858 = vld [vmem:[%s5 + $0x2c8] sm:$0xff]
    %v1859 = vld [vmem:[%s5 + $0x2d0] sm:$0xff]
    %v1860 = vld [vmem:[%s5 + $0x2d8] sm:$0xff]
    %v1861 = vld [vmem:[%s5 + $0x2e0] sm:$0xff]
    %v1862 = vld [vmem:[%s5 + $0x2e8] sm:$0xff]
    %v1863 = vld [vmem:[%s5 + $0x2f0] sm:$0xff]
    %v1864 = vld [vmem:[%s5 + $0x2f8] sm:$0xff]
    %v1865 = vld [vmem:[%s5 + $0x300] sm:$0xff]
    %v1866 = vld [vmem:[%s5 + $0x308] sm:$0xff]
    %v1867 = vld [vmem:[%s5 + $0x310] sm:$0xff]
    %v1868 = vld [vmem:[%s5 + $0x318] sm:$0xff]
    %v1869 = vld [vmem:[%s6] sm:$0x3]
    %v1871 = vlaneseq
    %v1872 = vshrl.u32 %v1871, 7
    %v1873 = vsub.s32 0, %v1872
    %v1874 = vrot.slane %v1869, %v1873
    %v1875 = vlaneseq
    %v1876 = vshrl.u32 %v1875, 7
    %v1877 = vsub.s32 1, %v1876
    %v1878 = vrot.slane %v1869, %v1877
    %vm1881 = vcmask 130048
    %v1883 = vsel %vm1881, %v1768, 0
    %1885 = vmatprep.subr.mxu0 %v1770
    %1886 = vmatpush1.msra.mxu0 %v1769
    %1887 = vmatprep.subr.mxu0 %v1772
    %1888 = vmatpush1.msra.mxu0 %v1771
    %1889 = vmatprep.subr.mxu0 %v1774
    %1890 = vmatpush1.msra.mxu0 %v1773
    %1891 = vmatprep.subr.mxu0 %v1776
    %1892 = vmatpush1.msra.mxu0 %v1775
    %1893 = vmatprep.subr.mxu0 %v1778
    %1894 = vmatpush1.msra.mxu0 %v1777
    %1895 = vmatprep.subr.mxu0 %v1780
    %1896 = vmatpush1.msra.mxu0 %v1779
    %1897 = vmatprep.subr.mxu0 %v1782
    %1898 = vmatpush1.msra.mxu0 %v1781
    %1899 = vmatprep.subr.mxu0 %v1784
    %1900 = vmatpush1.msra.mxu0 %v1783
    %1901 = vmatprep.subr.mxu0 %v1786
    %1902 = vmatpush1.msra.mxu0 %v1785
    %1903 = vmatprep.subr.mxu0 %v1788
    %1904 = vmatpush1.msra.mxu0 %v1787
    %1905 = vmatprep.subr.mxu0 %v1790
    %1906 = vmatpush1.msra.mxu0 %v1789
    %1907 = vmatprep.subr.mxu0 %v1792
    %1908 = vmatpush1.msra.mxu0 %v1791
    %1909 = vmatprep.subr.mxu0 %v1794
    %1910 = vmatpush1.msra.mxu0 %v1793
    %1911 = vmatprep.subr.mxu0 %v1796
    %1912 = vmatpush1.msra.mxu0 %v1795
    %1913 = vmatprep.subr.mxu0 %v1798
    %1914 = vmatpush1.msra.mxu0 %v1797
    %1915 = vmatprep.subr.mxu0 %v1800
    %1916 = vmatpush1.msra.mxu0 %v1799
    %1917 = vmatprep.subr.mxu0 %v1802
    %1918 = vmatpush1.msra.mxu0 %v1801
    %1919 = vmatprep.subr.mxu0 %v1804
    %1920 = vmatpush1.msra.mxu0 %v1803
    %1921 = vmatprep.subr.mxu0 %v1806
    %1922 = vmatpush1.msra.mxu0 %v1805
    %1923 = vmatprep.subr.mxu0 %v1808
    %1924 = vmatpush1.msra.mxu0 %v1807
    %1925 = vmatprep.subr.mxu0 %v1810
    %1926 = vmatpush1.msra.mxu0 %v1809
    %1927 = vmatprep.subr.mxu0 %v1812
    %1928 = vmatpush1.msra.mxu0 %v1811
    %1929 = vmatprep.subr.mxu0 %v1814
    %1930 = vmatpush1.msra.mxu0 %v1813
    %1931 = vmatprep.subr.mxu0 %v1816
    %1932 = vmatpush1.msra.mxu0 %v1815
    %1933 = vmatprep.subr.mxu0 %v1818
    %1934 = vmatpush1.msra.mxu0 %v1817
    %1935 = vmatprep.subr.mxu0 %v1820
    %1936 = vmatpush1.msra.mxu0 %v1819
    %1937 = vmatprep.subr.mxu0 %v1822
    %1938 = vmatpush1.msra.mxu0 %v1821
    %1939 = vmatprep.subr.mxu0 %v1824
    %1940 = vmatpush1.msra.mxu0 %v1823
    %1941 = vmatprep.subr.mxu0 %v1826
    %1942 = vmatpush1.msra.mxu0 %v1825
    %1943 = vmatprep.subr.mxu0 %v1828
    %1944 = vmatpush1.msra.mxu0 %v1827
    %1945 = vmatprep.subr.mxu0 %v1830
    %1946 = vmatpush1.msra.mxu0 %v1829
    %1947 = vmatprep.subr.mxu0 %v1832
    %1948 = vmatpush1.msra.mxu0 %v1831
    %1949 = vmatprep.mubr.f32.mxu0 %v1766
    %1950 = vmatmul.mubr.f32.gmra.mrb[0].mxu0 %v1765
    %v1951 = vpop.f32.mrb[0].mxu0
    %v1952 = vadd.f32 %v1874, %v1951
    %v1953 = vpop.f32.mrb[0].mxu0
    %v1954 = vadd.f32 %v1878, %v1953
    %1955 = vdwg.mxu0
    %1956 = vmatprep.subr.mxu0 %v1834
    %1957 = vmatpush1.msra.mxu0 %v1833
    %1958 = vmatprep.subr.mxu0 %v1836
    %1959 = vmatpush1.msra.mxu0 %v1835
    %1960 = vmatprep.subr.mxu0 %v1838
    %1961 = vmatpush1.msra.mxu0 %v1837
    %1962 = vmatprep.subr.mxu0 %v1840
    %1963 = vmatpush1.msra.mxu0 %v1839
    %1964 = vmatprep.subr.mxu0 %v1842
    %1965 = vmatpush1.msra.mxu0 %v1841
    %1966 = vmatprep.subr.mxu0 %v1844
    %1967 = vmatpush1.msra.mxu0 %v1843
    %1968 = vmatprep.subr.mxu0 %v1846
    %1969 = vmatpush1.msra.mxu0 %v1845
    %1970 = vmatprep.subr.mxu0 %v1848
    %1971 = vmatpush1.msra.mxu0 %v1847
    %1972 = vmatprep.subr.mxu0 %v1850
    %1973 = vmatpush1.msra.mxu0 %v1849
    %1974 = vmatprep.subr.mxu0 %v1852
    %1975 = vmatpush1.msra.mxu0 %v1851
    %1976 = vmatprep.subr.mxu0 %v1854
    %1977 = vmatpush1.msra.mxu0 %v1853
    %1978 = vmatprep.subr.mxu0 %v1856
    %1979 = vmatpush1.msra.mxu0 %v1855
    %1980 = vmatprep.subr.mxu0 %v1858
    %1981 = vmatpush1.msra.mxu0 %v1857
    %1982 = vmatprep.subr.mxu0 %v1860
    %1983 = vmatpush1.msra.mxu0 %v1859
    %1984 = vmatprep.subr.mxu0 %v1862
    %1985 = vmatpush1.msra.mxu0 %v1861
    %1986 = vmatprep.subr.mxu0 %v1864
    %1987 = vmatpush1.msra.mxu0 %v1863
    %1988 = vmatprep.subr.mxu0 %v1866
    %1989 = vmatpush1.msra.mxu0 %v1865
    %1990 = vmatprep.subr.mxu0 %v1868
    %1991 = vmatpush1.msra.mxu0 %v1867
    %1992 = vmatprep.subr.mxu0 0.0
    %1993 = vmatpush1.msra.mxu0 0.0
    %1994 = vmatprep.subr.mxu0 0.0
    %1995 = vmatpush1.msra.mxu0 0.0
    %1996 = vmatprep.subr.mxu0 0.0
    %1997 = vmatpush1.msra.mxu0 0.0
    %1998 = vmatprep.subr.mxu0 0.0
    %1999 = vmatpush1.msra.mxu0 0.0
    %2000 = vmatprep.subr.mxu0 0.0
    %2001 = vmatpush1.msra.mxu0 0.0
    %2002 = vmatprep.subr.mxu0 0.0
    %2003 = vmatpush1.msra.mxu0 0.0
    %2004 = vmatprep.subr.mxu0 0.0
    %2005 = vmatpush1.msra.mxu0 0.0
    %2006 = vmatprep.subr.mxu0 0.0
    %2007 = vmatpush1.msra.mxu0 0.0
    %2008 = vmatprep.subr.mxu0 0.0
    %2009 = vmatpush1.msra.mxu0 0.0
    %2010 = vmatprep.subr.mxu0 0.0
    %2011 = vmatpush1.msra.mxu0 0.0
    %2012 = vmatprep.subr.mxu0 0.0
    %2013 = vmatpush1.msra.mxu0 0.0
    %2014 = vmatprep.subr.mxu0 0.0
    %2015 = vmatpush1.msra.mxu0 0.0
    %2016 = vmatprep.subr.mxu0 0.0
    %2017 = vmatpush1.msra.mxu0 0.0
    %2018 = vmatprep.subr.mxu0 0.0
    %2019 = vmatpush1.msra.mxu0 0.0
    %2020 = vmatprep.mubr.f32.mxu0 %v1883
    %2021 = vmatmul.mubr.f32.gmra.mrb[0].mxu0 %v1767
    %v2022 = vpop.f32.mrb[0].mxu0
    %v2023 = vadd.f32 %v1952, %v2022
    %v2024 = vpop.f32.mrb[0].mxu0
    %v2025 = vadd.f32 %v1954, %v2024
    %2026 = vdwg.mxu0
    %v2027 = vmax.f32 %v2023, 0.0
    %v2028 = vmax.f32 %v2025, 0.0
    %v2029 = vld [vmem:[%s7] sm:$0xff]
    %v2030 = vld [vmem:[%s7 + $0x8] sm:$0xff]
    %v2031 = vld [vmem:[%s7 + $0x10] sm:$0xff]
    %v2032 = vld [vmem:[%s7 + $0x18] sm:$0xff]
    %v2033 = vld [vmem:[%s7 + $0x20] sm:$0xff]
    %v2034 = vld [vmem:[%s7 + $0x28] sm:$0xff]
    %v2035 = vld [vmem:[%s7 + $0x30] sm:$0xff]
    %v2036 = vld [vmem:[%s7 + $0x38] sm:$0xff]
    %v2037 = vld [vmem:[%s7 + $0x40] sm:$0xff]
    %v2038 = vld [vmem:[%s7 + $0x48] sm:$0xff]
    %v2039 = vld [vmem:[%s7 + $0x50] sm:$0xff]
    %v2040 = vld [vmem:[%s7 + $0x58] sm:$0xff]
    %v2041 = vld [vmem:[%s7 + $0x60] sm:$0xff]
    %v2042 = vld [vmem:[%s7 + $0x68] sm:$0xff]
    %v2043 = vld [vmem:[%s7 + $0x70] sm:$0xff]
    %v2044 = vld [vmem:[%s7 + $0x78] sm:$0xff]
    %v2045 = vld [vmem:[%s7 + $0x80] sm:$0xff]
    %v2046 = vld [vmem:[%s7 + $0x88] sm:$0xff]
    %v2047 = vld [vmem:[%s7 + $0x90] sm:$0xff]
    %v2048 = vld [vmem:[%s7 + $0x98] sm:$0xff]
    %v2049 = vld [vmem:[%s7 + $0xa0] sm:$0xff]
    %v2050 = vld [vmem:[%s7 + $0xa8] sm:$0xff]
    %v2051 = vld [vmem:[%s7 + $0xb0] sm:$0xff]
    %v2052 = vld [vmem:[%s7 + $0xb8] sm:$0xff]
    %v2053 = vld [vmem:[%s7 + $0xc0] sm:$0xff]
    %v2054 = vld [vmem:[%s7 + $0xc8] sm:$0xff]
    %v2055 = vld [vmem:[%s7 + $0xd0] sm:$0xff]
    %v2056 = vld [vmem:[%s7 + $0xd8] sm:$0xff]
    %v2057 = vld [vmem:[%s7 + $0xe0] sm:$0xff]
    %v2058 = vld [vmem:[%s7 + $0xe8] sm:$0xff]
    %v2059 = vld [vmem:[%s7 + $0xf0] sm:$0xff]
    %v2060 = vld [vmem:[%s7 + $0xf8] sm:$0xff]
    %v2061 = vld [vmem:[%s8] sm:$0x1]
    %v2063 = vlaneseq
    %v2064 = vshrl.u32 %v2063, 7
    %v2065 = vsub.s32 0, %v2064
    %v2066 = vrot.slane %v2061, %v2065
    %2068 = vmatprep.subr.mxu0 0.0
    %2069 = vmatpush1.msra.mxu0 %v2029
    %2070 = vmatprep.subr.mxu0 0.0
    %2071 = vmatpush1.msra.mxu0 %v2030
    %2072 = vmatprep.subr.mxu0 0.0
    %2073 = vmatpush1.msra.mxu0 %v2031
    %2074 = vmatprep.subr.mxu0 0.0
    %2075 = vmatpush1.msra.mxu0 %v2032
    %2076 = vmatprep.subr.mxu0 0.0
    %2077 = vmatpush1.msra.mxu0 %v2033
    %2078 = vmatprep.subr.mxu0 0.0
    %2079 = vmatpush1.msra.mxu0 %v2034
    %2080 = vmatprep.subr.mxu0 0.0
    %2081 = vmatpush1.msra.mxu0 %v2035
    %2082 = vmatprep.subr.mxu0 0.0
    %2083 = vmatpush1.msra.mxu0 %v2036
    %2084 = vmatprep.subr.mxu0 0.0
    %2085 = vmatpush1.msra.mxu0 %v2037
    %2086 = vmatprep.subr.mxu0 0.0
    %2087 = vmatpush1.msra.mxu0 %v2038
    %2088 = vmatprep.subr.mxu0 0.0
    %2089 = vmatpush1.msra.mxu0 %v2039
    %2090 = vmatprep.subr.mxu0 0.0
    %2091 = vmatpush1.msra.mxu0 %v2040
    %2092 = vmatprep.subr.mxu0 0.0
    %2093 = vmatpush1.msra.mxu0 %v2041
    %2094 = vmatprep.subr.mxu0 0.0
    %2095 = vmatpush1.msra.mxu0 %v2042
    %2096 = vmatprep.subr.mxu0 0.0
    %2097 = vmatpush1.msra.mxu0 %v2043
    %2098 = vmatprep.subr.mxu0 0.0
    %2099 = vmatpush1.msra.mxu0 %v2044
    %2100 = vmatprep.subr.mxu0 0.0
    %2101 = vmatpush1.msra.mxu0 %v2045
    %2102 = vmatprep.subr.mxu0 0.0
    %2103 = vmatpush1.msra.mxu0 %v2046
    %2104 = vmatprep.subr.mxu0 0.0
    %2105 = vmatpush1.msra.mxu0 %v2047
    %2106 = vmatprep.subr.mxu0 0.0
    %2107 = vmatpush1.msra.mxu0 %v2048
    %2108 = vmatprep.subr.mxu0 0.0
    %2109 = vmatpush1.msra.mxu0 %v2049
    %2110 = vmatprep.subr.mxu0 0.0
    %2111 = vmatpush1.msra.mxu0 %v2050
    %2112 = vmatprep.subr.mxu0 0.0
    %2113 = vmatpush1.msra.mxu0 %v2051
    %2114 = vmatprep.subr.mxu0 0.0
    %2115 = vmatpush1.msra.mxu0 %v2052
    %2116 = vmatprep.subr.mxu0 0.0
    %2117 = vmatpush1.msra.mxu0 %v2053
    %2118 = vmatprep.subr.mxu0 0.0
    %2119 = vmatpush1.msra.mxu0 %v2054
    %2120 = vmatprep.subr.mxu0 0.0
    %2121 = vmatpush1.msra.mxu0 %v2055
    %2122 = vmatprep.subr.mxu0 0.0
    %2123 = vmatpush1.msra.mxu0 %v2056
    %2124 = vmatprep.subr.mxu0 0.0
    %2125 = vmatpush1.msra.mxu0 %v2057
    %2126 = vmatprep.subr.mxu0 0.0
    %2127 = vmatpush1.msra.mxu0 %v2058
    %2128 = vmatprep.subr.mxu0 0.0
    %2129 = vmatpush1.msra.mxu0 %v2059
    %2130 = vmatprep.subr.mxu0 0.0
    %2131 = vmatpush1.msra.mxu0 %v2060
    %2132 = vmatprep.mubr.f32.mxu0 %v2028
    %2133 = vmatmul.mubr.f32.gmra.mrb[0].mxu0 %v2027
    %v2134 = vpop.f32.mrb[0].mxu0
    %v2135 = vadd.f32 %v2066, %v2134
    %v2136 = vpop.f32.mrb[0].mxu0
    %2137 = vdwg.mxu0
    %v2138 = vmax.f32 %v2135, 0.0
    %v2139 = vld [vmem:[%s9] sm:$0xff]
    %v2140 = vld [vmem:[%s9 + $0x8] sm:$0xff]
    %v2141 = vld [vmem:[%s9 + $0x10] sm:$0xff]
    %v2142 = vld [vmem:[%s9 + $0x18] sm:$0xff]
    %v2143 = vld [vmem:[%s9 + $0x20] sm:$0xff]
    %v2144 = vld [vmem:[%s9 + $0x28] sm:$0xff]
    %v2145 = vld [vmem:[%s9 + $0x30] sm:$0xff]
    %v2146 = vld [vmem:[%s9 + $0x38] sm:$0xff]
    %v2147 = vld [vmem:[%s9 + $0x40] sm:$0xff]
    %v2148 = vld [vmem:[%s9 + $0x48] sm:$0xff]
    %v2149 = vld [vmem:[%s9 + $0x50] sm:$0xff]
    %v2150 = vld [vmem:[%s9 + $0x58] sm:$0xff]
    %v2151 = vld [vmem:[%s9 + $0x60] sm:$0xff]
    %v2152 = vld [vmem:[%s9 + $0x68] sm:$0xff]
    %v2153 = vld [vmem:[%s9 + $0x70] sm:$0xff]
    %v2154 = vld [vmem:[%s9 + $0x78] sm:$0xff]
    %v2155 = vld [vmem:[%s10] sm:$0x1]
    %v2157 = vlaneseq
    %v2158 = vshrl.u32 %v2157, 7
    %v2159 = vsub.s32 0, %v2158
    %v2160 = vrot.slane %v2155, %v2159
    %2162 = vmatprep.subr.mxu0 0.0
    %2163 = vmatpush1.msra.mxu0 %v2139
    %2164 = vmatprep.subr.mxu0 0.0
    %2165 = vmatpush1.msra.mxu0 %v2140
    %2166 = vmatprep.subr.mxu0 0.0
    %2167 = vmatpush1.msra.mxu0 %v2141
    %2168 = vmatprep.subr.mxu0 0.0
    %2169 = vmatpush1.msra.mxu0 %v2142
    %2170 = vmatprep.subr.mxu0 0.0
    %2171 = vmatpush1.msra.mxu0 %v2143
    %2172 = vmatprep.subr.mxu0 0.0
    %2173 = vmatpush1.msra.mxu0 %v2144
    %2174 = vmatprep.subr.mxu0 0.0
    %2175 = vmatpush1.msra.mxu0 %v2145
    %2176 = vmatprep.subr.mxu0 0.0
    %2177 = vmatpush1.msra.mxu0 %v2146
    %2178 = vmatprep.subr.mxu0 0.0
    %2179 = vmatpush1.msra.mxu0 %v2147
    %2180 = vmatprep.subr.mxu0 0.0
    %2181 = vmatpush1.msra.mxu0 %v2148
    %2182 = vmatprep.subr.mxu0 0.0
    %2183 = vmatpush1.msra.mxu0 %v2149
    %2184 = vmatprep.subr.mxu0 0.0
    %2185 = vmatpush1.msra.mxu0 %v2150
    %2186 = vmatprep.subr.mxu0 0.0
    %2187 = vmatpush1.msra.mxu0 %v2151
    %2188 = vmatprep.subr.mxu0 0.0
    %2189 = vmatpush1.msra.mxu0 %v2152
    %2190 = vmatprep.subr.mxu0 0.0
    %2191 = vmatpush1.msra.mxu0 %v2153
    %2192 = vmatprep.subr.mxu0 0.0
    %2193 = vmatpush1.msra.mxu0 %v2154
    %2194 = vmatprep.subr.mxu0 0.0
    %2195 = vmatpush1.msra.mxu0 0.0
    %2196 = vmatprep.subr.mxu0 0.0
    %2197 = vmatpush1.msra.mxu0 0.0
    %2198 = vmatprep.subr.mxu0 0.0
    %2199 = vmatpush1.msra.mxu0 0.0
    %2200 = vmatprep.subr.mxu0 0.0
    %2201 = vmatpush1.msra.mxu0 0.0
    %2202 = vmatprep.subr.mxu0 0.0
    %2203 = vmatpush1.msra.mxu0 0.0
    %2204 = vmatprep.subr.mxu0 0.0
    %2205 = vmatpush1.msra.mxu0 0.0
    %2206 = vmatprep.subr.mxu0 0.0
    %2207 = vmatpush1.msra.mxu0 0.0
    %2208 = vmatprep.subr.mxu0 0.0
    %2209 = vmatpush1.msra.mxu0 0.0
    %2210 = vmatprep.subr.mxu0 0.0
    %2211 = vmatpush1.msra.mxu0 0.0
    %2212 = vmatprep.subr.mxu0 0.0
    %2213 = vmatpush1.msra.mxu0 0.0
    %2214 = vmatprep.subr.mxu0 0.0
    %2215 = vmatpush1.msra.mxu0 0.0
    %2216 = vmatprep.subr.mxu0 0.0
    %2217 = vmatpush1.msra.mxu0 0.0
    %2218 = vmatprep.subr.mxu0 0.0
    %2219 = vmatpush1.msra.mxu0 0.0
    %2220 = vmatprep.subr.mxu0 0.0
    %2221 = vmatpush1.msra.mxu0 0.0
    %2222 = vmatprep.subr.mxu0 0.0
    %2223 = vmatpush1.msra.mxu0 0.0
    %2224 = vmatprep.subr.mxu0 0.0
    %2225 = vmatpush1.msra.mxu0 0.0
    %2226 = vmatprep.mubr.f32.mxu0 0.0
    %2227 = vmatmul.mubr.f32.gmra.mrb[0].mxu0 %v2138
    %v2228 = vpop.f32.mrb[0].mxu0
    %v2229 = vadd.f32 %v2160, %v2228
    %v2230 = vpop.f32.mrb[0].mxu0
    %2231 = vdwg.mxu0
    %v2232 = vmax.f32 %v2229, 0.0
    %v2233 = vld [vmem:[%s11] sm:$0xff]
    %v2234 = vld [vmem:[%s11 + $0x8] sm:$0xff]
    %v2235 = vld [vmem:[%s11 + $0x10] sm:$0xff]
    %v2236 = vld [vmem:[%s11 + $0x18] sm:$0xff]
    %v2237 = vld [vmem:[%s11 + $0x20] sm:$0xff]
    %v2238 = vld [vmem:[%s11 + $0x28] sm:$0xff]
    %v2239 = vld [vmem:[%s11 + $0x30] sm:$0xff]
    %v2240 = vld [vmem:[%s11 + $0x38] sm:$0xff]
    %v2241 = vld [vmem:[%s12] sm:$0x1]
    %v2243 = vlaneseq
    %v2244 = vshrl.u32 %v2243, 7
    %v2245 = vsub.s32 0, %v2244
    %v2246 = vrot.slane %v2241, %v2245
    %vm2248 = vcmask 523264
    %v2250 = vsel %vm2248, %v2232, 0
    %2252 = vmatprep.subr.mxu0 0.0
    %2253 = vmatpush1.msra.mxu0 %v2233
    %2254 = vmatprep.subr.mxu0 0.0
    %2255 = vmatpush1.msra.mxu0 %v2234
    %2256 = vmatprep.subr.mxu0 0.0
    %2257 = vmatpush1.msra.mxu0 %v2235
    %2258 = vmatprep.subr.mxu0 0.0
    %2259 = vmatpush1.msra.mxu0 %v2236
    %2260 = vmatprep.subr.mxu0 0.0
    %2261 = vmatpush1.msra.mxu0 %v2237
    %2262 = vmatprep.subr.mxu0 0.0
    %2263 = vmatpush1.msra.mxu0 %v2238
    %2264 = vmatprep.subr.mxu0 0.0
    %2265 = vmatpush1.msra.mxu0 %v2239
    %2266 = vmatprep.subr.mxu0 0.0
    %2267 = vmatpush1.msra.mxu0 %v2240
    %2268 = vmatprep.subr.mxu0 0.0
    %2269 = vmatpush1.msra.mxu0 0.0
    %2270 = vmatprep.subr.mxu0 0.0
    %2271 = vmatpush1.msra.mxu0 0.0
    %2272 = vmatprep.subr.mxu0 0.0
    %2273 = vmatpush1.msra.mxu0 0.0
    %2274 = vmatprep.subr.mxu0 0.0
    %2275 = vmatpush1.msra.mxu0 0.0
    %2276 = vmatprep.subr.mxu0 0.0
    %2277 = vmatpush1.msra.mxu0 0.0
    %2278 = vmatprep.subr.mxu0 0.0
    %2279 = vmatpush1.msra.mxu0 0.0
    %2280 = vmatprep.subr.mxu0 0.0
    %2281 = vmatpush1.msra.mxu0 0.0
    %2282 = vmatprep.subr.mxu0 0.0
    %2283 = vmatpush1.msra.mxu0 0.0
    %2284 = vmatprep.subr.mxu0 0.0
    %2285 = vmatpush1.msra.mxu0 0.0
    %2286 = vmatprep.subr.mxu0 0.0
    %2287 = vmatpush1.msra.mxu0 0.0
    %2288 = vmatprep.subr.mxu0 0.0
    %2289 = vmatpush1.msra.mxu0 0.0
    %2290 = vmatprep.subr.mxu0 0.0
    %2291 = vmatpush1.msra.mxu0 0.0
    %2292 = vmatprep.subr.mxu0 0.0
    %2293 = vmatpush1.msra.mxu0 0.0
    %2294 = vmatprep.subr.mxu0 0.0
    %2295 = vmatpush1.msra.mxu0 0.0
    %2296 = vmatprep.subr.mxu0 0.0
    %2297 = vmatpush1.msra.mxu0 0.0
    %2298 = vmatprep.subr.mxu0 0.0
    %2299 = vmatpush1.msra.mxu0 0.0
    %2300 = vmatprep.subr.mxu0 0.0
    %2301 = vmatpush1.msra.mxu0 0.0
    %2302 = vmatprep.subr.mxu0 0.0
    %2303 = vmatpush1.msra.mxu0 0.0
    %2304 = vmatprep.subr.mxu0 0.0
    %2305 = vmatpush1.msra.mxu0 0.0
    %2306 = vmatprep.subr.mxu0 0.0
    %2307 = vmatpush1.msra.mxu0 0.0
    %2308 = vmatprep.subr.mxu0 0.0
    %2309 = vmatpush1.msra.mxu0 0.0
    %2310 = vmatprep.subr.mxu0 0.0
    %2311 = vmatpush1.msra.mxu0 0.0
    %2312 = vmatprep.subr.mxu0 0.0
    %2313 = vmatpush1.msra.mxu0 0.0
    %2314 = vmatprep.subr.mxu0 0.0
    %2315 = vmatpush1.msra.mxu0 0.0
    %2316 = vmatprep.mubr.f32.mxu0 0.0
    %2317 = vmatmul.mubr.f32.gmra.mrb[0].mxu0 %v2250
    %v2318 = vpop.f32.mrb[0].mxu0
    %v2319 = vadd.f32 %v2246, %v2318
    %v2320 = vpop.f32.mrb[0].mxu0
    %2321 = vdwg.mxu0
    %v2322 = vmax.f32 %v2319, 0.0
    %v2323 = vld [vmem:[%s13] sm:$0xff]
    %v2324 = vld [vmem:[%s13 + $0x8] sm:$0xff]
    %v2325 = vld [vmem:[%s13 + $0x10] sm:$0xff]
    %v2326 = vld [vmem:[%s13 + $0x18] sm:$0xff]
    %v2327 = vld [vmem:[%s14] sm:$0x1]
    %v2329 = vlaneseq
    %v2330 = vshrl.u32 %v2329, 7
    %v2331 = vsub.s32 0, %v2330
    %v2332 = vrot.slane %v2327, %v2331
    %vm2334 = vcmask 261120
    %v2336 = vsel %vm2334, %v2322, 0
    %2338 = vmatprep.subr.mxu0 0.0
    %2339 = vmatpush1.msra.mxu0 %v2323
    %2340 = vmatprep.subr.mxu0 0.0
    %2341 = vmatpush1.msra.mxu0 %v2324
    %2342 = vmatprep.subr.mxu0 0.0
    %2343 = vmatpush1.msra.mxu0 %v2325
    %2344 = vmatprep.subr.mxu0 0.0
    %2345 = vmatpush1.msra.mxu0 %v2326
    %2346 = vmatprep.subr.mxu0 0.0
    %2347 = vmatpush1.msra.mxu0 0.0
    %2348 = vmatprep.subr.mxu0 0.0
    %2349 = vmatpush1.msra.mxu0 0.0
    %2350 = vmatprep.subr.mxu0 0.0
    %2351 = vmatpush1.msra.mxu0 0.0
    %2352 = vmatprep.subr.mxu0 0.0
    %2353 = vmatpush1.msra.mxu0 0.0
    %2354 = vmatprep.subr.mxu0 0.0
    %2355 = vmatpush1.msra.mxu0 0.0
    %2356 = vmatprep.subr.mxu0 0.0
    %2357 = vmatpush1.msra.mxu0 0.0
    %2358 = vmatprep.subr.mxu0 0.0
    %2359 = vmatpush1.msra.mxu0 0.0
    %2360 = vmatprep.subr.mxu0 0.0
    %2361 = vmatpush1.msra.mxu0 0.0
    %2362 = vmatprep.subr.mxu0 0.0
    %2363 = vmatpush1.msra.mxu0 0.0
    %2364 = vmatprep.subr.mxu0 0.0
    %2365 = vmatpush1.msra.mxu0 0.0
    %2366 = vmatprep.subr.mxu0 0.0
    %2367 = vmatpush1.msra.mxu0 0.0
    %2368 = vmatprep.subr.mxu0 0.0
    %2369 = vmatpush1.msra.mxu0 0.0
    %2370 = vmatprep.subr.mxu0 0.0
    %2371 = vmatpush1.msra.mxu0 0.0
    %2372 = vmatprep.subr.mxu0 0.0
    %2373 = vmatpush1.msra.mxu0 0.0
    %2374 = vmatprep.subr.mxu0 0.0
    %2375 = vmatpush1.msra.mxu0 0.0
    %2376 = vmatprep.subr.mxu0 0.0
    %2377 = vmatpush1.msra.mxu0 0.0
    %2378 = vmatprep.subr.mxu0 0.0
    %2379 = vmatpush1.msra.mxu0 0.0
    %2380 = vmatprep.subr.mxu0 0.0
    %2381 = vmatpush1.msra.mxu0 0.0
    %2382 = vmatprep.subr.mxu0 0.0
    %2383 = vmatpush1.msra.mxu0 0.0
    %2384 = vmatprep.subr.mxu0 0.0
    %2385 = vmatpush1.msra.mxu0 0.0
    %2386 = vmatprep.subr.mxu0 0.0
    %2387 = vmatpush1.msra.mxu0 0.0
    %2388 = vmatprep.subr.mxu0 0.0
    %2389 = vmatpush1.msra.mxu0 0.0
    %2390 = vmatprep.subr.mxu0 0.0
    %2391 = vmatpush1.msra.mxu0 0.0
    %2392 = vmatprep.subr.mxu0 0.0
    %2393 = vmatpush1.msra.mxu0 0.0
    %2394 = vmatprep.subr.mxu0 0.0
    %2395 = vmatpush1.msra.mxu0 0.0
    %2396 = vmatprep.subr.mxu0 0.0
    %2397 = vmatpush1.msra.mxu0 0.0
    %2398 = vmatprep.subr.mxu0 0.0
    %2399 = vmatpush1.msra.mxu0 0.0
    %2400 = vmatprep.subr.mxu0 0.0
    %2401 = vmatpush1.msra.mxu0 0.0
    %2402 = vmatprep.mubr.f32.mxu0 0.0
    %2403 = vmatmul.mubr.f32.gmra.mrb[0].mxu0 %v2336
    %v2404 = vpop.f32.mrb[0].mxu0
    %v2405 = vadd.f32 %v2332, %v2404
    %v2406 = vpop.f32.mrb[0].mxu0
    %2407 = vdwg.mxu0
    %vm2408 = vcmask 74752
    %2409 = vst.msk [vmem:[#allocation2] sm:$0x3] %vm2408, %v2405
    // Predicated region
    $region62: #{net_forward.7} parent=1 // pred_check
      _
    $region63: #{net_forward.7} parent=1 // pred_check_branch
      %2411 = sbr.rel (0) target = $region65
    $region64: #{net_forward.7} parent=1 // pred_region
      %s2413 = ssub.s32 32, 32
      %2414 = vsyncadd [#allocation3], %s2413
      %s2416 = sshll.u32 [#allocation2], 4
      %s2417 = int_to_ptr.vmem [resolvable:$true] %s2416
      %2419 = dma.vmem_to_hbm [thread:$0]  %s2417, 32, %s15, [#allocation3]
    $region65: #{net_forward.7} parent=1 // pred_fallthru
      _
    // Predicated region
    $region66: #{net_forward.7} parent=1 // pred_check
      _
    $region67: #{net_forward.7} parent=1 // pred_check_branch
      %2421 = sbr.rel (0) target = $region69
    $region68: #{net_forward.7} parent=1 // pred_region
      %2422 = dma.done [#allocation3], 32
    $region69: #{net_forward.7} parent=1 // pred_fallthru
      _
    %2423 = vsyncpa [#allocation3], 1

</llo_original>
